<compile_context>
chip_gen: v7x
topology: tpu7x:2x2x1
jax: 0.10.0
libtpu: 0.0.40
codegen_flags: <defaults>
</compile_context>

<pallas_src>
import functools

import jax
import jax.numpy as jnp
from jax.experimental import pallas as pl
from jax.experimental.pallas import tpu as pltpu


def _round_up(x: int, m: int) -> int:
    return (x + m - 1) // m * m


# ---------------------------------------------------------------------------
# Pallas kernel: K-tiled fused  y = relu?(x @ W + b)
#   grid = (N_pad//tn, K_pad//tk); f32 VMEM accumulator across K steps.
# ---------------------------------------------------------------------------
def _linear_kernel(x_ref, w_ref, b_ref, o_ref, acc_ref, *,
                   apply_relu: bool, tk: int, x_resident: bool):
    # x_ref:   (M_pad, K_pad) bf16 if x_resident else (M_pad, tk) bf16
    # w_ref:   (1, 1, tk, tn) bf16 (pre-blocked weight tile -> contiguous DMA)
    # b_ref:   (1, tn)        f32
    # o_ref:   (M_pad, tn)    out_dtype (bf16 for hidden layers, f32 for last)
    # acc_ref: (M_pad, tn)    f32 VMEM scratch, persistent across K steps
    k = pl.program_id(1)

    @pl.when(k == 0)
    def _():
        acc_ref[...] = jnp.zeros_like(acc_ref)

    if x_resident:
        # Whole (padded) x lives in VMEM; slice the current K chunk.
        start = pl.multiple_of(k * tk, 256)
        x_tile = x_ref[:, pl.ds(start, tk)]
    else:
        x_tile = x_ref[...]

    acc_ref[...] += jnp.dot(
        x_tile, w_ref[0, 0], preferred_element_type=jnp.float32
    )

    @pl.when(k == pl.num_programs(1) - 1)
    def _():
        y = acc_ref[...] + b_ref[...]
        if apply_relu:
            y = jnp.maximum(y, 0.0)
        o_ref[...] = y.astype(o_ref.dtype)


# Keep the whole activation matrix resident in VMEM when it is small
# (batch <= ~64 even at the full K = 52992 stays under this).
_X_RESIDENT_LIMIT_BYTES = 8 << 20


def pallas_linear(x, w_blocked, b_padded, *, n_out: int, apply_relu: bool,
                  out_dtype=jnp.float32):
    """y = relu?(x @ W + b) with pre-blocked bf16 weights.

    w_blocked: (N_pad//tn, K_pad//tk, tk, tn) bf16
    b_padded:  (1, N_pad) f32
    Returns an (M_pad, n_out) array where M_pad = round_up(M, 16); the caller
    slices the batch rows back (padded rows carry garbage-but-harmless values).
    """
    M, K = x.shape
    nb, kb, tk, tn = w_blocked.shape
    K_pad, N_pad = kb * tk, nb * tn
    assert K <= K_pad and n_out <= N_pad

    # Cast before pad; stream activations in bf16.  Pad batch to a clean
    # sublane multiple and zero-pad the reduction dim.
    if x.dtype != jnp.bfloat16:
        x = x.astype(jnp.bfloat16)
    M_pad = max(16, _round_up(M, 16))
    if (M_pad, K_pad) != (M, K):
        x = jnp.pad(x, ((0, M_pad - M), (0, K_pad - K)))

    x_resident = M_pad * K_pad * 2 <= _X_RESIDENT_LIMIT_BYTES
    if x_resident:
        x_spec = pl.BlockSpec((M_pad, K_pad), lambda j, k: (0, 0))
    else:
        x_spec = pl.BlockSpec((M_pad, tk), lambda j, k: (0, k))

    out_itemsize = jnp.dtype(out_dtype).itemsize
    cost = pl.CostEstimate(
        flops=2 * M_pad * K_pad * N_pad,
        transcendentals=0,
        bytes_accessed=(
            w_blocked.size * 2                                    # bf16 weights (dominant)
            + M_pad * K_pad * 2 * (1 if x_resident else nb)       # activations
            + N_pad * 4                                           # bias
            + M_pad * N_pad * out_itemsize                        # output
        ),
    )

    out = pl.pallas_call(
        functools.partial(_linear_kernel, apply_relu=apply_relu, tk=tk,
                          x_resident=x_resident),
        out_shape=jax.ShapeDtypeStruct((M_pad, N_pad), out_dtype),
        grid_spec=pltpu.PrefetchScalarGridSpec(
            num_scalar_prefetch=0,
            grid=(nb, kb),  # N outer ("parallel"), K inner ("arbitrary")
            in_specs=[
                x_spec,                                                   # x
                pl.BlockSpec((1, 1, tk, tn), lambda j, k: (j, k, 0, 0)),  # W tile
                pl.BlockSpec((1, tn), lambda j, k: (0, j)),               # bias
            ],
            out_specs=pl.BlockSpec((M_pad, tn), lambda j, k: (0, j)),
            scratch_shapes=[pltpu.VMEM((M_pad, tn), jnp.float32)],
        ),
        compiler_params=pltpu.CompilerParams(
            dimension_semantics=("parallel", "arbitrary"),
            # VMEM budget at the largest config (fc1, tk=4096/tn=1024):
            # 16 MiB double-buffered W + ~2 MiB resident x + <0.5 MiB
            # out/acc/bias ~= 19 MiB.  32 MiB raises v5e's 16 MiB scoped
            # default, matches v6e/v7x defaults, and stays well under v7x's
            # 64 MiB physical VMEM.
            vmem_limit_bytes=32 * 1024 * 1024,
        ),
        cost_estimate=cost,
    )(x, w_blocked, b_padded)

    return out[:, :n_out] if n_out != N_pad else out


# ---------------------------------------------------------------------------
# Parameter init (matches nn.Linear default) + one-time inference layout prep.
# ---------------------------------------------------------------------------
def init_params(key, max_vertices, max_points, hidden1=4096, hidden2=1024):
    """Weights stored (in_features, out_features), f32."""
    dims = [max_vertices * 3, hidden1, hidden2, max_points * 2]
    params = []
    for i in range(3):
        key, kw, kb = jax.random.split(key, 3)
        fan_in, fan_out = dims[i], dims[i + 1]
        bound = 1.0 / jnp.sqrt(jnp.float32(fan_in))
        w = jax.random.uniform(kw, (fan_in, fan_out), jnp.float32, -bound, bound)
        b = jax.random.uniform(kb, (fan_out,), jnp.float32, -bound, bound)
        params.append((w, b))
    return params


def _choose_tiles(K, N, tk=4096, tn=1024):
    """Per-layer tile choice: big tiles to amortize per-step overhead, tn a
    power-of-two multiple of 128, and nb = N_pad//tn >= 2 so the parallel N
    axis can shard the weight stream across both v7x TensorCores."""
    tk = min(tk, _round_up(K, 256))
    tn = min(tn, max(128, pl.next_power_of_2(N)))
    N_pad = _round_up(N, tn)
    while N_pad // tn < 2 and tn > 128:
        tn //= 2
        N_pad = _round_up(N, tn)
    K_pad = _round_up(K, tk)
    return tk, tn, K_pad, N_pad


def prepare_params(params, *, tk=4096, tn=1024, weight_dtype=jnp.bfloat16):
    """Pad to tile multiples, cast weights to bf16, pre-block for contiguous DMA."""
    # TODO(synk): optional fp8 (v7x) / int8 (v5e, v6e) weight quantization with
    # per-output-channel scales applied in the kernel finalize.
    prepped = []
    for w, b in params:
        K, N = w.shape
        tk_i, tn_i, K_pad, N_pad = _choose_tiles(K, N, tk, tn)
        w_p = jnp.pad(w.astype(weight_dtype), ((0, K_pad - K), (0, N_pad - N)))
        # (K_pad, N_pad) -> (N_pad//tn, K_pad//tk, tk, tn)
        w_b = w_p.reshape(K_pad // tk_i, tk_i, N_pad // tn_i, tn_i).transpose(2, 0, 1, 3)
        b_p = jnp.pad(b.astype(jnp.float32), (0, N_pad - N)).reshape(1, N_pad)
        prepped.append((w_b, b_p))
    return prepped


# ---------------------------------------------------------------------------
# Forward pass (same semantics as MeshToImageNN.forward).
# ---------------------------------------------------------------------------
def mesh_to_image_forward(prepped, x, *, max_vertices, max_points,
                          hidden1=4096, hidden2=1024):
    B = x.shape[0]
    h = x.reshape(B, max_vertices * 3)                               # x.view(-1, V*3)
    (w1, b1), (w2, b2), (w3, b3) = prepped
    # Hidden activations stay bf16 between layers (no wrapper-side casts, half
    # the intermediate HBM traffic); padded batch rows are carried through and
    # sliced once at the end.
    h = pallas_linear(h, w1, b1, n_out=hidden1, apply_relu=True,
                      out_dtype=jnp.bfloat16)                        # relu(fc1)
    h = pallas_linear(h, w2, b2, n_out=hidden2, apply_relu=True,
                      out_dtype=jnp.bfloat16)                        # relu(fc2)
    h = pallas_linear(h, w3, b3, n_out=max_points * 2, apply_relu=False,
                      out_dtype=jnp.float32)                         # fc3
    return h[:B].reshape(B, max_points, 2)                           # view(-1, P, 2)


if __name__ == "__main__":
    # Small shapes consistent with the module (production: max_vertices=17664,
    # max_points=20000 — the K-tiling / N-padding above handles those too).
    # max_points=100 exercises the N-padding + nb>=2 path (200 -> 2x128);
    # max_vertices=64 exercises the K-padding path (192 -> 256).
    batch = 2
    max_vertices = 64
    max_points = 100

    key = jax.random.PRNGKey(0)
    key, kx = jax.random.split(key)
    x = jax.random.normal(kx, (batch, max_vertices, 3), dtype=jnp.float32)

    params = init_params(key, max_vertices, max_points)
    prepped = prepare_params(params)

    fwd = jax.jit(functools.partial(
        mesh_to_image_forward, max_vertices=max_vertices, max_points=max_points))
    out = fwd(prepped, x)
    jax.block_until_ready(out)

    assert out.shape == (batch, max_points, 2), out.shape
    assert out.dtype == jnp.float32

    # Pure-JAX reference using the same bf16-quantized weights / activations
    # (f32 accumulate, bf16 hidden activations), so it validates the kernel
    # path exactly.
    def ref_forward(params, x):
        h = x.reshape(x.shape[0], -1)
        for i, (w, b) in enumerate(params):
            hq = h.astype(jnp.bfloat16).astype(jnp.float32)
            wq = w.astype(jnp.bfloat16).astype(jnp.float32)
            h = jnp.dot(hq, wq, precision=jax.lax.Precision.HIGHEST) + b
            if i < 2:
                h = jnp.maximum(h, 0.0)
                h = h.astype(jnp.bfloat16).astype(jnp.float32)
        return h.reshape(x.shape[0], max_points, 2)

    ref = ref_forward(params, x)
    assert jnp.allclose(out, ref, atol=2e-3, rtol=2e-3), float(
        jnp.max(jnp.abs(out - ref)))

    print("KERNEL_OK")
</pallas_src>

<mosaic_0001>
module attributes {stable_mosaic.version = 11 : i64} {
  func.func @_linear_kernel(%arg0: i32, %arg1: i32, %arg2: memref<16x4096xbf16, #tpu.memory_space<vmem>>, %arg3: memref<1x1x4096x512xbf16, #tpu.memory_space<vmem>>, %arg4: memref<1x512xf32, #tpu.memory_space<vmem>>, %arg5: memref<16x512xbf16, #tpu.memory_space<vmem>>, %arg6: memref<16x512xf32, #tpu.memory_space<vmem>>) attributes {dimension_semantics = [#tpu.dimension_semantics<parallel>, #tpu.dimension_semantics<arbitrary>], iteration_bounds = array<i64: 2, 1>, scalar_prefetch = 0 : i64, scratch_operands = 1 : i64, tpu.core_type = #tpu.core_type<tc>, window_params = [{pipeline_mode = #tpu.pipeline_mode<synchronous>, transform_indices = @transform_0, window_bounds = array<i64: 16, 4096>}, {transform_indices = @transform_1, window_bounds = array<i64: 1, 1, 4096, 512>}, {transform_indices = @transform_2, window_bounds = array<i64: 1, 512>}, {transform_indices = @transform_3, window_bounds = array<i64: 16, 512>}]} {
    %c0_i32 = arith.constant 0 : i32
    %0 = arith.cmpi eq, %arg1, %c0_i32 : i32
    %1 = arith.extui %0 : i1 to i32
    %c0_i32_0 = arith.constant 0 : i32
    %2 = arith.cmpi ne, %1, %c0_i32_0 : i32
    scf.if %2 {
      %cst_11 = arith.constant 0.000000e+00 : f32
      %16 = vector.broadcast %cst_11 : f32 to vector<16x512xf32>
      %c0_12 = arith.constant 0 : index
      %c0_13 = arith.constant 0 : index
      %17 = vector.load %arg6[%c0_12, %c0_13] : memref<16x512xf32, #tpu.memory_space<vmem>>, vector<16x512xf32>
      tpu.vector_store %arg6[%c0_12, %c0_13], %16 {strides = array<i32>} : memref<16x512xf32, #tpu.memory_space<vmem>>, vector<16x512xf32>,
    } else {
    }
    %c4096_i32 = arith.constant 4096 : i32
    %3 = arith.muli %arg1, %c4096_i32 : i32
    %4 = tpu.assume_multiple %3, 256 : i32
    %c0 = arith.constant 0 : index
    %5 = arith.index_cast %4 : i32 to index
    %6 = vector.load %arg2[%c0, %5] : memref<16x4096xbf16, #tpu.memory_space<vmem>>, vector<16x4096xbf16>
    %c0_1 = arith.constant 0 : index
    %c0_2 = arith.constant 0 : index
    %7 = vector.load %arg6[%c0_1, %c0_2] : memref<16x512xf32, #tpu.memory_space<vmem>>, vector<16x512xf32>
    %c0_3 = arith.constant 0 : index
    %c0_4 = arith.constant 0 : index
    %c0_5 = arith.constant 0 : index
    %c0_6 = arith.constant 0 : index
    %8 = vector.load %arg3[%c0_3, %c0_4, %c0_5, %c0_6] : memref<1x1x4096x512xbf16, #tpu.memory_space<vmem>>, vector<1x1x4096x512xbf16>
    %9 = vector.shape_cast %8 : vector<1x1x4096x512xbf16> to vector<4096x512xbf16>
    %cst = arith.constant dense<0.000000e+00> : vector<16x512xf32>
    %10 = tpu.matmul %6, %9, %cst {dimension_numbers = #tpu.dot_dimension_numbers<[1], [0], [0], [1], [0, 0, 1, 1], [], []>} : vector<16x4096xbf16>, vector<4096x512xbf16>, vector<16x512xf32> -> vector<16x512xf32>
    %11 = arith.addf %7, %10 : vector<16x512xf32>
    %c0_7 = arith.constant 0 : index
    %c0_8 = arith.constant 0 : index
    %12 = vector.load %arg6[%c0_7, %c0_8] : memref<16x512xf32, #tpu.memory_space<vmem>>, vector<16x512xf32>
    tpu.vector_store %arg6[%c0_7, %c0_8], %11 {strides = array<i32>} : memref<16x512xf32, #tpu.memory_space<vmem>>, vector<16x512xf32>,
    %c0_i32_9 = arith.constant 0 : i32
    %13 = arith.cmpi eq, %arg1, %c0_i32_9 : i32
    %14 = arith.extui %13 : i1 to i32
    %c0_i32_10 = arith.constant 0 : i32
    %15 = arith.cmpi ne, %14, %c0_i32_10 : i32
    scf.if %15 {
      %c0_11 = arith.constant 0 : index
      %c0_12 = arith.constant 0 : index
      %16 = vector.load %arg6[%c0_11, %c0_12] : memref<16x512xf32, #tpu.memory_space<vmem>>, vector<16x512xf32>
      %c0_13 = arith.constant 0 : index
      %c0_14 = arith.constant 0 : index
      %17 = vector.load %arg4[%c0_13, %c0_14] : memref<1x512xf32, #tpu.memory_space<vmem>>, vector<1x512xf32>
      %18 = vector.broadcast %17 : vector<1x512xf32> to vector<16x512xf32>
      %19 = arith.addf %16, %18 : vector<16x512xf32>
      %cst_15 = arith.constant 0.000000e+00 : f32
      %20 = vector.broadcast %cst_15 : f32 to vector<16x512xf32>
      %21 = arith.maximumf %19, %20 : vector<16x512xf32>
      %22 = arith.truncf %21 : vector<16x512xf32> to vector<16x512xbf16>
      %c0_16 = arith.constant 0 : index
      %c0_17 = arith.constant 0 : index
      %23 = vector.load %arg5[%c0_16, %c0_17] : memref<16x512xbf16, #tpu.memory_space<vmem>>, vector<16x512xbf16>
      tpu.vector_store %arg5[%c0_16, %c0_17], %22 {strides = array<i32>} : memref<16x512xbf16, #tpu.memory_space<vmem>>, vector<16x512xbf16>,
    } else {
    }
    return
  }
  func.func @transform_0(%arg0: i32, %arg1: i32) -> (i32, i32) {
    %c0_i32 = arith.constant 0 : i32
    %c0_i32_0 = arith.constant 0 : i32
    %c0_i32_1 = arith.constant 0 : i32
    return %c0_i32, %c0_i32_0 : i32, i32
  }
  func.func @transform_1(%arg0: i32, %arg1: i32) -> (i32, i32, i32, i32) {
    %c0_i32 = arith.constant 0 : i32
    %c0_i32_0 = arith.constant 0 : i32
    %c0_i32_1 = arith.constant 0 : i32
    return %arg0, %arg1, %c0_i32, %c0_i32_0 : i32, i32, i32, i32
  }
  func.func @transform_2(%arg0: i32, %arg1: i32) -> (i32, i32) {
    %c0_i32 = arith.constant 0 : i32
    %c0_i32_0 = arith.constant 0 : i32
    return %c0_i32, %arg0 : i32, i32
  }
  func.func @transform_3(%arg0: i32, %arg1: i32) -> (i32, i32) {
    %c0_i32 = arith.constant 0 : i32
    %c0_i32_0 = arith.constant 0 : i32
    return %c0_i32, %arg0 : i32, i32
  }
}

module attributes {stable_mosaic.version = 11 : i64} {
  func.func @_linear_kernel(%arg0: i32, %arg1: i32, %arg2: memref<16x256xbf16, #tpu.memory_space<vmem>>, %arg3: memref<1x1x256x1024xbf16, #tpu.memory_space<vmem>>, %arg4: memref<1x1024xf32, #tpu.memory_space<vmem>>, %arg5: memref<16x1024xbf16, #tpu.memory_space<vmem>>, %arg6: memref<16x1024xf32, #tpu.memory_space<vmem>>) attributes {dimension_semantics = [#tpu.dimension_semantics<parallel>, #tpu.dimension_semantics<arbitrary>], iteration_bounds = array<i64: 4, 1>, scalar_prefetch = 0 : i64, scratch_operands = 1 : i64, tpu.core_type = #tpu.core_type<tc>, window_params = [{pipeline_mode = #tpu.pipeline_mode<synchronous>, transform_indices = @transform_0, window_bounds = array<i64: 16, 256>}, {transform_indices = @transform_1, window_bounds = array<i64: 1, 1, 256, 1024>}, {transform_indices = @transform_2, window_bounds = array<i64: 1, 1024>}, {transform_indices = @transform_3, window_bounds = array<i64: 16, 1024>}]} {
    %c0_i32 = arith.constant 0 : i32
    %0 = arith.cmpi eq, %arg1, %c0_i32 : i32
    %1 = arith.extui %0 : i1 to i32
    %c0_i32_0 = arith.constant 0 : i32
    %2 = arith.cmpi ne, %1, %c0_i32_0 : i32
    scf.if %2 {
      %cst_11 = arith.constant 0.000000e+00 : f32
      %16 = vector.broadcast %cst_11 : f32 to vector<16x1024xf32>
      %c0_12 = arith.constant 0 : index
      %c0_13 = arith.constant 0 : index
      %17 = vector.load %arg6[%c0_12, %c0_13] : memref<16x1024xf32, #tpu.memory_space<vmem>>, vector<16x1024xf32>
      tpu.vector_store %arg6[%c0_12, %c0_13], %16 {strides = array<i32>} : memref<16x1024xf32, #tpu.memory_space<vmem>>, vector<16x1024xf32>,
    } else {
    }
    %c256_i32 = arith.constant 256 : i32
    %3 = arith.muli %arg1, %c256_i32 : i32
    %4 = tpu.assume_multiple %3, 256 : i32
    %c0 = arith.constant 0 : index
    %5 = arith.index_cast %4 : i32 to index
    %6 = vector.load %arg2[%c0, %5] : memref<16x256xbf16, #tpu.memory_space<vmem>>, vector<16x256xbf16>
    %c0_1 = arith.constant 0 : index
    %c0_2 = arith.constant 0 : index
    %7 = vector.load %arg6[%c0_1, %c0_2] : memref<16x1024xf32, #tpu.memory_space<vmem>>, vector<16x1024xf32>
    %c0_3 = arith.constant 0 : index
    %c0_4 = arith.constant 0 : index
    %c0_5 = arith.constant 0 : index
    %c0_6 = arith.constant 0 : index
    %8 = vector.load %arg3[%c0_3, %c0_4, %c0_5, %c0_6] : memref<1x1x256x1024xbf16, #tpu.memory_space<vmem>>, vector<1x1x256x1024xbf16>
    %9 = vector.shape_cast %8 : vector<1x1x256x1024xbf16> to vector<256x1024xbf16>
    %cst = arith.constant dense<0.000000e+00> : vector<16x1024xf32>
    %10 = tpu.matmul %6, %9, %cst {dimension_numbers = #tpu.dot_dimension_numbers<[1], [0], [0], [1], [0, 0, 1, 1], [], []>} : vector<16x256xbf16>, vector<256x1024xbf16>, vector<16x1024xf32> -> vector<16x1024xf32>
    %11 = arith.addf %7, %10 : vector<16x1024xf32>
    %c0_7 = arith.constant 0 : index
    %c0_8 = arith.constant 0 : index
    %12 = vector.load %arg6[%c0_7, %c0_8] : memref<16x1024xf32, #tpu.memory_space<vmem>>, vector<16x1024xf32>
    tpu.vector_store %arg6[%c0_7, %c0_8], %11 {strides = array<i32>} : memref<16x1024xf32, #tpu.memory_space<vmem>>, vector<16x1024xf32>,
    %c0_i32_9 = arith.constant 0 : i32
    %13 = arith.cmpi eq, %arg1, %c0_i32_9 : i32
    %14 = arith.extui %13 : i1 to i32
    %c0_i32_10 = arith.constant 0 : i32
    %15 = arith.cmpi ne, %14, %c0_i32_10 : i32
    scf.if %15 {
      %c0_11 = arith.constant 0 : index
      %c0_12 = arith.constant 0 : index
      %16 = vector.load %arg6[%c0_11, %c0_12] : memref<16x1024xf32, #tpu.memory_space<vmem>>, vector<16x1024xf32>
      %c0_13 = arith.constant 0 : index
      %c0_14 = arith.constant 0 : index
      %17 = vector.load %arg4[%c0_13, %c0_14] : memref<1x1024xf32, #tpu.memory_space<vmem>>, vector<1x1024xf32>
      %18 = vector.broadcast %17 : vector<1x1024xf32> to vector<16x1024xf32>
      %19 = arith.addf %16, %18 : vector<16x1024xf32>
      %cst_15 = arith.constant 0.000000e+00 : f32
      %20 = vector.broadcast %cst_15 : f32 to vector<16x1024xf32>
      %21 = arith.maximumf %19, %20 : vector<16x1024xf32>
      %22 = arith.truncf %21 : vector<16x1024xf32> to vector<16x1024xbf16>
      %c0_16 = arith.constant 0 : index
      %c0_17 = arith.constant 0 : index
      %23 = vector.load %arg5[%c0_16, %c0_17] : memref<16x1024xbf16, #tpu.memory_space<vmem>>, vector<16x1024xbf16>
      tpu.vector_store %arg5[%c0_16, %c0_17], %22 {strides = array<i32>} : memref<16x1024xbf16, #tpu.memory_space<vmem>>, vector<16x1024xbf16>,
    } else {
    }
    return
  }
  func.func @transform_0(%arg0: i32, %arg1: i32) -> (i32, i32) {
    %c0_i32 = arith.constant 0 : i32
    %c0_i32_0 = arith.constant 0 : i32
    %c0_i32_1 = arith.constant 0 : i32
    return %c0_i32, %c0_i32_0 : i32, i32
  }
  func.func @transform_1(%arg0: i32, %arg1: i32) -> (i32, i32, i32, i32) {
    %c0_i32 = arith.constant 0 : i32
    %c0_i32_0 = arith.constant 0 : i32
    %c0_i32_1 = arith.constant 0 : i32
    return %arg0, %arg1, %c0_i32, %c0_i32_0 : i32, i32, i32, i32
  }
  func.func @transform_2(%arg0: i32, %arg1: i32) -> (i32, i32) {
    %c0_i32 = arith.constant 0 : i32
    %c0_i32_0 = arith.constant 0 : i32
    return %c0_i32, %arg0 : i32, i32
  }
  func.func @transform_3(%arg0: i32, %arg1: i32) -> (i32, i32) {
    %c0_i32 = arith.constant 0 : i32
    %c0_i32_0 = arith.constant 0 : i32
    return %c0_i32, %arg0 : i32, i32
  }
}

module attributes {stable_mosaic.version = 11 : i64} {
  func.func @_linear_kernel(%arg0: i32, %arg1: i32, %arg2: memref<16x1024xbf16, #tpu.memory_space<vmem>>, %arg3: memref<1x1x1024x128xbf16, #tpu.memory_space<vmem>>, %arg4: memref<1x128xf32, #tpu.memory_space<vmem>>, %arg5: memref<16x128xf32, #tpu.memory_space<vmem>>, %arg6: memref<16x128xf32, #tpu.memory_space<vmem>>) attributes {dimension_semantics = [#tpu.dimension_semantics<parallel>, #tpu.dimension_semantics<arbitrary>], iteration_bounds = array<i64: 2, 1>, scalar_prefetch = 0 : i64, scratch_operands = 1 : i64, tpu.core_type = #tpu.core_type<tc>, window_params = [{pipeline_mode = #tpu.pipeline_mode<synchronous>, transform_indices = @transform_0, window_bounds = array<i64: 16, 1024>}, {transform_indices = @transform_1, window_bounds = array<i64: 1, 1, 1024, 128>}, {transform_indices = @transform_2, window_bounds = array<i64: 1, 128>}, {transform_indices = @transform_3, window_bounds = array<i64: 16, 128>}]} {
    %c0_i32 = arith.constant 0 : i32
    %0 = arith.cmpi eq, %arg1, %c0_i32 : i32
    %1 = arith.extui %0 : i1 to i32
    %c0_i32_0 = arith.constant 0 : i32
    %2 = arith.cmpi ne, %1, %c0_i32_0 : i32
    scf.if %2 {
      %cst_11 = arith.constant 0.000000e+00 : f32
      %16 = vector.broadcast %cst_11 : f32 to vector<16x128xf32>
      %c0_12 = arith.constant 0 : index
      %c0_13 = arith.constant 0 : index
      %17 = vector.load %arg6[%c0_12, %c0_13] : memref<16x128xf32, #tpu.memory_space<vmem>>, vector<16x128xf32>
      tpu.vector_store %arg6[%c0_12, %c0_13], %16 {strides = array<i32>} : memref<16x128xf32, #tpu.memory_space<vmem>>, vector<16x128xf32>,
    } else {
    }
    %c1024_i32 = arith.constant 1024 : i32
    %3 = arith.muli %arg1, %c1024_i32 : i32
    %4 = tpu.assume_multiple %3, 256 : i32
    %c0 = arith.constant 0 : index
    %5 = arith.index_cast %4 : i32 to index
    %6 = vector.load %arg2[%c0, %5] : memref<16x1024xbf16, #tpu.memory_space<vmem>>, vector<16x1024xbf16>
    %c0_1 = arith.constant 0 : index
    %c0_2 = arith.constant 0 : index
    %7 = vector.load %arg6[%c0_1, %c0_2] : memref<16x128xf32, #tpu.memory_space<vmem>>, vector<16x128xf32>
    %c0_3 = arith.constant 0 : index
    %c0_4 = arith.constant 0 : index
    %c0_5 = arith.constant 0 : index
    %c0_6 = arith.constant 0 : index
    %8 = vector.load %arg3[%c0_3, %c0_4, %c0_5, %c0_6] : memref<1x1x1024x128xbf16, #tpu.memory_space<vmem>>, vector<1x1x1024x128xbf16>
    %9 = vector.shape_cast %8 : vector<1x1x1024x128xbf16> to vector<1024x128xbf16>
    %cst = arith.constant dense<0.000000e+00> : vector<16x128xf32>
    %10 = tpu.matmul %6, %9, %cst {dimension_numbers = #tpu.dot_dimension_numbers<[1], [0], [0], [1], [0, 0, 1, 1], [], []>} : vector<16x1024xbf16>, vector<1024x128xbf16>, vector<16x128xf32> -> vector<16x128xf32>
    %11 = arith.addf %7, %10 : vector<16x128xf32>
    %c0_7 = arith.constant 0 : index
    %c0_8 = arith.constant 0 : index
    %12 = vector.load %arg6[%c0_7, %c0_8] : memref<16x128xf32, #tpu.memory_space<vmem>>, vector<16x128xf32>
    tpu.vector_store %arg6[%c0_7, %c0_8], %11 {strides = array<i32>} : memref<16x128xf32, #tpu.memory_space<vmem>>, vector<16x128xf32>,
    %c0_i32_9 = arith.constant 0 : i32
    %13 = arith.cmpi eq, %arg1, %c0_i32_9 : i32
    %14 = arith.extui %13 : i1 to i32
    %c0_i32_10 = arith.constant 0 : i32
    %15 = arith.cmpi ne, %14, %c0_i32_10 : i32
    scf.if %15 {
      %c0_11 = arith.constant 0 : index
      %c0_12 = arith.constant 0 : index
      %16 = vector.load %arg6[%c0_11, %c0_12] : memref<16x128xf32, #tpu.memory_space<vmem>>, vector<16x128xf32>
      %c0_13 = arith.constant 0 : index
      %c0_14 = arith.constant 0 : index
      %17 = vector.load %arg4[%c0_13, %c0_14] : memref<1x128xf32, #tpu.memory_space<vmem>>, vector<1x128xf32>
      %18 = vector.broadcast %17 : vector<1x128xf32> to vector<16x128xf32>
      %19 = arith.addf %16, %18 : vector<16x128xf32>
      %c0_15 = arith.constant 0 : index
      %c0_16 = arith.constant 0 : index
      %20 = vector.load %arg5[%c0_15, %c0_16] : memref<16x128xf32, #tpu.memory_space<vmem>>, vector<16x128xf32>
      tpu.vector_store %arg5[%c0_15, %c0_16], %19 {strides = array<i32>} : memref<16x128xf32, #tpu.memory_space<vmem>>, vector<16x128xf32>,
    } else {
    }
    return
  }
  func.func @transform_0(%arg0: i32, %arg1: i32) -> (i32, i32) {
    %c0_i32 = arith.constant 0 : i32
    %c0_i32_0 = arith.constant 0 : i32
    %c0_i32_1 = arith.constant 0 : i32
    return %c0_i32, %c0_i32_0 : i32, i32
  }
  func.func @transform_1(%arg0: i32, %arg1: i32) -> (i32, i32, i32, i32) {
    %c0_i32 = arith.constant 0 : i32
    %c0_i32_0 = arith.constant 0 : i32
    %c0_i32_1 = arith.constant 0 : i32
    return %arg0, %arg1, %c0_i32, %c0_i32_0 : i32, i32, i32, i32
  }
  func.func @transform_2(%arg0: i32, %arg1: i32) -> (i32, i32) {
    %c0_i32 = arith.constant 0 : i32
    %c0_i32_0 = arith.constant 0 : i32
    return %c0_i32, %arg0 : i32, i32
  }
  func.func @transform_3(%arg0: i32, %arg1: i32) -> (i32, i32) {
    %c0_i32 = arith.constant 0 : i32
    %c0_i32_0 = arith.constant 0 : i32
    return %c0_i32, %arg0 : i32, i32
  }
}

</mosaic_0001>

<llo_original>
// kernel: mesh_to_image_forward.5
$region0: #{mesh_to_image_forward.5}
  #allocation0 [shape = 'u32[]', space=smem, size = 0x4, offset = 0x4, fixed_abs, tag = 'smem constant byte address 0x4 - core index']
  #allocation1 [shape = 'u32[144,128]{1,0:T(1,128)}', space=vmem, size = 0x12000, scoped, tag = 'internal scratch']
  #allocation2 [shape = 'f32[16,128]{1,0:T(8,128)}', space=vmem, size = 0x2000, scoped, tag = 'scratch operand']
  %s0 = inlined_call_operand.vmem [shape: bf16[16,1024], index: 0, kind: input, shape index: {}]
  %s1 = inlined_call_operand.vmem [shape: bf16[2,1,1024,128], index: 1, kind: input, shape index: {}]
  %s2 = inlined_call_operand.vmem [shape: f32[1,256], index: 2, kind: input, shape index: {}]
  %s3 = inlined_call_operand.vmem [shape: f32[16,256], index: 3, kind: output, shape index: {}]
  %s4 = sld [smem:[#allocation0]]
  $region87: #{mesh_to_image_forward.5} parent=0
    _
  %s6 = ssub.s32 1, %s4
  %s7 = scalar_select 0, %s6, %s4
  $region1: #{mesh_to_image_forward.5} parent=0
    #allocation3 [shape = 'u8[16384]{0}', space=vmem, size = 0x4000, scoped, tag = 'output window, operand 0']
    loop: start=0, step=1, limit=4
    $region2: #{mesh_to_image_forward.5} parent=1 // loop_pre_header
      _
    $region3: #{mesh_to_image_forward.5} parent=1 // loop_header
      %s9 = sphi 0, %s13
      %p10 = scmp.ge.s32.totalorder %s9, 4
      %s16 = sphi 0, %s28
      %s17 = sphi 0, %s24
      %s18 = sphi 0, %s16
      %s19 = sphi 0, %s17
      %s20 = sphi 0, %s18
      %s21 = sphi 0, %s19
      %s29 = sphi 0, %s29
      %s31 = sphi 0, %s29
      %s32 = sphi 0, %s31
      %s46 = sphi 0, %s32
      %s54 = sphi 0, %s56
      %s57 = sphi 0, %s54
      %s58 = sphi 0, %s57
      %s74 = sphi 0, %s58
      %s80 = sphi 0, %s82
      %s83 = sphi 0, %s80
      %s84 = sphi 0, %s83
      %s100 = sphi 0, %s84
      %s106 = sphi 0, %s108
      %s109 = sphi 0, %s106
      %s110 = sphi 0, %s109
      %s126 = sphi 0, %s110
    $region4: #{mesh_to_image_forward.5} parent=1 // loop_header_branch
      %12 = sbr.rel (%p10) target = $region8
    $region5: #{mesh_to_image_forward.5} parent=1 // loop_body
      %s14 = ssub.s32 %s9, 1
      %s15 = ssub.s32 %s9, 2
      %s22 = sadd.s32 1, %s17
      %p23 = scmp.ge.s32.totalorder %s22, 1
      %s24 = scalar_select %p23, 0, %s22
      %s25 = sadd.s32 1, %s16
      %s26 = scalar_select %p23, %s25, %s16
      %p27 = scmp.ge.s32.totalorder %s26, 2
      %s28 = scalar_select %p27, 0, %s26
      %s30 = sadd.s32 %s29, 1
      %p33 = scmp.eq.s32.totalorder %s9, 1
      %p34 = scmp.ne.s32.totalorder %s29, %s31
      %p35 = scmp.eq.s32.totalorder %s9, 0
      %p36 = por %p34, %p35
      %p37 = scmp.ne.s32.totalorder %s29, %s31
      %p38 = scmp.eq.s32.totalorder %s14, 1
      %p39 = por %p37, %p38
      %p40 = scmp.ne.s32.totalorder %s31, %s32
      %p41 = scmp.eq.s32.totalorder %s14, 0
      %p42 = por %p40, %p41
      %p43 = scmp.ne.s32.totalorder %s31, %s32
      %p44 = scmp.eq.s32.totalorder %s15, 1
      %p45 = por %p43, %p44
      %p47 = scmp.ne.s32.totalorder %s32, %s46
      %p48 = scmp.eq.s32.totalorder %s15, 0
      %p49 = por %p47, %p48
      %s50 = ssub.s32 %s16, %s28
      %s51 = ssub.s32 %s17, %s24
      %s52 = sor.u32 %s50, %s51
      %p53 = scmp.eq.s32.totalorder %s52, 0
      %s55 = sadd.s32 %s54, 1
      %s56 = scalar_select %p53, %s54, %s55
      %p59 = pneg %p53
      %p60 = scmp.eq.s32.totalorder %s9, 1
      %p61 = por %p59, %p60
      %p62 = scmp.ne.s32.totalorder %s54, %s57
      %p63 = scmp.eq.s32.totalorder %s9, 0
      %p64 = por %p62, %p63
      %p65 = scmp.ne.s32.totalorder %s54, %s57
      %p66 = scmp.eq.s32.totalorder %s14, 1
      %p67 = por %p65, %p66
      %p68 = scmp.ne.s32.totalorder %s57, %s58
      %p69 = scmp.eq.s32.totalorder %s14, 0
      %p70 = por %p68, %p69
      %p71 = scmp.ne.s32.totalorder %s57, %s58
      %p72 = scmp.eq.s32.totalorder %s15, 1
      %p73 = por %p71, %p72
      %p75 = scmp.ne.s32.totalorder %s58, %s74
      %p76 = scmp.eq.s32.totalorder %s15, 0
      %p77 = por %p75, %p76
      %s78 = ssub.s32 %s16, %s28
      %p79 = scmp.eq.s32.totalorder %s78, 0
      %s81 = sadd.s32 %s80, 1
      %s82 = scalar_select %p79, %s80, %s81
      %p85 = pneg %p79
      %p86 = scmp.eq.s32.totalorder %s9, 1
      %p87 = por %p85, %p86
      %p88 = scmp.ne.s32.totalorder %s80, %s83
      %p89 = scmp.eq.s32.totalorder %s9, 0
      %p90 = por %p88, %p89
      %p91 = scmp.ne.s32.totalorder %s80, %s83
      %p92 = scmp.eq.s32.totalorder %s14, 1
      %p93 = por %p91, %p92
      %p94 = scmp.ne.s32.totalorder %s83, %s84
      %p95 = scmp.eq.s32.totalorder %s14, 0
      %p96 = por %p94, %p95
      %p97 = scmp.ne.s32.totalorder %s83, %s84
      %p98 = scmp.eq.s32.totalorder %s15, 1
      %p99 = por %p97, %p98
      %p101 = scmp.ne.s32.totalorder %s84, %s100
      %p102 = scmp.eq.s32.totalorder %s15, 0
      %p103 = por %p101, %p102
      %s104 = ssub.s32 %s16, %s28
      %p105 = scmp.eq.s32.totalorder %s104, 0
      %s107 = sadd.s32 %s106, 1
      %s108 = scalar_select %p105, %s106, %s107
      %p111 = pneg %p105
      %p112 = scmp.eq.s32.totalorder %s9, 1
      %p113 = por %p111, %p112
      %p114 = scmp.ne.s32.totalorder %s106, %s109
      %p115 = scmp.eq.s32.totalorder %s9, 0
      %p116 = por %p114, %p115
      %p117 = scmp.ne.s32.totalorder %s106, %s109
      %p118 = scmp.eq.s32.totalorder %s14, 1
      %p119 = por %p117, %p118
      %p120 = scmp.ne.s32.totalorder %s109, %s110
      %p121 = scmp.eq.s32.totalorder %s14, 0
      %p122 = por %p120, %p121
      %p123 = scmp.ne.s32.totalorder %s109, %s110
      %p124 = scmp.eq.s32.totalorder %s15, 1
      %p125 = por %p123, %p124
      %p127 = scmp.ne.s32.totalorder %s110, %s126
      %p128 = scmp.eq.s32.totalorder %s15, 0
      %p129 = por %p127, %p128
      %p130 = scmp.le.s32.totalorder 1, %s9
      %p131 = scmp.lt.s32.totalorder %s9, 3
      %p132 = pnand %p130, %p131
      %p133 = pneg %p132
      // Predicated region
      $region9: #{mesh_to_image_forward.5} parent=5 // pred_check
        _
      $region10: #{mesh_to_image_forward.5} parent=5 // pred_check_branch
        %135 = sbr.rel (%p132) target = $region12
      $region11: #{mesh_to_image_forward.5} parent=5 // pred_region
        %s136 = ssub.s32 %s9, 1
        // Predicated region
        $region13: #{mesh_to_image_forward.5} parent=11 // pred_check
          %p137 = pneg %p42
        $region14: #{mesh_to_image_forward.5} parent=11 // pred_check_branch
          %139 = sbr.rel (%p137) target = $region16
        $region15: #{mesh_to_image_forward.5} parent=11 // pred_region
          _
        $region16: #{mesh_to_image_forward.5} parent=11 // pred_fallthru
          _
      $region12: #{mesh_to_image_forward.5} parent=5 // pred_fallthru
        _
      %p140 = scmp.lt.s32.totalorder %s9, 2
      // Predicated region
      $region17: #{mesh_to_image_forward.5} parent=5 // pred_check
        %p141 = pneg %p140
      $region18: #{mesh_to_image_forward.5} parent=5 // pred_check_branch
        %143 = sbr.rel (%p141) target = $region20
      $region19: #{mesh_to_image_forward.5} parent=5 // pred_region
        // Predicated region
        $region21: #{mesh_to_image_forward.5} parent=19 // pred_check
          %p144 = pneg %p64
        $region22: #{mesh_to_image_forward.5} parent=19 // pred_check_branch
          %146 = sbr.rel (%p144) target = $region24
        $region23: #{mesh_to_image_forward.5} parent=19 // pred_region
          %p147 = scmp.lt.s32.totalorder %s16, 1
          %s148 = scalar_select %p147, %s16, 1
          %p149 = scmp.lt.s32.totalorder %s17, 0
          %s150 = scalar_select %p149, %s17, 0
          %s151 = smul.addr %s150, 128
          %s152 = smul.addr %s148, 128
          %s153 = sadd.s32 %s151, %s152
          %s154 = smul.addr %s153, 4
          %s155 = scalar_lea.vmem %s1, %s154
        $region24: #{mesh_to_image_forward.5} parent=19 // pred_fallthru
          _
        // Predicated region
        $region25: #{mesh_to_image_forward.5} parent=19 // pred_check
          %p156 = pneg %p90
        $region26: #{mesh_to_image_forward.5} parent=19 // pred_check_branch
          %158 = sbr.rel (%p156) target = $region28
        $region27: #{mesh_to_image_forward.5} parent=19 // pred_region
          %p159 = scmp.lt.s32.totalorder %s16, 1
          %s160 = scalar_select %p159, %s16, 1
          %s161 = scalar_lea.vmem %s2, %s160
        $region28: #{mesh_to_image_forward.5} parent=19 // pred_fallthru
          _
      $region20: #{mesh_to_image_forward.5} parent=5 // pred_fallthru
        _
      %p162 = scmp.le.s32.totalorder 1, %s9
      %p163 = scmp.lt.s32.totalorder %s9, 3
      %p164 = pnand %p162, %p163
      %p165 = pneg %p164
      // Predicated region
      $region29: #{mesh_to_image_forward.5} parent=5 // pred_check
        _
      $region30: #{mesh_to_image_forward.5} parent=5 // pred_check_branch
        %167 = sbr.rel (%p164) target = $region32
      $region31: #{mesh_to_image_forward.5} parent=5 // pred_region
        %s168 = ssub.s32 %s9, 1
        %p169 = pneg %p42
        %p170 = pneg %p39
        %p171 = scmp.lt.s32.totalorder %s18, 1
        %s172 = scalar_select %p171, %s18, 1
        %p173 = scmp.lt.s32.totalorder %s19, 0
        %s174 = scalar_select %p173, %s19, 0
        %s175 = smul.addr %s174, 128
        %s176 = smul.addr %s172, 128
        %s177 = sadd.s32 %s175, %s176
        %s178 = smul.addr %s177, 4
        %s179 = scalar_lea.vmem %s1, %s178
        %p180 = pneg %p70
        %p181 = pneg %p67
        %p182 = scmp.lt.s32.totalorder %s18, 1
        %s183 = scalar_select %p182, %s18, 1
        %s184 = scalar_lea.vmem %s2, %s183
        %p185 = pneg %p96
        %p186 = pneg %p93
        %p187 = pneg %p122
        %p188 = pneg %p119
        %s189 = sand.u32 %s109, 1
        %s190 = sand.u32 %s109, 1
        %s191 = smul.addr %s190, 16
        %s192 = scalar_lea.vmem [#allocation3], %s191
        %p193 = scmp.lt.s32.totalorder %s18, 1
        %s194 = scalar_select %p193, %s18, 1
        %p195 = scmp.lt.s32.totalorder %s19, 0
        %s196 = scalar_select %p195, %s19, 0
        %s197 = smul.addr %s196, 128
        %s198 = smul.addr %s194, 128
        %s199 = sadd.s32 %s197, %s198
        %s200 = smul.addr %s199, 4
        %s201 = scalar_lea.vmem %s1, %s200
        %p202 = scmp.lt.s32.totalorder %s18, 1
        %s203 = scalar_select %p202, %s18, 1
        %s204 = scalar_lea.vmem %s2, %s203
        %p206 = scmp.eq.s32.totalorder %s19, 0
        // Predicated region
        $region33: #{mesh_to_image_forward.5} parent=31 // pred_check
          %p207 = pneg %p206
        $region34: #{mesh_to_image_forward.5} parent=31 // pred_check_branch
          %209 = sbr.rel (%p207) target = $region36
        $region35: #{mesh_to_image_forward.5} parent=31 // pred_region
          %210 = vst [vmem:[#allocation2] sm:$0xff] 0.0
          %211 = vst [vmem:[#allocation2 + $0x8] sm:$0xff] 0.0
        $region36: #{mesh_to_image_forward.5} parent=31 // pred_fallthru
          _
        %s212 = smul.u32 %s19, 1024
        %s213 = sshra.s32 %s212, 7
        %s214 = sand.u32 %s212, 127
        %s215 = smul.addr %s213, 4
        %s216 = scalar_lea.vmem %s0, %s215
        %v217 = vld [vmem:[%s216] sm:$0xff]
        %v218 = vld [vmem:[%s216 + $0x8] sm:$0xff]
        %v219 = vld [vmem:[%s216 + $0x10] sm:$0xff]
        %v220 = vld [vmem:[%s216 + $0x18] sm:$0xff]
        %v221 = vld [vmem:[%s216 + $0x20] sm:$0xff]
        %v222 = vld [vmem:[%s216 + $0x28] sm:$0xff]
        %v223 = vld [vmem:[%s216 + $0x30] sm:$0xff]
        %v224 = vld [vmem:[%s216 + $0x38] sm:$0xff]
        %v225 = vld [vmem:[#allocation2] sm:$0xff]
        %v226 = vld [vmem:[#allocation2 + $0x8] sm:$0xff]
        %v227 = vld [vmem:[%s201] sm:$0xf]
        %v228 = vld [vmem:[%s201 + $0x4] sm:$0xf]
        %v229 = vld [vmem:[%s201 + $0x8] sm:$0xf]
        %v230 = vld [vmem:[%s201 + $0xc] sm:$0xf]
        %v231 = vld [vmem:[%s201 + $0x10] sm:$0xf]
        %v232 = vld [vmem:[%s201 + $0x14] sm:$0xf]
        %v233 = vld [vmem:[%s201 + $0x18] sm:$0xf]
        %v234 = vld [vmem:[%s201 + $0x1c] sm:$0xf]
        %v235 = vld [vmem:[%s201 + $0x20] sm:$0xf]
        %v236 = vld [vmem:[%s201 + $0x24] sm:$0xf]
        %v237 = vld [vmem:[%s201 + $0x28] sm:$0xf]
        %v238 = vld [vmem:[%s201 + $0x2c] sm:$0xf]
        %v239 = vld [vmem:[%s201 + $0x30] sm:$0xf]
        %v240 = vld [vmem:[%s201 + $0x34] sm:$0xf]
        %v241 = vld [vmem:[%s201 + $0x38] sm:$0xf]
        %v242 = vld [vmem:[%s201 + $0x3c] sm:$0xf]
        %v243 = vld [vmem:[%s201 + $0x40] sm:$0xf]
        %v244 = vld [vmem:[%s201 + $0x44] sm:$0xf]
        %v245 = vld [vmem:[%s201 + $0x48] sm:$0xf]
        %v246 = vld [vmem:[%s201 + $0x4c] sm:$0xf]
        %v247 = vld [vmem:[%s201 + $0x50] sm:$0xf]
        %v248 = vld [vmem:[%s201 + $0x54] sm:$0xf]
        %v249 = vld [vmem:[%s201 + $0x58] sm:$0xf]
        %v250 = vld [vmem:[%s201 + $0x5c] sm:$0xf]
        %v251 = vld [vmem:[%s201 + $0x60] sm:$0xf]
        %v252 = vld [vmem:[%s201 + $0x64] sm:$0xf]
        %v253 = vld [vmem:[%s201 + $0x68] sm:$0xf]
        %v254 = vld [vmem:[%s201 + $0x6c] sm:$0xf]
        %v255 = vld [vmem:[%s201 + $0x70] sm:$0xf]
        %v256 = vld [vmem:[%s201 + $0x74] sm:$0xf]
        %v257 = vld [vmem:[%s201 + $0x78] sm:$0xf]
        %v258 = vld [vmem:[%s201 + $0x7c] sm:$0xf]
        %v259 = vld [vmem:[%s201 + $0x80] sm:$0xf]
        %v260 = vld [vmem:[%s201 + $0x84] sm:$0xf]
        %v261 = vld [vmem:[%s201 + $0x88] sm:$0xf]
        %v262 = vld [vmem:[%s201 + $0x8c] sm:$0xf]
        %v263 = vld [vmem:[%s201 + $0x90] sm:$0xf]
        %v264 = vld [vmem:[%s201 + $0x94] sm:$0xf]
        %v265 = vld [vmem:[%s201 + $0x98] sm:$0xf]
        %v266 = vld [vmem:[%s201 + $0x9c] sm:$0xf]
        %v267 = vld [vmem:[%s201 + $0xa0] sm:$0xf]
        %v268 = vld [vmem:[%s201 + $0xa4] sm:$0xf]
        %v269 = vld [vmem:[%s201 + $0xa8] sm:$0xf]
        %v270 = vld [vmem:[%s201 + $0xac] sm:$0xf]
        %v271 = vld [vmem:[%s201 + $0xb0] sm:$0xf]
        %v272 = vld [vmem:[%s201 + $0xb4] sm:$0xf]
        %v273 = vld [vmem:[%s201 + $0xb8] sm:$0xf]
        %v274 = vld [vmem:[%s201 + $0xbc] sm:$0xf]
        %v275 = vld [vmem:[%s201 + $0xc0] sm:$0xf]
        %v276 = vld [vmem:[%s201 + $0xc4] sm:$0xf]
        %v277 = vld [vmem:[%s201 + $0xc8] sm:$0xf]
        %v278 = vld [vmem:[%s201 + $0xcc] sm:$0xf]
        %v279 = vld [vmem:[%s201 + $0xd0] sm:$0xf]
        %v280 = vld [vmem:[%s201 + $0xd4] sm:$0xf]
        %v281 = vld [vmem:[%s201 + $0xd8] sm:$0xf]
        %v282 = vld [vmem:[%s201 + $0xdc] sm:$0xf]
        %v283 = vld [vmem:[%s201 + $0xe0] sm:$0xf]
        %v284 = vld [vmem:[%s201 + $0xe4] sm:$0xf]
        %v285 = vld [vmem:[%s201 + $0xe8] sm:$0xf]
        %v286 = vld [vmem:[%s201 + $0xec] sm:$0xf]
        %v287 = vld [vmem:[%s201 + $0xf0] sm:$0xf]
        %v288 = vld [vmem:[%s201 + $0xf4] sm:$0xf]
        %v289 = vld [vmem:[%s201 + $0xf8] sm:$0xf]
        %v290 = vld [vmem:[%s201 + $0xfc] sm:$0xf]
        %v291 = vld [vmem:[%s201 + $0x100] sm:$0xf]
        %v292 = vld [vmem:[%s201 + $0x104] sm:$0xf]
        %v293 = vld [vmem:[%s201 + $0x108] sm:$0xf]
        %v294 = vld [vmem:[%s201 + $0x10c] sm:$0xf]
        %v295 = vld [vmem:[%s201 + $0x110] sm:$0xf]
        %v296 = vld [vmem:[%s201 + $0x114] sm:$0xf]
        %v297 = vld [vmem:[%s201 + $0x118] sm:$0xf]
        %v298 = vld [vmem:[%s201 + $0x11c] sm:$0xf]
        %v299 = vld [vmem:[%s201 + $0x120] sm:$0xf]
        %v300 = vld [vmem:[%s201 + $0x124] sm:$0xf]
        %v301 = vld [vmem:[%s201 + $0x128] sm:$0xf]
        %v302 = vld [vmem:[%s201 + $0x12c] sm:$0xf]
        %v303 = vld [vmem:[%s201 + $0x130] sm:$0xf]
        %v304 = vld [vmem:[%s201 + $0x134] sm:$0xf]
        %v305 = vld [vmem:[%s201 + $0x138] sm:$0xf]
        %v306 = vld [vmem:[%s201 + $0x13c] sm:$0xf]
        %v307 = vld [vmem:[%s201 + $0x140] sm:$0xf]
        %v308 = vld [vmem:[%s201 + $0x144] sm:$0xf]
        %v309 = vld [vmem:[%s201 + $0x148] sm:$0xf]
        %v310 = vld [vmem:[%s201 + $0x14c] sm:$0xf]
        %v311 = vld [vmem:[%s201 + $0x150] sm:$0xf]
        %v312 = vld [vmem:[%s201 + $0x154] sm:$0xf]
        %v313 = vld [vmem:[%s201 + $0x158] sm:$0xf]
        %v314 = vld [vmem:[%s201 + $0x15c] sm:$0xf]
        %v315 = vld [vmem:[%s201 + $0x160] sm:$0xf]
        %v316 = vld [vmem:[%s201 + $0x164] sm:$0xf]
        %v317 = vld [vmem:[%s201 + $0x168] sm:$0xf]
        %v318 = vld [vmem:[%s201 + $0x16c] sm:$0xf]
        %v319 = vld [vmem:[%s201 + $0x170] sm:$0xf]
        %v320 = vld [vmem:[%s201 + $0x174] sm:$0xf]
        %v321 = vld [vmem:[%s201 + $0x178] sm:$0xf]
        %v322 = vld [vmem:[%s201 + $0x17c] sm:$0xf]
        %v323 = vld [vmem:[%s201 + $0x180] sm:$0xf]
        %v324 = vld [vmem:[%s201 + $0x184] sm:$0xf]
        %v325 = vld [vmem:[%s201 + $0x188] sm:$0xf]
        %v326 = vld [vmem:[%s201 + $0x18c] sm:$0xf]
        %v327 = vld [vmem:[%s201 + $0x190] sm:$0xf]
        %v328 = vld [vmem:[%s201 + $0x194] sm:$0xf]
        %v329 = vld [vmem:[%s201 + $0x198] sm:$0xf]
        %v330 = vld [vmem:[%s201 + $0x19c] sm:$0xf]
        %v331 = vld [vmem:[%s201 + $0x1a0] sm:$0xf]
        %v332 = vld [vmem:[%s201 + $0x1a4] sm:$0xf]
        %v333 = vld [vmem:[%s201 + $0x1a8] sm:$0xf]
        %v334 = vld [vmem:[%s201 + $0x1ac] sm:$0xf]
        %v335 = vld [vmem:[%s201 + $0x1b0] sm:$0xf]
        %v336 = vld [vmem:[%s201 + $0x1b4] sm:$0xf]
        %v337 = vld [vmem:[%s201 + $0x1b8] sm:$0xf]
        %v338 = vld [vmem:[%s201 + $0x1bc] sm:$0xf]
        %v339 = vld [vmem:[%s201 + $0x1c0] sm:$0xf]
        %v340 = vld [vmem:[%s201 + $0x1c4] sm:$0xf]
        %v341 = vld [vmem:[%s201 + $0x1c8] sm:$0xf]
        %v342 = vld [vmem:[%s201 + $0x1cc] sm:$0xf]
        %v343 = vld [vmem:[%s201 + $0x1d0] sm:$0xf]
        %v344 = vld [vmem:[%s201 + $0x1d4] sm:$0xf]
        %v345 = vld [vmem:[%s201 + $0x1d8] sm:$0xf]
        %v346 = vld [vmem:[%s201 + $0x1dc] sm:$0xf]
        %v347 = vld [vmem:[%s201 + $0x1e0] sm:$0xf]
        %v348 = vld [vmem:[%s201 + $0x1e4] sm:$0xf]
        %v349 = vld [vmem:[%s201 + $0x1e8] sm:$0xf]
        %v350 = vld [vmem:[%s201 + $0x1ec] sm:$0xf]
        %v351 = vld [vmem:[%s201 + $0x1f0] sm:$0xf]
        %v352 = vld [vmem:[%s201 + $0x1f4] sm:$0xf]
        %v353 = vld [vmem:[%s201 + $0x1f8] sm:$0xf]
        %v354 = vld [vmem:[%s201 + $0x1fc] sm:$0xf]
        %v363 = vunpack.c.l.b16 %v217
        %v364 = vunpack.c.h.b16 %v217
        %v365 = vunpack.c.l.b16 %v218
        %v366 = vunpack.c.h.b16 %v218
        %v367 = vunpack.c.l.b16 %v219
        %v368 = vunpack.c.h.b16 %v219
        %v369 = vunpack.c.l.b16 %v220
        %v370 = vunpack.c.h.b16 %v220
        %v371 = vunpack.c.l.b16 %v221
        %v372 = vunpack.c.h.b16 %v221
        %v373 = vunpack.c.l.b16 %v222
        %v374 = vunpack.c.h.b16 %v222
        %v375 = vunpack.c.l.b16 %v223
        %v376 = vunpack.c.h.b16 %v223
        %v377 = vunpack.c.l.b16 %v224
        %v378 = vunpack.c.h.b16 %v224
        %v379 = vpack.c.b16 %v371, %v363
        %v380 = vpack.c.b16 %v372, %v364
        %v381 = vpack.c.b16 %v373, %v365
        %v382 = vpack.c.b16 %v374, %v366
        %v383 = vpack.c.b16 %v375, %v367
        %v384 = vpack.c.b16 %v376, %v368
        %v385 = vpack.c.b16 %v377, %v369
        %v386 = vpack.c.b16 %v378, %v370
        %v523 = vunpack.c.l.b16 %v227
        %v524 = vunpack.c.l.b16 %v228
        %v525 = vunpack.c.l.b16 %v229
        %v526 = vunpack.c.l.b16 %v230
        %v527 = vunpack.c.l.b16 %v231
        %v528 = vunpack.c.l.b16 %v232
        %v529 = vunpack.c.l.b16 %v233
        %v530 = vunpack.c.l.b16 %v234
        %v531 = vunpack.c.l.b16 %v235
        %v532 = vunpack.c.l.b16 %v236
        %v533 = vunpack.c.l.b16 %v237
        %v534 = vunpack.c.l.b16 %v238
        %v535 = vunpack.c.l.b16 %v239
        %v536 = vunpack.c.l.b16 %v240
        %v537 = vunpack.c.l.b16 %v241
        %v538 = vunpack.c.l.b16 %v242
        %v539 = vunpack.c.l.b16 %v243
        %v540 = vunpack.c.l.b16 %v244
        %v541 = vunpack.c.l.b16 %v245
        %v542 = vunpack.c.l.b16 %v246
        %v543 = vunpack.c.l.b16 %v247
        %v544 = vunpack.c.l.b16 %v248
        %v545 = vunpack.c.l.b16 %v249
        %v546 = vunpack.c.l.b16 %v250
        %v547 = vunpack.c.l.b16 %v251
        %v548 = vunpack.c.l.b16 %v252
        %v549 = vunpack.c.l.b16 %v253
        %v550 = vunpack.c.l.b16 %v254
        %v551 = vunpack.c.l.b16 %v255
        %v552 = vunpack.c.l.b16 %v256
        %v553 = vunpack.c.l.b16 %v257
        %v554 = vunpack.c.l.b16 %v258
        %v555 = vunpack.c.l.b16 %v259
        %v556 = vunpack.c.l.b16 %v260
        %v557 = vunpack.c.l.b16 %v261
        %v558 = vunpack.c.l.b16 %v262
        %v559 = vunpack.c.l.b16 %v263
        %v560 = vunpack.c.l.b16 %v264
        %v561 = vunpack.c.l.b16 %v265
        %v562 = vunpack.c.l.b16 %v266
        %v563 = vunpack.c.l.b16 %v267
        %v564 = vunpack.c.l.b16 %v268
        %v565 = vunpack.c.l.b16 %v269
        %v566 = vunpack.c.l.b16 %v270
        %v567 = vunpack.c.l.b16 %v271
        %v568 = vunpack.c.l.b16 %v272
        %v569 = vunpack.c.l.b16 %v273
        %v570 = vunpack.c.l.b16 %v274
        %v571 = vunpack.c.l.b16 %v275
        %v572 = vunpack.c.l.b16 %v276
        %v573 = vunpack.c.l.b16 %v277
        %v574 = vunpack.c.l.b16 %v278
        %v575 = vunpack.c.l.b16 %v279
        %v576 = vunpack.c.l.b16 %v280
        %v577 = vunpack.c.l.b16 %v281
        %v578 = vunpack.c.l.b16 %v282
        %v579 = vunpack.c.l.b16 %v283
        %v580 = vunpack.c.l.b16 %v284
        %v581 = vunpack.c.l.b16 %v285
        %v582 = vunpack.c.l.b16 %v286
        %v583 = vunpack.c.l.b16 %v287
        %v584 = vunpack.c.l.b16 %v288
        %v585 = vunpack.c.l.b16 %v289
        %v586 = vunpack.c.l.b16 %v290
        %v587 = vunpack.c.l.b16 %v291
        %v588 = vunpack.c.l.b16 %v292
        %v589 = vunpack.c.l.b16 %v293
        %v590 = vunpack.c.l.b16 %v294
        %v591 = vunpack.c.l.b16 %v295
        %v592 = vunpack.c.l.b16 %v296
        %v593 = vunpack.c.l.b16 %v297
        %v594 = vunpack.c.l.b16 %v298
        %v595 = vunpack.c.l.b16 %v299
        %v596 = vunpack.c.l.b16 %v300
        %v597 = vunpack.c.l.b16 %v301
        %v598 = vunpack.c.l.b16 %v302
        %v599 = vunpack.c.l.b16 %v303
        %v600 = vunpack.c.l.b16 %v304
        %v601 = vunpack.c.l.b16 %v305
        %v602 = vunpack.c.l.b16 %v306
        %v603 = vunpack.c.l.b16 %v307
        %v604 = vunpack.c.l.b16 %v308
        %v605 = vunpack.c.l.b16 %v309
        %v606 = vunpack.c.l.b16 %v310
        %v607 = vunpack.c.l.b16 %v311
        %v608 = vunpack.c.l.b16 %v312
        %v609 = vunpack.c.l.b16 %v313
        %v610 = vunpack.c.l.b16 %v314
        %v611 = vunpack.c.l.b16 %v315
        %v612 = vunpack.c.l.b16 %v316
        %v613 = vunpack.c.l.b16 %v317
        %v614 = vunpack.c.l.b16 %v318
        %v615 = vunpack.c.l.b16 %v319
        %v616 = vunpack.c.l.b16 %v320
        %v617 = vunpack.c.l.b16 %v321
        %v618 = vunpack.c.l.b16 %v322
        %v619 = vunpack.c.l.b16 %v323
        %v620 = vunpack.c.l.b16 %v324
        %v621 = vunpack.c.l.b16 %v325
        %v622 = vunpack.c.l.b16 %v326
        %v623 = vunpack.c.l.b16 %v327
        %v624 = vunpack.c.l.b16 %v328
        %v625 = vunpack.c.l.b16 %v329
        %v626 = vunpack.c.l.b16 %v330
        %v627 = vunpack.c.l.b16 %v331
        %v628 = vunpack.c.l.b16 %v332
        %v629 = vunpack.c.l.b16 %v333
        %v630 = vunpack.c.l.b16 %v334
        %v631 = vunpack.c.l.b16 %v335
        %v632 = vunpack.c.l.b16 %v336
        %v633 = vunpack.c.l.b16 %v337
        %v634 = vunpack.c.l.b16 %v338
        %v635 = vunpack.c.l.b16 %v339
        %v636 = vunpack.c.l.b16 %v340
        %v637 = vunpack.c.l.b16 %v341
        %v638 = vunpack.c.l.b16 %v342
        %v639 = vunpack.c.l.b16 %v343
        %v640 = vunpack.c.l.b16 %v344
        %v641 = vunpack.c.l.b16 %v345
        %v642 = vunpack.c.l.b16 %v346
        %v643 = vunpack.c.l.b16 %v347
        %v644 = vunpack.c.l.b16 %v348
        %v645 = vunpack.c.l.b16 %v349
        %v646 = vunpack.c.l.b16 %v350
        %v647 = vunpack.c.l.b16 %v351
        %v648 = vunpack.c.l.b16 %v352
        %v649 = vunpack.c.l.b16 %v353
        %v650 = vunpack.c.l.b16 %v354
        %v651 = vpack.c.b16 %v524, %v523
        %v652 = vpack.c.b16 %v526, %v525
        %v653 = vpack.c.b16 %v528, %v527
        %v654 = vpack.c.b16 %v530, %v529
        %v655 = vpack.c.b16 %v532, %v531
        %v656 = vpack.c.b16 %v534, %v533
        %v657 = vpack.c.b16 %v536, %v535
        %v658 = vpack.c.b16 %v538, %v537
        %v659 = vpack.c.b16 %v540, %v539
        %v660 = vpack.c.b16 %v542, %v541
        %v661 = vpack.c.b16 %v544, %v543
        %v662 = vpack.c.b16 %v546, %v545
        %v663 = vpack.c.b16 %v548, %v547
        %v664 = vpack.c.b16 %v550, %v549
        %v665 = vpack.c.b16 %v552, %v551
        %v666 = vpack.c.b16 %v554, %v553
        %v667 = vpack.c.b16 %v556, %v555
        %v668 = vpack.c.b16 %v558, %v557
        %v669 = vpack.c.b16 %v560, %v559
        %v670 = vpack.c.b16 %v562, %v561
        %v671 = vpack.c.b16 %v564, %v563
        %v672 = vpack.c.b16 %v566, %v565
        %v673 = vpack.c.b16 %v568, %v567
        %v674 = vpack.c.b16 %v570, %v569
        %v675 = vpack.c.b16 %v572, %v571
        %v676 = vpack.c.b16 %v574, %v573
        %v677 = vpack.c.b16 %v576, %v575
        %v678 = vpack.c.b16 %v578, %v577
        %v679 = vpack.c.b16 %v580, %v579
        %v680 = vpack.c.b16 %v582, %v581
        %v681 = vpack.c.b16 %v584, %v583
        %v682 = vpack.c.b16 %v586, %v585
        %v683 = vpack.c.b16 %v588, %v587
        %v684 = vpack.c.b16 %v590, %v589
        %v685 = vpack.c.b16 %v592, %v591
        %v686 = vpack.c.b16 %v594, %v593
        %v687 = vpack.c.b16 %v596, %v595
        %v688 = vpack.c.b16 %v598, %v597
        %v689 = vpack.c.b16 %v600, %v599
        %v690 = vpack.c.b16 %v602, %v601
        %v691 = vpack.c.b16 %v604, %v603
        %v692 = vpack.c.b16 %v606, %v605
        %v693 = vpack.c.b16 %v608, %v607
        %v694 = vpack.c.b16 %v610, %v609
        %v695 = vpack.c.b16 %v612, %v611
        %v696 = vpack.c.b16 %v614, %v613
        %v697 = vpack.c.b16 %v616, %v615
        %v698 = vpack.c.b16 %v618, %v617
        %v699 = vpack.c.b16 %v620, %v619
        %v700 = vpack.c.b16 %v622, %v621
        %v701 = vpack.c.b16 %v624, %v623
        %v702 = vpack.c.b16 %v626, %v625
        %v703 = vpack.c.b16 %v628, %v627
        %v704 = vpack.c.b16 %v630, %v629
        %v705 = vpack.c.b16 %v632, %v631
        %v706 = vpack.c.b16 %v634, %v633
        %v707 = vpack.c.b16 %v636, %v635
        %v708 = vpack.c.b16 %v638, %v637
        %v709 = vpack.c.b16 %v640, %v639
        %v710 = vpack.c.b16 %v642, %v641
        %v711 = vpack.c.b16 %v644, %v643
        %v712 = vpack.c.b16 %v646, %v645
        %v713 = vpack.c.b16 %v648, %v647
        %v714 = vpack.c.b16 %v650, %v649
        %779 = vmatprep.subr.bf16.mxu0 0
        %780 = vmatpush1.bf16.msra.mxu0 %v651
        %781 = vmatprep.subr.bf16.mxu0 0
        %782 = vmatpush1.bf16.msra.mxu0 %v652
        %783 = vmatprep.subr.bf16.mxu0 0
        %784 = vmatpush1.bf16.msra.mxu0 %v653
        %785 = vmatprep.subr.bf16.mxu0 0
        %786 = vmatpush1.bf16.msra.mxu0 %v654
        %787 = vmatprep.subr.bf16.mxu0 0
        %788 = vmatpush1.bf16.msra.mxu0 %v655
        %789 = vmatprep.subr.bf16.mxu0 0
        %790 = vmatpush1.bf16.msra.mxu0 %v656
        %791 = vmatprep.subr.bf16.mxu0 0
        %792 = vmatpush1.bf16.msra.mxu0 %v657
        %793 = vmatprep.subr.bf16.mxu0 0
        %794 = vmatpush1.bf16.msra.mxu0 %v658
        %795 = vmatprep.subr.bf16.mxu0 0
        %796 = vmatpush1.bf16.msra.mxu0 %v659
        %797 = vmatprep.subr.bf16.mxu0 0
        %798 = vmatpush1.bf16.msra.mxu0 %v660
        %799 = vmatprep.subr.bf16.mxu0 0
        %800 = vmatpush1.bf16.msra.mxu0 %v661
        %801 = vmatprep.subr.bf16.mxu0 0
        %802 = vmatpush1.bf16.msra.mxu0 %v662
        %803 = vmatprep.subr.bf16.mxu0 0
        %804 = vmatpush1.bf16.msra.mxu0 %v663
        %805 = vmatprep.subr.bf16.mxu0 0
        %806 = vmatpush1.bf16.msra.mxu0 %v664
        %807 = vmatprep.subr.bf16.mxu0 0
        %808 = vmatpush1.bf16.msra.mxu0 %v665
        %809 = vmatprep.subr.bf16.mxu0 0
        %810 = vmatpush1.bf16.msra.mxu0 %v666
        %811 = vmatprep.mubr.bf16.mxu0 %v380
        %812 = vmatmul.mubr.bf16.gmra.mrb[0].mxu0 %v379
        %v813 = vpop.f32.mrb[0].mxu0
        %v814 = vadd.f32 0.0, %v813
        %v815 = vpop.f32.mrb[0].mxu0
        %v816 = vpop.f32.mrb[0].mxu0
        %v817 = vadd.f32 0.0, %v816
        %v818 = vpop.f32.mrb[0].mxu0
        %819 = vdwg.mxu0
        %820 = vmatprep.subr.bf16.mxu0 0
        %821 = vmatpush1.bf16.msra.mxu0 %v667
        %822 = vmatprep.subr.bf16.mxu0 0
        %823 = vmatpush1.bf16.msra.mxu0 %v668
        %824 = vmatprep.subr.bf16.mxu0 0
        %825 = vmatpush1.bf16.msra.mxu0 %v669
        %826 = vmatprep.subr.bf16.mxu0 0
        %827 = vmatpush1.bf16.msra.mxu0 %v670
        %828 = vmatprep.subr.bf16.mxu0 0
        %829 = vmatpush1.bf16.msra.mxu0 %v671
        %830 = vmatprep.subr.bf16.mxu0 0
        %831 = vmatpush1.bf16.msra.mxu0 %v672
        %832 = vmatprep.subr.bf16.mxu0 0
        %833 = vmatpush1.bf16.msra.mxu0 %v673
        %834 = vmatprep.subr.bf16.mxu0 0
        %835 = vmatpush1.bf16.msra.mxu0 %v674
        %836 = vmatprep.subr.bf16.mxu0 0
        %837 = vmatpush1.bf16.msra.mxu0 %v675
        %838 = vmatprep.subr.bf16.mxu0 0
        %839 = vmatpush1.bf16.msra.mxu0 %v676
        %840 = vmatprep.subr.bf16.mxu0 0
        %841 = vmatpush1.bf16.msra.mxu0 %v677
        %842 = vmatprep.subr.bf16.mxu0 0
        %843 = vmatpush1.bf16.msra.mxu0 %v678
        %844 = vmatprep.subr.bf16.mxu0 0
        %845 = vmatpush1.bf16.msra.mxu0 %v679
        %846 = vmatprep.subr.bf16.mxu0 0
        %847 = vmatpush1.bf16.msra.mxu0 %v680
        %848 = vmatprep.subr.bf16.mxu0 0
        %849 = vmatpush1.bf16.msra.mxu0 %v681
        %850 = vmatprep.subr.bf16.mxu0 0
        %851 = vmatpush1.bf16.msra.mxu0 %v682
        %852 = vmatprep.mubr.bf16.mxu0 %v382
        %853 = vmatmul.mubr.bf16.gmra.mrb[0].mxu0 %v381
        %v854 = vpop.f32.mrb[0].mxu0
        %v855 = vadd.f32 %v814, %v854
        %v856 = vpop.f32.mrb[0].mxu0
        %v857 = vpop.f32.mrb[0].mxu0
        %v858 = vadd.f32 %v817, %v857
        %v859 = vpop.f32.mrb[0].mxu0
        %860 = vdwg.mxu0
        %861 = vmatprep.subr.bf16.mxu0 0
        %862 = vmatpush1.bf16.msra.mxu0 %v683
        %863 = vmatprep.subr.bf16.mxu0 0
        %864 = vmatpush1.bf16.msra.mxu0 %v684
        %865 = vmatprep.subr.bf16.mxu0 0
        %866 = vmatpush1.bf16.msra.mxu0 %v685
        %867 = vmatprep.subr.bf16.mxu0 0
        %868 = vmatpush1.bf16.msra.mxu0 %v686
        %869 = vmatprep.subr.bf16.mxu0 0
        %870 = vmatpush1.bf16.msra.mxu0 %v687
        %871 = vmatprep.subr.bf16.mxu0 0
        %872 = vmatpush1.bf16.msra.mxu0 %v688
        %873 = vmatprep.subr.bf16.mxu0 0
        %874 = vmatpush1.bf16.msra.mxu0 %v689
        %875 = vmatprep.subr.bf16.mxu0 0
        %876 = vmatpush1.bf16.msra.mxu0 %v690
        %877 = vmatprep.subr.bf16.mxu0 0
        %878 = vmatpush1.bf16.msra.mxu0 %v691
        %879 = vmatprep.subr.bf16.mxu0 0
        %880 = vmatpush1.bf16.msra.mxu0 %v692
        %881 = vmatprep.subr.bf16.mxu0 0
        %882 = vmatpush1.bf16.msra.mxu0 %v693
        %883 = vmatprep.subr.bf16.mxu0 0
        %884 = vmatpush1.bf16.msra.mxu0 %v694
        %885 = vmatprep.subr.bf16.mxu0 0
        %886 = vmatpush1.bf16.msra.mxu0 %v695
        %887 = vmatprep.subr.bf16.mxu0 0
        %888 = vmatpush1.bf16.msra.mxu0 %v696
        %889 = vmatprep.subr.bf16.mxu0 0
        %890 = vmatpush1.bf16.msra.mxu0 %v697
        %891 = vmatprep.subr.bf16.mxu0 0
        %892 = vmatpush1.bf16.msra.mxu0 %v698
        %893 = vmatprep.mubr.bf16.mxu0 %v384
        %894 = vmatmul.mubr.bf16.gmra.mrb[0].mxu0 %v383
        %v895 = vpop.f32.mrb[0].mxu0
        %v896 = vadd.f32 %v855, %v895
        %v897 = vpop.f32.mrb[0].mxu0
        %v898 = vpop.f32.mrb[0].mxu0
        %v899 = vadd.f32 %v858, %v898
        %v900 = vpop.f32.mrb[0].mxu0
        %901 = vdwg.mxu0
        %902 = vmatprep.subr.bf16.mxu0 0
        %903 = vmatpush1.bf16.msra.mxu0 %v699
        %904 = vmatprep.subr.bf16.mxu0 0
        %905 = vmatpush1.bf16.msra.mxu0 %v700
        %906 = vmatprep.subr.bf16.mxu0 0
        %907 = vmatpush1.bf16.msra.mxu0 %v701
        %908 = vmatprep.subr.bf16.mxu0 0
        %909 = vmatpush1.bf16.msra.mxu0 %v702
        %910 = vmatprep.subr.bf16.mxu0 0
        %911 = vmatpush1.bf16.msra.mxu0 %v703
        %912 = vmatprep.subr.bf16.mxu0 0
        %913 = vmatpush1.bf16.msra.mxu0 %v704
        %914 = vmatprep.subr.bf16.mxu0 0
        %915 = vmatpush1.bf16.msra.mxu0 %v705
        %916 = vmatprep.subr.bf16.mxu0 0
        %917 = vmatpush1.bf16.msra.mxu0 %v706
        %918 = vmatprep.subr.bf16.mxu0 0
        %919 = vmatpush1.bf16.msra.mxu0 %v707
        %920 = vmatprep.subr.bf16.mxu0 0
        %921 = vmatpush1.bf16.msra.mxu0 %v708
        %922 = vmatprep.subr.bf16.mxu0 0
        %923 = vmatpush1.bf16.msra.mxu0 %v709
        %924 = vmatprep.subr.bf16.mxu0 0
        %925 = vmatpush1.bf16.msra.mxu0 %v710
        %926 = vmatprep.subr.bf16.mxu0 0
        %927 = vmatpush1.bf16.msra.mxu0 %v711
        %928 = vmatprep.subr.bf16.mxu0 0
        %929 = vmatpush1.bf16.msra.mxu0 %v712
        %930 = vmatprep.subr.bf16.mxu0 0
        %931 = vmatpush1.bf16.msra.mxu0 %v713
        %932 = vmatprep.subr.bf16.mxu0 0
        %933 = vmatpush1.bf16.msra.mxu0 %v714
        %934 = vmatprep.mubr.bf16.mxu0 %v386
        %935 = vmatmul.mubr.bf16.gmra.mrb[0].mxu0 %v385
        %v936 = vpop.f32.mrb[0].mxu0
        %v937 = vadd.f32 %v896, %v936
        %v938 = vpop.f32.mrb[0].mxu0
        %v939 = vpop.f32.mrb[0].mxu0
        %v940 = vadd.f32 %v899, %v939
        %v941 = vpop.f32.mrb[0].mxu0
        %942 = vdwg.mxu0
        %v943 = vadd.f32 %v225, %v937
        %v944 = vadd.f32 %v226, %v940
        %945 = vst [vmem:[#allocation2] sm:$0xff] %v943
        %946 = vst [vmem:[#allocation2 + $0x8] sm:$0xff] %v944
        // Predicated region
        $region37: #{mesh_to_image_forward.5} parent=31 // pred_check
          %p947 = pneg %p206
        $region38: #{mesh_to_image_forward.5} parent=31 // pred_check_branch
          %949 = sbr.rel (%p947) target = $region40
        $region39: #{mesh_to_image_forward.5} parent=31 // pred_region
          %v950 = vld [vmem:[#allocation2] sm:$0xff]
          %v951 = vld [vmem:[#allocation2 + $0x8] sm:$0xff]
          %v952 = vld [vmem:[%s204] sm:$0x1]
          %v954 = vlaneseq
          %v955 = vshrl.u32 %v954, 7
          %v956 = vsub.s32 0, %v955
          %v957 = vrot.slane %v952, %v956
          %v959 = vadd.f32 %v950, %v957
          %v960 = vadd.f32 %v951, %v957
          %961 = vst [vmem:[%s192] sm:$0xff] %v959
          %962 = vst [vmem:[%s192 + $0x8] sm:$0xff] %v960
        $region40: #{mesh_to_image_forward.5} parent=31 // pred_fallthru
          _
        %s963 = sand.u32 %s109, 1
        %s964 = sand.u32 %s109, 1
        %s965 = smul.addr %s964, 16
        %s966 = scalar_lea.vmem [#allocation3], %s965
        // Predicated region
        $region41: #{mesh_to_image_forward.5} parent=31 // pred_check
          %p967 = pneg %p119
        $region42: #{mesh_to_image_forward.5} parent=31 // pred_check_branch
          %969 = sbr.rel (%p967) target = $region44
        $region43: #{mesh_to_image_forward.5} parent=31 // pred_region
          %s970 = smul.addr %s18, 8
          %s971 = scalar_lea.vmem %s3, %s970
          // Predicated region
          $region45: #{mesh_to_image_forward.5} parent=43 // pred_check
            _
          $region46: #{mesh_to_image_forward.5} parent=43 // pred_check_branch
            %973 = sbr.rel (0) target = $region48
          $region47: #{mesh_to_image_forward.5} parent=43 // pred_region
            // Predicated region
            $region49: #{mesh_to_image_forward.5} parent=47 // pred_check
              _
            $region50: #{mesh_to_image_forward.5} parent=47 // pred_check_branch
              %975 = sbr.rel (0) target = $region52
            $region51: #{mesh_to_image_forward.5} parent=47 // pred_region
              // Predicated region
              $region64: #{mesh_to_image_forward.5} parent=51 // pred_check
                _
              $region65: #{mesh_to_image_forward.5} parent=51 // pred_check_branch
                %992 = sbr.rel (0) target = $region67
              $region66: #{mesh_to_image_forward.5} parent=51 // pred_region
                loop: start=0, step=1, limit=1
                $region68: #{mesh_to_image_forward.5} parent=66 // loop_pre_header
                  _
                $region69: #{mesh_to_image_forward.5} parent=66 // loop_header
                  %s994 = sphi 0, %s998
                  %p995 = scmp.ge.s32.totalorder %s994, 1
                  %s999 = sphi %s966, %s966
                  %s1000 = sphi %s971, %s971
                $region70: #{mesh_to_image_forward.5} parent=66 // loop_header_branch
                  %997 = sbr.rel (%p995) target = $region74
                $region71: #{mesh_to_image_forward.5} parent=66 // loop_body
                  %v1001 = vld [vmem:[%s999] sm:$0xff]
                  %1002 = vst [vmem:[%s1000] sm:$0xff] %v1001
                  %v1003 = vld [vmem:[%s999 + $0x8] sm:$0xff]
                  %1004 = vst [vmem:[%s1000 + $0x10] sm:$0xff] %v1003
                $region72: #{mesh_to_image_forward.5} parent=66 // loop_footer
                  %s998 = sadd.s32 1, %s994
                $region73: #{mesh_to_image_forward.5} parent=66 // loop_footer_branch
                  %993 = sbr.rel target = $region69
                $region74: #{mesh_to_image_forward.5} parent=66 // loop_exit
                  _
              $region67: #{mesh_to_image_forward.5} parent=51 // pred_fallthru
                _
              // Predicated region
              $region75: #{mesh_to_image_forward.5} parent=51 // pred_check
                _
              $region76: #{mesh_to_image_forward.5} parent=51 // pred_check_branch
                %1006 = sbr.rel target = $region78
              $region77: #{mesh_to_image_forward.5} parent=51 // pred_region
                _
              $region78: #{mesh_to_image_forward.5} parent=51 // pred_fallthru
                _
            $region52: #{mesh_to_image_forward.5} parent=47 // pred_fallthru
              _
            // Predicated region
            $region53: #{mesh_to_image_forward.5} parent=47 // pred_check
              _
            $region54: #{mesh_to_image_forward.5} parent=47 // pred_check_branch
              %977 = sbr.rel target = $region56
            $region55: #{mesh_to_image_forward.5} parent=47 // pred_region
              loop: start=0, step=1, limit=1
              $region57: #{mesh_to_image_forward.5} parent=55 // loop_pre_header
                _
              $region58: #{mesh_to_image_forward.5} parent=55 // loop_header
                %s980 = sphi 0, %s984
                %p981 = scmp.ge.s32.totalorder %s980, 1
                %s985 = sphi %s966, %s966
                %s986 = sphi %s971, %s971
              $region59: #{mesh_to_image_forward.5} parent=55 // loop_header_branch
                %983 = sbr.rel (%p981) target = $region63
              $region60: #{mesh_to_image_forward.5} parent=55 // loop_body
                %v987 = vld [vmem:[%s985] sm:$0xff]
                %988 = vst [vmem:[%s986] sm:$0xff] %v987
                %v989 = vld [vmem:[%s985 + $0x8] sm:$0xff]
                %990 = vst [vmem:[%s986 + $0x10] sm:$0xff] %v989
              $region61: #{mesh_to_image_forward.5} parent=55 // loop_footer
                %s984 = sadd.s32 1, %s980
              $region62: #{mesh_to_image_forward.5} parent=55 // loop_footer_branch
                %979 = sbr.rel target = $region58
              $region63: #{mesh_to_image_forward.5} parent=55 // loop_exit
                _
            $region56: #{mesh_to_image_forward.5} parent=47 // pred_fallthru
              _
          $region48: #{mesh_to_image_forward.5} parent=43 // pred_fallthru
            _
          %1007 = vnop
        $region44: #{mesh_to_image_forward.5} parent=31 // pred_fallthru
          _
      $region32: #{mesh_to_image_forward.5} parent=5 // pred_fallthru
        _
      %p1008 = scmp.le.s32.totalorder 2, %s9
      // Predicated region
      $region79: #{mesh_to_image_forward.5} parent=5 // pred_check
        %p1009 = pneg %p1008
      $region80: #{mesh_to_image_forward.5} parent=5 // pred_check_branch
        %1011 = sbr.rel (%p1009) target = $region82
      $region81: #{mesh_to_image_forward.5} parent=5 // pred_region
        %s1012 = ssub.s32 %s9, 2
        // Predicated region
        $region83: #{mesh_to_image_forward.5} parent=81 // pred_check
          %p1013 = pneg %p125
        $region84: #{mesh_to_image_forward.5} parent=81 // pred_check_branch
          %1015 = sbr.rel (%p1013) target = $region86
        $region85: #{mesh_to_image_forward.5} parent=81 // pred_region
          %s1016 = sand.u32 %s110, 1
          %s1017 = sand.u32 %s110, 1
          %s1018 = smul.addr %s1017, 16
          %s1019 = scalar_lea.vmem [#allocation3], %s1018
        $region86: #{mesh_to_image_forward.5} parent=81 // pred_fallthru
          _
      $region82: #{mesh_to_image_forward.5} parent=5 // pred_fallthru
        _
    $region6: #{mesh_to_image_forward.5} parent=1 // loop_footer
      %s13 = sadd.s32 1, %s9
    $region7: #{mesh_to_image_forward.5} parent=1 // loop_footer_branch
      %8 = sbr.rel target = $region3
    $region8: #{mesh_to_image_forward.5} parent=1 // loop_exit
      _

// kernel: mesh_to_image_forward.3
$region0: #{mesh_to_image_forward.3}
  #allocation0 [shape = 'u32[]', space=smem, size = 0x4, offset = 0x4, fixed_abs, tag = 'smem constant byte address 0x4 - core index']
  #allocation1 [shape = 'u32[144,128]{1,0:T(1,128)}', space=vmem, size = 0x12000, scoped, tag = 'internal scratch']
  #allocation2 [shape = 'f32[16,1024]{1,0:T(8,128)}', space=vmem, size = 0x10000, scoped, tag = 'scratch operand']
  %s0 = inlined_call_operand.vmem [shape: bf16[16,256], index: 0, kind: input, shape index: {}]
  %s1 = inlined_call_operand.hbm [shape: bf16[4,1,256,1024], index: 1, kind: input, shape index: {}]
  %s2 = inlined_call_operand.hbm [shape: f32[1,4096], index: 2, kind: input, shape index: {}]
  %s3 = inlined_call_operand.vmem [shape: bf16[16,4096], index: 3, kind: output, shape index: {}]
  %s4 = sld [smem:[#allocation0]]
  $region80: #{mesh_to_image_forward.3} parent=0
    _
  %s6 = ssub.s32 1, %s4
  %s7 = scalar_select 0, %s6, %s4
  $region1: #{mesh_to_image_forward.3} parent=0
    #allocation3 [shape = 'u8[1048576]{0}', space=vmem, size = 0x100000, scoped, tag = 'input window, operand 1']
    #allocation4 [shape = 's32[2]{0}', space=sflag, size = 0x8, scoped, tag = 'scoped memory for mesh_to_image_forward.3']
    #allocation5 [shape = 'u8[8192]{0}', space=vmem, size = 0x2000, scoped, tag = 'input window, operand 2']
    #allocation6 [shape = 's32[2]{0}', space=sflag, size = 0x8, scoped, tag = 'scoped memory for mesh_to_image_forward.3']
    #allocation7 [shape = 'u8[65536]{0}', space=vmem, size = 0x10000, scoped, tag = 'output window, operand 0']
    %8 = vsyncpa [#allocation4], 0
    %s9 = scalar_lea.sflag [#allocation4], 1
    %10 = vsyncpa %s9, 0
    %11 = vsyncpa [#allocation6], 0
    %s12 = scalar_lea.sflag [#allocation6], 1
    %13 = vsyncpa %s12, 0
    loop: start=0, step=1, limit=6
    $region2: #{mesh_to_image_forward.3} parent=1 // loop_pre_header
      _
    $region3: #{mesh_to_image_forward.3} parent=1 // loop_header
      %s15 = sphi 0, %s19
      %p16 = scmp.ge.s32.totalorder %s15, 6
      %s22 = sphi 0, %s34
      %s23 = sphi 0, %s30
      %s24 = sphi 0, %s22
      %s25 = sphi 0, %s23
      %s26 = sphi 0, %s24
      %s27 = sphi 0, %s25
      %s35 = sphi 0, %s35
      %s37 = sphi 0, %s35
      %s38 = sphi 0, %s37
      %s52 = sphi 0, %s38
      %s60 = sphi 0, %s62
      %s63 = sphi 0, %s60
      %s64 = sphi 0, %s63
      %s80 = sphi 0, %s64
      %s86 = sphi 0, %s88
      %s89 = sphi 0, %s86
      %s90 = sphi 0, %s89
      %s106 = sphi 0, %s90
      %s112 = sphi 0, %s114
      %s115 = sphi 0, %s112
      %s116 = sphi 0, %s115
      %s132 = sphi 0, %s116
    $region4: #{mesh_to_image_forward.3} parent=1 // loop_header_branch
      %18 = sbr.rel (%p16) target = $region8
    $region5: #{mesh_to_image_forward.3} parent=1 // loop_body
      %s20 = ssub.s32 %s15, 1
      %s21 = ssub.s32 %s15, 2
      %s28 = sadd.s32 1, %s23
      %p29 = scmp.ge.s32.totalorder %s28, 1
      %s30 = scalar_select %p29, 0, %s28
      %s31 = sadd.s32 1, %s22
      %s32 = scalar_select %p29, %s31, %s22
      %p33 = scmp.ge.s32.totalorder %s32, 4
      %s34 = scalar_select %p33, 0, %s32
      %s36 = sadd.s32 %s35, 1
      %p39 = scmp.eq.s32.totalorder %s15, 3
      %p40 = scmp.ne.s32.totalorder %s35, %s37
      %p41 = scmp.eq.s32.totalorder %s15, 0
      %p42 = por %p40, %p41
      %p43 = scmp.ne.s32.totalorder %s35, %s37
      %p44 = scmp.eq.s32.totalorder %s20, 3
      %p45 = por %p43, %p44
      %p46 = scmp.ne.s32.totalorder %s37, %s38
      %p47 = scmp.eq.s32.totalorder %s20, 0
      %p48 = por %p46, %p47
      %p49 = scmp.ne.s32.totalorder %s37, %s38
      %p50 = scmp.eq.s32.totalorder %s21, 3
      %p51 = por %p49, %p50
      %p53 = scmp.ne.s32.totalorder %s38, %s52
      %p54 = scmp.eq.s32.totalorder %s21, 0
      %p55 = por %p53, %p54
      %s56 = ssub.s32 %s22, %s34
      %s57 = ssub.s32 %s23, %s30
      %s58 = sor.u32 %s56, %s57
      %p59 = scmp.eq.s32.totalorder %s58, 0
      %s61 = sadd.s32 %s60, 1
      %s62 = scalar_select %p59, %s60, %s61
      %p65 = pneg %p59
      %p66 = scmp.eq.s32.totalorder %s15, 3
      %p67 = por %p65, %p66
      %p68 = scmp.ne.s32.totalorder %s60, %s63
      %p69 = scmp.eq.s32.totalorder %s15, 0
      %p70 = por %p68, %p69
      %p71 = scmp.ne.s32.totalorder %s60, %s63
      %p72 = scmp.eq.s32.totalorder %s20, 3
      %p73 = por %p71, %p72
      %p74 = scmp.ne.s32.totalorder %s63, %s64
      %p75 = scmp.eq.s32.totalorder %s20, 0
      %p76 = por %p74, %p75
      %p77 = scmp.ne.s32.totalorder %s63, %s64
      %p78 = scmp.eq.s32.totalorder %s21, 3
      %p79 = por %p77, %p78
      %p81 = scmp.ne.s32.totalorder %s64, %s80
      %p82 = scmp.eq.s32.totalorder %s21, 0
      %p83 = por %p81, %p82
      %s84 = ssub.s32 %s22, %s34
      %p85 = scmp.eq.s32.totalorder %s84, 0
      %s87 = sadd.s32 %s86, 1
      %s88 = scalar_select %p85, %s86, %s87
      %p91 = pneg %p85
      %p92 = scmp.eq.s32.totalorder %s15, 3
      %p93 = por %p91, %p92
      %p94 = scmp.ne.s32.totalorder %s86, %s89
      %p95 = scmp.eq.s32.totalorder %s15, 0
      %p96 = por %p94, %p95
      %p97 = scmp.ne.s32.totalorder %s86, %s89
      %p98 = scmp.eq.s32.totalorder %s20, 3
      %p99 = por %p97, %p98
      %p100 = scmp.ne.s32.totalorder %s89, %s90
      %p101 = scmp.eq.s32.totalorder %s20, 0
      %p102 = por %p100, %p101
      %p103 = scmp.ne.s32.totalorder %s89, %s90
      %p104 = scmp.eq.s32.totalorder %s21, 3
      %p105 = por %p103, %p104
      %p107 = scmp.ne.s32.totalorder %s90, %s106
      %p108 = scmp.eq.s32.totalorder %s21, 0
      %p109 = por %p107, %p108
      %s110 = ssub.s32 %s22, %s34
      %p111 = scmp.eq.s32.totalorder %s110, 0
      %s113 = sadd.s32 %s112, 1
      %s114 = scalar_select %p111, %s112, %s113
      %p117 = pneg %p111
      %p118 = scmp.eq.s32.totalorder %s15, 3
      %p119 = por %p117, %p118
      %p120 = scmp.ne.s32.totalorder %s112, %s115
      %p121 = scmp.eq.s32.totalorder %s15, 0
      %p122 = por %p120, %p121
      %p123 = scmp.ne.s32.totalorder %s112, %s115
      %p124 = scmp.eq.s32.totalorder %s20, 3
      %p125 = por %p123, %p124
      %p126 = scmp.ne.s32.totalorder %s115, %s116
      %p127 = scmp.eq.s32.totalorder %s20, 0
      %p128 = por %p126, %p127
      %p129 = scmp.ne.s32.totalorder %s115, %s116
      %p130 = scmp.eq.s32.totalorder %s21, 3
      %p131 = por %p129, %p130
      %p133 = scmp.ne.s32.totalorder %s116, %s132
      %p134 = scmp.eq.s32.totalorder %s21, 0
      %p135 = por %p133, %p134
      %p136 = scmp.le.s32.totalorder 1, %s15
      %p137 = scmp.lt.s32.totalorder %s15, 5
      %p138 = pnand %p136, %p137
      %p139 = pneg %p138
      // Predicated region
      $region9: #{mesh_to_image_forward.3} parent=5 // pred_check
        _
      $region10: #{mesh_to_image_forward.3} parent=5 // pred_check_branch
        %141 = sbr.rel (%p138) target = $region12
      $region11: #{mesh_to_image_forward.3} parent=5 // pred_region
        %s142 = ssub.s32 %s15, 1
        // Predicated region
        $region13: #{mesh_to_image_forward.3} parent=11 // pred_check
          %p143 = pneg %p48
        $region14: #{mesh_to_image_forward.3} parent=11 // pred_check_branch
          %145 = sbr.rel (%p143) target = $region16
        $region15: #{mesh_to_image_forward.3} parent=11 // pred_region
          _
        $region16: #{mesh_to_image_forward.3} parent=11 // pred_fallthru
          _
      $region12: #{mesh_to_image_forward.3} parent=5 // pred_fallthru
        _
      %p146 = scmp.lt.s32.totalorder %s15, 4
      // Predicated region
      $region17: #{mesh_to_image_forward.3} parent=5 // pred_check
        %p147 = pneg %p146
      $region18: #{mesh_to_image_forward.3} parent=5 // pred_check_branch
        %149 = sbr.rel (%p147) target = $region20
      $region19: #{mesh_to_image_forward.3} parent=5 // pred_region
        // Predicated region
        $region21: #{mesh_to_image_forward.3} parent=19 // pred_check
          %p150 = pneg %p70
        $region22: #{mesh_to_image_forward.3} parent=19 // pred_check_branch
          %152 = sbr.rel (%p150) target = $region24
        $region23: #{mesh_to_image_forward.3} parent=19 // pred_region
          %s153 = sand.u32 %s60, 1
          %s154 = scalar_lea.sflag [#allocation4], %s153
          %s155 = sand.u32 %s60, 1
          %s156 = smul.addr %s155, 1024
          %s157 = scalar_lea.vmem [#allocation3], %s156
          %s159 = ssub.s32 16384, 16384
          %160 = vsyncadd %s154, %s159
          %s161 = smul.addr %s23, 256
          %s162 = smul.addr %s22, 256
          %s163 = sadd.s32 %s161, %s162
          %s164 = smul.addr %s163, 64
          %s165 = scalar_lea.hbm %s1, %s164
          %s166 = sshll.u32 %s157, 4
          %s167 = int_to_ptr.vmem [resolvable:$true] %s166
          %172 = dma.hbm_to_vmem [thread:$0]  %s165, 16384, %s167, %s154, 512, 512, 32
        $region24: #{mesh_to_image_forward.3} parent=19 // pred_fallthru
          _
        // Predicated region
        $region25: #{mesh_to_image_forward.3} parent=19 // pred_check
          %p173 = pneg %p96
        $region26: #{mesh_to_image_forward.3} parent=19 // pred_check_branch
          %175 = sbr.rel (%p173) target = $region28
        $region27: #{mesh_to_image_forward.3} parent=19 // pred_region
          %s176 = sand.u32 %s86, 1
          %s177 = scalar_lea.sflag [#allocation6], %s176
          %s178 = sand.u32 %s86, 1
          %s179 = smul.addr %s178, 8
          %s180 = scalar_lea.vmem [#allocation5], %s179
          %s181 = smul.u32 8, %s22
          %s183 = ssub.s32 128, 128
          %184 = vsyncadd %s177, %s183
          %s185 = smul.addr %s181, 16
          %s186 = scalar_lea.hbm %s2, %s185
          %s188 = sshll.u32 %s180, 4
          %s189 = int_to_ptr.vmem [resolvable:$true] %s188
          %191 = dma.hbm_to_vmem [thread:$0]  %s186, 128, %s189, %s177
        $region28: #{mesh_to_image_forward.3} parent=19 // pred_fallthru
          _
      $region20: #{mesh_to_image_forward.3} parent=5 // pred_fallthru
        _
      %p192 = scmp.le.s32.totalorder 1, %s15
      %p193 = scmp.lt.s32.totalorder %s15, 5
      %p194 = pnand %p192, %p193
      %p195 = pneg %p194
      // Predicated region
      $region29: #{mesh_to_image_forward.3} parent=5 // pred_check
        _
      $region30: #{mesh_to_image_forward.3} parent=5 // pred_check_branch
        %197 = sbr.rel (%p194) target = $region32
      $region31: #{mesh_to_image_forward.3} parent=5 // pred_region
        %s198 = ssub.s32 %s15, 1
        %s199 = sand.u32 %s63, 1
        %s200 = scalar_lea.sflag [#allocation4], %s199
        %s201 = sand.u32 %s63, 1
        %s202 = smul.addr %s201, 1024
        %s203 = scalar_lea.vmem [#allocation3], %s202
        // Predicated region
        $region33: #{mesh_to_image_forward.3} parent=31 // pred_check
          %p204 = pneg %p76
        $region34: #{mesh_to_image_forward.3} parent=31 // pred_check_branch
          %206 = sbr.rel (%p204) target = $region36
        $region35: #{mesh_to_image_forward.3} parent=31 // pred_region
          %207 = dma.done %s200, 16384
        $region36: #{mesh_to_image_forward.3} parent=31 // pred_fallthru
          _
        %s208 = sand.u32 %s89, 1
        %s209 = scalar_lea.sflag [#allocation6], %s208
        %s210 = sand.u32 %s89, 1
        %s211 = smul.addr %s210, 8
        %s212 = scalar_lea.vmem [#allocation5], %s211
        // Predicated region
        $region37: #{mesh_to_image_forward.3} parent=31 // pred_check
          %p213 = pneg %p102
        $region38: #{mesh_to_image_forward.3} parent=31 // pred_check_branch
          %215 = sbr.rel (%p213) target = $region40
        $region39: #{mesh_to_image_forward.3} parent=31 // pred_region
          %216 = dma.done %s209, 128
        $region40: #{mesh_to_image_forward.3} parent=31 // pred_fallthru
          _
        %p217 = pneg %p48
        %p218 = pneg %p45
        %s219 = sand.u32 %s63, 1
        %s220 = scalar_lea.sflag [#allocation4], %s219
        %s221 = sand.u32 %s63, 1
        %s222 = smul.addr %s221, 1024
        %s223 = scalar_lea.vmem [#allocation3], %s222
        %p224 = pneg %p76
        %p225 = pneg %p73
        %s226 = sand.u32 %s89, 1
        %s227 = scalar_lea.sflag [#allocation6], %s226
        %s228 = sand.u32 %s89, 1
        %s229 = smul.addr %s228, 8
        %s230 = scalar_lea.vmem [#allocation5], %s229
        %p231 = pneg %p102
        %p232 = pneg %p99
        %p233 = pneg %p128
        %p234 = pneg %p125
        %s235 = sand.u32 %s115, 1
        %s236 = sand.u32 %s115, 1
        %s237 = smul.addr %s236, 64
        %s238 = scalar_lea.vmem [#allocation7], %s237
        %s239 = smul.u32 8, %s24
        %s240 = smul.u32 8, %s24
        %p241 = scmp.eq.s32.totalorder %s25, 0
        // Predicated region
        $region41: #{mesh_to_image_forward.3} parent=31 // pred_check
          %p242 = pneg %p241
        $region42: #{mesh_to_image_forward.3} parent=31 // pred_check_branch
          %244 = sbr.rel (%p242) target = $region44
        $region43: #{mesh_to_image_forward.3} parent=31 // pred_region
          %245 = vst [vmem:[#allocation2] sm:$0xff] 0.0
          %246 = vst [vmem:[#allocation2 + $0x8] sm:$0xff] 0.0
          %247 = vst [vmem:[#allocation2 + $0x10] sm:$0xff] 0.0
          %248 = vst [vmem:[#allocation2 + $0x18] sm:$0xff] 0.0
          %249 = vst [vmem:[#allocation2 + $0x20] sm:$0xff] 0.0
          %250 = vst [vmem:[#allocation2 + $0x28] sm:$0xff] 0.0
          %251 = vst [vmem:[#allocation2 + $0x30] sm:$0xff] 0.0
          %252 = vst [vmem:[#allocation2 + $0x38] sm:$0xff] 0.0
          %253 = vst [vmem:[#allocation2 + $0x40] sm:$0xff] 0.0
          %254 = vst [vmem:[#allocation2 + $0x48] sm:$0xff] 0.0
          %255 = vst [vmem:[#allocation2 + $0x50] sm:$0xff] 0.0
          %256 = vst [vmem:[#allocation2 + $0x58] sm:$0xff] 0.0
          %257 = vst [vmem:[#allocation2 + $0x60] sm:$0xff] 0.0
          %258 = vst [vmem:[#allocation2 + $0x68] sm:$0xff] 0.0
          %259 = vst [vmem:[#allocation2 + $0x70] sm:$0xff] 0.0
          %260 = vst [vmem:[#allocation2 + $0x78] sm:$0xff] 0.0
        $region44: #{mesh_to_image_forward.3} parent=31 // pred_fallthru
          _
        %s261 = smul.u32 %s25, 256
        %s262 = sshra.s32 %s261, 7
        %s263 = sand.u32 %s261, 127
        %s264 = smul.addr %s262, 4
        %s265 = scalar_lea.vmem %s0, %s264
        %v266 = vld [vmem:[%s265] sm:$0xff]
        %v267 = vld [vmem:[%s265 + $0x8] sm:$0xff]
        %v268 = vld [vmem:[#allocation2] sm:$0xff]
        %v269 = vld [vmem:[#allocation2 + $0x8] sm:$0xff]
        %v270 = vld [vmem:[#allocation2 + $0x10] sm:$0xff]
        %v271 = vld [vmem:[#allocation2 + $0x18] sm:$0xff]
        %v272 = vld [vmem:[#allocation2 + $0x20] sm:$0xff]
        %v273 = vld [vmem:[#allocation2 + $0x28] sm:$0xff]
        %v274 = vld [vmem:[#allocation2 + $0x30] sm:$0xff]
        %v275 = vld [vmem:[#allocation2 + $0x38] sm:$0xff]
        %v276 = vld [vmem:[#allocation2 + $0x40] sm:$0xff]
        %v277 = vld [vmem:[#allocation2 + $0x48] sm:$0xff]
        %v278 = vld [vmem:[#allocation2 + $0x50] sm:$0xff]
        %v279 = vld [vmem:[#allocation2 + $0x58] sm:$0xff]
        %v280 = vld [vmem:[#allocation2 + $0x60] sm:$0xff]
        %v281 = vld [vmem:[#allocation2 + $0x68] sm:$0xff]
        %v282 = vld [vmem:[#allocation2 + $0x70] sm:$0xff]
        %v283 = vld [vmem:[#allocation2 + $0x78] sm:$0xff]
        %v284 = vld [vmem:[%s203] sm:$0xff]
        %v285 = vld [vmem:[%s203 + $0x8] sm:$0xff]
        %v286 = vld [vmem:[%s203 + $0x10] sm:$0xff]
        %v287 = vld [vmem:[%s203 + $0x18] sm:$0xff]
        %v288 = vld [vmem:[%s203 + $0x20] sm:$0xff]
        %v289 = vld [vmem:[%s203 + $0x28] sm:$0xff]
        %v290 = vld [vmem:[%s203 + $0x30] sm:$0xff]
        %v291 = vld [vmem:[%s203 + $0x38] sm:$0xff]
        %v292 = vld [vmem:[%s203 + $0x40] sm:$0xff]
        %v293 = vld [vmem:[%s203 + $0x48] sm:$0xff]
        %v294 = vld [vmem:[%s203 + $0x50] sm:$0xff]
        %v295 = vld [vmem:[%s203 + $0x58] sm:$0xff]
        %v296 = vld [vmem:[%s203 + $0x60] sm:$0xff]
        %v297 = vld [vmem:[%s203 + $0x68] sm:$0xff]
        %v298 = vld [vmem:[%s203 + $0x70] sm:$0xff]
        %v299 = vld [vmem:[%s203 + $0x78] sm:$0xff]
        %v300 = vld [vmem:[%s203 + $0x80] sm:$0xff]
        %v301 = vld [vmem:[%s203 + $0x88] sm:$0xff]
        %v302 = vld [vmem:[%s203 + $0x90] sm:$0xff]
        %v303 = vld [vmem:[%s203 + $0x98] sm:$0xff]
        %v304 = vld [vmem:[%s203 + $0xa0] sm:$0xff]
        %v305 = vld [vmem:[%s203 + $0xa8] sm:$0xff]
        %v306 = vld [vmem:[%s203 + $0xb0] sm:$0xff]
        %v307 = vld [vmem:[%s203 + $0xb8] sm:$0xff]
        %v308 = vld [vmem:[%s203 + $0xc0] sm:$0xff]
        %v309 = vld [vmem:[%s203 + $0xc8] sm:$0xff]
        %v310 = vld [vmem:[%s203 + $0xd0] sm:$0xff]
        %v311 = vld [vmem:[%s203 + $0xd8] sm:$0xff]
        %v312 = vld [vmem:[%s203 + $0xe0] sm:$0xff]
        %v313 = vld [vmem:[%s203 + $0xe8] sm:$0xff]
        %v314 = vld [vmem:[%s203 + $0xf0] sm:$0xff]
        %v315 = vld [vmem:[%s203 + $0xf8] sm:$0xff]
        %v316 = vld [vmem:[%s203 + $0x100] sm:$0xff]
        %v317 = vld [vmem:[%s203 + $0x108] sm:$0xff]
        %v318 = vld [vmem:[%s203 + $0x110] sm:$0xff]
        %v319 = vld [vmem:[%s203 + $0x118] sm:$0xff]
        %v320 = vld [vmem:[%s203 + $0x120] sm:$0xff]
        %v321 = vld [vmem:[%s203 + $0x128] sm:$0xff]
        %v322 = vld [vmem:[%s203 + $0x130] sm:$0xff]
        %v323 = vld [vmem:[%s203 + $0x138] sm:$0xff]
        %v324 = vld [vmem:[%s203 + $0x140] sm:$0xff]
        %v325 = vld [vmem:[%s203 + $0x148] sm:$0xff]
        %v326 = vld [vmem:[%s203 + $0x150] sm:$0xff]
        %v327 = vld [vmem:[%s203 + $0x158] sm:$0xff]
        %v328 = vld [vmem:[%s203 + $0x160] sm:$0xff]
        %v329 = vld [vmem:[%s203 + $0x168] sm:$0xff]
        %v330 = vld [vmem:[%s203 + $0x170] sm:$0xff]
        %v331 = vld [vmem:[%s203 + $0x178] sm:$0xff]
        %v332 = vld [vmem:[%s203 + $0x180] sm:$0xff]
        %v333 = vld [vmem:[%s203 + $0x188] sm:$0xff]
        %v334 = vld [vmem:[%s203 + $0x190] sm:$0xff]
        %v335 = vld [vmem:[%s203 + $0x198] sm:$0xff]
        %v336 = vld [vmem:[%s203 + $0x1a0] sm:$0xff]
        %v337 = vld [vmem:[%s203 + $0x1a8] sm:$0xff]
        %v338 = vld [vmem:[%s203 + $0x1b0] sm:$0xff]
        %v339 = vld [vmem:[%s203 + $0x1b8] sm:$0xff]
        %v340 = vld [vmem:[%s203 + $0x1c0] sm:$0xff]
        %v341 = vld [vmem:[%s203 + $0x1c8] sm:$0xff]
        %v342 = vld [vmem:[%s203 + $0x1d0] sm:$0xff]
        %v343 = vld [vmem:[%s203 + $0x1d8] sm:$0xff]
        %v344 = vld [vmem:[%s203 + $0x1e0] sm:$0xff]
        %v345 = vld [vmem:[%s203 + $0x1e8] sm:$0xff]
        %v346 = vld [vmem:[%s203 + $0x1f0] sm:$0xff]
        %v347 = vld [vmem:[%s203 + $0x1f8] sm:$0xff]
        %v348 = vld [vmem:[%s203 + $0x200] sm:$0xff]
        %v349 = vld [vmem:[%s203 + $0x208] sm:$0xff]
        %v350 = vld [vmem:[%s203 + $0x210] sm:$0xff]
        %v351 = vld [vmem:[%s203 + $0x218] sm:$0xff]
        %v352 = vld [vmem:[%s203 + $0x220] sm:$0xff]
        %v353 = vld [vmem:[%s203 + $0x228] sm:$0xff]
        %v354 = vld [vmem:[%s203 + $0x230] sm:$0xff]
        %v355 = vld [vmem:[%s203 + $0x238] sm:$0xff]
        %v356 = vld [vmem:[%s203 + $0x240] sm:$0xff]
        %v357 = vld [vmem:[%s203 + $0x248] sm:$0xff]
        %v358 = vld [vmem:[%s203 + $0x250] sm:$0xff]
        %v359 = vld [vmem:[%s203 + $0x258] sm:$0xff]
        %v360 = vld [vmem:[%s203 + $0x260] sm:$0xff]
        %v361 = vld [vmem:[%s203 + $0x268] sm:$0xff]
        %v362 = vld [vmem:[%s203 + $0x270] sm:$0xff]
        %v363 = vld [vmem:[%s203 + $0x278] sm:$0xff]
        %v364 = vld [vmem:[%s203 + $0x280] sm:$0xff]
        %v365 = vld [vmem:[%s203 + $0x288] sm:$0xff]
        %v366 = vld [vmem:[%s203 + $0x290] sm:$0xff]
        %v367 = vld [vmem:[%s203 + $0x298] sm:$0xff]
        %v368 = vld [vmem:[%s203 + $0x2a0] sm:$0xff]
        %v369 = vld [vmem:[%s203 + $0x2a8] sm:$0xff]
        %v370 = vld [vmem:[%s203 + $0x2b0] sm:$0xff]
        %v371 = vld [vmem:[%s203 + $0x2b8] sm:$0xff]
        %v372 = vld [vmem:[%s203 + $0x2c0] sm:$0xff]
        %v373 = vld [vmem:[%s203 + $0x2c8] sm:$0xff]
        %v374 = vld [vmem:[%s203 + $0x2d0] sm:$0xff]
        %v375 = vld [vmem:[%s203 + $0x2d8] sm:$0xff]
        %v376 = vld [vmem:[%s203 + $0x2e0] sm:$0xff]
        %v377 = vld [vmem:[%s203 + $0x2e8] sm:$0xff]
        %v378 = vld [vmem:[%s203 + $0x2f0] sm:$0xff]
        %v379 = vld [vmem:[%s203 + $0x2f8] sm:$0xff]
        %v380 = vld [vmem:[%s203 + $0x300] sm:$0xff]
        %v381 = vld [vmem:[%s203 + $0x308] sm:$0xff]
        %v382 = vld [vmem:[%s203 + $0x310] sm:$0xff]
        %v383 = vld [vmem:[%s203 + $0x318] sm:$0xff]
        %v384 = vld [vmem:[%s203 + $0x320] sm:$0xff]
        %v385 = vld [vmem:[%s203 + $0x328] sm:$0xff]
        %v386 = vld [vmem:[%s203 + $0x330] sm:$0xff]
        %v387 = vld [vmem:[%s203 + $0x338] sm:$0xff]
        %v388 = vld [vmem:[%s203 + $0x340] sm:$0xff]
        %v389 = vld [vmem:[%s203 + $0x348] sm:$0xff]
        %v390 = vld [vmem:[%s203 + $0x350] sm:$0xff]
        %v391 = vld [vmem:[%s203 + $0x358] sm:$0xff]
        %v392 = vld [vmem:[%s203 + $0x360] sm:$0xff]
        %v393 = vld [vmem:[%s203 + $0x368] sm:$0xff]
        %v394 = vld [vmem:[%s203 + $0x370] sm:$0xff]
        %v395 = vld [vmem:[%s203 + $0x378] sm:$0xff]
        %v396 = vld [vmem:[%s203 + $0x380] sm:$0xff]
        %v397 = vld [vmem:[%s203 + $0x388] sm:$0xff]
        %v398 = vld [vmem:[%s203 + $0x390] sm:$0xff]
        %v399 = vld [vmem:[%s203 + $0x398] sm:$0xff]
        %v400 = vld [vmem:[%s203 + $0x3a0] sm:$0xff]
        %v401 = vld [vmem:[%s203 + $0x3a8] sm:$0xff]
        %v402 = vld [vmem:[%s203 + $0x3b0] sm:$0xff]
        %v403 = vld [vmem:[%s203 + $0x3b8] sm:$0xff]
        %v404 = vld [vmem:[%s203 + $0x3c0] sm:$0xff]
        %v405 = vld [vmem:[%s203 + $0x3c8] sm:$0xff]
        %v406 = vld [vmem:[%s203 + $0x3d0] sm:$0xff]
        %v407 = vld [vmem:[%s203 + $0x3d8] sm:$0xff]
        %v408 = vld [vmem:[%s203 + $0x3e0] sm:$0xff]
        %v409 = vld [vmem:[%s203 + $0x3e8] sm:$0xff]
        %v410 = vld [vmem:[%s203 + $0x3f0] sm:$0xff]
        %v411 = vld [vmem:[%s203 + $0x3f8] sm:$0xff]
        %v414 = vunpack.c.l.b16 %v266
        %v415 = vunpack.c.h.b16 %v266
        %v416 = vunpack.c.l.b16 %v267
        %v417 = vunpack.c.h.b16 %v267
        %v418 = vpack.c.b16 %v416, %v414
        %v419 = vpack.c.b16 %v417, %v415
        %v550 = vunpack.c.l.b16 %v284
        %v551 = vunpack.c.h.b16 %v284
        %v552 = vunpack.c.l.b16 %v285
        %v553 = vunpack.c.h.b16 %v285
        %v554 = vunpack.c.l.b16 %v286
        %v555 = vunpack.c.h.b16 %v286
        %v556 = vunpack.c.l.b16 %v287
        %v557 = vunpack.c.h.b16 %v287
        %v558 = vunpack.c.l.b16 %v288
        %v559 = vunpack.c.h.b16 %v288
        %v560 = vunpack.c.l.b16 %v289
        %v561 = vunpack.c.h.b16 %v289
        %v562 = vunpack.c.l.b16 %v290
        %v563 = vunpack.c.h.b16 %v290
        %v564 = vunpack.c.l.b16 %v291
        %v565 = vunpack.c.h.b16 %v291
        %v566 = vunpack.c.l.b16 %v292
        %v567 = vunpack.c.h.b16 %v292
        %v568 = vunpack.c.l.b16 %v293
        %v569 = vunpack.c.h.b16 %v293
        %v570 = vunpack.c.l.b16 %v294
        %v571 = vunpack.c.h.b16 %v294
        %v572 = vunpack.c.l.b16 %v295
        %v573 = vunpack.c.h.b16 %v295
        %v574 = vunpack.c.l.b16 %v296
        %v575 = vunpack.c.h.b16 %v296
        %v576 = vunpack.c.l.b16 %v297
        %v577 = vunpack.c.h.b16 %v297
        %v578 = vunpack.c.l.b16 %v298
        %v579 = vunpack.c.h.b16 %v298
        %v580 = vunpack.c.l.b16 %v299
        %v581 = vunpack.c.h.b16 %v299
        %v582 = vunpack.c.l.b16 %v300
        %v583 = vunpack.c.h.b16 %v300
        %v584 = vunpack.c.l.b16 %v301
        %v585 = vunpack.c.h.b16 %v301
        %v586 = vunpack.c.l.b16 %v302
        %v587 = vunpack.c.h.b16 %v302
        %v588 = vunpack.c.l.b16 %v303
        %v589 = vunpack.c.h.b16 %v303
        %v590 = vunpack.c.l.b16 %v304
        %v591 = vunpack.c.h.b16 %v304
        %v592 = vunpack.c.l.b16 %v305
        %v593 = vunpack.c.h.b16 %v305
        %v594 = vunpack.c.l.b16 %v306
        %v595 = vunpack.c.h.b16 %v306
        %v596 = vunpack.c.l.b16 %v307
        %v597 = vunpack.c.h.b16 %v307
        %v598 = vunpack.c.l.b16 %v308
        %v599 = vunpack.c.h.b16 %v308
        %v600 = vunpack.c.l.b16 %v309
        %v601 = vunpack.c.h.b16 %v309
        %v602 = vunpack.c.l.b16 %v310
        %v603 = vunpack.c.h.b16 %v310
        %v604 = vunpack.c.l.b16 %v311
        %v605 = vunpack.c.h.b16 %v311
        %v606 = vunpack.c.l.b16 %v312
        %v607 = vunpack.c.h.b16 %v312
        %v608 = vunpack.c.l.b16 %v313
        %v609 = vunpack.c.h.b16 %v313
        %v610 = vunpack.c.l.b16 %v314
        %v611 = vunpack.c.h.b16 %v314
        %v612 = vunpack.c.l.b16 %v315
        %v613 = vunpack.c.h.b16 %v315
        %v614 = vunpack.c.l.b16 %v316
        %v615 = vunpack.c.h.b16 %v316
        %v616 = vunpack.c.l.b16 %v317
        %v617 = vunpack.c.h.b16 %v317
        %v618 = vunpack.c.l.b16 %v318
        %v619 = vunpack.c.h.b16 %v318
        %v620 = vunpack.c.l.b16 %v319
        %v621 = vunpack.c.h.b16 %v319
        %v622 = vunpack.c.l.b16 %v320
        %v623 = vunpack.c.h.b16 %v320
        %v624 = vunpack.c.l.b16 %v321
        %v625 = vunpack.c.h.b16 %v321
        %v626 = vunpack.c.l.b16 %v322
        %v627 = vunpack.c.h.b16 %v322
        %v628 = vunpack.c.l.b16 %v323
        %v629 = vunpack.c.h.b16 %v323
        %v630 = vunpack.c.l.b16 %v324
        %v631 = vunpack.c.h.b16 %v324
        %v632 = vunpack.c.l.b16 %v325
        %v633 = vunpack.c.h.b16 %v325
        %v634 = vunpack.c.l.b16 %v326
        %v635 = vunpack.c.h.b16 %v326
        %v636 = vunpack.c.l.b16 %v327
        %v637 = vunpack.c.h.b16 %v327
        %v638 = vunpack.c.l.b16 %v328
        %v639 = vunpack.c.h.b16 %v328
        %v640 = vunpack.c.l.b16 %v329
        %v641 = vunpack.c.h.b16 %v329
        %v642 = vunpack.c.l.b16 %v330
        %v643 = vunpack.c.h.b16 %v330
        %v644 = vunpack.c.l.b16 %v331
        %v645 = vunpack.c.h.b16 %v331
        %v646 = vunpack.c.l.b16 %v332
        %v647 = vunpack.c.h.b16 %v332
        %v648 = vunpack.c.l.b16 %v333
        %v649 = vunpack.c.h.b16 %v333
        %v650 = vunpack.c.l.b16 %v334
        %v651 = vunpack.c.h.b16 %v334
        %v652 = vunpack.c.l.b16 %v335
        %v653 = vunpack.c.h.b16 %v335
        %v654 = vunpack.c.l.b16 %v336
        %v655 = vunpack.c.h.b16 %v336
        %v656 = vunpack.c.l.b16 %v337
        %v657 = vunpack.c.h.b16 %v337
        %v658 = vunpack.c.l.b16 %v338
        %v659 = vunpack.c.h.b16 %v338
        %v660 = vunpack.c.l.b16 %v339
        %v661 = vunpack.c.h.b16 %v339
        %v662 = vunpack.c.l.b16 %v340
        %v663 = vunpack.c.h.b16 %v340
        %v664 = vunpack.c.l.b16 %v341
        %v665 = vunpack.c.h.b16 %v341
        %v666 = vunpack.c.l.b16 %v342
        %v667 = vunpack.c.h.b16 %v342
        %v668 = vunpack.c.l.b16 %v343
        %v669 = vunpack.c.h.b16 %v343
        %v670 = vunpack.c.l.b16 %v344
        %v671 = vunpack.c.h.b16 %v344
        %v672 = vunpack.c.l.b16 %v345
        %v673 = vunpack.c.h.b16 %v345
        %v674 = vunpack.c.l.b16 %v346
        %v675 = vunpack.c.h.b16 %v346
        %v676 = vunpack.c.l.b16 %v347
        %v677 = vunpack.c.h.b16 %v347
        %v678 = vunpack.c.l.b16 %v348
        %v679 = vunpack.c.h.b16 %v348
        %v680 = vunpack.c.l.b16 %v349
        %v681 = vunpack.c.h.b16 %v349
        %v682 = vunpack.c.l.b16 %v350
        %v683 = vunpack.c.h.b16 %v350
        %v684 = vunpack.c.l.b16 %v351
        %v685 = vunpack.c.h.b16 %v351
        %v686 = vunpack.c.l.b16 %v352
        %v687 = vunpack.c.h.b16 %v352
        %v688 = vunpack.c.l.b16 %v353
        %v689 = vunpack.c.h.b16 %v353
        %v690 = vunpack.c.l.b16 %v354
        %v691 = vunpack.c.h.b16 %v354
        %v692 = vunpack.c.l.b16 %v355
        %v693 = vunpack.c.h.b16 %v355
        %v694 = vunpack.c.l.b16 %v356
        %v695 = vunpack.c.h.b16 %v356
        %v696 = vunpack.c.l.b16 %v357
        %v697 = vunpack.c.h.b16 %v357
        %v698 = vunpack.c.l.b16 %v358
        %v699 = vunpack.c.h.b16 %v358
        %v700 = vunpack.c.l.b16 %v359
        %v701 = vunpack.c.h.b16 %v359
        %v702 = vunpack.c.l.b16 %v360
        %v703 = vunpack.c.h.b16 %v360
        %v704 = vunpack.c.l.b16 %v361
        %v705 = vunpack.c.h.b16 %v361
        %v706 = vunpack.c.l.b16 %v362
        %v707 = vunpack.c.h.b16 %v362
        %v708 = vunpack.c.l.b16 %v363
        %v709 = vunpack.c.h.b16 %v363
        %v710 = vunpack.c.l.b16 %v364
        %v711 = vunpack.c.h.b16 %v364
        %v712 = vunpack.c.l.b16 %v365
        %v713 = vunpack.c.h.b16 %v365
        %v714 = vunpack.c.l.b16 %v366
        %v715 = vunpack.c.h.b16 %v366
        %v716 = vunpack.c.l.b16 %v367
        %v717 = vunpack.c.h.b16 %v367
        %v718 = vunpack.c.l.b16 %v368
        %v719 = vunpack.c.h.b16 %v368
        %v720 = vunpack.c.l.b16 %v369
        %v721 = vunpack.c.h.b16 %v369
        %v722 = vunpack.c.l.b16 %v370
        %v723 = vunpack.c.h.b16 %v370
        %v724 = vunpack.c.l.b16 %v371
        %v725 = vunpack.c.h.b16 %v371
        %v726 = vunpack.c.l.b16 %v372
        %v727 = vunpack.c.h.b16 %v372
        %v728 = vunpack.c.l.b16 %v373
        %v729 = vunpack.c.h.b16 %v373
        %v730 = vunpack.c.l.b16 %v374
        %v731 = vunpack.c.h.b16 %v374
        %v732 = vunpack.c.l.b16 %v375
        %v733 = vunpack.c.h.b16 %v375
        %v734 = vunpack.c.l.b16 %v376
        %v735 = vunpack.c.h.b16 %v376
        %v736 = vunpack.c.l.b16 %v377
        %v737 = vunpack.c.h.b16 %v377
        %v738 = vunpack.c.l.b16 %v378
        %v739 = vunpack.c.h.b16 %v378
        %v740 = vunpack.c.l.b16 %v379
        %v741 = vunpack.c.h.b16 %v379
        %v742 = vunpack.c.l.b16 %v380
        %v743 = vunpack.c.h.b16 %v380
        %v744 = vunpack.c.l.b16 %v381
        %v745 = vunpack.c.h.b16 %v381
        %v746 = vunpack.c.l.b16 %v382
        %v747 = vunpack.c.h.b16 %v382
        %v748 = vunpack.c.l.b16 %v383
        %v749 = vunpack.c.h.b16 %v383
        %v750 = vunpack.c.l.b16 %v384
        %v751 = vunpack.c.h.b16 %v384
        %v752 = vunpack.c.l.b16 %v385
        %v753 = vunpack.c.h.b16 %v385
        %v754 = vunpack.c.l.b16 %v386
        %v755 = vunpack.c.h.b16 %v386
        %v756 = vunpack.c.l.b16 %v387
        %v757 = vunpack.c.h.b16 %v387
        %v758 = vunpack.c.l.b16 %v388
        %v759 = vunpack.c.h.b16 %v388
        %v760 = vunpack.c.l.b16 %v389
        %v761 = vunpack.c.h.b16 %v389
        %v762 = vunpack.c.l.b16 %v390
        %v763 = vunpack.c.h.b16 %v390
        %v764 = vunpack.c.l.b16 %v391
        %v765 = vunpack.c.h.b16 %v391
        %v766 = vunpack.c.l.b16 %v392
        %v767 = vunpack.c.h.b16 %v392
        %v768 = vunpack.c.l.b16 %v393
        %v769 = vunpack.c.h.b16 %v393
        %v770 = vunpack.c.l.b16 %v394
        %v771 = vunpack.c.h.b16 %v394
        %v772 = vunpack.c.l.b16 %v395
        %v773 = vunpack.c.h.b16 %v395
        %v774 = vunpack.c.l.b16 %v396
        %v775 = vunpack.c.h.b16 %v396
        %v776 = vunpack.c.l.b16 %v397
        %v777 = vunpack.c.h.b16 %v397
        %v778 = vunpack.c.l.b16 %v398
        %v779 = vunpack.c.h.b16 %v398
        %v780 = vunpack.c.l.b16 %v399
        %v781 = vunpack.c.h.b16 %v399
        %v782 = vunpack.c.l.b16 %v400
        %v783 = vunpack.c.h.b16 %v400
        %v784 = vunpack.c.l.b16 %v401
        %v785 = vunpack.c.h.b16 %v401
        %v786 = vunpack.c.l.b16 %v402
        %v787 = vunpack.c.h.b16 %v402
        %v788 = vunpack.c.l.b16 %v403
        %v789 = vunpack.c.h.b16 %v403
        %v790 = vunpack.c.l.b16 %v404
        %v791 = vunpack.c.h.b16 %v404
        %v792 = vunpack.c.l.b16 %v405
        %v793 = vunpack.c.h.b16 %v405
        %v794 = vunpack.c.l.b16 %v406
        %v795 = vunpack.c.h.b16 %v406
        %v796 = vunpack.c.l.b16 %v407
        %v797 = vunpack.c.h.b16 %v407
        %v798 = vunpack.c.l.b16 %v408
        %v799 = vunpack.c.h.b16 %v408
        %v800 = vunpack.c.l.b16 %v409
        %v801 = vunpack.c.h.b16 %v409
        %v802 = vunpack.c.l.b16 %v410
        %v803 = vunpack.c.h.b16 %v410
        %v804 = vunpack.c.l.b16 %v411
        %v805 = vunpack.c.h.b16 %v411
        %v806 = vpack.c.b16 %v558, %v550
        %v807 = vpack.c.b16 %v559, %v551
        %v808 = vpack.c.b16 %v560, %v552
        %v809 = vpack.c.b16 %v561, %v553
        %v810 = vpack.c.b16 %v562, %v554
        %v811 = vpack.c.b16 %v563, %v555
        %v812 = vpack.c.b16 %v564, %v556
        %v813 = vpack.c.b16 %v565, %v557
        %v814 = vpack.c.b16 %v574, %v566
        %v815 = vpack.c.b16 %v575, %v567
        %v816 = vpack.c.b16 %v576, %v568
        %v817 = vpack.c.b16 %v577, %v569
        %v818 = vpack.c.b16 %v578, %v570
        %v819 = vpack.c.b16 %v579, %v571
        %v820 = vpack.c.b16 %v580, %v572
        %v821 = vpack.c.b16 %v581, %v573
        %v822 = vpack.c.b16 %v590, %v582
        %v823 = vpack.c.b16 %v591, %v583
        %v824 = vpack.c.b16 %v592, %v584
        %v825 = vpack.c.b16 %v593, %v585
        %v826 = vpack.c.b16 %v594, %v586
        %v827 = vpack.c.b16 %v595, %v587
        %v828 = vpack.c.b16 %v596, %v588
        %v829 = vpack.c.b16 %v597, %v589
        %v830 = vpack.c.b16 %v606, %v598
        %v831 = vpack.c.b16 %v607, %v599
        %v832 = vpack.c.b16 %v608, %v600
        %v833 = vpack.c.b16 %v609, %v601
        %v834 = vpack.c.b16 %v610, %v602
        %v835 = vpack.c.b16 %v611, %v603
        %v836 = vpack.c.b16 %v612, %v604
        %v837 = vpack.c.b16 %v613, %v605
        %v838 = vpack.c.b16 %v622, %v614
        %v839 = vpack.c.b16 %v623, %v615
        %v840 = vpack.c.b16 %v624, %v616
        %v841 = vpack.c.b16 %v625, %v617
        %v842 = vpack.c.b16 %v626, %v618
        %v843 = vpack.c.b16 %v627, %v619
        %v844 = vpack.c.b16 %v628, %v620
        %v845 = vpack.c.b16 %v629, %v621
        %v846 = vpack.c.b16 %v638, %v630
        %v847 = vpack.c.b16 %v639, %v631
        %v848 = vpack.c.b16 %v640, %v632
        %v849 = vpack.c.b16 %v641, %v633
        %v850 = vpack.c.b16 %v642, %v634
        %v851 = vpack.c.b16 %v643, %v635
        %v852 = vpack.c.b16 %v644, %v636
        %v853 = vpack.c.b16 %v645, %v637
        %v854 = vpack.c.b16 %v654, %v646
        %v855 = vpack.c.b16 %v655, %v647
        %v856 = vpack.c.b16 %v656, %v648
        %v857 = vpack.c.b16 %v657, %v649
        %v858 = vpack.c.b16 %v658, %v650
        %v859 = vpack.c.b16 %v659, %v651
        %v860 = vpack.c.b16 %v660, %v652
        %v861 = vpack.c.b16 %v661, %v653
        %v862 = vpack.c.b16 %v670, %v662
        %v863 = vpack.c.b16 %v671, %v663
        %v864 = vpack.c.b16 %v672, %v664
        %v865 = vpack.c.b16 %v673, %v665
        %v866 = vpack.c.b16 %v674, %v666
        %v867 = vpack.c.b16 %v675, %v667
        %v868 = vpack.c.b16 %v676, %v668
        %v869 = vpack.c.b16 %v677, %v669
        %v870 = vpack.c.b16 %v686, %v678
        %v871 = vpack.c.b16 %v687, %v679
        %v872 = vpack.c.b16 %v688, %v680
        %v873 = vpack.c.b16 %v689, %v681
        %v874 = vpack.c.b16 %v690, %v682
        %v875 = vpack.c.b16 %v691, %v683
        %v876 = vpack.c.b16 %v692, %v684
        %v877 = vpack.c.b16 %v693, %v685
        %v878 = vpack.c.b16 %v702, %v694
        %v879 = vpack.c.b16 %v703, %v695
        %v880 = vpack.c.b16 %v704, %v696
        %v881 = vpack.c.b16 %v705, %v697
        %v882 = vpack.c.b16 %v706, %v698
        %v883 = vpack.c.b16 %v707, %v699
        %v884 = vpack.c.b16 %v708, %v700
        %v885 = vpack.c.b16 %v709, %v701
        %v886 = vpack.c.b16 %v718, %v710
        %v887 = vpack.c.b16 %v719, %v711
        %v888 = vpack.c.b16 %v720, %v712
        %v889 = vpack.c.b16 %v721, %v713
        %v890 = vpack.c.b16 %v722, %v714
        %v891 = vpack.c.b16 %v723, %v715
        %v892 = vpack.c.b16 %v724, %v716
        %v893 = vpack.c.b16 %v725, %v717
        %v894 = vpack.c.b16 %v734, %v726
        %v895 = vpack.c.b16 %v735, %v727
        %v896 = vpack.c.b16 %v736, %v728
        %v897 = vpack.c.b16 %v737, %v729
        %v898 = vpack.c.b16 %v738, %v730
        %v899 = vpack.c.b16 %v739, %v731
        %v900 = vpack.c.b16 %v740, %v732
        %v901 = vpack.c.b16 %v741, %v733
        %v902 = vpack.c.b16 %v750, %v742
        %v903 = vpack.c.b16 %v751, %v743
        %v904 = vpack.c.b16 %v752, %v744
        %v905 = vpack.c.b16 %v753, %v745
        %v906 = vpack.c.b16 %v754, %v746
        %v907 = vpack.c.b16 %v755, %v747
        %v908 = vpack.c.b16 %v756, %v748
        %v909 = vpack.c.b16 %v757, %v749
        %v910 = vpack.c.b16 %v766, %v758
        %v911 = vpack.c.b16 %v767, %v759
        %v912 = vpack.c.b16 %v768, %v760
        %v913 = vpack.c.b16 %v769, %v761
        %v914 = vpack.c.b16 %v770, %v762
        %v915 = vpack.c.b16 %v771, %v763
        %v916 = vpack.c.b16 %v772, %v764
        %v917 = vpack.c.b16 %v773, %v765
        %v918 = vpack.c.b16 %v782, %v774
        %v919 = vpack.c.b16 %v783, %v775
        %v920 = vpack.c.b16 %v784, %v776
        %v921 = vpack.c.b16 %v785, %v777
        %v922 = vpack.c.b16 %v786, %v778
        %v923 = vpack.c.b16 %v787, %v779
        %v924 = vpack.c.b16 %v788, %v780
        %v925 = vpack.c.b16 %v789, %v781
        %v926 = vpack.c.b16 %v798, %v790
        %v927 = vpack.c.b16 %v799, %v791
        %v928 = vpack.c.b16 %v800, %v792
        %v929 = vpack.c.b16 %v801, %v793
        %v930 = vpack.c.b16 %v802, %v794
        %v931 = vpack.c.b16 %v803, %v795
        %v932 = vpack.c.b16 %v804, %v796
        %v933 = vpack.c.b16 %v805, %v797
        %1062 = vmatprep.subr.bf16.mxu0 %v807
        %1063 = vmatpush1.bf16.msra.mxu0 %v806
        %1064 = vmatprep.subr.bf16.mxu0 %v815
        %1065 = vmatpush1.bf16.msra.mxu0 %v814
        %1066 = vmatprep.subr.bf16.mxu0 %v823
        %1067 = vmatpush1.bf16.msra.mxu0 %v822
        %1068 = vmatprep.subr.bf16.mxu0 %v831
        %1069 = vmatpush1.bf16.msra.mxu0 %v830
        %1070 = vmatprep.subr.bf16.mxu0 %v839
        %1071 = vmatpush1.bf16.msra.mxu0 %v838
        %1072 = vmatprep.subr.bf16.mxu0 %v847
        %1073 = vmatpush1.bf16.msra.mxu0 %v846
        %1074 = vmatprep.subr.bf16.mxu0 %v855
        %1075 = vmatpush1.bf16.msra.mxu0 %v854
        %1076 = vmatprep.subr.bf16.mxu0 %v863
        %1077 = vmatpush1.bf16.msra.mxu0 %v862
        %1078 = vmatprep.subr.bf16.mxu0 %v871
        %1079 = vmatpush1.bf16.msra.mxu0 %v870
        %1080 = vmatprep.subr.bf16.mxu0 %v879
        %1081 = vmatpush1.bf16.msra.mxu0 %v878
        %1082 = vmatprep.subr.bf16.mxu0 %v887
        %1083 = vmatpush1.bf16.msra.mxu0 %v886
        %1084 = vmatprep.subr.bf16.mxu0 %v895
        %1085 = vmatpush1.bf16.msra.mxu0 %v894
        %1086 = vmatprep.subr.bf16.mxu0 %v903
        %1087 = vmatpush1.bf16.msra.mxu0 %v902
        %1088 = vmatprep.subr.bf16.mxu0 %v911
        %1089 = vmatpush1.bf16.msra.mxu0 %v910
        %1090 = vmatprep.subr.bf16.mxu0 %v919
        %1091 = vmatpush1.bf16.msra.mxu0 %v918
        %1092 = vmatprep.subr.bf16.mxu0 %v927
        %1093 = vmatpush1.bf16.msra.mxu0 %v926
        %1094 = vmatprep.mubr.bf16.mxu0 %v419
        %1095 = vmatmul.mubr.bf16.gmra.mrb[0].mxu0 %v418
        %v1096 = vpop.f32.mrb[0].mxu0
        %v1097 = vadd.f32 0.0, %v1096
        %v1098 = vpop.f32.mrb[0].mxu0
        %v1099 = vadd.f32 0.0, %v1098
        %v1100 = vpop.f32.mrb[0].mxu0
        %v1101 = vadd.f32 0.0, %v1100
        %v1102 = vpop.f32.mrb[0].mxu0
        %v1103 = vadd.f32 0.0, %v1102
        %1104 = vdwg.mxu0
        %1105 = vmatprep.subr.bf16.mxu0 %v809
        %1106 = vmatpush1.bf16.msra.mxu0 %v808
        %1107 = vmatprep.subr.bf16.mxu0 %v817
        %1108 = vmatpush1.bf16.msra.mxu0 %v816
        %1109 = vmatprep.subr.bf16.mxu0 %v825
        %1110 = vmatpush1.bf16.msra.mxu0 %v824
        %1111 = vmatprep.subr.bf16.mxu0 %v833
        %1112 = vmatpush1.bf16.msra.mxu0 %v832
        %1113 = vmatprep.subr.bf16.mxu0 %v841
        %1114 = vmatpush1.bf16.msra.mxu0 %v840
        %1115 = vmatprep.subr.bf16.mxu0 %v849
        %1116 = vmatpush1.bf16.msra.mxu0 %v848
        %1117 = vmatprep.subr.bf16.mxu0 %v857
        %1118 = vmatpush1.bf16.msra.mxu0 %v856
        %1119 = vmatprep.subr.bf16.mxu0 %v865
        %1120 = vmatpush1.bf16.msra.mxu0 %v864
        %1121 = vmatprep.subr.bf16.mxu0 %v873
        %1122 = vmatpush1.bf16.msra.mxu0 %v872
        %1123 = vmatprep.subr.bf16.mxu0 %v881
        %1124 = vmatpush1.bf16.msra.mxu0 %v880
        %1125 = vmatprep.subr.bf16.mxu0 %v889
        %1126 = vmatpush1.bf16.msra.mxu0 %v888
        %1127 = vmatprep.subr.bf16.mxu0 %v897
        %1128 = vmatpush1.bf16.msra.mxu0 %v896
        %1129 = vmatprep.subr.bf16.mxu0 %v905
        %1130 = vmatpush1.bf16.msra.mxu0 %v904
        %1131 = vmatprep.subr.bf16.mxu0 %v913
        %1132 = vmatpush1.bf16.msra.mxu0 %v912
        %1133 = vmatprep.subr.bf16.mxu0 %v921
        %1134 = vmatpush1.bf16.msra.mxu0 %v920
        %1135 = vmatprep.subr.bf16.mxu0 %v929
        %1136 = vmatpush1.bf16.msra.mxu0 %v928
        %1137 = vmatprep.mubr.bf16.mxu0 %v419
        %1138 = vmatmul.mubr.bf16.gmra.mrb[0].mxu0 %v418
        %v1139 = vpop.f32.mrb[0].mxu0
        %v1140 = vadd.f32 0.0, %v1139
        %v1141 = vpop.f32.mrb[0].mxu0
        %v1142 = vadd.f32 0.0, %v1141
        %v1143 = vpop.f32.mrb[0].mxu0
        %v1144 = vadd.f32 0.0, %v1143
        %v1145 = vpop.f32.mrb[0].mxu0
        %v1146 = vadd.f32 0.0, %v1145
        %1147 = vdwg.mxu0
        %1148 = vmatprep.subr.bf16.mxu0 %v811
        %1149 = vmatpush1.bf16.msra.mxu0 %v810
        %1150 = vmatprep.subr.bf16.mxu0 %v819
        %1151 = vmatpush1.bf16.msra.mxu0 %v818
        %1152 = vmatprep.subr.bf16.mxu0 %v827
        %1153 = vmatpush1.bf16.msra.mxu0 %v826
        %1154 = vmatprep.subr.bf16.mxu0 %v835
        %1155 = vmatpush1.bf16.msra.mxu0 %v834
        %1156 = vmatprep.subr.bf16.mxu0 %v843
        %1157 = vmatpush1.bf16.msra.mxu0 %v842
        %1158 = vmatprep.subr.bf16.mxu0 %v851
        %1159 = vmatpush1.bf16.msra.mxu0 %v850
        %1160 = vmatprep.subr.bf16.mxu0 %v859
        %1161 = vmatpush1.bf16.msra.mxu0 %v858
        %1162 = vmatprep.subr.bf16.mxu0 %v867
        %1163 = vmatpush1.bf16.msra.mxu0 %v866
        %1164 = vmatprep.subr.bf16.mxu0 %v875
        %1165 = vmatpush1.bf16.msra.mxu0 %v874
        %1166 = vmatprep.subr.bf16.mxu0 %v883
        %1167 = vmatpush1.bf16.msra.mxu0 %v882
        %1168 = vmatprep.subr.bf16.mxu0 %v891
        %1169 = vmatpush1.bf16.msra.mxu0 %v890
        %1170 = vmatprep.subr.bf16.mxu0 %v899
        %1171 = vmatpush1.bf16.msra.mxu0 %v898
        %1172 = vmatprep.subr.bf16.mxu0 %v907
        %1173 = vmatpush1.bf16.msra.mxu0 %v906
        %1174 = vmatprep.subr.bf16.mxu0 %v915
        %1175 = vmatpush1.bf16.msra.mxu0 %v914
        %1176 = vmatprep.subr.bf16.mxu0 %v923
        %1177 = vmatpush1.bf16.msra.mxu0 %v922
        %1178 = vmatprep.subr.bf16.mxu0 %v931
        %1179 = vmatpush1.bf16.msra.mxu0 %v930
        %1180 = vmatprep.mubr.bf16.mxu0 %v419
        %1181 = vmatmul.mubr.bf16.gmra.mrb[0].mxu0 %v418
        %v1182 = vpop.f32.mrb[0].mxu0
        %v1183 = vadd.f32 0.0, %v1182
        %v1184 = vpop.f32.mrb[0].mxu0
        %v1185 = vadd.f32 0.0, %v1184
        %v1186 = vpop.f32.mrb[0].mxu0
        %v1187 = vadd.f32 0.0, %v1186
        %v1188 = vpop.f32.mrb[0].mxu0
        %v1189 = vadd.f32 0.0, %v1188
        %1190 = vdwg.mxu0
        %1191 = vmatprep.subr.bf16.mxu0 %v813
        %1192 = vmatpush1.bf16.msra.mxu0 %v812
        %1193 = vmatprep.subr.bf16.mxu0 %v821
        %1194 = vmatpush1.bf16.msra.mxu0 %v820
        %1195 = vmatprep.subr.bf16.mxu0 %v829
        %1196 = vmatpush1.bf16.msra.mxu0 %v828
        %1197 = vmatprep.subr.bf16.mxu0 %v837
        %1198 = vmatpush1.bf16.msra.mxu0 %v836
        %1199 = vmatprep.subr.bf16.mxu0 %v845
        %1200 = vmatpush1.bf16.msra.mxu0 %v844
        %1201 = vmatprep.subr.bf16.mxu0 %v853
        %1202 = vmatpush1.bf16.msra.mxu0 %v852
        %1203 = vmatprep.subr.bf16.mxu0 %v861
        %1204 = vmatpush1.bf16.msra.mxu0 %v860
        %1205 = vmatprep.subr.bf16.mxu0 %v869
        %1206 = vmatpush1.bf16.msra.mxu0 %v868
        %1207 = vmatprep.subr.bf16.mxu0 %v877
        %1208 = vmatpush1.bf16.msra.mxu0 %v876
        %1209 = vmatprep.subr.bf16.mxu0 %v885
        %1210 = vmatpush1.bf16.msra.mxu0 %v884
        %1211 = vmatprep.subr.bf16.mxu0 %v893
        %1212 = vmatpush1.bf16.msra.mxu0 %v892
        %1213 = vmatprep.subr.bf16.mxu0 %v901
        %1214 = vmatpush1.bf16.msra.mxu0 %v900
        %1215 = vmatprep.subr.bf16.mxu0 %v909
        %1216 = vmatpush1.bf16.msra.mxu0 %v908
        %1217 = vmatprep.subr.bf16.mxu0 %v917
        %1218 = vmatpush1.bf16.msra.mxu0 %v916
        %1219 = vmatprep.subr.bf16.mxu0 %v925
        %1220 = vmatpush1.bf16.msra.mxu0 %v924
        %1221 = vmatprep.subr.bf16.mxu0 %v933
        %1222 = vmatpush1.bf16.msra.mxu0 %v932
        %1223 = vmatprep.mubr.bf16.mxu0 %v419
        %1224 = vmatmul.mubr.bf16.gmra.mrb[0].mxu0 %v418
        %v1225 = vpop.f32.mrb[0].mxu0
        %v1226 = vadd.f32 0.0, %v1225
        %v1227 = vpop.f32.mrb[0].mxu0
        %v1228 = vadd.f32 0.0, %v1227
        %v1229 = vpop.f32.mrb[0].mxu0
        %v1230 = vadd.f32 0.0, %v1229
        %v1231 = vpop.f32.mrb[0].mxu0
        %v1232 = vadd.f32 0.0, %v1231
        %1233 = vdwg.mxu0
        %v1234 = vadd.f32 %v268, %v1097
        %v1235 = vadd.f32 %v269, %v1099
        %v1236 = vadd.f32 %v270, %v1140
        %v1237 = vadd.f32 %v271, %v1142
        %v1238 = vadd.f32 %v272, %v1183
        %v1239 = vadd.f32 %v273, %v1185
        %v1240 = vadd.f32 %v274, %v1226
        %v1241 = vadd.f32 %v275, %v1228
        %v1242 = vadd.f32 %v276, %v1101
        %v1243 = vadd.f32 %v277, %v1103
        %v1244 = vadd.f32 %v278, %v1144
        %v1245 = vadd.f32 %v279, %v1146
        %v1246 = vadd.f32 %v280, %v1187
        %v1247 = vadd.f32 %v281, %v1189
        %v1248 = vadd.f32 %v282, %v1230
        %v1249 = vadd.f32 %v283, %v1232
        %1250 = vst [vmem:[#allocation2] sm:$0xff] %v1234
        %1251 = vst [vmem:[#allocation2 + $0x8] sm:$0xff] %v1235
        %1252 = vst [vmem:[#allocation2 + $0x10] sm:$0xff] %v1236
        %1253 = vst [vmem:[#allocation2 + $0x18] sm:$0xff] %v1237
        %1254 = vst [vmem:[#allocation2 + $0x20] sm:$0xff] %v1238
        %1255 = vst [vmem:[#allocation2 + $0x28] sm:$0xff] %v1239
        %1256 = vst [vmem:[#allocation2 + $0x30] sm:$0xff] %v1240
        %1257 = vst [vmem:[#allocation2 + $0x38] sm:$0xff] %v1241
        %1258 = vst [vmem:[#allocation2 + $0x40] sm:$0xff] %v1242
        %1259 = vst [vmem:[#allocation2 + $0x48] sm:$0xff] %v1243
        %1260 = vst [vmem:[#allocation2 + $0x50] sm:$0xff] %v1244
        %1261 = vst [vmem:[#allocation2 + $0x58] sm:$0xff] %v1245
        %1262 = vst [vmem:[#allocation2 + $0x60] sm:$0xff] %v1246
        %1263 = vst [vmem:[#allocation2 + $0x68] sm:$0xff] %v1247
        %1264 = vst [vmem:[#allocation2 + $0x70] sm:$0xff] %v1248
        %1265 = vst [vmem:[#allocation2 + $0x78] sm:$0xff] %v1249
        // Predicated region
        $region45: #{mesh_to_image_forward.3} parent=31 // pred_check
          %p1266 = pneg %p241
        $region46: #{mesh_to_image_forward.3} parent=31 // pred_check_branch
          %1268 = sbr.rel (%p1266) target = $region48
        $region47: #{mesh_to_image_forward.3} parent=31 // pred_region
          %v1269 = vld [vmem:[#allocation2] sm:$0xff]
          %v1270 = vld [vmem:[#allocation2 + $0x8] sm:$0xff]
          %v1271 = vld [vmem:[#allocation2 + $0x10] sm:$0xff]
          %v1272 = vld [vmem:[#allocation2 + $0x18] sm:$0xff]
          %v1273 = vld [vmem:[#allocation2 + $0x20] sm:$0xff]
          %v1274 = vld [vmem:[#allocation2 + $0x28] sm:$0xff]
          %v1275 = vld [vmem:[#allocation2 + $0x30] sm:$0xff]
          %v1276 = vld [vmem:[#allocation2 + $0x38] sm:$0xff]
          %v1277 = vld [vmem:[#allocation2 + $0x40] sm:$0xff]
          %v1278 = vld [vmem:[#allocation2 + $0x48] sm:$0xff]
          %v1279 = vld [vmem:[#allocation2 + $0x50] sm:$0xff]
          %v1280 = vld [vmem:[#allocation2 + $0x58] sm:$0xff]
          %v1281 = vld [vmem:[#allocation2 + $0x60] sm:$0xff]
          %v1282 = vld [vmem:[#allocation2 + $0x68] sm:$0xff]
          %v1283 = vld [vmem:[#allocation2 + $0x70] sm:$0xff]
          %v1284 = vld [vmem:[#allocation2 + $0x78] sm:$0xff]
          %v1285 = vld [vmem:[%s212] sm:$0xff]
          %v1287 = vlaneseq
          %v1288 = vshrl.u32 %v1287, 7
          %v1289 = vsub.s32 0, %v1288
          %v1290 = vrot.slane %v1285, %v1289
          %v1291 = vlaneseq
          %v1292 = vshrl.u32 %v1291, 7
          %v1293 = vsub.s32 1, %v1292
          %v1294 = vrot.slane %v1285, %v1293
          %v1295 = vlaneseq
          %v1296 = vshrl.u32 %v1295, 7
          %v1297 = vsub.s32 2, %v1296
          %v1298 = vrot.slane %v1285, %v1297
          %v1299 = vlaneseq
          %v1300 = vshrl.u32 %v1299, 7
          %v1301 = vsub.s32 3, %v1300
          %v1302 = vrot.slane %v1285, %v1301
          %v1303 = vlaneseq
          %v1304 = vshrl.u32 %v1303, 7
          %v1305 = vsub.s32 4, %v1304
          %v1306 = vrot.slane %v1285, %v1305
          %v1307 = vlaneseq
          %v1308 = vshrl.u32 %v1307, 7
          %v1309 = vsub.s32 5, %v1308
          %v1310 = vrot.slane %v1285, %v1309
          %v1311 = vlaneseq
          %v1312 = vshrl.u32 %v1311, 7
          %v1313 = vsub.s32 6, %v1312
          %v1314 = vrot.slane %v1285, %v1313
          %v1315 = vlaneseq
          %v1316 = vshrl.u32 %v1315, 7
          %v1317 = vsub.s32 7, %v1316
          %v1318 = vrot.slane %v1285, %v1317
          %v1327 = vadd.f32 %v1269, %v1290
          %v1328 = vadd.f32 %v1270, %v1294
          %v1329 = vadd.f32 %v1271, %v1298
          %v1330 = vadd.f32 %v1272, %v1302
          %v1331 = vadd.f32 %v1273, %v1306
          %v1332 = vadd.f32 %v1274, %v1310
          %v1333 = vadd.f32 %v1275, %v1314
          %v1334 = vadd.f32 %v1276, %v1318
          %v1335 = vadd.f32 %v1277, %v1290
          %v1336 = vadd.f32 %v1278, %v1294
          %v1337 = vadd.f32 %v1279, %v1298
          %v1338 = vadd.f32 %v1280, %v1302
          %v1339 = vadd.f32 %v1281, %v1306
          %v1340 = vadd.f32 %v1282, %v1310
          %v1341 = vadd.f32 %v1283, %v1314
          %v1342 = vadd.f32 %v1284, %v1318
          %v1343 = vmax.f32 %v1327, 0.0
          %v1344 = vmax.f32 %v1328, 0.0
          %v1345 = vmax.f32 %v1329, 0.0
          %v1346 = vmax.f32 %v1330, 0.0
          %v1347 = vmax.f32 %v1331, 0.0
          %v1348 = vmax.f32 %v1332, 0.0
          %v1349 = vmax.f32 %v1333, 0.0
          %v1350 = vmax.f32 %v1334, 0.0
          %v1351 = vmax.f32 %v1335, 0.0
          %v1352 = vmax.f32 %v1336, 0.0
          %v1353 = vmax.f32 %v1337, 0.0
          %v1354 = vmax.f32 %v1338, 0.0
          %v1355 = vmax.f32 %v1339, 0.0
          %v1356 = vmax.f32 %v1340, 0.0
          %v1357 = vmax.f32 %v1341, 0.0
          %v1358 = vmax.f32 %v1342, 0.0
          %v1359 = vpack.c.bf16 %v1351, %v1343
          %v1360 = vpack.c.bf16 %v1352, %v1344
          %v1361 = vpack.c.bf16 %v1353, %v1345
          %v1362 = vpack.c.bf16 %v1354, %v1346
          %v1363 = vpack.c.bf16 %v1355, %v1347
          %v1364 = vpack.c.bf16 %v1356, %v1348
          %v1365 = vpack.c.bf16 %v1357, %v1349
          %v1366 = vpack.c.bf16 %v1358, %v1350
          %v1375 = vunpack.c.l.b16 %v1359
          %v1376 = vunpack.c.l.b16 %v1360
          %v1377 = vunpack.c.l.b16 %v1361
          %v1378 = vunpack.c.l.b16 %v1362
          %v1379 = vunpack.c.l.b16 %v1363
          %v1380 = vunpack.c.l.b16 %v1364
          %v1381 = vunpack.c.l.b16 %v1365
          %v1382 = vunpack.c.l.b16 %v1366
          %v1383 = vunpack.c.h.b16 %v1359
          %v1384 = vunpack.c.h.b16 %v1360
          %v1385 = vunpack.c.h.b16 %v1361
          %v1386 = vunpack.c.h.b16 %v1362
          %v1387 = vunpack.c.h.b16 %v1363
          %v1388 = vunpack.c.h.b16 %v1364
          %v1389 = vunpack.c.h.b16 %v1365
          %v1390 = vunpack.c.h.b16 %v1366
          %v1391 = vpack.c.b16 %v1376, %v1375
          %v1392 = vpack.c.b16 %v1378, %v1377
          %v1393 = vpack.c.b16 %v1380, %v1379
          %v1394 = vpack.c.b16 %v1382, %v1381
          %v1395 = vpack.c.b16 %v1384, %v1383
          %v1396 = vpack.c.b16 %v1386, %v1385
          %v1397 = vpack.c.b16 %v1388, %v1387
          %v1398 = vpack.c.b16 %v1390, %v1389
          %1407 = vst [vmem:[%s238] sm:$0xff] %v1391
          %1408 = vst [vmem:[%s238 + $0x8] sm:$0xff] %v1392
          %1409 = vst [vmem:[%s238 + $0x10] sm:$0xff] %v1393
          %1410 = vst [vmem:[%s238 + $0x18] sm:$0xff] %v1394
          %1411 = vst [vmem:[%s238 + $0x20] sm:$0xff] %v1395
          %1412 = vst [vmem:[%s238 + $0x28] sm:$0xff] %v1396
          %1413 = vst [vmem:[%s238 + $0x30] sm:$0xff] %v1397
          %1414 = vst [vmem:[%s238 + $0x38] sm:$0xff] %v1398
        $region48: #{mesh_to_image_forward.3} parent=31 // pred_fallthru
          _
        %s1415 = sand.u32 %s115, 1
        %s1416 = sand.u32 %s115, 1
        %s1417 = smul.addr %s1416, 64
        %s1418 = scalar_lea.vmem [#allocation7], %s1417
        // Predicated region
        $region49: #{mesh_to_image_forward.3} parent=31 // pred_check
          %p1419 = pneg %p125
        $region50: #{mesh_to_image_forward.3} parent=31 // pred_check_branch
          %1421 = sbr.rel (%p1419) target = $region52
        $region51: #{mesh_to_image_forward.3} parent=31 // pred_region
          %s1422 = smul.u32 8, %s24
          %s1423 = smul.addr %s1422, 4
          %s1424 = scalar_lea.vmem %s3, %s1423
          // Predicated region
          $region53: #{mesh_to_image_forward.3} parent=51 // pred_check
            _
          $region54: #{mesh_to_image_forward.3} parent=51 // pred_check_branch
            %1426 = sbr.rel (0) target = $region56
          $region55: #{mesh_to_image_forward.3} parent=51 // pred_region
            // Predicated region
            $region57: #{mesh_to_image_forward.3} parent=55 // pred_check
              _
            $region58: #{mesh_to_image_forward.3} parent=55 // pred_check_branch
              %1428 = sbr.rel (0) target = $region60
            $region59: #{mesh_to_image_forward.3} parent=55 // pred_region
              loop: start=0, step=1, limit=1
              $region61: #{mesh_to_image_forward.3} parent=59 // loop_pre_header
                _
              $region62: #{mesh_to_image_forward.3} parent=59 // loop_header
                %s1430 = sphi 0, %s1434
                %p1431 = scmp.ge.s32.totalorder %s1430, 1
                %s1435 = sphi %s1418, %s1418
                %s1436 = sphi %s1424, %s1424
              $region63: #{mesh_to_image_forward.3} parent=59 // loop_header_branch
                %1433 = sbr.rel (%p1431) target = $region67
              $region64: #{mesh_to_image_forward.3} parent=59 // loop_body
                %v1437 = vld [vmem:[%s1435] sm:$0xff]
                %1438 = vst [vmem:[%s1436] sm:$0xff] %v1437
                %v1439 = vld [vmem:[%s1435 + $0x8] sm:$0xff]
                %1440 = vst [vmem:[%s1436 + $0x8] sm:$0xff] %v1439
                %v1441 = vld [vmem:[%s1435 + $0x10] sm:$0xff]
                %1442 = vst [vmem:[%s1436 + $0x10] sm:$0xff] %v1441
                %v1443 = vld [vmem:[%s1435 + $0x18] sm:$0xff]
                %1444 = vst [vmem:[%s1436 + $0x18] sm:$0xff] %v1443
                %v1445 = vld [vmem:[%s1435 + $0x20] sm:$0xff]
                %1446 = vst [vmem:[%s1436 + $0x80] sm:$0xff] %v1445
                %v1447 = vld [vmem:[%s1435 + $0x28] sm:$0xff]
                %1448 = vst [vmem:[%s1436 + $0x88] sm:$0xff] %v1447
                %v1449 = vld [vmem:[%s1435 + $0x30] sm:$0xff]
                %1450 = vst [vmem:[%s1436 + $0x90] sm:$0xff] %v1449
                %v1451 = vld [vmem:[%s1435 + $0x38] sm:$0xff]
                %1452 = vst [vmem:[%s1436 + $0x98] sm:$0xff] %v1451
              $region65: #{mesh_to_image_forward.3} parent=59 // loop_footer
                %s1434 = sadd.s32 1, %s1430
              $region66: #{mesh_to_image_forward.3} parent=59 // loop_footer_branch
                %1429 = sbr.rel target = $region62
              $region67: #{mesh_to_image_forward.3} parent=59 // loop_exit
                _
            $region60: #{mesh_to_image_forward.3} parent=55 // pred_fallthru
              _
            // Predicated region
            $region68: #{mesh_to_image_forward.3} parent=55 // pred_check
              _
            $region69: #{mesh_to_image_forward.3} parent=55 // pred_check_branch
              %1454 = sbr.rel target = $region71
            $region70: #{mesh_to_image_forward.3} parent=55 // pred_region
              _
            $region71: #{mesh_to_image_forward.3} parent=55 // pred_fallthru
              _
          $region56: #{mesh_to_image_forward.3} parent=51 // pred_fallthru
            _
          %1455 = vnop
        $region52: #{mesh_to_image_forward.3} parent=31 // pred_fallthru
          _
      $region32: #{mesh_to_image_forward.3} parent=5 // pred_fallthru
        _
      %p1456 = scmp.le.s32.totalorder 2, %s15
      // Predicated region
      $region72: #{mesh_to_image_forward.3} parent=5 // pred_check
        %p1457 = pneg %p1456
      $region73: #{mesh_to_image_forward.3} parent=5 // pred_check_branch
        %1459 = sbr.rel (%p1457) target = $region75
      $region74: #{mesh_to_image_forward.3} parent=5 // pred_region
        %s1460 = ssub.s32 %s15, 2
        // Predicated region
        $region76: #{mesh_to_image_forward.3} parent=74 // pred_check
          %p1461 = pneg %p131
        $region77: #{mesh_to_image_forward.3} parent=74 // pred_check_branch
          %1463 = sbr.rel (%p1461) target = $region79
        $region78: #{mesh_to_image_forward.3} parent=74 // pred_region
          %s1464 = sand.u32 %s116, 1
          %s1465 = sand.u32 %s116, 1
          %s1466 = smul.addr %s1465, 64
          %s1467 = scalar_lea.vmem [#allocation7], %s1466
        $region79: #{mesh_to_image_forward.3} parent=74 // pred_fallthru
          _
      $region75: #{mesh_to_image_forward.3} parent=5 // pred_fallthru
        _
    $region6: #{mesh_to_image_forward.3} parent=1 // loop_footer
      %s19 = sadd.s32 1, %s15
    $region7: #{mesh_to_image_forward.3} parent=1 // loop_footer_branch
      %14 = sbr.rel target = $region3
    $region8: #{mesh_to_image_forward.3} parent=1 // loop_exit
      _
    %1468 = vsyncpa [#allocation4], 1
    %s1469 = scalar_lea.sflag [#allocation4], 1
    %1470 = vsyncpa %s1469, 1
    %1471 = vsyncpa [#allocation6], 1
    %s1472 = scalar_lea.sflag [#allocation6], 1
    %1473 = vsyncpa %s1472, 1

// kernel: mesh_to_image_forward.4
$region0: #{mesh_to_image_forward.4}
  #allocation0 [shape = 'u32[]', space=smem, size = 0x4, offset = 0x4, fixed_abs, tag = 'smem constant byte address 0x4 - core index']
  #allocation1 [shape = 'u32[144,128]{1,0:T(1,128)}', space=vmem, size = 0x12000, scoped, tag = 'internal scratch']
  #allocation2 [shape = 'f32[16,512]{1,0:T(8,128)}', space=vmem, size = 0x8000, scoped, tag = 'scratch operand']
  %s0 = inlined_call_operand.vmem [shape: bf16[16,4096], index: 0, kind: input, shape index: {}]
  %s1 = inlined_call_operand.hbm [shape: bf16[2,1,4096,512], index: 1, kind: input, shape index: {}]
  %s2 = inlined_call_operand.hbm [shape: f32[1,1024], index: 2, kind: input, shape index: {}]
  %s3 = inlined_call_operand.vmem [shape: bf16[16,1024], index: 3, kind: output, shape index: {}]
  %s4 = sld [smem:[#allocation0]]
  $region80: #{mesh_to_image_forward.4} parent=0
    _
  %s6 = ssub.s32 1, %s4
  %s7 = scalar_select 0, %s6, %s4
  $region1: #{mesh_to_image_forward.4} parent=0
    #allocation3 [shape = 'u8[8388608]{0}', space=vmem, size = 0x800000, scoped, tag = 'input window, operand 1']
    #allocation4 [shape = 's32[2]{0}', space=sflag, size = 0x8, scoped, tag = 'scoped memory for mesh_to_image_forward.4']
    #allocation5 [shape = 'u8[4096]{0}', space=vmem, size = 0x1000, scoped, tag = 'input window, operand 2']
    #allocation6 [shape = 's32[2]{0}', space=sflag, size = 0x8, scoped, tag = 'scoped memory for mesh_to_image_forward.4']
    #allocation7 [shape = 'u8[32768]{0}', space=vmem, size = 0x8000, scoped, tag = 'output window, operand 0']
    %8 = vsyncpa [#allocation4], 0
    %s9 = scalar_lea.sflag [#allocation4], 1
    %10 = vsyncpa %s9, 0
    %11 = vsyncpa [#allocation6], 0
    %s12 = scalar_lea.sflag [#allocation6], 1
    %13 = vsyncpa %s12, 0
    loop: start=0, step=1, limit=4
    $region2: #{mesh_to_image_forward.4} parent=1 // loop_pre_header
      _
    $region3: #{mesh_to_image_forward.4} parent=1 // loop_header
      %s15 = sphi 0, %s19
      %p16 = scmp.ge.s32.totalorder %s15, 4
      %s22 = sphi 0, %s34
      %s23 = sphi 0, %s30
      %s24 = sphi 0, %s22
      %s25 = sphi 0, %s23
      %s26 = sphi 0, %s24
      %s27 = sphi 0, %s25
      %s35 = sphi 0, %s35
      %s37 = sphi 0, %s35
      %s38 = sphi 0, %s37
      %s52 = sphi 0, %s38
      %s60 = sphi 0, %s62
      %s63 = sphi 0, %s60
      %s64 = sphi 0, %s63
      %s80 = sphi 0, %s64
      %s86 = sphi 0, %s88
      %s89 = sphi 0, %s86
      %s90 = sphi 0, %s89
      %s106 = sphi 0, %s90
      %s112 = sphi 0, %s114
      %s115 = sphi 0, %s112
      %s116 = sphi 0, %s115
      %s132 = sphi 0, %s116
    $region4: #{mesh_to_image_forward.4} parent=1 // loop_header_branch
      %18 = sbr.rel (%p16) target = $region8
    $region5: #{mesh_to_image_forward.4} parent=1 // loop_body
      %s20 = ssub.s32 %s15, 1
      %s21 = ssub.s32 %s15, 2
      %s28 = sadd.s32 1, %s23
      %p29 = scmp.ge.s32.totalorder %s28, 1
      %s30 = scalar_select %p29, 0, %s28
      %s31 = sadd.s32 1, %s22
      %s32 = scalar_select %p29, %s31, %s22
      %p33 = scmp.ge.s32.totalorder %s32, 2
      %s34 = scalar_select %p33, 0, %s32
      %s36 = sadd.s32 %s35, 1
      %p39 = scmp.eq.s32.totalorder %s15, 1
      %p40 = scmp.ne.s32.totalorder %s35, %s37
      %p41 = scmp.eq.s32.totalorder %s15, 0
      %p42 = por %p40, %p41
      %p43 = scmp.ne.s32.totalorder %s35, %s37
      %p44 = scmp.eq.s32.totalorder %s20, 1
      %p45 = por %p43, %p44
      %p46 = scmp.ne.s32.totalorder %s37, %s38
      %p47 = scmp.eq.s32.totalorder %s20, 0
      %p48 = por %p46, %p47
      %p49 = scmp.ne.s32.totalorder %s37, %s38
      %p50 = scmp.eq.s32.totalorder %s21, 1
      %p51 = por %p49, %p50
      %p53 = scmp.ne.s32.totalorder %s38, %s52
      %p54 = scmp.eq.s32.totalorder %s21, 0
      %p55 = por %p53, %p54
      %s56 = ssub.s32 %s22, %s34
      %s57 = ssub.s32 %s23, %s30
      %s58 = sor.u32 %s56, %s57
      %p59 = scmp.eq.s32.totalorder %s58, 0
      %s61 = sadd.s32 %s60, 1
      %s62 = scalar_select %p59, %s60, %s61
      %p65 = pneg %p59
      %p66 = scmp.eq.s32.totalorder %s15, 1
      %p67 = por %p65, %p66
      %p68 = scmp.ne.s32.totalorder %s60, %s63
      %p69 = scmp.eq.s32.totalorder %s15, 0
      %p70 = por %p68, %p69
      %p71 = scmp.ne.s32.totalorder %s60, %s63
      %p72 = scmp.eq.s32.totalorder %s20, 1
      %p73 = por %p71, %p72
      %p74 = scmp.ne.s32.totalorder %s63, %s64
      %p75 = scmp.eq.s32.totalorder %s20, 0
      %p76 = por %p74, %p75
      %p77 = scmp.ne.s32.totalorder %s63, %s64
      %p78 = scmp.eq.s32.totalorder %s21, 1
      %p79 = por %p77, %p78
      %p81 = scmp.ne.s32.totalorder %s64, %s80
      %p82 = scmp.eq.s32.totalorder %s21, 0
      %p83 = por %p81, %p82
      %s84 = ssub.s32 %s22, %s34
      %p85 = scmp.eq.s32.totalorder %s84, 0
      %s87 = sadd.s32 %s86, 1
      %s88 = scalar_select %p85, %s86, %s87
      %p91 = pneg %p85
      %p92 = scmp.eq.s32.totalorder %s15, 1
      %p93 = por %p91, %p92
      %p94 = scmp.ne.s32.totalorder %s86, %s89
      %p95 = scmp.eq.s32.totalorder %s15, 0
      %p96 = por %p94, %p95
      %p97 = scmp.ne.s32.totalorder %s86, %s89
      %p98 = scmp.eq.s32.totalorder %s20, 1
      %p99 = por %p97, %p98
      %p100 = scmp.ne.s32.totalorder %s89, %s90
      %p101 = scmp.eq.s32.totalorder %s20, 0
      %p102 = por %p100, %p101
      %p103 = scmp.ne.s32.totalorder %s89, %s90
      %p104 = scmp.eq.s32.totalorder %s21, 1
      %p105 = por %p103, %p104
      %p107 = scmp.ne.s32.totalorder %s90, %s106
      %p108 = scmp.eq.s32.totalorder %s21, 0
      %p109 = por %p107, %p108
      %s110 = ssub.s32 %s22, %s34
      %p111 = scmp.eq.s32.totalorder %s110, 0
      %s113 = sadd.s32 %s112, 1
      %s114 = scalar_select %p111, %s112, %s113
      %p117 = pneg %p111
      %p118 = scmp.eq.s32.totalorder %s15, 1
      %p119 = por %p117, %p118
      %p120 = scmp.ne.s32.totalorder %s112, %s115
      %p121 = scmp.eq.s32.totalorder %s15, 0
      %p122 = por %p120, %p121
      %p123 = scmp.ne.s32.totalorder %s112, %s115
      %p124 = scmp.eq.s32.totalorder %s20, 1
      %p125 = por %p123, %p124
      %p126 = scmp.ne.s32.totalorder %s115, %s116
      %p127 = scmp.eq.s32.totalorder %s20, 0
      %p128 = por %p126, %p127
      %p129 = scmp.ne.s32.totalorder %s115, %s116
      %p130 = scmp.eq.s32.totalorder %s21, 1
      %p131 = por %p129, %p130
      %p133 = scmp.ne.s32.totalorder %s116, %s132
      %p134 = scmp.eq.s32.totalorder %s21, 0
      %p135 = por %p133, %p134
      %p136 = scmp.le.s32.totalorder 1, %s15
      %p137 = scmp.lt.s32.totalorder %s15, 3
      %p138 = pnand %p136, %p137
      %p139 = pneg %p138
      // Predicated region
      $region9: #{mesh_to_image_forward.4} parent=5 // pred_check
        _
      $region10: #{mesh_to_image_forward.4} parent=5 // pred_check_branch
        %141 = sbr.rel (%p138) target = $region12
      $region11: #{mesh_to_image_forward.4} parent=5 // pred_region
        %s142 = ssub.s32 %s15, 1
        // Predicated region
        $region13: #{mesh_to_image_forward.4} parent=11 // pred_check
          %p143 = pneg %p48
        $region14: #{mesh_to_image_forward.4} parent=11 // pred_check_branch
          %145 = sbr.rel (%p143) target = $region16
        $region15: #{mesh_to_image_forward.4} parent=11 // pred_region
          _
        $region16: #{mesh_to_image_forward.4} parent=11 // pred_fallthru
          _
      $region12: #{mesh_to_image_forward.4} parent=5 // pred_fallthru
        _
      %p146 = scmp.lt.s32.totalorder %s15, 2
      // Predicated region
      $region17: #{mesh_to_image_forward.4} parent=5 // pred_check
        %p147 = pneg %p146
      $region18: #{mesh_to_image_forward.4} parent=5 // pred_check_branch
        %149 = sbr.rel (%p147) target = $region20
      $region19: #{mesh_to_image_forward.4} parent=5 // pred_region
        // Predicated region
        $region21: #{mesh_to_image_forward.4} parent=19 // pred_check
          %p150 = pneg %p70
        $region22: #{mesh_to_image_forward.4} parent=19 // pred_check_branch
          %152 = sbr.rel (%p150) target = $region24
        $region23: #{mesh_to_image_forward.4} parent=19 // pred_region
          %s153 = sand.u32 %s60, 1
          %s154 = scalar_lea.sflag [#allocation4], %s153
          %s155 = sand.u32 %s60, 1
          %s156 = smul.addr %s155, 8192
          %s157 = scalar_lea.vmem [#allocation3], %s156
          %s159 = ssub.s32 131072, 131072
          %160 = vsyncadd %s154, %s159
          %s161 = smul.addr %s23, 2048
          %s162 = smul.addr %s22, 2048
          %s163 = sadd.s32 %s161, %s162
          %s164 = smul.addr %s163, 64
          %s165 = scalar_lea.hbm %s1, %s164
          %s166 = sshll.u32 %s157, 4
          %s167 = int_to_ptr.vmem [resolvable:$true] %s166
          %172 = dma.hbm_to_vmem [thread:$0]  %s165, 131072, %s167, %s154, 256, 256, 16
        $region24: #{mesh_to_image_forward.4} parent=19 // pred_fallthru
          _
        // Predicated region
        $region25: #{mesh_to_image_forward.4} parent=19 // pred_check
          %p173 = pneg %p96
        $region26: #{mesh_to_image_forward.4} parent=19 // pred_check_branch
          %175 = sbr.rel (%p173) target = $region28
        $region27: #{mesh_to_image_forward.4} parent=19 // pred_region
          %s176 = sand.u32 %s86, 1
          %s177 = scalar_lea.sflag [#allocation6], %s176
          %s178 = sand.u32 %s86, 1
          %s179 = smul.addr %s178, 4
          %s180 = scalar_lea.vmem [#allocation5], %s179
          %s181 = smul.u32 4, %s22
          %s183 = ssub.s32 64, 64
          %184 = vsyncadd %s177, %s183
          %s185 = smul.addr %s181, 16
          %s186 = scalar_lea.hbm %s2, %s185
          %s188 = sshll.u32 %s180, 4
          %s189 = int_to_ptr.vmem [resolvable:$true] %s188
          %191 = dma.hbm_to_vmem [thread:$0]  %s186, 64, %s189, %s177
        $region28: #{mesh_to_image_forward.4} parent=19 // pred_fallthru
          _
      $region20: #{mesh_to_image_forward.4} parent=5 // pred_fallthru
        _
      %p192 = scmp.le.s32.totalorder 1, %s15
      %p193 = scmp.lt.s32.totalorder %s15, 3
      %p194 = pnand %p192, %p193
      %p195 = pneg %p194
      // Predicated region
      $region29: #{mesh_to_image_forward.4} parent=5 // pred_check
        _
      $region30: #{mesh_to_image_forward.4} parent=5 // pred_check_branch
        %197 = sbr.rel (%p194) target = $region32
      $region31: #{mesh_to_image_forward.4} parent=5 // pred_region
        %s198 = ssub.s32 %s15, 1
        %s199 = sand.u32 %s63, 1
        %s200 = scalar_lea.sflag [#allocation4], %s199
        %s201 = sand.u32 %s63, 1
        %s202 = smul.addr %s201, 8192
        %s203 = scalar_lea.vmem [#allocation3], %s202
        // Predicated region
        $region33: #{mesh_to_image_forward.4} parent=31 // pred_check
          %p204 = pneg %p76
        $region34: #{mesh_to_image_forward.4} parent=31 // pred_check_branch
          %206 = sbr.rel (%p204) target = $region36
        $region35: #{mesh_to_image_forward.4} parent=31 // pred_region
          %207 = dma.done %s200, 131072
        $region36: #{mesh_to_image_forward.4} parent=31 // pred_fallthru
          _
        %s208 = sand.u32 %s89, 1
        %s209 = scalar_lea.sflag [#allocation6], %s208
        %s210 = sand.u32 %s89, 1
        %s211 = smul.addr %s210, 4
        %s212 = scalar_lea.vmem [#allocation5], %s211
        // Predicated region
        $region37: #{mesh_to_image_forward.4} parent=31 // pred_check
          %p213 = pneg %p102
        $region38: #{mesh_to_image_forward.4} parent=31 // pred_check_branch
          %215 = sbr.rel (%p213) target = $region40
        $region39: #{mesh_to_image_forward.4} parent=31 // pred_region
          %216 = dma.done %s209, 64
        $region40: #{mesh_to_image_forward.4} parent=31 // pred_fallthru
          _
        %p217 = pneg %p48
        %p218 = pneg %p45
        %s219 = sand.u32 %s63, 1
        %s220 = scalar_lea.sflag [#allocation4], %s219
        %s221 = sand.u32 %s63, 1
        %s222 = smul.addr %s221, 8192
        %s223 = scalar_lea.vmem [#allocation3], %s222
        %p224 = pneg %p76
        %p225 = pneg %p73
        %s226 = sand.u32 %s89, 1
        %s227 = scalar_lea.sflag [#allocation6], %s226
        %s228 = sand.u32 %s89, 1
        %s229 = smul.addr %s228, 4
        %s230 = scalar_lea.vmem [#allocation5], %s229
        %p231 = pneg %p102
        %p232 = pneg %p99
        %p233 = pneg %p128
        %p234 = pneg %p125
        %s235 = sand.u32 %s115, 1
        %s236 = sand.u32 %s115, 1
        %s237 = smul.addr %s236, 32
        %s238 = scalar_lea.vmem [#allocation7], %s237
        %s239 = smul.u32 4, %s24
        %s240 = smul.u32 4, %s24
        %p241 = scmp.eq.s32.totalorder %s25, 0
        // Predicated region
        $region41: #{mesh_to_image_forward.4} parent=31 // pred_check
          %p242 = pneg %p241
        $region42: #{mesh_to_image_forward.4} parent=31 // pred_check_branch
          %244 = sbr.rel (%p242) target = $region44
        $region43: #{mesh_to_image_forward.4} parent=31 // pred_region
          %245 = vst [vmem:[#allocation2] sm:$0xff] 0.0
          %246 = vst [vmem:[#allocation2 + $0x8] sm:$0xff] 0.0
          %247 = vst [vmem:[#allocation2 + $0x10] sm:$0xff] 0.0
          %248 = vst [vmem:[#allocation2 + $0x18] sm:$0xff] 0.0
          %249 = vst [vmem:[#allocation2 + $0x20] sm:$0xff] 0.0
          %250 = vst [vmem:[#allocation2 + $0x28] sm:$0xff] 0.0
          %251 = vst [vmem:[#allocation2 + $0x30] sm:$0xff] 0.0
          %252 = vst [vmem:[#allocation2 + $0x38] sm:$0xff] 0.0
        $region44: #{mesh_to_image_forward.4} parent=31 // pred_fallthru
          _
        %s253 = smul.u32 %s25, 4096
        %s254 = sshra.s32 %s253, 7
        %s255 = sand.u32 %s253, 127
        %s256 = smul.addr %s254, 4
        %s257 = scalar_lea.vmem %s0, %s256
        %v258 = vld [vmem:[%s257] sm:$0xff]
        %v259 = vld [vmem:[%s257 + $0x8] sm:$0xff]
        %v260 = vld [vmem:[%s257 + $0x10] sm:$0xff]
        %v261 = vld [vmem:[%s257 + $0x18] sm:$0xff]
        %v262 = vld [vmem:[%s257 + $0x20] sm:$0xff]
        %v263 = vld [vmem:[%s257 + $0x28] sm:$0xff]
        %v264 = vld [vmem:[%s257 + $0x30] sm:$0xff]
        %v265 = vld [vmem:[%s257 + $0x38] sm:$0xff]
        %v266 = vld [vmem:[%s257 + $0x40] sm:$0xff]
        %v267 = vld [vmem:[%s257 + $0x48] sm:$0xff]
        %v268 = vld [vmem:[%s257 + $0x50] sm:$0xff]
        %v269 = vld [vmem:[%s257 + $0x58] sm:$0xff]
        %v270 = vld [vmem:[%s257 + $0x60] sm:$0xff]
        %v271 = vld [vmem:[%s257 + $0x68] sm:$0xff]
        %v272 = vld [vmem:[%s257 + $0x70] sm:$0xff]
        %v273 = vld [vmem:[%s257 + $0x78] sm:$0xff]
        %v274 = vld [vmem:[%s257 + $0x80] sm:$0xff]
        %v275 = vld [vmem:[%s257 + $0x88] sm:$0xff]
        %v276 = vld [vmem:[%s257 + $0x90] sm:$0xff]
        %v277 = vld [vmem:[%s257 + $0x98] sm:$0xff]
        %v278 = vld [vmem:[%s257 + $0xa0] sm:$0xff]
        %v279 = vld [vmem:[%s257 + $0xa8] sm:$0xff]
        %v280 = vld [vmem:[%s257 + $0xb0] sm:$0xff]
        %v281 = vld [vmem:[%s257 + $0xb8] sm:$0xff]
        %v282 = vld [vmem:[%s257 + $0xc0] sm:$0xff]
        %v283 = vld [vmem:[%s257 + $0xc8] sm:$0xff]
        %v284 = vld [vmem:[%s257 + $0xd0] sm:$0xff]
        %v285 = vld [vmem:[%s257 + $0xd8] sm:$0xff]
        %v286 = vld [vmem:[%s257 + $0xe0] sm:$0xff]
        %v287 = vld [vmem:[%s257 + $0xe8] sm:$0xff]
        %v288 = vld [vmem:[%s257 + $0xf0] sm:$0xff]
        %v289 = vld [vmem:[%s257 + $0xf8] sm:$0xff]
        %v290 = vld [vmem:[#allocation2] sm:$0xff]
        %v291 = vld [vmem:[#allocation2 + $0x8] sm:$0xff]
        %v292 = vld [vmem:[#allocation2 + $0x10] sm:$0xff]
        %v293 = vld [vmem:[#allocation2 + $0x18] sm:$0xff]
        %v294 = vld [vmem:[#allocation2 + $0x20] sm:$0xff]
        %v295 = vld [vmem:[#allocation2 + $0x28] sm:$0xff]
        %v296 = vld [vmem:[#allocation2 + $0x30] sm:$0xff]
        %v297 = vld [vmem:[#allocation2 + $0x38] sm:$0xff]
        %v298 = vld [vmem:[%s203] sm:$0xff]
        %v299 = vld [vmem:[%s203 + $0x8] sm:$0xff]
        %v300 = vld [vmem:[%s203 + $0x10] sm:$0xff]
        %v301 = vld [vmem:[%s203 + $0x18] sm:$0xff]
        %v302 = vld [vmem:[%s203 + $0x20] sm:$0xff]
        %v303 = vld [vmem:[%s203 + $0x28] sm:$0xff]
        %v304 = vld [vmem:[%s203 + $0x30] sm:$0xff]
        %v305 = vld [vmem:[%s203 + $0x38] sm:$0xff]
        %v306 = vld [vmem:[%s203 + $0x40] sm:$0xff]
        %v307 = vld [vmem:[%s203 + $0x48] sm:$0xff]
        %v308 = vld [vmem:[%s203 + $0x50] sm:$0xff]
        %v309 = vld [vmem:[%s203 + $0x58] sm:$0xff]
        %v310 = vld [vmem:[%s203 + $0x60] sm:$0xff]
        %v311 = vld [vmem:[%s203 + $0x68] sm:$0xff]
        %v312 = vld [vmem:[%s203 + $0x70] sm:$0xff]
        %v313 = vld [vmem:[%s203 + $0x78] sm:$0xff]
        %v314 = vld [vmem:[%s203 + $0x80] sm:$0xff]
        %v315 = vld [vmem:[%s203 + $0x88] sm:$0xff]
        %v316 = vld [vmem:[%s203 + $0x90] sm:$0xff]
        %v317 = vld [vmem:[%s203 + $0x98] sm:$0xff]
        %v318 = vld [vmem:[%s203 + $0xa0] sm:$0xff]
        %v319 = vld [vmem:[%s203 + $0xa8] sm:$0xff]
        %v320 = vld [vmem:[%s203 + $0xb0] sm:$0xff]
        %v321 = vld [vmem:[%s203 + $0xb8] sm:$0xff]
        %v322 = vld [vmem:[%s203 + $0xc0] sm:$0xff]
        %v323 = vld [vmem:[%s203 + $0xc8] sm:$0xff]
        %v324 = vld [vmem:[%s203 + $0xd0] sm:$0xff]
        %v325 = vld [vmem:[%s203 + $0xd8] sm:$0xff]
        %v326 = vld [vmem:[%s203 + $0xe0] sm:$0xff]
        %v327 = vld [vmem:[%s203 + $0xe8] sm:$0xff]
        %v328 = vld [vmem:[%s203 + $0xf0] sm:$0xff]
        %v329 = vld [vmem:[%s203 + $0xf8] sm:$0xff]
        %v330 = vld [vmem:[%s203 + $0x100] sm:$0xff]
        %v331 = vld [vmem:[%s203 + $0x108] sm:$0xff]
        %v332 = vld [vmem:[%s203 + $0x110] sm:$0xff]
        %v333 = vld [vmem:[%s203 + $0x118] sm:$0xff]
        %v334 = vld [vmem:[%s203 + $0x120] sm:$0xff]
        %v335 = vld [vmem:[%s203 + $0x128] sm:$0xff]
        %v336 = vld [vmem:[%s203 + $0x130] sm:$0xff]
        %v337 = vld [vmem:[%s203 + $0x138] sm:$0xff]
        %v338 = vld [vmem:[%s203 + $0x140] sm:$0xff]
        %v339 = vld [vmem:[%s203 + $0x148] sm:$0xff]
        %v340 = vld [vmem:[%s203 + $0x150] sm:$0xff]
        %v341 = vld [vmem:[%s203 + $0x158] sm:$0xff]
        %v342 = vld [vmem:[%s203 + $0x160] sm:$0xff]
        %v343 = vld [vmem:[%s203 + $0x168] sm:$0xff]
        %v344 = vld [vmem:[%s203 + $0x170] sm:$0xff]
        %v345 = vld [vmem:[%s203 + $0x178] sm:$0xff]
        %v346 = vld [vmem:[%s203 + $0x180] sm:$0xff]
        %v347 = vld [vmem:[%s203 + $0x188] sm:$0xff]
        %v348 = vld [vmem:[%s203 + $0x190] sm:$0xff]
        %v349 = vld [vmem:[%s203 + $0x198] sm:$0xff]
        %v350 = vld [vmem:[%s203 + $0x1a0] sm:$0xff]
        %v351 = vld [vmem:[%s203 + $0x1a8] sm:$0xff]
        %v352 = vld [vmem:[%s203 + $0x1b0] sm:$0xff]
        %v353 = vld [vmem:[%s203 + $0x1b8] sm:$0xff]
        %v354 = vld [vmem:[%s203 + $0x1c0] sm:$0xff]
        %v355 = vld [vmem:[%s203 + $0x1c8] sm:$0xff]
        %v356 = vld [vmem:[%s203 + $0x1d0] sm:$0xff]
        %v357 = vld [vmem:[%s203 + $0x1d8] sm:$0xff]
        %v358 = vld [vmem:[%s203 + $0x1e0] sm:$0xff]
        %v359 = vld [vmem:[%s203 + $0x1e8] sm:$0xff]
        %v360 = vld [vmem:[%s203 + $0x1f0] sm:$0xff]
        %v361 = vld [vmem:[%s203 + $0x1f8] sm:$0xff]
        %v362 = vld [vmem:[%s203 + $0x200] sm:$0xff]
        %v363 = vld [vmem:[%s203 + $0x208] sm:$0xff]
        %v364 = vld [vmem:[%s203 + $0x210] sm:$0xff]
        %v365 = vld [vmem:[%s203 + $0x218] sm:$0xff]
        %v366 = vld [vmem:[%s203 + $0x220] sm:$0xff]
        %v367 = vld [vmem:[%s203 + $0x228] sm:$0xff]
        %v368 = vld [vmem:[%s203 + $0x230] sm:$0xff]
        %v369 = vld [vmem:[%s203 + $0x238] sm:$0xff]
        %v370 = vld [vmem:[%s203 + $0x240] sm:$0xff]
        %v371 = vld [vmem:[%s203 + $0x248] sm:$0xff]
        %v372 = vld [vmem:[%s203 + $0x250] sm:$0xff]
        %v373 = vld [vmem:[%s203 + $0x258] sm:$0xff]
        %v374 = vld [vmem:[%s203 + $0x260] sm:$0xff]
        %v375 = vld [vmem:[%s203 + $0x268] sm:$0xff]
        %v376 = vld [vmem:[%s203 + $0x270] sm:$0xff]
        %v377 = vld [vmem:[%s203 + $0x278] sm:$0xff]
        %v378 = vld [vmem:[%s203 + $0x280] sm:$0xff]
        %v379 = vld [vmem:[%s203 + $0x288] sm:$0xff]
        %v380 = vld [vmem:[%s203 + $0x290] sm:$0xff]
        %v381 = vld [vmem:[%s203 + $0x298] sm:$0xff]
        %v382 = vld [vmem:[%s203 + $0x2a0] sm:$0xff]
        %v383 = vld [vmem:[%s203 + $0x2a8] sm:$0xff]
        %v384 = vld [vmem:[%s203 + $0x2b0] sm:$0xff]
        %v385 = vld [vmem:[%s203 + $0x2b8] sm:$0xff]
        %v386 = vld [vmem:[%s203 + $0x2c0] sm:$0xff]
        %v387 = vld [vmem:[%s203 + $0x2c8] sm:$0xff]
        %v388 = vld [vmem:[%s203 + $0x2d0] sm:$0xff]
        %v389 = vld [vmem:[%s203 + $0x2d8] sm:$0xff]
        %v390 = vld [vmem:[%s203 + $0x2e0] sm:$0xff]
        %v391 = vld [vmem:[%s203 + $0x2e8] sm:$0xff]
        %v392 = vld [vmem:[%s203 + $0x2f0] sm:$0xff]
        %v393 = vld [vmem:[%s203 + $0x2f8] sm:$0xff]
        %v394 = vld [vmem:[%s203 + $0x300] sm:$0xff]
        %v395 = vld [vmem:[%s203 + $0x308] sm:$0xff]
        %v396 = vld [vmem:[%s203 + $0x310] sm:$0xff]
        %v397 = vld [vmem:[%s203 + $0x318] sm:$0xff]
        %v398 = vld [vmem:[%s203 + $0x320] sm:$0xff]
        %v399 = vld [vmem:[%s203 + $0x328] sm:$0xff]
        %v400 = vld [vmem:[%s203 + $0x330] sm:$0xff]
        %v401 = vld [vmem:[%s203 + $0x338] sm:$0xff]
        %v402 = vld [vmem:[%s203 + $0x340] sm:$0xff]
        %v403 = vld [vmem:[%s203 + $0x348] sm:$0xff]
        %v404 = vld [vmem:[%s203 + $0x350] sm:$0xff]
        %v405 = vld [vmem:[%s203 + $0x358] sm:$0xff]
        %v406 = vld [vmem:[%s203 + $0x360] sm:$0xff]
        %v407 = vld [vmem:[%s203 + $0x368] sm:$0xff]
        %v408 = vld [vmem:[%s203 + $0x370] sm:$0xff]
        %v409 = vld [vmem:[%s203 + $0x378] sm:$0xff]
        %v410 = vld [vmem:[%s203 + $0x380] sm:$0xff]
        %v411 = vld [vmem:[%s203 + $0x388] sm:$0xff]
        %v412 = vld [vmem:[%s203 + $0x390] sm:$0xff]
        %v413 = vld [vmem:[%s203 + $0x398] sm:$0xff]
        %v414 = vld [vmem:[%s203 + $0x3a0] sm:$0xff]
        %v415 = vld [vmem:[%s203 + $0x3a8] sm:$0xff]
        %v416 = vld [vmem:[%s203 + $0x3b0] sm:$0xff]
        %v417 = vld [vmem:[%s203 + $0x3b8] sm:$0xff]
        %v418 = vld [vmem:[%s203 + $0x3c0] sm:$0xff]
        %v419 = vld [vmem:[%s203 + $0x3c8] sm:$0xff]
        %v420 = vld [vmem:[%s203 + $0x3d0] sm:$0xff]
        %v421 = vld [vmem:[%s203 + $0x3d8] sm:$0xff]
        %v422 = vld [vmem:[%s203 + $0x3e0] sm:$0xff]
        %v423 = vld [vmem:[%s203 + $0x3e8] sm:$0xff]
        %v424 = vld [vmem:[%s203 + $0x3f0] sm:$0xff]
        %v425 = vld [vmem:[%s203 + $0x3f8] sm:$0xff]
        %v426 = vld [vmem:[%s203 + $0x400] sm:$0xff]
        %v427 = vld [vmem:[%s203 + $0x408] sm:$0xff]
        %v428 = vld [vmem:[%s203 + $0x410] sm:$0xff]
        %v429 = vld [vmem:[%s203 + $0x418] sm:$0xff]
        %v430 = vld [vmem:[%s203 + $0x420] sm:$0xff]
        %v431 = vld [vmem:[%s203 + $0x428] sm:$0xff]
        %v432 = vld [vmem:[%s203 + $0x430] sm:$0xff]
        %v433 = vld [vmem:[%s203 + $0x438] sm:$0xff]
        %v434 = vld [vmem:[%s203 + $0x440] sm:$0xff]
        %v435 = vld [vmem:[%s203 + $0x448] sm:$0xff]
        %v436 = vld [vmem:[%s203 + $0x450] sm:$0xff]
        %v437 = vld [vmem:[%s203 + $0x458] sm:$0xff]
        %v438 = vld [vmem:[%s203 + $0x460] sm:$0xff]
        %v439 = vld [vmem:[%s203 + $0x468] sm:$0xff]
        %v440 = vld [vmem:[%s203 + $0x470] sm:$0xff]
        %v441 = vld [vmem:[%s203 + $0x478] sm:$0xff]
        %v442 = vld [vmem:[%s203 + $0x480] sm:$0xff]
        %v443 = vld [vmem:[%s203 + $0x488] sm:$0xff]
        %v444 = vld [vmem:[%s203 + $0x490] sm:$0xff]
        %v445 = vld [vmem:[%s203 + $0x498] sm:$0xff]
        %v446 = vld [vmem:[%s203 + $0x4a0] sm:$0xff]
        %v447 = vld [vmem:[%s203 + $0x4a8] sm:$0xff]
        %v448 = vld [vmem:[%s203 + $0x4b0] sm:$0xff]
        %v449 = vld [vmem:[%s203 + $0x4b8] sm:$0xff]
        %v450 = vld [vmem:[%s203 + $0x4c0] sm:$0xff]
        %v451 = vld [vmem:[%s203 + $0x4c8] sm:$0xff]
        %v452 = vld [vmem:[%s203 + $0x4d0] sm:$0xff]
        %v453 = vld [vmem:[%s203 + $0x4d8] sm:$0xff]
        %v454 = vld [vmem:[%s203 + $0x4e0] sm:$0xff]
        %v455 = vld [vmem:[%s203 + $0x4e8] sm:$0xff]
        %v456 = vld [vmem:[%s203 + $0x4f0] sm:$0xff]
        %v457 = vld [vmem:[%s203 + $0x4f8] sm:$0xff]
        %v458 = vld [vmem:[%s203 + $0x500] sm:$0xff]
        %v459 = vld [vmem:[%s203 + $0x508] sm:$0xff]
        %v460 = vld [vmem:[%s203 + $0x510] sm:$0xff]
        %v461 = vld [vmem:[%s203 + $0x518] sm:$0xff]
        %v462 = vld [vmem:[%s203 + $0x520] sm:$0xff]
        %v463 = vld [vmem:[%s203 + $0x528] sm:$0xff]
        %v464 = vld [vmem:[%s203 + $0x530] sm:$0xff]
        %v465 = vld [vmem:[%s203 + $0x538] sm:$0xff]
        %v466 = vld [vmem:[%s203 + $0x540] sm:$0xff]
        %v467 = vld [vmem:[%s203 + $0x548] sm:$0xff]
        %v468 = vld [vmem:[%s203 + $0x550] sm:$0xff]
        %v469 = vld [vmem:[%s203 + $0x558] sm:$0xff]
        %v470 = vld [vmem:[%s203 + $0x560] sm:$0xff]
        %v471 = vld [vmem:[%s203 + $0x568] sm:$0xff]
        %v472 = vld [vmem:[%s203 + $0x570] sm:$0xff]
        %v473 = vld [vmem:[%s203 + $0x578] sm:$0xff]
        %v474 = vld [vmem:[%s203 + $0x580] sm:$0xff]
        %v475 = vld [vmem:[%s203 + $0x588] sm:$0xff]
        %v476 = vld [vmem:[%s203 + $0x590] sm:$0xff]
        %v477 = vld [vmem:[%s203 + $0x598] sm:$0xff]
        %v478 = vld [vmem:[%s203 + $0x5a0] sm:$0xff]
        %v479 = vld [vmem:[%s203 + $0x5a8] sm:$0xff]
        %v480 = vld [vmem:[%s203 + $0x5b0] sm:$0xff]
        %v481 = vld [vmem:[%s203 + $0x5b8] sm:$0xff]
        %v482 = vld [vmem:[%s203 + $0x5c0] sm:$0xff]
        %v483 = vld [vmem:[%s203 + $0x5c8] sm:$0xff]
        %v484 = vld [vmem:[%s203 + $0x5d0] sm:$0xff]
        %v485 = vld [vmem:[%s203 + $0x5d8] sm:$0xff]
        %v486 = vld [vmem:[%s203 + $0x5e0] sm:$0xff]
        %v487 = vld [vmem:[%s203 + $0x5e8] sm:$0xff]
        %v488 = vld [vmem:[%s203 + $0x5f0] sm:$0xff]
        %v489 = vld [vmem:[%s203 + $0x5f8] sm:$0xff]
        %v490 = vld [vmem:[%s203 + $0x600] sm:$0xff]
        %v491 = vld [vmem:[%s203 + $0x608] sm:$0xff]
        %v492 = vld [vmem:[%s203 + $0x610] sm:$0xff]
        %v493 = vld [vmem:[%s203 + $0x618] sm:$0xff]
        %v494 = vld [vmem:[%s203 + $0x620] sm:$0xff]
        %v495 = vld [vmem:[%s203 + $0x628] sm:$0xff]
        %v496 = vld [vmem:[%s203 + $0x630] sm:$0xff]
        %v497 = vld [vmem:[%s203 + $0x638] sm:$0xff]
        %v498 = vld [vmem:[%s203 + $0x640] sm:$0xff]
        %v499 = vld [vmem:[%s203 + $0x648] sm:$0xff]
        %v500 = vld [vmem:[%s203 + $0x650] sm:$0xff]
        %v501 = vld [vmem:[%s203 + $0x658] sm:$0xff]
        %v502 = vld [vmem:[%s203 + $0x660] sm:$0xff]
        %v503 = vld [vmem:[%s203 + $0x668] sm:$0xff]
        %v504 = vld [vmem:[%s203 + $0x670] sm:$0xff]
        %v505 = vld [vmem:[%s203 + $0x678] sm:$0xff]
        %v506 = vld [vmem:[%s203 + $0x680] sm:$0xff]
        %v507 = vld [vmem:[%s203 + $0x688] sm:$0xff]
        %v508 = vld [vmem:[%s203 + $0x690] sm:$0xff]
        %v509 = vld [vmem:[%s203 + $0x698] sm:$0xff]
        %v510 = vld [vmem:[%s203 + $0x6a0] sm:$0xff]
        %v511 = vld [vmem:[%s203 + $0x6a8] sm:$0xff]
        %v512 = vld [vmem:[%s203 + $0x6b0] sm:$0xff]
        %v513 = vld [vmem:[%s203 + $0x6b8] sm:$0xff]
        %v514 = vld [vmem:[%s203 + $0x6c0] sm:$0xff]
        %v515 = vld [vmem:[%s203 + $0x6c8] sm:$0xff]
        %v516 = vld [vmem:[%s203 + $0x6d0] sm:$0xff]
        %v517 = vld [vmem:[%s203 + $0x6d8] sm:$0xff]
        %v518 = vld [vmem:[%s203 + $0x6e0] sm:$0xff]
        %v519 = vld [vmem:[%s203 + $0x6e8] sm:$0xff]
        %v520 = vld [vmem:[%s203 + $0x6f0] sm:$0xff]
        %v521 = vld [vmem:[%s203 + $0x6f8] sm:$0xff]
        %v522 = vld [vmem:[%s203 + $0x700] sm:$0xff]
        %v523 = vld [vmem:[%s203 + $0x708] sm:$0xff]
        %v524 = vld [vmem:[%s203 + $0x710] sm:$0xff]
        %v525 = vld [vmem:[%s203 + $0x718] sm:$0xff]
        %v526 = vld [vmem:[%s203 + $0x720] sm:$0xff]
        %v527 = vld [vmem:[%s203 + $0x728] sm:$0xff]
        %v528 = vld [vmem:[%s203 + $0x730] sm:$0xff]
        %v529 = vld [vmem:[%s203 + $0x738] sm:$0xff]
        %v530 = vld [vmem:[%s203 + $0x740] sm:$0xff]
        %v531 = vld [vmem:[%s203 + $0x748] sm:$0xff]
        %v532 = vld [vmem:[%s203 + $0x750] sm:$0xff]
        %v533 = vld [vmem:[%s203 + $0x758] sm:$0xff]
        %v534 = vld [vmem:[%s203 + $0x760] sm:$0xff]
        %v535 = vld [vmem:[%s203 + $0x768] sm:$0xff]
        %v536 = vld [vmem:[%s203 + $0x770] sm:$0xff]
        %v537 = vld [vmem:[%s203 + $0x778] sm:$0xff]
        %v538 = vld [vmem:[%s203 + $0x780] sm:$0xff]
        %v539 = vld [vmem:[%s203 + $0x788] sm:$0xff]
        %v540 = vld [vmem:[%s203 + $0x790] sm:$0xff]
        %v541 = vld [vmem:[%s203 + $0x798] sm:$0xff]
        %v542 = vld [vmem:[%s203 + $0x7a0] sm:$0xff]
        %v543 = vld [vmem:[%s203 + $0x7a8] sm:$0xff]
        %v544 = vld [vmem:[%s203 + $0x7b0] sm:$0xff]
        %v545 = vld [vmem:[%s203 + $0x7b8] sm:$0xff]
        %v546 = vld [vmem:[%s203 + $0x7c0] sm:$0xff]
        %v547 = vld [vmem:[%s203 + $0x7c8] sm:$0xff]
        %v548 = vld [vmem:[%s203 + $0x7d0] sm:$0xff]
        %v549 = vld [vmem:[%s203 + $0x7d8] sm:$0xff]
        %v550 = vld [vmem:[%s203 + $0x7e0] sm:$0xff]
        %v551 = vld [vmem:[%s203 + $0x7e8] sm:$0xff]
        %v552 = vld [vmem:[%s203 + $0x7f0] sm:$0xff]
        %v553 = vld [vmem:[%s203 + $0x7f8] sm:$0xff]
        %v554 = vld [vmem:[%s203 + $0x800] sm:$0xff]
        %v555 = vld [vmem:[%s203 + $0x808] sm:$0xff]
        %v556 = vld [vmem:[%s203 + $0x810] sm:$0xff]
        %v557 = vld [vmem:[%s203 + $0x818] sm:$0xff]
        %v558 = vld [vmem:[%s203 + $0x820] sm:$0xff]
        %v559 = vld [vmem:[%s203 + $0x828] sm:$0xff]
        %v560 = vld [vmem:[%s203 + $0x830] sm:$0xff]
        %v561 = vld [vmem:[%s203 + $0x838] sm:$0xff]
        %v562 = vld [vmem:[%s203 + $0x840] sm:$0xff]
        %v563 = vld [vmem:[%s203 + $0x848] sm:$0xff]
        %v564 = vld [vmem:[%s203 + $0x850] sm:$0xff]
        %v565 = vld [vmem:[%s203 + $0x858] sm:$0xff]
        %v566 = vld [vmem:[%s203 + $0x860] sm:$0xff]
        %v567 = vld [vmem:[%s203 + $0x868] sm:$0xff]
        %v568 = vld [vmem:[%s203 + $0x870] sm:$0xff]
        %v569 = vld [vmem:[%s203 + $0x878] sm:$0xff]
        %v570 = vld [vmem:[%s203 + $0x880] sm:$0xff]
        %v571 = vld [vmem:[%s203 + $0x888] sm:$0xff]
        %v572 = vld [vmem:[%s203 + $0x890] sm:$0xff]
        %v573 = vld [vmem:[%s203 + $0x898] sm:$0xff]
        %v574 = vld [vmem:[%s203 + $0x8a0] sm:$0xff]
        %v575 = vld [vmem:[%s203 + $0x8a8] sm:$0xff]
        %v576 = vld [vmem:[%s203 + $0x8b0] sm:$0xff]
        %v577 = vld [vmem:[%s203 + $0x8b8] sm:$0xff]
        %v578 = vld [vmem:[%s203 + $0x8c0] sm:$0xff]
        %v579 = vld [vmem:[%s203 + $0x8c8] sm:$0xff]
        %v580 = vld [vmem:[%s203 + $0x8d0] sm:$0xff]
        %v581 = vld [vmem:[%s203 + $0x8d8] sm:$0xff]
        %v582 = vld [vmem:[%s203 + $0x8e0] sm:$0xff]
        %v583 = vld [vmem:[%s203 + $0x8e8] sm:$0xff]
        %v584 = vld [vmem:[%s203 + $0x8f0] sm:$0xff]
        %v585 = vld [vmem:[%s203 + $0x8f8] sm:$0xff]
        %v586 = vld [vmem:[%s203 + $0x900] sm:$0xff]
        %v587 = vld [vmem:[%s203 + $0x908] sm:$0xff]
        %v588 = vld [vmem:[%s203 + $0x910] sm:$0xff]
        %v589 = vld [vmem:[%s203 + $0x918] sm:$0xff]
        %v590 = vld [vmem:[%s203 + $0x920] sm:$0xff]
        %v591 = vld [vmem:[%s203 + $0x928] sm:$0xff]
        %v592 = vld [vmem:[%s203 + $0x930] sm:$0xff]
        %v593 = vld [vmem:[%s203 + $0x938] sm:$0xff]
        %v594 = vld [vmem:[%s203 + $0x940] sm:$0xff]
        %v595 = vld [vmem:[%s203 + $0x948] sm:$0xff]
        %v596 = vld [vmem:[%s203 + $0x950] sm:$0xff]
        %v597 = vld [vmem:[%s203 + $0x958] sm:$0xff]
        %v598 = vld [vmem:[%s203 + $0x960] sm:$0xff]
        %v599 = vld [vmem:[%s203 + $0x968] sm:$0xff]
        %v600 = vld [vmem:[%s203 + $0x970] sm:$0xff]
        %v601 = vld [vmem:[%s203 + $0x978] sm:$0xff]
        %v602 = vld [vmem:[%s203 + $0x980] sm:$0xff]
        %v603 = vld [vmem:[%s203 + $0x988] sm:$0xff]
        %v604 = vld [vmem:[%s203 + $0x990] sm:$0xff]
        %v605 = vld [vmem:[%s203 + $0x998] sm:$0xff]
        %v606 = vld [vmem:[%s203 + $0x9a0] sm:$0xff]
        %v607 = vld [vmem:[%s203 + $0x9a8] sm:$0xff]
        %v608 = vld [vmem:[%s203 + $0x9b0] sm:$0xff]
        %v609 = vld [vmem:[%s203 + $0x9b8] sm:$0xff]
        %v610 = vld [vmem:[%s203 + $0x9c0] sm:$0xff]
        %v611 = vld [vmem:[%s203 + $0x9c8] sm:$0xff]
        %v612 = vld [vmem:[%s203 + $0x9d0] sm:$0xff]
        %v613 = vld [vmem:[%s203 + $0x9d8] sm:$0xff]
        %v614 = vld [vmem:[%s203 + $0x9e0] sm:$0xff]
        %v615 = vld [vmem:[%s203 + $0x9e8] sm:$0xff]
        %v616 = vld [vmem:[%s203 + $0x9f0] sm:$0xff]
        %v617 = vld [vmem:[%s203 + $0x9f8] sm:$0xff]
        %v618 = vld [vmem:[%s203 + $0xa00] sm:$0xff]
        %v619 = vld [vmem:[%s203 + $0xa08] sm:$0xff]
        %v620 = vld [vmem:[%s203 + $0xa10] sm:$0xff]
        %v621 = vld [vmem:[%s203 + $0xa18] sm:$0xff]
        %v622 = vld [vmem:[%s203 + $0xa20] sm:$0xff]
        %v623 = vld [vmem:[%s203 + $0xa28] sm:$0xff]
        %v624 = vld [vmem:[%s203 + $0xa30] sm:$0xff]
        %v625 = vld [vmem:[%s203 + $0xa38] sm:$0xff]
        %v626 = vld [vmem:[%s203 + $0xa40] sm:$0xff]
        %v627 = vld [vmem:[%s203 + $0xa48] sm:$0xff]
        %v628 = vld [vmem:[%s203 + $0xa50] sm:$0xff]
        %v629 = vld [vmem:[%s203 + $0xa58] sm:$0xff]
        %v630 = vld [vmem:[%s203 + $0xa60] sm:$0xff]
        %v631 = vld [vmem:[%s203 + $0xa68] sm:$0xff]
        %v632 = vld [vmem:[%s203 + $0xa70] sm:$0xff]
        %v633 = vld [vmem:[%s203 + $0xa78] sm:$0xff]
        %v634 = vld [vmem:[%s203 + $0xa80] sm:$0xff]
        %v635 = vld [vmem:[%s203 + $0xa88] sm:$0xff]
        %v636 = vld [vmem:[%s203 + $0xa90] sm:$0xff]
        %v637 = vld [vmem:[%s203 + $0xa98] sm:$0xff]
        %v638 = vld [vmem:[%s203 + $0xaa0] sm:$0xff]
        %v639 = vld [vmem:[%s203 + $0xaa8] sm:$0xff]
        %v640 = vld [vmem:[%s203 + $0xab0] sm:$0xff]
        %v641 = vld [vmem:[%s203 + $0xab8] sm:$0xff]
        %v642 = vld [vmem:[%s203 + $0xac0] sm:$0xff]
        %v643 = vld [vmem:[%s203 + $0xac8] sm:$0xff]
        %v644 = vld [vmem:[%s203 + $0xad0] sm:$0xff]
        %v645 = vld [vmem:[%s203 + $0xad8] sm:$0xff]
        %v646 = vld [vmem:[%s203 + $0xae0] sm:$0xff]
        %v647 = vld [vmem:[%s203 + $0xae8] sm:$0xff]
        %v648 = vld [vmem:[%s203 + $0xaf0] sm:$0xff]
        %v649 = vld [vmem:[%s203 + $0xaf8] sm:$0xff]
        %v650 = vld [vmem:[%s203 + $0xb00] sm:$0xff]
        %v651 = vld [vmem:[%s203 + $0xb08] sm:$0xff]
        %v652 = vld [vmem:[%s203 + $0xb10] sm:$0xff]
        %v653 = vld [vmem:[%s203 + $0xb18] sm:$0xff]
        %v654 = vld [vmem:[%s203 + $0xb20] sm:$0xff]
        %v655 = vld [vmem:[%s203 + $0xb28] sm:$0xff]
        %v656 = vld [vmem:[%s203 + $0xb30] sm:$0xff]
        %v657 = vld [vmem:[%s203 + $0xb38] sm:$0xff]
        %v658 = vld [vmem:[%s203 + $0xb40] sm:$0xff]
        %v659 = vld [vmem:[%s203 + $0xb48] sm:$0xff]
        %v660 = vld [vmem:[%s203 + $0xb50] sm:$0xff]
        %v661 = vld [vmem:[%s203 + $0xb58] sm:$0xff]
        %v662 = vld [vmem:[%s203 + $0xb60] sm:$0xff]
        %v663 = vld [vmem:[%s203 + $0xb68] sm:$0xff]
        %v664 = vld [vmem:[%s203 + $0xb70] sm:$0xff]
        %v665 = vld [vmem:[%s203 + $0xb78] sm:$0xff]
        %v666 = vld [vmem:[%s203 + $0xb80] sm:$0xff]
        %v667 = vld [vmem:[%s203 + $0xb88] sm:$0xff]
        %v668 = vld [vmem:[%s203 + $0xb90] sm:$0xff]
        %v669 = vld [vmem:[%s203 + $0xb98] sm:$0xff]
        %v670 = vld [vmem:[%s203 + $0xba0] sm:$0xff]
        %v671 = vld [vmem:[%s203 + $0xba8] sm:$0xff]
        %v672 = vld [vmem:[%s203 + $0xbb0] sm:$0xff]
        %v673 = vld [vmem:[%s203 + $0xbb8] sm:$0xff]
        %v674 = vld [vmem:[%s203 + $0xbc0] sm:$0xff]
        %v675 = vld [vmem:[%s203 + $0xbc8] sm:$0xff]
        %v676 = vld [vmem:[%s203 + $0xbd0] sm:$0xff]
        %v677 = vld [vmem:[%s203 + $0xbd8] sm:$0xff]
        %v678 = vld [vmem:[%s203 + $0xbe0] sm:$0xff]
        %v679 = vld [vmem:[%s203 + $0xbe8] sm:$0xff]
        %v680 = vld [vmem:[%s203 + $0xbf0] sm:$0xff]
        %v681 = vld [vmem:[%s203 + $0xbf8] sm:$0xff]
        %v682 = vld [vmem:[%s203 + $0xc00] sm:$0xff]
        %v683 = vld [vmem:[%s203 + $0xc08] sm:$0xff]
        %v684 = vld [vmem:[%s203 + $0xc10] sm:$0xff]
        %v685 = vld [vmem:[%s203 + $0xc18] sm:$0xff]
        %v686 = vld [vmem:[%s203 + $0xc20] sm:$0xff]
        %v687 = vld [vmem:[%s203 + $0xc28] sm:$0xff]
        %v688 = vld [vmem:[%s203 + $0xc30] sm:$0xff]
        %v689 = vld [vmem:[%s203 + $0xc38] sm:$0xff]
        %v690 = vld [vmem:[%s203 + $0xc40] sm:$0xff]
        %v691 = vld [vmem:[%s203 + $0xc48] sm:$0xff]
        %v692 = vld [vmem:[%s203 + $0xc50] sm:$0xff]
        %v693 = vld [vmem:[%s203 + $0xc58] sm:$0xff]
        %v694 = vld [vmem:[%s203 + $0xc60] sm:$0xff]
        %v695 = vld [vmem:[%s203 + $0xc68] sm:$0xff]
        %v696 = vld [vmem:[%s203 + $0xc70] sm:$0xff]
        %v697 = vld [vmem:[%s203 + $0xc78] sm:$0xff]
        %v698 = vld [vmem:[%s203 + $0xc80] sm:$0xff]
        %v699 = vld [vmem:[%s203 + $0xc88] sm:$0xff]
        %v700 = vld [vmem:[%s203 + $0xc90] sm:$0xff]
        %v701 = vld [vmem:[%s203 + $0xc98] sm:$0xff]
        %v702 = vld [vmem:[%s203 + $0xca0] sm:$0xff]
        %v703 = vld [vmem:[%s203 + $0xca8] sm:$0xff]
        %v704 = vld [vmem:[%s203 + $0xcb0] sm:$0xff]
        %v705 = vld [vmem:[%s203 + $0xcb8] sm:$0xff]
        %v706 = vld [vmem:[%s203 + $0xcc0] sm:$0xff]
        %v707 = vld [vmem:[%s203 + $0xcc8] sm:$0xff]
        %v708 = vld [vmem:[%s203 + $0xcd0] sm:$0xff]
        %v709 = vld [vmem:[%s203 + $0xcd8] sm:$0xff]
        %v710 = vld [vmem:[%s203 + $0xce0] sm:$0xff]
        %v711 = vld [vmem:[%s203 + $0xce8] sm:$0xff]
        %v712 = vld [vmem:[%s203 + $0xcf0] sm:$0xff]
        %v713 = vld [vmem:[%s203 + $0xcf8] sm:$0xff]
        %v714 = vld [vmem:[%s203 + $0xd00] sm:$0xff]
        %v715 = vld [vmem:[%s203 + $0xd08] sm:$0xff]
        %v716 = vld [vmem:[%s203 + $0xd10] sm:$0xff]
        %v717 = vld [vmem:[%s203 + $0xd18] sm:$0xff]
        %v718 = vld [vmem:[%s203 + $0xd20] sm:$0xff]
        %v719 = vld [vmem:[%s203 + $0xd28] sm:$0xff]
        %v720 = vld [vmem:[%s203 + $0xd30] sm:$0xff]
        %v721 = vld [vmem:[%s203 + $0xd38] sm:$0xff]
        %v722 = vld [vmem:[%s203 + $0xd40] sm:$0xff]
        %v723 = vld [vmem:[%s203 + $0xd48] sm:$0xff]
        %v724 = vld [vmem:[%s203 + $0xd50] sm:$0xff]
        %v725 = vld [vmem:[%s203 + $0xd58] sm:$0xff]
        %v726 = vld [vmem:[%s203 + $0xd60] sm:$0xff]
        %v727 = vld [vmem:[%s203 + $0xd68] sm:$0xff]
        %v728 = vld [vmem:[%s203 + $0xd70] sm:$0xff]
        %v729 = vld [vmem:[%s203 + $0xd78] sm:$0xff]
        %v730 = vld [vmem:[%s203 + $0xd80] sm:$0xff]
        %v731 = vld [vmem:[%s203 + $0xd88] sm:$0xff]
        %v732 = vld [vmem:[%s203 + $0xd90] sm:$0xff]
        %v733 = vld [vmem:[%s203 + $0xd98] sm:$0xff]
        %v734 = vld [vmem:[%s203 + $0xda0] sm:$0xff]
        %v735 = vld [vmem:[%s203 + $0xda8] sm:$0xff]
        %v736 = vld [vmem:[%s203 + $0xdb0] sm:$0xff]
        %v737 = vld [vmem:[%s203 + $0xdb8] sm:$0xff]
        %v738 = vld [vmem:[%s203 + $0xdc0] sm:$0xff]
        %v739 = vld [vmem:[%s203 + $0xdc8] sm:$0xff]
        %v740 = vld [vmem:[%s203 + $0xdd0] sm:$0xff]
        %v741 = vld [vmem:[%s203 + $0xdd8] sm:$0xff]
        %v742 = vld [vmem:[%s203 + $0xde0] sm:$0xff]
        %v743 = vld [vmem:[%s203 + $0xde8] sm:$0xff]
        %v744 = vld [vmem:[%s203 + $0xdf0] sm:$0xff]
        %v745 = vld [vmem:[%s203 + $0xdf8] sm:$0xff]
        %v746 = vld [vmem:[%s203 + $0xe00] sm:$0xff]
        %v747 = vld [vmem:[%s203 + $0xe08] sm:$0xff]
        %v748 = vld [vmem:[%s203 + $0xe10] sm:$0xff]
        %v749 = vld [vmem:[%s203 + $0xe18] sm:$0xff]
        %v750 = vld [vmem:[%s203 + $0xe20] sm:$0xff]
        %v751 = vld [vmem:[%s203 + $0xe28] sm:$0xff]
        %v752 = vld [vmem:[%s203 + $0xe30] sm:$0xff]
        %v753 = vld [vmem:[%s203 + $0xe38] sm:$0xff]
        %v754 = vld [vmem:[%s203 + $0xe40] sm:$0xff]
        %v755 = vld [vmem:[%s203 + $0xe48] sm:$0xff]
        %v756 = vld [vmem:[%s203 + $0xe50] sm:$0xff]
        %v757 = vld [vmem:[%s203 + $0xe58] sm:$0xff]
        %v758 = vld [vmem:[%s203 + $0xe60] sm:$0xff]
        %v759 = vld [vmem:[%s203 + $0xe68] sm:$0xff]
        %v760 = vld [vmem:[%s203 + $0xe70] sm:$0xff]
        %v761 = vld [vmem:[%s203 + $0xe78] sm:$0xff]
        %v762 = vld [vmem:[%s203 + $0xe80] sm:$0xff]
        %v763 = vld [vmem:[%s203 + $0xe88] sm:$0xff]
        %v764 = vld [vmem:[%s203 + $0xe90] sm:$0xff]
        %v765 = vld [vmem:[%s203 + $0xe98] sm:$0xff]
        %v766 = vld [vmem:[%s203 + $0xea0] sm:$0xff]
        %v767 = vld [vmem:[%s203 + $0xea8] sm:$0xff]
        %v768 = vld [vmem:[%s203 + $0xeb0] sm:$0xff]
        %v769 = vld [vmem:[%s203 + $0xeb8] sm:$0xff]
        %v770 = vld [vmem:[%s203 + $0xec0] sm:$0xff]
        %v771 = vld [vmem:[%s203 + $0xec8] sm:$0xff]
        %v772 = vld [vmem:[%s203 + $0xed0] sm:$0xff]
        %v773 = vld [vmem:[%s203 + $0xed8] sm:$0xff]
        %v774 = vld [vmem:[%s203 + $0xee0] sm:$0xff]
        %v775 = vld [vmem:[%s203 + $0xee8] sm:$0xff]
        %v776 = vld [vmem:[%s203 + $0xef0] sm:$0xff]
        %v777 = vld [vmem:[%s203 + $0xef8] sm:$0xff]
        %v778 = vld [vmem:[%s203 + $0xf00] sm:$0xff]
        %v779 = vld [vmem:[%s203 + $0xf08] sm:$0xff]
        %v780 = vld [vmem:[%s203 + $0xf10] sm:$0xff]
        %v781 = vld [vmem:[%s203 + $0xf18] sm:$0xff]
        %v782 = vld [vmem:[%s203 + $0xf20] sm:$0xff]
        %v783 = vld [vmem:[%s203 + $0xf28] sm:$0xff]
        %v784 = vld [vmem:[%s203 + $0xf30] sm:$0xff]
        %v785 = vld [vmem:[%s203 + $0xf38] sm:$0xff]
        %v786 = vld [vmem:[%s203 + $0xf40] sm:$0xff]
        %v787 = vld [vmem:[%s203 + $0xf48] sm:$0xff]
        %v788 = vld [vmem:[%s203 + $0xf50] sm:$0xff]
        %v789 = vld [vmem:[%s203 + $0xf58] sm:$0xff]
        %v790 = vld [vmem:[%s203 + $0xf60] sm:$0xff]
        %v791 = vld [vmem:[%s203 + $0xf68] sm:$0xff]
        %v792 = vld [vmem:[%s203 + $0xf70] sm:$0xff]
        %v793 = vld [vmem:[%s203 + $0xf78] sm:$0xff]
        %v794 = vld [vmem:[%s203 + $0xf80] sm:$0xff]
        %v795 = vld [vmem:[%s203 + $0xf88] sm:$0xff]
        %v796 = vld [vmem:[%s203 + $0xf90] sm:$0xff]
        %v797 = vld [vmem:[%s203 + $0xf98] sm:$0xff]
        %v798 = vld [vmem:[%s203 + $0xfa0] sm:$0xff]
        %v799 = vld [vmem:[%s203 + $0xfa8] sm:$0xff]
        %v800 = vld [vmem:[%s203 + $0xfb0] sm:$0xff]
        %v801 = vld [vmem:[%s203 + $0xfb8] sm:$0xff]
        %v802 = vld [vmem:[%s203 + $0xfc0] sm:$0xff]
        %v803 = vld [vmem:[%s203 + $0xfc8] sm:$0xff]
        %v804 = vld [vmem:[%s203 + $0xfd0] sm:$0xff]
        %v805 = vld [vmem:[%s203 + $0xfd8] sm:$0xff]
        %v806 = vld [vmem:[%s203 + $0xfe0] sm:$0xff]
        %v807 = vld [vmem:[%s203 + $0xfe8] sm:$0xff]
        %v808 = vld [vmem:[%s203 + $0xff0] sm:$0xff]
        %v809 = vld [vmem:[%s203 + $0xff8] sm:$0xff]
        %v810 = vld [vmem:[%s203 + $0x1000] sm:$0xff]
        %v811 = vld [vmem:[%s203 + $0x1008] sm:$0xff]
        %v812 = vld [vmem:[%s203 + $0x1010] sm:$0xff]
        %v813 = vld [vmem:[%s203 + $0x1018] sm:$0xff]
        %v814 = vld [vmem:[%s203 + $0x1020] sm:$0xff]
        %v815 = vld [vmem:[%s203 + $0x1028] sm:$0xff]
        %v816 = vld [vmem:[%s203 + $0x1030] sm:$0xff]
        %v817 = vld [vmem:[%s203 + $0x1038] sm:$0xff]
        %v818 = vld [vmem:[%s203 + $0x1040] sm:$0xff]
        %v819 = vld [vmem:[%s203 + $0x1048] sm:$0xff]
        %v820 = vld [vmem:[%s203 + $0x1050] sm:$0xff]
        %v821 = vld [vmem:[%s203 + $0x1058] sm:$0xff]
        %v822 = vld [vmem:[%s203 + $0x1060] sm:$0xff]
        %v823 = vld [vmem:[%s203 + $0x1068] sm:$0xff]
        %v824 = vld [vmem:[%s203 + $0x1070] sm:$0xff]
        %v825 = vld [vmem:[%s203 + $0x1078] sm:$0xff]
        %v826 = vld [vmem:[%s203 + $0x1080] sm:$0xff]
        %v827 = vld [vmem:[%s203 + $0x1088] sm:$0xff]
        %v828 = vld [vmem:[%s203 + $0x1090] sm:$0xff]
        %v829 = vld [vmem:[%s203 + $0x1098] sm:$0xff]
        %v830 = vld [vmem:[%s203 + $0x10a0] sm:$0xff]
        %v831 = vld [vmem:[%s203 + $0x10a8] sm:$0xff]
        %v832 = vld [vmem:[%s203 + $0x10b0] sm:$0xff]
        %v833 = vld [vmem:[%s203 + $0x10b8] sm:$0xff]
        %v834 = vld [vmem:[%s203 + $0x10c0] sm:$0xff]
        %v835 = vld [vmem:[%s203 + $0x10c8] sm:$0xff]
        %v836 = vld [vmem:[%s203 + $0x10d0] sm:$0xff]
        %v837 = vld [vmem:[%s203 + $0x10d8] sm:$0xff]
        %v838 = vld [vmem:[%s203 + $0x10e0] sm:$0xff]
        %v839 = vld [vmem:[%s203 + $0x10e8] sm:$0xff]
        %v840 = vld [vmem:[%s203 + $0x10f0] sm:$0xff]
        %v841 = vld [vmem:[%s203 + $0x10f8] sm:$0xff]
        %v842 = vld [vmem:[%s203 + $0x1100] sm:$0xff]
        %v843 = vld [vmem:[%s203 + $0x1108] sm:$0xff]
        %v844 = vld [vmem:[%s203 + $0x1110] sm:$0xff]
        %v845 = vld [vmem:[%s203 + $0x1118] sm:$0xff]
        %v846 = vld [vmem:[%s203 + $0x1120] sm:$0xff]
        %v847 = vld [vmem:[%s203 + $0x1128] sm:$0xff]
        %v848 = vld [vmem:[%s203 + $0x1130] sm:$0xff]
        %v849 = vld [vmem:[%s203 + $0x1138] sm:$0xff]
        %v850 = vld [vmem:[%s203 + $0x1140] sm:$0xff]
        %v851 = vld [vmem:[%s203 + $0x1148] sm:$0xff]
        %v852 = vld [vmem:[%s203 + $0x1150] sm:$0xff]
        %v853 = vld [vmem:[%s203 + $0x1158] sm:$0xff]
        %v854 = vld [vmem:[%s203 + $0x1160] sm:$0xff]
        %v855 = vld [vmem:[%s203 + $0x1168] sm:$0xff]
        %v856 = vld [vmem:[%s203 + $0x1170] sm:$0xff]
        %v857 = vld [vmem:[%s203 + $0x1178] sm:$0xff]
        %v858 = vld [vmem:[%s203 + $0x1180] sm:$0xff]
        %v859 = vld [vmem:[%s203 + $0x1188] sm:$0xff]
        %v860 = vld [vmem:[%s203 + $0x1190] sm:$0xff]
        %v861 = vld [vmem:[%s203 + $0x1198] sm:$0xff]
        %v862 = vld [vmem:[%s203 + $0x11a0] sm:$0xff]
        %v863 = vld [vmem:[%s203 + $0x11a8] sm:$0xff]
        %v864 = vld [vmem:[%s203 + $0x11b0] sm:$0xff]
        %v865 = vld [vmem:[%s203 + $0x11b8] sm:$0xff]
        %v866 = vld [vmem:[%s203 + $0x11c0] sm:$0xff]
        %v867 = vld [vmem:[%s203 + $0x11c8] sm:$0xff]
        %v868 = vld [vmem:[%s203 + $0x11d0] sm:$0xff]
        %v869 = vld [vmem:[%s203 + $0x11d8] sm:$0xff]
        %v870 = vld [vmem:[%s203 + $0x11e0] sm:$0xff]
        %v871 = vld [vmem:[%s203 + $0x11e8] sm:$0xff]
        %v872 = vld [vmem:[%s203 + $0x11f0] sm:$0xff]
        %v873 = vld [vmem:[%s203 + $0x11f8] sm:$0xff]
        %v874 = vld [vmem:[%s203 + $0x1200] sm:$0xff]
        %v875 = vld [vmem:[%s203 + $0x1208] sm:$0xff]
        %v876 = vld [vmem:[%s203 + $0x1210] sm:$0xff]
        %v877 = vld [vmem:[%s203 + $0x1218] sm:$0xff]
        %v878 = vld [vmem:[%s203 + $0x1220] sm:$0xff]
        %v879 = vld [vmem:[%s203 + $0x1228] sm:$0xff]
        %v880 = vld [vmem:[%s203 + $0x1230] sm:$0xff]
        %v881 = vld [vmem:[%s203 + $0x1238] sm:$0xff]
        %v882 = vld [vmem:[%s203 + $0x1240] sm:$0xff]
        %v883 = vld [vmem:[%s203 + $0x1248] sm:$0xff]
        %v884 = vld [vmem:[%s203 + $0x1250] sm:$0xff]
        %v885 = vld [vmem:[%s203 + $0x1258] sm:$0xff]
        %v886 = vld [vmem:[%s203 + $0x1260] sm:$0xff]
        %v887 = vld [vmem:[%s203 + $0x1268] sm:$0xff]
        %v888 = vld [vmem:[%s203 + $0x1270] sm:$0xff]
        %v889 = vld [vmem:[%s203 + $0x1278] sm:$0xff]
        %v890 = vld [vmem:[%s203 + $0x1280] sm:$0xff]
        %v891 = vld [vmem:[%s203 + $0x1288] sm:$0xff]
        %v892 = vld [vmem:[%s203 + $0x1290] sm:$0xff]
        %v893 = vld [vmem:[%s203 + $0x1298] sm:$0xff]
        %v894 = vld [vmem:[%s203 + $0x12a0] sm:$0xff]
        %v895 = vld [vmem:[%s203 + $0x12a8] sm:$0xff]
        %v896 = vld [vmem:[%s203 + $0x12b0] sm:$0xff]
        %v897 = vld [vmem:[%s203 + $0x12b8] sm:$0xff]
        %v898 = vld [vmem:[%s203 + $0x12c0] sm:$0xff]
        %v899 = vld [vmem:[%s203 + $0x12c8] sm:$0xff]
        %v900 = vld [vmem:[%s203 + $0x12d0] sm:$0xff]
        %v901 = vld [vmem:[%s203 + $0x12d8] sm:$0xff]
        %v902 = vld [vmem:[%s203 + $0x12e0] sm:$0xff]
        %v903 = vld [vmem:[%s203 + $0x12e8] sm:$0xff]
        %v904 = vld [vmem:[%s203 + $0x12f0] sm:$0xff]
        %v905 = vld [vmem:[%s203 + $0x12f8] sm:$0xff]
        %v906 = vld [vmem:[%s203 + $0x1300] sm:$0xff]
        %v907 = vld [vmem:[%s203 + $0x1308] sm:$0xff]
        %v908 = vld [vmem:[%s203 + $0x1310] sm:$0xff]
        %v909 = vld [vmem:[%s203 + $0x1318] sm:$0xff]
        %v910 = vld [vmem:[%s203 + $0x1320] sm:$0xff]
        %v911 = vld [vmem:[%s203 + $0x1328] sm:$0xff]
        %v912 = vld [vmem:[%s203 + $0x1330] sm:$0xff]
        %v913 = vld [vmem:[%s203 + $0x1338] sm:$0xff]
        %v914 = vld [vmem:[%s203 + $0x1340] sm:$0xff]
        %v915 = vld [vmem:[%s203 + $0x1348] sm:$0xff]
        %v916 = vld [vmem:[%s203 + $0x1350] sm:$0xff]
        %v917 = vld [vmem:[%s203 + $0x1358] sm:$0xff]
        %v918 = vld [vmem:[%s203 + $0x1360] sm:$0xff]
        %v919 = vld [vmem:[%s203 + $0x1368] sm:$0xff]
        %v920 = vld [vmem:[%s203 + $0x1370] sm:$0xff]
        %v921 = vld [vmem:[%s203 + $0x1378] sm:$0xff]
        %v922 = vld [vmem:[%s203 + $0x1380] sm:$0xff]
        %v923 = vld [vmem:[%s203 + $0x1388] sm:$0xff]
        %v924 = vld [vmem:[%s203 + $0x1390] sm:$0xff]
        %v925 = vld [vmem:[%s203 + $0x1398] sm:$0xff]
        %v926 = vld [vmem:[%s203 + $0x13a0] sm:$0xff]
        %v927 = vld [vmem:[%s203 + $0x13a8] sm:$0xff]
        %v928 = vld [vmem:[%s203 + $0x13b0] sm:$0xff]
        %v929 = vld [vmem:[%s203 + $0x13b8] sm:$0xff]
        %v930 = vld [vmem:[%s203 + $0x13c0] sm:$0xff]
        %v931 = vld [vmem:[%s203 + $0x13c8] sm:$0xff]
        %v932 = vld [vmem:[%s203 + $0x13d0] sm:$0xff]
        %v933 = vld [vmem:[%s203 + $0x13d8] sm:$0xff]
        %v934 = vld [vmem:[%s203 + $0x13e0] sm:$0xff]
        %v935 = vld [vmem:[%s203 + $0x13e8] sm:$0xff]
        %v936 = vld [vmem:[%s203 + $0x13f0] sm:$0xff]
        %v937 = vld [vmem:[%s203 + $0x13f8] sm:$0xff]
        %v938 = vld [vmem:[%s203 + $0x1400] sm:$0xff]
        %v939 = vld [vmem:[%s203 + $0x1408] sm:$0xff]
        %v940 = vld [vmem:[%s203 + $0x1410] sm:$0xff]
        %v941 = vld [vmem:[%s203 + $0x1418] sm:$0xff]
        %v942 = vld [vmem:[%s203 + $0x1420] sm:$0xff]
        %v943 = vld [vmem:[%s203 + $0x1428] sm:$0xff]
        %v944 = vld [vmem:[%s203 + $0x1430] sm:$0xff]
        %v945 = vld [vmem:[%s203 + $0x1438] sm:$0xff]
        %v946 = vld [vmem:[%s203 + $0x1440] sm:$0xff]
        %v947 = vld [vmem:[%s203 + $0x1448] sm:$0xff]
        %v948 = vld [vmem:[%s203 + $0x1450] sm:$0xff]
        %v949 = vld [vmem:[%s203 + $0x1458] sm:$0xff]
        %v950 = vld [vmem:[%s203 + $0x1460] sm:$0xff]
        %v951 = vld [vmem:[%s203 + $0x1468] sm:$0xff]
        %v952 = vld [vmem:[%s203 + $0x1470] sm:$0xff]
        %v953 = vld [vmem:[%s203 + $0x1478] sm:$0xff]
        %v954 = vld [vmem:[%s203 + $0x1480] sm:$0xff]
        %v955 = vld [vmem:[%s203 + $0x1488] sm:$0xff]
        %v956 = vld [vmem:[%s203 + $0x1490] sm:$0xff]
        %v957 = vld [vmem:[%s203 + $0x1498] sm:$0xff]
        %v958 = vld [vmem:[%s203 + $0x14a0] sm:$0xff]
        %v959 = vld [vmem:[%s203 + $0x14a8] sm:$0xff]
        %v960 = vld [vmem:[%s203 + $0x14b0] sm:$0xff]
        %v961 = vld [vmem:[%s203 + $0x14b8] sm:$0xff]
        %v962 = vld [vmem:[%s203 + $0x14c0] sm:$0xff]
        %v963 = vld [vmem:[%s203 + $0x14c8] sm:$0xff]
        %v964 = vld [vmem:[%s203 + $0x14d0] sm:$0xff]
        %v965 = vld [vmem:[%s203 + $0x14d8] sm:$0xff]
        %v966 = vld [vmem:[%s203 + $0x14e0] sm:$0xff]
        %v967 = vld [vmem:[%s203 + $0x14e8] sm:$0xff]
        %v968 = vld [vmem:[%s203 + $0x14f0] sm:$0xff]
        %v969 = vld [vmem:[%s203 + $0x14f8] sm:$0xff]
        %v970 = vld [vmem:[%s203 + $0x1500] sm:$0xff]
        %v971 = vld [vmem:[%s203 + $0x1508] sm:$0xff]
        %v972 = vld [vmem:[%s203 + $0x1510] sm:$0xff]
        %v973 = vld [vmem:[%s203 + $0x1518] sm:$0xff]
        %v974 = vld [vmem:[%s203 + $0x1520] sm:$0xff]
        %v975 = vld [vmem:[%s203 + $0x1528] sm:$0xff]
        %v976 = vld [vmem:[%s203 + $0x1530] sm:$0xff]
        %v977 = vld [vmem:[%s203 + $0x1538] sm:$0xff]
        %v978 = vld [vmem:[%s203 + $0x1540] sm:$0xff]
        %v979 = vld [vmem:[%s203 + $0x1548] sm:$0xff]
        %v980 = vld [vmem:[%s203 + $0x1550] sm:$0xff]
        %v981 = vld [vmem:[%s203 + $0x1558] sm:$0xff]
        %v982 = vld [vmem:[%s203 + $0x1560] sm:$0xff]
        %v983 = vld [vmem:[%s203 + $0x1568] sm:$0xff]
        %v984 = vld [vmem:[%s203 + $0x1570] sm:$0xff]
        %v985 = vld [vmem:[%s203 + $0x1578] sm:$0xff]
        %v986 = vld [vmem:[%s203 + $0x1580] sm:$0xff]
        %v987 = vld [vmem:[%s203 + $0x1588] sm:$0xff]
        %v988 = vld [vmem:[%s203 + $0x1590] sm:$0xff]
        %v989 = vld [vmem:[%s203 + $0x1598] sm:$0xff]
        %v990 = vld [vmem:[%s203 + $0x15a0] sm:$0xff]
        %v991 = vld [vmem:[%s203 + $0x15a8] sm:$0xff]
        %v992 = vld [vmem:[%s203 + $0x15b0] sm:$0xff]
        %v993 = vld [vmem:[%s203 + $0x15b8] sm:$0xff]
        %v994 = vld [vmem:[%s203 + $0x15c0] sm:$0xff]
        %v995 = vld [vmem:[%s203 + $0x15c8] sm:$0xff]
        %v996 = vld [vmem:[%s203 + $0x15d0] sm:$0xff]
        %v997 = vld [vmem:[%s203 + $0x15d8] sm:$0xff]
        %v998 = vld [vmem:[%s203 + $0x15e0] sm:$0xff]
        %v999 = vld [vmem:[%s203 + $0x15e8] sm:$0xff]
        %v1000 = vld [vmem:[%s203 + $0x15f0] sm:$0xff]
        %v1001 = vld [vmem:[%s203 + $0x15f8] sm:$0xff]
        %v1002 = vld [vmem:[%s203 + $0x1600] sm:$0xff]
        %v1003 = vld [vmem:[%s203 + $0x1608] sm:$0xff]
        %v1004 = vld [vmem:[%s203 + $0x1610] sm:$0xff]
        %v1005 = vld [vmem:[%s203 + $0x1618] sm:$0xff]
        %v1006 = vld [vmem:[%s203 + $0x1620] sm:$0xff]
        %v1007 = vld [vmem:[%s203 + $0x1628] sm:$0xff]
        %v1008 = vld [vmem:[%s203 + $0x1630] sm:$0xff]
        %v1009 = vld [vmem:[%s203 + $0x1638] sm:$0xff]
        %v1010 = vld [vmem:[%s203 + $0x1640] sm:$0xff]
        %v1011 = vld [vmem:[%s203 + $0x1648] sm:$0xff]
        %v1012 = vld [vmem:[%s203 + $0x1650] sm:$0xff]
        %v1013 = vld [vmem:[%s203 + $0x1658] sm:$0xff]
        %v1014 = vld [vmem:[%s203 + $0x1660] sm:$0xff]
        %v1015 = vld [vmem:[%s203 + $0x1668] sm:$0xff]
        %v1016 = vld [vmem:[%s203 + $0x1670] sm:$0xff]
        %v1017 = vld [vmem:[%s203 + $0x1678] sm:$0xff]
        %v1018 = vld [vmem:[%s203 + $0x1680] sm:$0xff]
        %v1019 = vld [vmem:[%s203 + $0x1688] sm:$0xff]
        %v1020 = vld [vmem:[%s203 + $0x1690] sm:$0xff]
        %v1021 = vld [vmem:[%s203 + $0x1698] sm:$0xff]
        %v1022 = vld [vmem:[%s203 + $0x16a0] sm:$0xff]
        %v1023 = vld [vmem:[%s203 + $0x16a8] sm:$0xff]
        %v1024 = vld [vmem:[%s203 + $0x16b0] sm:$0xff]
        %v1025 = vld [vmem:[%s203 + $0x16b8] sm:$0xff]
        %v1026 = vld [vmem:[%s203 + $0x16c0] sm:$0xff]
        %v1027 = vld [vmem:[%s203 + $0x16c8] sm:$0xff]
        %v1028 = vld [vmem:[%s203 + $0x16d0] sm:$0xff]
        %v1029 = vld [vmem:[%s203 + $0x16d8] sm:$0xff]
        %v1030 = vld [vmem:[%s203 + $0x16e0] sm:$0xff]
        %v1031 = vld [vmem:[%s203 + $0x16e8] sm:$0xff]
        %v1032 = vld [vmem:[%s203 + $0x16f0] sm:$0xff]
        %v1033 = vld [vmem:[%s203 + $0x16f8] sm:$0xff]
        %v1034 = vld [vmem:[%s203 + $0x1700] sm:$0xff]
        %v1035 = vld [vmem:[%s203 + $0x1708] sm:$0xff]
        %v1036 = vld [vmem:[%s203 + $0x1710] sm:$0xff]
        %v1037 = vld [vmem:[%s203 + $0x1718] sm:$0xff]
        %v1038 = vld [vmem:[%s203 + $0x1720] sm:$0xff]
        %v1039 = vld [vmem:[%s203 + $0x1728] sm:$0xff]
        %v1040 = vld [vmem:[%s203 + $0x1730] sm:$0xff]
        %v1041 = vld [vmem:[%s203 + $0x1738] sm:$0xff]
        %v1042 = vld [vmem:[%s203 + $0x1740] sm:$0xff]
        %v1043 = vld [vmem:[%s203 + $0x1748] sm:$0xff]
        %v1044 = vld [vmem:[%s203 + $0x1750] sm:$0xff]
        %v1045 = vld [vmem:[%s203 + $0x1758] sm:$0xff]
        %v1046 = vld [vmem:[%s203 + $0x1760] sm:$0xff]
        %v1047 = vld [vmem:[%s203 + $0x1768] sm:$0xff]
        %v1048 = vld [vmem:[%s203 + $0x1770] sm:$0xff]
        %v1049 = vld [vmem:[%s203 + $0x1778] sm:$0xff]
        %v1050 = vld [vmem:[%s203 + $0x1780] sm:$0xff]
        %v1051 = vld [vmem:[%s203 + $0x1788] sm:$0xff]
        %v1052 = vld [vmem:[%s203 + $0x1790] sm:$0xff]
        %v1053 = vld [vmem:[%s203 + $0x1798] sm:$0xff]
        %v1054 = vld [vmem:[%s203 + $0x17a0] sm:$0xff]
        %v1055 = vld [vmem:[%s203 + $0x17a8] sm:$0xff]
        %v1056 = vld [vmem:[%s203 + $0x17b0] sm:$0xff]
        %v1057 = vld [vmem:[%s203 + $0x17b8] sm:$0xff]
        %v1058 = vld [vmem:[%s203 + $0x17c0] sm:$0xff]
        %v1059 = vld [vmem:[%s203 + $0x17c8] sm:$0xff]
        %v1060 = vld [vmem:[%s203 + $0x17d0] sm:$0xff]
        %v1061 = vld [vmem:[%s203 + $0x17d8] sm:$0xff]
        %v1062 = vld [vmem:[%s203 + $0x17e0] sm:$0xff]
        %v1063 = vld [vmem:[%s203 + $0x17e8] sm:$0xff]
        %v1064 = vld [vmem:[%s203 + $0x17f0] sm:$0xff]
        %v1065 = vld [vmem:[%s203 + $0x17f8] sm:$0xff]
        %v1066 = vld [vmem:[%s203 + $0x1800] sm:$0xff]
        %v1067 = vld [vmem:[%s203 + $0x1808] sm:$0xff]
        %v1068 = vld [vmem:[%s203 + $0x1810] sm:$0xff]
        %v1069 = vld [vmem:[%s203 + $0x1818] sm:$0xff]
        %v1070 = vld [vmem:[%s203 + $0x1820] sm:$0xff]
        %v1071 = vld [vmem:[%s203 + $0x1828] sm:$0xff]
        %v1072 = vld [vmem:[%s203 + $0x1830] sm:$0xff]
        %v1073 = vld [vmem:[%s203 + $0x1838] sm:$0xff]
        %v1074 = vld [vmem:[%s203 + $0x1840] sm:$0xff]
        %v1075 = vld [vmem:[%s203 + $0x1848] sm:$0xff]
        %v1076 = vld [vmem:[%s203 + $0x1850] sm:$0xff]
        %v1077 = vld [vmem:[%s203 + $0x1858] sm:$0xff]
        %v1078 = vld [vmem:[%s203 + $0x1860] sm:$0xff]
        %v1079 = vld [vmem:[%s203 + $0x1868] sm:$0xff]
        %v1080 = vld [vmem:[%s203 + $0x1870] sm:$0xff]
        %v1081 = vld [vmem:[%s203 + $0x1878] sm:$0xff]
        %v1082 = vld [vmem:[%s203 + $0x1880] sm:$0xff]
        %v1083 = vld [vmem:[%s203 + $0x1888] sm:$0xff]
        %v1084 = vld [vmem:[%s203 + $0x1890] sm:$0xff]
        %v1085 = vld [vmem:[%s203 + $0x1898] sm:$0xff]
        %v1086 = vld [vmem:[%s203 + $0x18a0] sm:$0xff]
        %v1087 = vld [vmem:[%s203 + $0x18a8] sm:$0xff]
        %v1088 = vld [vmem:[%s203 + $0x18b0] sm:$0xff]
        %v1089 = vld [vmem:[%s203 + $0x18b8] sm:$0xff]
        %v1090 = vld [vmem:[%s203 + $0x18c0] sm:$0xff]
        %v1091 = vld [vmem:[%s203 + $0x18c8] sm:$0xff]
        %v1092 = vld [vmem:[%s203 + $0x18d0] sm:$0xff]
        %v1093 = vld [vmem:[%s203 + $0x18d8] sm:$0xff]
        %v1094 = vld [vmem:[%s203 + $0x18e0] sm:$0xff]
        %v1095 = vld [vmem:[%s203 + $0x18e8] sm:$0xff]
        %v1096 = vld [vmem:[%s203 + $0x18f0] sm:$0xff]
        %v1097 = vld [vmem:[%s203 + $0x18f8] sm:$0xff]
        %v1098 = vld [vmem:[%s203 + $0x1900] sm:$0xff]
        %v1099 = vld [vmem:[%s203 + $0x1908] sm:$0xff]
        %v1100 = vld [vmem:[%s203 + $0x1910] sm:$0xff]
        %v1101 = vld [vmem:[%s203 + $0x1918] sm:$0xff]
        %v1102 = vld [vmem:[%s203 + $0x1920] sm:$0xff]
        %v1103 = vld [vmem:[%s203 + $0x1928] sm:$0xff]
        %v1104 = vld [vmem:[%s203 + $0x1930] sm:$0xff]
        %v1105 = vld [vmem:[%s203 + $0x1938] sm:$0xff]
        %v1106 = vld [vmem:[%s203 + $0x1940] sm:$0xff]
        %v1107 = vld [vmem:[%s203 + $0x1948] sm:$0xff]
        %v1108 = vld [vmem:[%s203 + $0x1950] sm:$0xff]
        %v1109 = vld [vmem:[%s203 + $0x1958] sm:$0xff]
        %v1110 = vld [vmem:[%s203 + $0x1960] sm:$0xff]
        %v1111 = vld [vmem:[%s203 + $0x1968] sm:$0xff]
        %v1112 = vld [vmem:[%s203 + $0x1970] sm:$0xff]
        %v1113 = vld [vmem:[%s203 + $0x1978] sm:$0xff]
        %v1114 = vld [vmem:[%s203 + $0x1980] sm:$0xff]
        %v1115 = vld [vmem:[%s203 + $0x1988] sm:$0xff]
        %v1116 = vld [vmem:[%s203 + $0x1990] sm:$0xff]
        %v1117 = vld [vmem:[%s203 + $0x1998] sm:$0xff]
        %v1118 = vld [vmem:[%s203 + $0x19a0] sm:$0xff]
        %v1119 = vld [vmem:[%s203 + $0x19a8] sm:$0xff]
        %v1120 = vld [vmem:[%s203 + $0x19b0] sm:$0xff]
        %v1121 = vld [vmem:[%s203 + $0x19b8] sm:$0xff]
        %v1122 = vld [vmem:[%s203 + $0x19c0] sm:$0xff]
        %v1123 = vld [vmem:[%s203 + $0x19c8] sm:$0xff]
        %v1124 = vld [vmem:[%s203 + $0x19d0] sm:$0xff]
        %v1125 = vld [vmem:[%s203 + $0x19d8] sm:$0xff]
        %v1126 = vld [vmem:[%s203 + $0x19e0] sm:$0xff]
        %v1127 = vld [vmem:[%s203 + $0x19e8] sm:$0xff]
        %v1128 = vld [vmem:[%s203 + $0x19f0] sm:$0xff]
        %v1129 = vld [vmem:[%s203 + $0x19f8] sm:$0xff]
        %v1130 = vld [vmem:[%s203 + $0x1a00] sm:$0xff]
        %v1131 = vld [vmem:[%s203 + $0x1a08] sm:$0xff]
        %v1132 = vld [vmem:[%s203 + $0x1a10] sm:$0xff]
        %v1133 = vld [vmem:[%s203 + $0x1a18] sm:$0xff]
        %v1134 = vld [vmem:[%s203 + $0x1a20] sm:$0xff]
        %v1135 = vld [vmem:[%s203 + $0x1a28] sm:$0xff]
        %v1136 = vld [vmem:[%s203 + $0x1a30] sm:$0xff]
        %v1137 = vld [vmem:[%s203 + $0x1a38] sm:$0xff]
        %v1138 = vld [vmem:[%s203 + $0x1a40] sm:$0xff]
        %v1139 = vld [vmem:[%s203 + $0x1a48] sm:$0xff]
        %v1140 = vld [vmem:[%s203 + $0x1a50] sm:$0xff]
        %v1141 = vld [vmem:[%s203 + $0x1a58] sm:$0xff]
        %v1142 = vld [vmem:[%s203 + $0x1a60] sm:$0xff]
        %v1143 = vld [vmem:[%s203 + $0x1a68] sm:$0xff]
        %v1144 = vld [vmem:[%s203 + $0x1a70] sm:$0xff]
        %v1145 = vld [vmem:[%s203 + $0x1a78] sm:$0xff]
        %v1146 = vld [vmem:[%s203 + $0x1a80] sm:$0xff]
        %v1147 = vld [vmem:[%s203 + $0x1a88] sm:$0xff]
        %v1148 = vld [vmem:[%s203 + $0x1a90] sm:$0xff]
        %v1149 = vld [vmem:[%s203 + $0x1a98] sm:$0xff]
        %v1150 = vld [vmem:[%s203 + $0x1aa0] sm:$0xff]
        %v1151 = vld [vmem:[%s203 + $0x1aa8] sm:$0xff]
        %v1152 = vld [vmem:[%s203 + $0x1ab0] sm:$0xff]
        %v1153 = vld [vmem:[%s203 + $0x1ab8] sm:$0xff]
        %v1154 = vld [vmem:[%s203 + $0x1ac0] sm:$0xff]
        %v1155 = vld [vmem:[%s203 + $0x1ac8] sm:$0xff]
        %v1156 = vld [vmem:[%s203 + $0x1ad0] sm:$0xff]
        %v1157 = vld [vmem:[%s203 + $0x1ad8] sm:$0xff]
        %v1158 = vld [vmem:[%s203 + $0x1ae0] sm:$0xff]
        %v1159 = vld [vmem:[%s203 + $0x1ae8] sm:$0xff]
        %v1160 = vld [vmem:[%s203 + $0x1af0] sm:$0xff]
        %v1161 = vld [vmem:[%s203 + $0x1af8] sm:$0xff]
        %v1162 = vld [vmem:[%s203 + $0x1b00] sm:$0xff]
        %v1163 = vld [vmem:[%s203 + $0x1b08] sm:$0xff]
        %v1164 = vld [vmem:[%s203 + $0x1b10] sm:$0xff]
        %v1165 = vld [vmem:[%s203 + $0x1b18] sm:$0xff]
        %v1166 = vld [vmem:[%s203 + $0x1b20] sm:$0xff]
        %v1167 = vld [vmem:[%s203 + $0x1b28] sm:$0xff]
        %v1168 = vld [vmem:[%s203 + $0x1b30] sm:$0xff]
        %v1169 = vld [vmem:[%s203 + $0x1b38] sm:$0xff]
        %v1170 = vld [vmem:[%s203 + $0x1b40] sm:$0xff]
        %v1171 = vld [vmem:[%s203 + $0x1b48] sm:$0xff]
        %v1172 = vld [vmem:[%s203 + $0x1b50] sm:$0xff]
        %v1173 = vld [vmem:[%s203 + $0x1b58] sm:$0xff]
        %v1174 = vld [vmem:[%s203 + $0x1b60] sm:$0xff]
        %v1175 = vld [vmem:[%s203 + $0x1b68] sm:$0xff]
        %v1176 = vld [vmem:[%s203 + $0x1b70] sm:$0xff]
        %v1177 = vld [vmem:[%s203 + $0x1b78] sm:$0xff]
        %v1178 = vld [vmem:[%s203 + $0x1b80] sm:$0xff]
        %v1179 = vld [vmem:[%s203 + $0x1b88] sm:$0xff]
        %v1180 = vld [vmem:[%s203 + $0x1b90] sm:$0xff]
        %v1181 = vld [vmem:[%s203 + $0x1b98] sm:$0xff]
        %v1182 = vld [vmem:[%s203 + $0x1ba0] sm:$0xff]
        %v1183 = vld [vmem:[%s203 + $0x1ba8] sm:$0xff]
        %v1184 = vld [vmem:[%s203 + $0x1bb0] sm:$0xff]
        %v1185 = vld [vmem:[%s203 + $0x1bb8] sm:$0xff]
        %v1186 = vld [vmem:[%s203 + $0x1bc0] sm:$0xff]
        %v1187 = vld [vmem:[%s203 + $0x1bc8] sm:$0xff]
        %v1188 = vld [vmem:[%s203 + $0x1bd0] sm:$0xff]
        %v1189 = vld [vmem:[%s203 + $0x1bd8] sm:$0xff]
        %v1190 = vld [vmem:[%s203 + $0x1be0] sm:$0xff]
        %v1191 = vld [vmem:[%s203 + $0x1be8] sm:$0xff]
        %v1192 = vld [vmem:[%s203 + $0x1bf0] sm:$0xff]
        %v1193 = vld [vmem:[%s203 + $0x1bf8] sm:$0xff]
        %v1194 = vld [vmem:[%s203 + $0x1c00] sm:$0xff]
        %v1195 = vld [vmem:[%s203 + $0x1c08] sm:$0xff]
        %v1196 = vld [vmem:[%s203 + $0x1c10] sm:$0xff]
        %v1197 = vld [vmem:[%s203 + $0x1c18] sm:$0xff]
        %v1198 = vld [vmem:[%s203 + $0x1c20] sm:$0xff]
        %v1199 = vld [vmem:[%s203 + $0x1c28] sm:$0xff]
        %v1200 = vld [vmem:[%s203 + $0x1c30] sm:$0xff]
        %v1201 = vld [vmem:[%s203 + $0x1c38] sm:$0xff]
        %v1202 = vld [vmem:[%s203 + $0x1c40] sm:$0xff]
        %v1203 = vld [vmem:[%s203 + $0x1c48] sm:$0xff]
        %v1204 = vld [vmem:[%s203 + $0x1c50] sm:$0xff]
        %v1205 = vld [vmem:[%s203 + $0x1c58] sm:$0xff]
        %v1206 = vld [vmem:[%s203 + $0x1c60] sm:$0xff]
        %v1207 = vld [vmem:[%s203 + $0x1c68] sm:$0xff]
        %v1208 = vld [vmem:[%s203 + $0x1c70] sm:$0xff]
        %v1209 = vld [vmem:[%s203 + $0x1c78] sm:$0xff]
        %v1210 = vld [vmem:[%s203 + $0x1c80] sm:$0xff]
        %v1211 = vld [vmem:[%s203 + $0x1c88] sm:$0xff]
        %v1212 = vld [vmem:[%s203 + $0x1c90] sm:$0xff]
        %v1213 = vld [vmem:[%s203 + $0x1c98] sm:$0xff]
        %v1214 = vld [vmem:[%s203 + $0x1ca0] sm:$0xff]
        %v1215 = vld [vmem:[%s203 + $0x1ca8] sm:$0xff]
        %v1216 = vld [vmem:[%s203 + $0x1cb0] sm:$0xff]
        %v1217 = vld [vmem:[%s203 + $0x1cb8] sm:$0xff]
        %v1218 = vld [vmem:[%s203 + $0x1cc0] sm:$0xff]
        %v1219 = vld [vmem:[%s203 + $0x1cc8] sm:$0xff]
        %v1220 = vld [vmem:[%s203 + $0x1cd0] sm:$0xff]
        %v1221 = vld [vmem:[%s203 + $0x1cd8] sm:$0xff]
        %v1222 = vld [vmem:[%s203 + $0x1ce0] sm:$0xff]
        %v1223 = vld [vmem:[%s203 + $0x1ce8] sm:$0xff]
        %v1224 = vld [vmem:[%s203 + $0x1cf0] sm:$0xff]
        %v1225 = vld [vmem:[%s203 + $0x1cf8] sm:$0xff]
        %v1226 = vld [vmem:[%s203 + $0x1d00] sm:$0xff]
        %v1227 = vld [vmem:[%s203 + $0x1d08] sm:$0xff]
        %v1228 = vld [vmem:[%s203 + $0x1d10] sm:$0xff]
        %v1229 = vld [vmem:[%s203 + $0x1d18] sm:$0xff]
        %v1230 = vld [vmem:[%s203 + $0x1d20] sm:$0xff]
        %v1231 = vld [vmem:[%s203 + $0x1d28] sm:$0xff]
        %v1232 = vld [vmem:[%s203 + $0x1d30] sm:$0xff]
        %v1233 = vld [vmem:[%s203 + $0x1d38] sm:$0xff]
        %v1234 = vld [vmem:[%s203 + $0x1d40] sm:$0xff]
        %v1235 = vld [vmem:[%s203 + $0x1d48] sm:$0xff]
        %v1236 = vld [vmem:[%s203 + $0x1d50] sm:$0xff]
        %v1237 = vld [vmem:[%s203 + $0x1d58] sm:$0xff]
        %v1238 = vld [vmem:[%s203 + $0x1d60] sm:$0xff]
        %v1239 = vld [vmem:[%s203 + $0x1d68] sm:$0xff]
        %v1240 = vld [vmem:[%s203 + $0x1d70] sm:$0xff]
        %v1241 = vld [vmem:[%s203 + $0x1d78] sm:$0xff]
        %v1242 = vld [vmem:[%s203 + $0x1d80] sm:$0xff]
        %v1243 = vld [vmem:[%s203 + $0x1d88] sm:$0xff]
        %v1244 = vld [vmem:[%s203 + $0x1d90] sm:$0xff]
        %v1245 = vld [vmem:[%s203 + $0x1d98] sm:$0xff]
        %v1246 = vld [vmem:[%s203 + $0x1da0] sm:$0xff]
        %v1247 = vld [vmem:[%s203 + $0x1da8] sm:$0xff]
        %v1248 = vld [vmem:[%s203 + $0x1db0] sm:$0xff]
        %v1249 = vld [vmem:[%s203 + $0x1db8] sm:$0xff]
        %v1250 = vld [vmem:[%s203 + $0x1dc0] sm:$0xff]
        %v1251 = vld [vmem:[%s203 + $0x1dc8] sm:$0xff]
        %v1252 = vld [vmem:[%s203 + $0x1dd0] sm:$0xff]
        %v1253 = vld [vmem:[%s203 + $0x1dd8] sm:$0xff]
        %v1254 = vld [vmem:[%s203 + $0x1de0] sm:$0xff]
        %v1255 = vld [vmem:[%s203 + $0x1de8] sm:$0xff]
        %v1256 = vld [vmem:[%s203 + $0x1df0] sm:$0xff]
        %v1257 = vld [vmem:[%s203 + $0x1df8] sm:$0xff]
        %v1258 = vld [vmem:[%s203 + $0x1e00] sm:$0xff]
        %v1259 = vld [vmem:[%s203 + $0x1e08] sm:$0xff]
        %v1260 = vld [vmem:[%s203 + $0x1e10] sm:$0xff]
        %v1261 = vld [vmem:[%s203 + $0x1e18] sm:$0xff]
        %v1262 = vld [vmem:[%s203 + $0x1e20] sm:$0xff]
        %v1263 = vld [vmem:[%s203 + $0x1e28] sm:$0xff]
        %v1264 = vld [vmem:[%s203 + $0x1e30] sm:$0xff]
        %v1265 = vld [vmem:[%s203 + $0x1e38] sm:$0xff]
        %v1266 = vld [vmem:[%s203 + $0x1e40] sm:$0xff]
        %v1267 = vld [vmem:[%s203 + $0x1e48] sm:$0xff]
        %v1268 = vld [vmem:[%s203 + $0x1e50] sm:$0xff]
        %v1269 = vld [vmem:[%s203 + $0x1e58] sm:$0xff]
        %v1270 = vld [vmem:[%s203 + $0x1e60] sm:$0xff]
        %v1271 = vld [vmem:[%s203 + $0x1e68] sm:$0xff]
        %v1272 = vld [vmem:[%s203 + $0x1e70] sm:$0xff]
        %v1273 = vld [vmem:[%s203 + $0x1e78] sm:$0xff]
        %v1274 = vld [vmem:[%s203 + $0x1e80] sm:$0xff]
        %v1275 = vld [vmem:[%s203 + $0x1e88] sm:$0xff]
        %v1276 = vld [vmem:[%s203 + $0x1e90] sm:$0xff]
        %v1277 = vld [vmem:[%s203 + $0x1e98] sm:$0xff]
        %v1278 = vld [vmem:[%s203 + $0x1ea0] sm:$0xff]
        %v1279 = vld [vmem:[%s203 + $0x1ea8] sm:$0xff]
        %v1280 = vld [vmem:[%s203 + $0x1eb0] sm:$0xff]
        %v1281 = vld [vmem:[%s203 + $0x1eb8] sm:$0xff]
        %v1282 = vld [vmem:[%s203 + $0x1ec0] sm:$0xff]
        %v1283 = vld [vmem:[%s203 + $0x1ec8] sm:$0xff]
        %v1284 = vld [vmem:[%s203 + $0x1ed0] sm:$0xff]
        %v1285 = vld [vmem:[%s203 + $0x1ed8] sm:$0xff]
        %v1286 = vld [vmem:[%s203 + $0x1ee0] sm:$0xff]
        %v1287 = vld [vmem:[%s203 + $0x1ee8] sm:$0xff]
        %v1288 = vld [vmem:[%s203 + $0x1ef0] sm:$0xff]
        %v1289 = vld [vmem:[%s203 + $0x1ef8] sm:$0xff]
        %v1290 = vld [vmem:[%s203 + $0x1f00] sm:$0xff]
        %v1291 = vld [vmem:[%s203 + $0x1f08] sm:$0xff]
        %v1292 = vld [vmem:[%s203 + $0x1f10] sm:$0xff]
        %v1293 = vld [vmem:[%s203 + $0x1f18] sm:$0xff]
        %v1294 = vld [vmem:[%s203 + $0x1f20] sm:$0xff]
        %v1295 = vld [vmem:[%s203 + $0x1f28] sm:$0xff]
        %v1296 = vld [vmem:[%s203 + $0x1f30] sm:$0xff]
        %v1297 = vld [vmem:[%s203 + $0x1f38] sm:$0xff]
        %v1298 = vld [vmem:[%s203 + $0x1f40] sm:$0xff]
        %v1299 = vld [vmem:[%s203 + $0x1f48] sm:$0xff]
        %v1300 = vld [vmem:[%s203 + $0x1f50] sm:$0xff]
        %v1301 = vld [vmem:[%s203 + $0x1f58] sm:$0xff]
        %v1302 = vld [vmem:[%s203 + $0x1f60] sm:$0xff]
        %v1303 = vld [vmem:[%s203 + $0x1f68] sm:$0xff]
        %v1304 = vld [vmem:[%s203 + $0x1f70] sm:$0xff]
        %v1305 = vld [vmem:[%s203 + $0x1f78] sm:$0xff]
        %v1306 = vld [vmem:[%s203 + $0x1f80] sm:$0xff]
        %v1307 = vld [vmem:[%s203 + $0x1f88] sm:$0xff]
        %v1308 = vld [vmem:[%s203 + $0x1f90] sm:$0xff]
        %v1309 = vld [vmem:[%s203 + $0x1f98] sm:$0xff]
        %v1310 = vld [vmem:[%s203 + $0x1fa0] sm:$0xff]
        %v1311 = vld [vmem:[%s203 + $0x1fa8] sm:$0xff]
        %v1312 = vld [vmem:[%s203 + $0x1fb0] sm:$0xff]
        %v1313 = vld [vmem:[%s203 + $0x1fb8] sm:$0xff]
        %v1314 = vld [vmem:[%s203 + $0x1fc0] sm:$0xff]
        %v1315 = vld [vmem:[%s203 + $0x1fc8] sm:$0xff]
        %v1316 = vld [vmem:[%s203 + $0x1fd0] sm:$0xff]
        %v1317 = vld [vmem:[%s203 + $0x1fd8] sm:$0xff]
        %v1318 = vld [vmem:[%s203 + $0x1fe0] sm:$0xff]
        %v1319 = vld [vmem:[%s203 + $0x1fe8] sm:$0xff]
        %v1320 = vld [vmem:[%s203 + $0x1ff0] sm:$0xff]
        %v1321 = vld [vmem:[%s203 + $0x1ff8] sm:$0xff]
        %v1354 = vunpack.c.l.b16 %v258
        %v1355 = vunpack.c.h.b16 %v258
        %v1356 = vunpack.c.l.b16 %v259
        %v1357 = vunpack.c.h.b16 %v259
        %v1358 = vunpack.c.l.b16 %v260
        %v1359 = vunpack.c.h.b16 %v260
        %v1360 = vunpack.c.l.b16 %v261
        %v1361 = vunpack.c.h.b16 %v261
        %v1362 = vunpack.c.l.b16 %v262
        %v1363 = vunpack.c.h.b16 %v262
        %v1364 = vunpack.c.l.b16 %v263
        %v1365 = vunpack.c.h.b16 %v263
        %v1366 = vunpack.c.l.b16 %v264
        %v1367 = vunpack.c.h.b16 %v264
        %v1368 = vunpack.c.l.b16 %v265
        %v1369 = vunpack.c.h.b16 %v265
        %v1370 = vunpack.c.l.b16 %v266
        %v1371 = vunpack.c.h.b16 %v266
        %v1372 = vunpack.c.l.b16 %v267
        %v1373 = vunpack.c.h.b16 %v267
        %v1374 = vunpack.c.l.b16 %v268
        %v1375 = vunpack.c.h.b16 %v268
        %v1376 = vunpack.c.l.b16 %v269
        %v1377 = vunpack.c.h.b16 %v269
        %v1378 = vunpack.c.l.b16 %v270
        %v1379 = vunpack.c.h.b16 %v270
        %v1380 = vunpack.c.l.b16 %v271
        %v1381 = vunpack.c.h.b16 %v271
        %v1382 = vunpack.c.l.b16 %v272
        %v1383 = vunpack.c.h.b16 %v272
        %v1384 = vunpack.c.l.b16 %v273
        %v1385 = vunpack.c.h.b16 %v273
        %v1386 = vunpack.c.l.b16 %v274
        %v1387 = vunpack.c.h.b16 %v274
        %v1388 = vunpack.c.l.b16 %v275
        %v1389 = vunpack.c.h.b16 %v275
        %v1390 = vunpack.c.l.b16 %v276
        %v1391 = vunpack.c.h.b16 %v276
        %v1392 = vunpack.c.l.b16 %v277
        %v1393 = vunpack.c.h.b16 %v277
        %v1394 = vunpack.c.l.b16 %v278
        %v1395 = vunpack.c.h.b16 %v278
        %v1396 = vunpack.c.l.b16 %v279
        %v1397 = vunpack.c.h.b16 %v279
        %v1398 = vunpack.c.l.b16 %v280
        %v1399 = vunpack.c.h.b16 %v280
        %v1400 = vunpack.c.l.b16 %v281
        %v1401 = vunpack.c.h.b16 %v281
        %v1402 = vunpack.c.l.b16 %v282
        %v1403 = vunpack.c.h.b16 %v282
        %v1404 = vunpack.c.l.b16 %v283
        %v1405 = vunpack.c.h.b16 %v283
        %v1406 = vunpack.c.l.b16 %v284
        %v1407 = vunpack.c.h.b16 %v284
        %v1408 = vunpack.c.l.b16 %v285
        %v1409 = vunpack.c.h.b16 %v285
        %v1410 = vunpack.c.l.b16 %v286
        %v1411 = vunpack.c.h.b16 %v286
        %v1412 = vunpack.c.l.b16 %v287
        %v1413 = vunpack.c.h.b16 %v287
        %v1414 = vunpack.c.l.b16 %v288
        %v1415 = vunpack.c.h.b16 %v288
        %v1416 = vunpack.c.l.b16 %v289
        %v1417 = vunpack.c.h.b16 %v289
        %v1418 = vpack.c.b16 %v1386, %v1354
        %v1419 = vpack.c.b16 %v1387, %v1355
        %v1420 = vpack.c.b16 %v1388, %v1356
        %v1421 = vpack.c.b16 %v1389, %v1357
        %v1422 = vpack.c.b16 %v1390, %v1358
        %v1423 = vpack.c.b16 %v1391, %v1359
        %v1424 = vpack.c.b16 %v1392, %v1360
        %v1425 = vpack.c.b16 %v1393, %v1361
        %v1426 = vpack.c.b16 %v1394, %v1362
        %v1427 = vpack.c.b16 %v1395, %v1363
        %v1428 = vpack.c.b16 %v1396, %v1364
        %v1429 = vpack.c.b16 %v1397, %v1365
        %v1430 = vpack.c.b16 %v1398, %v1366
        %v1431 = vpack.c.b16 %v1399, %v1367
        %v1432 = vpack.c.b16 %v1400, %v1368
        %v1433 = vpack.c.b16 %v1401, %v1369
        %v1434 = vpack.c.b16 %v1402, %v1370
        %v1435 = vpack.c.b16 %v1403, %v1371
        %v1436 = vpack.c.b16 %v1404, %v1372
        %v1437 = vpack.c.b16 %v1405, %v1373
        %v1438 = vpack.c.b16 %v1406, %v1374
        %v1439 = vpack.c.b16 %v1407, %v1375
        %v1440 = vpack.c.b16 %v1408, %v1376
        %v1441 = vpack.c.b16 %v1409, %v1377
        %v1442 = vpack.c.b16 %v1410, %v1378
        %v1443 = vpack.c.b16 %v1411, %v1379
        %v1444 = vpack.c.b16 %v1412, %v1380
        %v1445 = vpack.c.b16 %v1413, %v1381
        %v1446 = vpack.c.b16 %v1414, %v1382
        %v1447 = vpack.c.b16 %v1415, %v1383
        %v1448 = vpack.c.b16 %v1416, %v1384
        %v1449 = vpack.c.b16 %v1417, %v1385
        %v2506 = vunpack.c.l.b16 %v298
        %v2507 = vunpack.c.h.b16 %v298
        %v2508 = vunpack.c.l.b16 %v299
        %v2509 = vunpack.c.h.b16 %v299
        %v2510 = vunpack.c.l.b16 %v300
        %v2511 = vunpack.c.h.b16 %v300
        %v2512 = vunpack.c.l.b16 %v301
        %v2513 = vunpack.c.h.b16 %v301
        %v2514 = vunpack.c.l.b16 %v302
        %v2515 = vunpack.c.h.b16 %v302
        %v2516 = vunpack.c.l.b16 %v303
        %v2517 = vunpack.c.h.b16 %v303
        %v2518 = vunpack.c.l.b16 %v304
        %v2519 = vunpack.c.h.b16 %v304
        %v2520 = vunpack.c.l.b16 %v305
        %v2521 = vunpack.c.h.b16 %v305
        %v2522 = vunpack.c.l.b16 %v306
        %v2523 = vunpack.c.h.b16 %v306
        %v2524 = vunpack.c.l.b16 %v307
        %v2525 = vunpack.c.h.b16 %v307
        %v2526 = vunpack.c.l.b16 %v308
        %v2527 = vunpack.c.h.b16 %v308
        %v2528 = vunpack.c.l.b16 %v309
        %v2529 = vunpack.c.h.b16 %v309
        %v2530 = vunpack.c.l.b16 %v310
        %v2531 = vunpack.c.h.b16 %v310
        %v2532 = vunpack.c.l.b16 %v311
        %v2533 = vunpack.c.h.b16 %v311
        %v2534 = vunpack.c.l.b16 %v312
        %v2535 = vunpack.c.h.b16 %v312
        %v2536 = vunpack.c.l.b16 %v313
        %v2537 = vunpack.c.h.b16 %v313
        %v2538 = vunpack.c.l.b16 %v314
        %v2539 = vunpack.c.h.b16 %v314
        %v2540 = vunpack.c.l.b16 %v315
        %v2541 = vunpack.c.h.b16 %v315
        %v2542 = vunpack.c.l.b16 %v316
        %v2543 = vunpack.c.h.b16 %v316
        %v2544 = vunpack.c.l.b16 %v317
        %v2545 = vunpack.c.h.b16 %v317
        %v2546 = vunpack.c.l.b16 %v318
        %v2547 = vunpack.c.h.b16 %v318
        %v2548 = vunpack.c.l.b16 %v319
        %v2549 = vunpack.c.h.b16 %v319
        %v2550 = vunpack.c.l.b16 %v320
        %v2551 = vunpack.c.h.b16 %v320
        %v2552 = vunpack.c.l.b16 %v321
        %v2553 = vunpack.c.h.b16 %v321
        %v2554 = vunpack.c.l.b16 %v322
        %v2555 = vunpack.c.h.b16 %v322
        %v2556 = vunpack.c.l.b16 %v323
        %v2557 = vunpack.c.h.b16 %v323
        %v2558 = vunpack.c.l.b16 %v324
        %v2559 = vunpack.c.h.b16 %v324
        %v2560 = vunpack.c.l.b16 %v325
        %v2561 = vunpack.c.h.b16 %v325
        %v2562 = vunpack.c.l.b16 %v326
        %v2563 = vunpack.c.h.b16 %v326
        %v2564 = vunpack.c.l.b16 %v327
        %v2565 = vunpack.c.h.b16 %v327
        %v2566 = vunpack.c.l.b16 %v328
        %v2567 = vunpack.c.h.b16 %v328
        %v2568 = vunpack.c.l.b16 %v329
        %v2569 = vunpack.c.h.b16 %v329
        %v2570 = vunpack.c.l.b16 %v330
        %v2571 = vunpack.c.h.b16 %v330
        %v2572 = vunpack.c.l.b16 %v331
        %v2573 = vunpack.c.h.b16 %v331
        %v2574 = vunpack.c.l.b16 %v332
        %v2575 = vunpack.c.h.b16 %v332
        %v2576 = vunpack.c.l.b16 %v333
        %v2577 = vunpack.c.h.b16 %v333
        %v2578 = vunpack.c.l.b16 %v334
        %v2579 = vunpack.c.h.b16 %v334
        %v2580 = vunpack.c.l.b16 %v335
        %v2581 = vunpack.c.h.b16 %v335
        %v2582 = vunpack.c.l.b16 %v336
        %v2583 = vunpack.c.h.b16 %v336
        %v2584 = vunpack.c.l.b16 %v337
        %v2585 = vunpack.c.h.b16 %v337
        %v2586 = vunpack.c.l.b16 %v338
        %v2587 = vunpack.c.h.b16 %v338
        %v2588 = vunpack.c.l.b16 %v339
        %v2589 = vunpack.c.h.b16 %v339
        %v2590 = vunpack.c.l.b16 %v340
        %v2591 = vunpack.c.h.b16 %v340
        %v2592 = vunpack.c.l.b16 %v341
        %v2593 = vunpack.c.h.b16 %v341
        %v2594 = vunpack.c.l.b16 %v342
        %v2595 = vunpack.c.h.b16 %v342
        %v2596 = vunpack.c.l.b16 %v343
        %v2597 = vunpack.c.h.b16 %v343
        %v2598 = vunpack.c.l.b16 %v344
        %v2599 = vunpack.c.h.b16 %v344
        %v2600 = vunpack.c.l.b16 %v345
        %v2601 = vunpack.c.h.b16 %v345
        %v2602 = vunpack.c.l.b16 %v346
        %v2603 = vunpack.c.h.b16 %v346
        %v2604 = vunpack.c.l.b16 %v347
        %v2605 = vunpack.c.h.b16 %v347
        %v2606 = vunpack.c.l.b16 %v348
        %v2607 = vunpack.c.h.b16 %v348
        %v2608 = vunpack.c.l.b16 %v349
        %v2609 = vunpack.c.h.b16 %v349
        %v2610 = vunpack.c.l.b16 %v350
        %v2611 = vunpack.c.h.b16 %v350
        %v2612 = vunpack.c.l.b16 %v351
        %v2613 = vunpack.c.h.b16 %v351
        %v2614 = vunpack.c.l.b16 %v352
        %v2615 = vunpack.c.h.b16 %v352
        %v2616 = vunpack.c.l.b16 %v353
        %v2617 = vunpack.c.h.b16 %v353
        %v2618 = vunpack.c.l.b16 %v354
        %v2619 = vunpack.c.h.b16 %v354
        %v2620 = vunpack.c.l.b16 %v355
        %v2621 = vunpack.c.h.b16 %v355
        %v2622 = vunpack.c.l.b16 %v356
        %v2623 = vunpack.c.h.b16 %v356
        %v2624 = vunpack.c.l.b16 %v357
        %v2625 = vunpack.c.h.b16 %v357
        %v2626 = vunpack.c.l.b16 %v358
        %v2627 = vunpack.c.h.b16 %v358
        %v2628 = vunpack.c.l.b16 %v359
        %v2629 = vunpack.c.h.b16 %v359
        %v2630 = vunpack.c.l.b16 %v360
        %v2631 = vunpack.c.h.b16 %v360
        %v2632 = vunpack.c.l.b16 %v361
        %v2633 = vunpack.c.h.b16 %v361
        %v2634 = vunpack.c.l.b16 %v362
        %v2635 = vunpack.c.h.b16 %v362
        %v2636 = vunpack.c.l.b16 %v363
        %v2637 = vunpack.c.h.b16 %v363
        %v2638 = vunpack.c.l.b16 %v364
        %v2639 = vunpack.c.h.b16 %v364
        %v2640 = vunpack.c.l.b16 %v365
        %v2641 = vunpack.c.h.b16 %v365
        %v2642 = vunpack.c.l.b16 %v366
        %v2643 = vunpack.c.h.b16 %v366
        %v2644 = vunpack.c.l.b16 %v367
        %v2645 = vunpack.c.h.b16 %v367
        %v2646 = vunpack.c.l.b16 %v368
        %v2647 = vunpack.c.h.b16 %v368
        %v2648 = vunpack.c.l.b16 %v369
        %v2649 = vunpack.c.h.b16 %v369
        %v2650 = vunpack.c.l.b16 %v370
        %v2651 = vunpack.c.h.b16 %v370
        %v2652 = vunpack.c.l.b16 %v371
        %v2653 = vunpack.c.h.b16 %v371
        %v2654 = vunpack.c.l.b16 %v372
        %v2655 = vunpack.c.h.b16 %v372
        %v2656 = vunpack.c.l.b16 %v373
        %v2657 = vunpack.c.h.b16 %v373
        %v2658 = vunpack.c.l.b16 %v374
        %v2659 = vunpack.c.h.b16 %v374
        %v2660 = vunpack.c.l.b16 %v375
        %v2661 = vunpack.c.h.b16 %v375
        %v2662 = vunpack.c.l.b16 %v376
        %v2663 = vunpack.c.h.b16 %v376
        %v2664 = vunpack.c.l.b16 %v377
        %v2665 = vunpack.c.h.b16 %v377
        %v2666 = vunpack.c.l.b16 %v378
        %v2667 = vunpack.c.h.b16 %v378
        %v2668 = vunpack.c.l.b16 %v379
        %v2669 = vunpack.c.h.b16 %v379
        %v2670 = vunpack.c.l.b16 %v380
        %v2671 = vunpack.c.h.b16 %v380
        %v2672 = vunpack.c.l.b16 %v381
        %v2673 = vunpack.c.h.b16 %v381
        %v2674 = vunpack.c.l.b16 %v382
        %v2675 = vunpack.c.h.b16 %v382
        %v2676 = vunpack.c.l.b16 %v383
        %v2677 = vunpack.c.h.b16 %v383
        %v2678 = vunpack.c.l.b16 %v384
        %v2679 = vunpack.c.h.b16 %v384
        %v2680 = vunpack.c.l.b16 %v385
        %v2681 = vunpack.c.h.b16 %v385
        %v2682 = vunpack.c.l.b16 %v386
        %v2683 = vunpack.c.h.b16 %v386
        %v2684 = vunpack.c.l.b16 %v387
        %v2685 = vunpack.c.h.b16 %v387
        %v2686 = vunpack.c.l.b16 %v388
        %v2687 = vunpack.c.h.b16 %v388
        %v2688 = vunpack.c.l.b16 %v389
        %v2689 = vunpack.c.h.b16 %v389
        %v2690 = vunpack.c.l.b16 %v390
        %v2691 = vunpack.c.h.b16 %v390
        %v2692 = vunpack.c.l.b16 %v391
        %v2693 = vunpack.c.h.b16 %v391
        %v2694 = vunpack.c.l.b16 %v392
        %v2695 = vunpack.c.h.b16 %v392
        %v2696 = vunpack.c.l.b16 %v393
        %v2697 = vunpack.c.h.b16 %v393
        %v2698 = vunpack.c.l.b16 %v394
        %v2699 = vunpack.c.h.b16 %v394
        %v2700 = vunpack.c.l.b16 %v395
        %v2701 = vunpack.c.h.b16 %v395
        %v2702 = vunpack.c.l.b16 %v396
        %v2703 = vunpack.c.h.b16 %v396
        %v2704 = vunpack.c.l.b16 %v397
        %v2705 = vunpack.c.h.b16 %v397
        %v2706 = vunpack.c.l.b16 %v398
        %v2707 = vunpack.c.h.b16 %v398
        %v2708 = vunpack.c.l.b16 %v399
        %v2709 = vunpack.c.h.b16 %v399
        %v2710 = vunpack.c.l.b16 %v400
        %v2711 = vunpack.c.h.b16 %v400
        %v2712 = vunpack.c.l.b16 %v401
        %v2713 = vunpack.c.h.b16 %v401
        %v2714 = vunpack.c.l.b16 %v402
        %v2715 = vunpack.c.h.b16 %v402
        %v2716 = vunpack.c.l.b16 %v403
        %v2717 = vunpack.c.h.b16 %v403
        %v2718 = vunpack.c.l.b16 %v404
        %v2719 = vunpack.c.h.b16 %v404
        %v2720 = vunpack.c.l.b16 %v405
        %v2721 = vunpack.c.h.b16 %v405
        %v2722 = vunpack.c.l.b16 %v406
        %v2723 = vunpack.c.h.b16 %v406
        %v2724 = vunpack.c.l.b16 %v407
        %v2725 = vunpack.c.h.b16 %v407
        %v2726 = vunpack.c.l.b16 %v408
        %v2727 = vunpack.c.h.b16 %v408
        %v2728 = vunpack.c.l.b16 %v409
        %v2729 = vunpack.c.h.b16 %v409
        %v2730 = vunpack.c.l.b16 %v410
        %v2731 = vunpack.c.h.b16 %v410
        %v2732 = vunpack.c.l.b16 %v411
        %v2733 = vunpack.c.h.b16 %v411
        %v2734 = vunpack.c.l.b16 %v412
        %v2735 = vunpack.c.h.b16 %v412
        %v2736 = vunpack.c.l.b16 %v413
        %v2737 = vunpack.c.h.b16 %v413
        %v2738 = vunpack.c.l.b16 %v414
        %v2739 = vunpack.c.h.b16 %v414
        %v2740 = vunpack.c.l.b16 %v415
        %v2741 = vunpack.c.h.b16 %v415
        %v2742 = vunpack.c.l.b16 %v416
        %v2743 = vunpack.c.h.b16 %v416
        %v2744 = vunpack.c.l.b16 %v417
        %v2745 = vunpack.c.h.b16 %v417
        %v2746 = vunpack.c.l.b16 %v418
        %v2747 = vunpack.c.h.b16 %v418
        %v2748 = vunpack.c.l.b16 %v419
        %v2749 = vunpack.c.h.b16 %v419
        %v2750 = vunpack.c.l.b16 %v420
        %v2751 = vunpack.c.h.b16 %v420
        %v2752 = vunpack.c.l.b16 %v421
        %v2753 = vunpack.c.h.b16 %v421
        %v2754 = vunpack.c.l.b16 %v422
        %v2755 = vunpack.c.h.b16 %v422
        %v2756 = vunpack.c.l.b16 %v423
        %v2757 = vunpack.c.h.b16 %v423
        %v2758 = vunpack.c.l.b16 %v424
        %v2759 = vunpack.c.h.b16 %v424
        %v2760 = vunpack.c.l.b16 %v425
        %v2761 = vunpack.c.h.b16 %v425
        %v2762 = vunpack.c.l.b16 %v426
        %v2763 = vunpack.c.h.b16 %v426
        %v2764 = vunpack.c.l.b16 %v427
        %v2765 = vunpack.c.h.b16 %v427
        %v2766 = vunpack.c.l.b16 %v428
        %v2767 = vunpack.c.h.b16 %v428
        %v2768 = vunpack.c.l.b16 %v429
        %v2769 = vunpack.c.h.b16 %v429
        %v2770 = vunpack.c.l.b16 %v430
        %v2771 = vunpack.c.h.b16 %v430
        %v2772 = vunpack.c.l.b16 %v431
        %v2773 = vunpack.c.h.b16 %v431
        %v2774 = vunpack.c.l.b16 %v432
        %v2775 = vunpack.c.h.b16 %v432
        %v2776 = vunpack.c.l.b16 %v433
        %v2777 = vunpack.c.h.b16 %v433
        %v2778 = vunpack.c.l.b16 %v434
        %v2779 = vunpack.c.h.b16 %v434
        %v2780 = vunpack.c.l.b16 %v435
        %v2781 = vunpack.c.h.b16 %v435
        %v2782 = vunpack.c.l.b16 %v436
        %v2783 = vunpack.c.h.b16 %v436
        %v2784 = vunpack.c.l.b16 %v437
        %v2785 = vunpack.c.h.b16 %v437
        %v2786 = vunpack.c.l.b16 %v438
        %v2787 = vunpack.c.h.b16 %v438
        %v2788 = vunpack.c.l.b16 %v439
        %v2789 = vunpack.c.h.b16 %v439
        %v2790 = vunpack.c.l.b16 %v440
        %v2791 = vunpack.c.h.b16 %v440
        %v2792 = vunpack.c.l.b16 %v441
        %v2793 = vunpack.c.h.b16 %v441
        %v2794 = vunpack.c.l.b16 %v442
        %v2795 = vunpack.c.h.b16 %v442
        %v2796 = vunpack.c.l.b16 %v443
        %v2797 = vunpack.c.h.b16 %v443
        %v2798 = vunpack.c.l.b16 %v444
        %v2799 = vunpack.c.h.b16 %v444
        %v2800 = vunpack.c.l.b16 %v445
        %v2801 = vunpack.c.h.b16 %v445
        %v2802 = vunpack.c.l.b16 %v446
        %v2803 = vunpack.c.h.b16 %v446
        %v2804 = vunpack.c.l.b16 %v447
        %v2805 = vunpack.c.h.b16 %v447
        %v2806 = vunpack.c.l.b16 %v448
        %v2807 = vunpack.c.h.b16 %v448
        %v2808 = vunpack.c.l.b16 %v449
        %v2809 = vunpack.c.h.b16 %v449
        %v2810 = vunpack.c.l.b16 %v450
        %v2811 = vunpack.c.h.b16 %v450
        %v2812 = vunpack.c.l.b16 %v451
        %v2813 = vunpack.c.h.b16 %v451
        %v2814 = vunpack.c.l.b16 %v452
        %v2815 = vunpack.c.h.b16 %v452
        %v2816 = vunpack.c.l.b16 %v453
        %v2817 = vunpack.c.h.b16 %v453
        %v2818 = vunpack.c.l.b16 %v454
        %v2819 = vunpack.c.h.b16 %v454
        %v2820 = vunpack.c.l.b16 %v455
        %v2821 = vunpack.c.h.b16 %v455
        %v2822 = vunpack.c.l.b16 %v456
        %v2823 = vunpack.c.h.b16 %v456
        %v2824 = vunpack.c.l.b16 %v457
        %v2825 = vunpack.c.h.b16 %v457
        %v2826 = vunpack.c.l.b16 %v458
        %v2827 = vunpack.c.h.b16 %v458
        %v2828 = vunpack.c.l.b16 %v459
        %v2829 = vunpack.c.h.b16 %v459
        %v2830 = vunpack.c.l.b16 %v460
        %v2831 = vunpack.c.h.b16 %v460
        %v2832 = vunpack.c.l.b16 %v461
        %v2833 = vunpack.c.h.b16 %v461
        %v2834 = vunpack.c.l.b16 %v462
        %v2835 = vunpack.c.h.b16 %v462
        %v2836 = vunpack.c.l.b16 %v463
        %v2837 = vunpack.c.h.b16 %v463
        %v2838 = vunpack.c.l.b16 %v464
        %v2839 = vunpack.c.h.b16 %v464
        %v2840 = vunpack.c.l.b16 %v465
        %v2841 = vunpack.c.h.b16 %v465
        %v2842 = vunpack.c.l.b16 %v466
        %v2843 = vunpack.c.h.b16 %v466
        %v2844 = vunpack.c.l.b16 %v467
        %v2845 = vunpack.c.h.b16 %v467
        %v2846 = vunpack.c.l.b16 %v468
        %v2847 = vunpack.c.h.b16 %v468
        %v2848 = vunpack.c.l.b16 %v469
        %v2849 = vunpack.c.h.b16 %v469
        %v2850 = vunpack.c.l.b16 %v470
        %v2851 = vunpack.c.h.b16 %v470
        %v2852 = vunpack.c.l.b16 %v471
        %v2853 = vunpack.c.h.b16 %v471
        %v2854 = vunpack.c.l.b16 %v472
        %v2855 = vunpack.c.h.b16 %v472
        %v2856 = vunpack.c.l.b16 %v473
        %v2857 = vunpack.c.h.b16 %v473
        %v2858 = vunpack.c.l.b16 %v474
        %v2859 = vunpack.c.h.b16 %v474
        %v2860 = vunpack.c.l.b16 %v475
        %v2861 = vunpack.c.h.b16 %v475
        %v2862 = vunpack.c.l.b16 %v476
        %v2863 = vunpack.c.h.b16 %v476
        %v2864 = vunpack.c.l.b16 %v477
        %v2865 = vunpack.c.h.b16 %v477
        %v2866 = vunpack.c.l.b16 %v478
        %v2867 = vunpack.c.h.b16 %v478
        %v2868 = vunpack.c.l.b16 %v479
        %v2869 = vunpack.c.h.b16 %v479
        %v2870 = vunpack.c.l.b16 %v480
        %v2871 = vunpack.c.h.b16 %v480
        %v2872 = vunpack.c.l.b16 %v481
        %v2873 = vunpack.c.h.b16 %v481
        %v2874 = vunpack.c.l.b16 %v482
        %v2875 = vunpack.c.h.b16 %v482
        %v2876 = vunpack.c.l.b16 %v483
        %v2877 = vunpack.c.h.b16 %v483
        %v2878 = vunpack.c.l.b16 %v484
        %v2879 = vunpack.c.h.b16 %v484
        %v2880 = vunpack.c.l.b16 %v485
        %v2881 = vunpack.c.h.b16 %v485
        %v2882 = vunpack.c.l.b16 %v486
        %v2883 = vunpack.c.h.b16 %v486
        %v2884 = vunpack.c.l.b16 %v487
        %v2885 = vunpack.c.h.b16 %v487
        %v2886 = vunpack.c.l.b16 %v488
        %v2887 = vunpack.c.h.b16 %v488
        %v2888 = vunpack.c.l.b16 %v489
        %v2889 = vunpack.c.h.b16 %v489
        %v2890 = vunpack.c.l.b16 %v490
        %v2891 = vunpack.c.h.b16 %v490
        %v2892 = vunpack.c.l.b16 %v491
        %v2893 = vunpack.c.h.b16 %v491
        %v2894 = vunpack.c.l.b16 %v492
        %v2895 = vunpack.c.h.b16 %v492
        %v2896 = vunpack.c.l.b16 %v493
        %v2897 = vunpack.c.h.b16 %v493
        %v2898 = vunpack.c.l.b16 %v494
        %v2899 = vunpack.c.h.b16 %v494
        %v2900 = vunpack.c.l.b16 %v495
        %v2901 = vunpack.c.h.b16 %v495
        %v2902 = vunpack.c.l.b16 %v496
        %v2903 = vunpack.c.h.b16 %v496
        %v2904 = vunpack.c.l.b16 %v497
        %v2905 = vunpack.c.h.b16 %v497
        %v2906 = vunpack.c.l.b16 %v498
        %v2907 = vunpack.c.h.b16 %v498
        %v2908 = vunpack.c.l.b16 %v499
        %v2909 = vunpack.c.h.b16 %v499
        %v2910 = vunpack.c.l.b16 %v500
        %v2911 = vunpack.c.h.b16 %v500
        %v2912 = vunpack.c.l.b16 %v501
        %v2913 = vunpack.c.h.b16 %v501
        %v2914 = vunpack.c.l.b16 %v502
        %v2915 = vunpack.c.h.b16 %v502
        %v2916 = vunpack.c.l.b16 %v503
        %v2917 = vunpack.c.h.b16 %v503
        %v2918 = vunpack.c.l.b16 %v504
        %v2919 = vunpack.c.h.b16 %v504
        %v2920 = vunpack.c.l.b16 %v505
        %v2921 = vunpack.c.h.b16 %v505
        %v2922 = vunpack.c.l.b16 %v506
        %v2923 = vunpack.c.h.b16 %v506
        %v2924 = vunpack.c.l.b16 %v507
        %v2925 = vunpack.c.h.b16 %v507
        %v2926 = vunpack.c.l.b16 %v508
        %v2927 = vunpack.c.h.b16 %v508
        %v2928 = vunpack.c.l.b16 %v509
        %v2929 = vunpack.c.h.b16 %v509
        %v2930 = vunpack.c.l.b16 %v510
        %v2931 = vunpack.c.h.b16 %v510
        %v2932 = vunpack.c.l.b16 %v511
        %v2933 = vunpack.c.h.b16 %v511
        %v2934 = vunpack.c.l.b16 %v512
        %v2935 = vunpack.c.h.b16 %v512
        %v2936 = vunpack.c.l.b16 %v513
        %v2937 = vunpack.c.h.b16 %v513
        %v2938 = vunpack.c.l.b16 %v514
        %v2939 = vunpack.c.h.b16 %v514
        %v2940 = vunpack.c.l.b16 %v515
        %v2941 = vunpack.c.h.b16 %v515
        %v2942 = vunpack.c.l.b16 %v516
        %v2943 = vunpack.c.h.b16 %v516
        %v2944 = vunpack.c.l.b16 %v517
        %v2945 = vunpack.c.h.b16 %v517
        %v2946 = vunpack.c.l.b16 %v518
        %v2947 = vunpack.c.h.b16 %v518
        %v2948 = vunpack.c.l.b16 %v519
        %v2949 = vunpack.c.h.b16 %v519
        %v2950 = vunpack.c.l.b16 %v520
        %v2951 = vunpack.c.h.b16 %v520
        %v2952 = vunpack.c.l.b16 %v521
        %v2953 = vunpack.c.h.b16 %v521
        %v2954 = vunpack.c.l.b16 %v522
        %v2955 = vunpack.c.h.b16 %v522
        %v2956 = vunpack.c.l.b16 %v523
        %v2957 = vunpack.c.h.b16 %v523
        %v2958 = vunpack.c.l.b16 %v524
        %v2959 = vunpack.c.h.b16 %v524
        %v2960 = vunpack.c.l.b16 %v525
        %v2961 = vunpack.c.h.b16 %v525
        %v2962 = vunpack.c.l.b16 %v526
        %v2963 = vunpack.c.h.b16 %v526
        %v2964 = vunpack.c.l.b16 %v527
        %v2965 = vunpack.c.h.b16 %v527
        %v2966 = vunpack.c.l.b16 %v528
        %v2967 = vunpack.c.h.b16 %v528
        %v2968 = vunpack.c.l.b16 %v529
        %v2969 = vunpack.c.h.b16 %v529
        %v2970 = vunpack.c.l.b16 %v530
        %v2971 = vunpack.c.h.b16 %v530
        %v2972 = vunpack.c.l.b16 %v531
        %v2973 = vunpack.c.h.b16 %v531
        %v2974 = vunpack.c.l.b16 %v532
        %v2975 = vunpack.c.h.b16 %v532
        %v2976 = vunpack.c.l.b16 %v533
        %v2977 = vunpack.c.h.b16 %v533
        %v2978 = vunpack.c.l.b16 %v534
        %v2979 = vunpack.c.h.b16 %v534
        %v2980 = vunpack.c.l.b16 %v535
        %v2981 = vunpack.c.h.b16 %v535
        %v2982 = vunpack.c.l.b16 %v536
        %v2983 = vunpack.c.h.b16 %v536
        %v2984 = vunpack.c.l.b16 %v537
        %v2985 = vunpack.c.h.b16 %v537
        %v2986 = vunpack.c.l.b16 %v538
        %v2987 = vunpack.c.h.b16 %v538
        %v2988 = vunpack.c.l.b16 %v539
        %v2989 = vunpack.c.h.b16 %v539
        %v2990 = vunpack.c.l.b16 %v540
        %v2991 = vunpack.c.h.b16 %v540
        %v2992 = vunpack.c.l.b16 %v541
        %v2993 = vunpack.c.h.b16 %v541
        %v2994 = vunpack.c.l.b16 %v542
        %v2995 = vunpack.c.h.b16 %v542
        %v2996 = vunpack.c.l.b16 %v543
        %v2997 = vunpack.c.h.b16 %v543
        %v2998 = vunpack.c.l.b16 %v544
        %v2999 = vunpack.c.h.b16 %v544
        %v3000 = vunpack.c.l.b16 %v545
        %v3001 = vunpack.c.h.b16 %v545
        %v3002 = vunpack.c.l.b16 %v546
        %v3003 = vunpack.c.h.b16 %v546
        %v3004 = vunpack.c.l.b16 %v547
        %v3005 = vunpack.c.h.b16 %v547
        %v3006 = vunpack.c.l.b16 %v548
        %v3007 = vunpack.c.h.b16 %v548
        %v3008 = vunpack.c.l.b16 %v549
        %v3009 = vunpack.c.h.b16 %v549
        %v3010 = vunpack.c.l.b16 %v550
        %v3011 = vunpack.c.h.b16 %v550
        %v3012 = vunpack.c.l.b16 %v551
        %v3013 = vunpack.c.h.b16 %v551
        %v3014 = vunpack.c.l.b16 %v552
        %v3015 = vunpack.c.h.b16 %v552
        %v3016 = vunpack.c.l.b16 %v553
        %v3017 = vunpack.c.h.b16 %v553
        %v3018 = vunpack.c.l.b16 %v554
        %v3019 = vunpack.c.h.b16 %v554
        %v3020 = vunpack.c.l.b16 %v555
        %v3021 = vunpack.c.h.b16 %v555
        %v3022 = vunpack.c.l.b16 %v556
        %v3023 = vunpack.c.h.b16 %v556
        %v3024 = vunpack.c.l.b16 %v557
        %v3025 = vunpack.c.h.b16 %v557
        %v3026 = vunpack.c.l.b16 %v558
        %v3027 = vunpack.c.h.b16 %v558
        %v3028 = vunpack.c.l.b16 %v559
        %v3029 = vunpack.c.h.b16 %v559
        %v3030 = vunpack.c.l.b16 %v560
        %v3031 = vunpack.c.h.b16 %v560
        %v3032 = vunpack.c.l.b16 %v561
        %v3033 = vunpack.c.h.b16 %v561
        %v3034 = vunpack.c.l.b16 %v562
        %v3035 = vunpack.c.h.b16 %v562
        %v3036 = vunpack.c.l.b16 %v563
        %v3037 = vunpack.c.h.b16 %v563
        %v3038 = vunpack.c.l.b16 %v564
        %v3039 = vunpack.c.h.b16 %v564
        %v3040 = vunpack.c.l.b16 %v565
        %v3041 = vunpack.c.h.b16 %v565
        %v3042 = vunpack.c.l.b16 %v566
        %v3043 = vunpack.c.h.b16 %v566
        %v3044 = vunpack.c.l.b16 %v567
        %v3045 = vunpack.c.h.b16 %v567
        %v3046 = vunpack.c.l.b16 %v568
        %v3047 = vunpack.c.h.b16 %v568
        %v3048 = vunpack.c.l.b16 %v569
        %v3049 = vunpack.c.h.b16 %v569
        %v3050 = vunpack.c.l.b16 %v570
        %v3051 = vunpack.c.h.b16 %v570
        %v3052 = vunpack.c.l.b16 %v571
        %v3053 = vunpack.c.h.b16 %v571
        %v3054 = vunpack.c.l.b16 %v572
        %v3055 = vunpack.c.h.b16 %v572
        %v3056 = vunpack.c.l.b16 %v573
        %v3057 = vunpack.c.h.b16 %v573
        %v3058 = vunpack.c.l.b16 %v574
        %v3059 = vunpack.c.h.b16 %v574
        %v3060 = vunpack.c.l.b16 %v575
        %v3061 = vunpack.c.h.b16 %v575
        %v3062 = vunpack.c.l.b16 %v576
        %v3063 = vunpack.c.h.b16 %v576
        %v3064 = vunpack.c.l.b16 %v577
        %v3065 = vunpack.c.h.b16 %v577
        %v3066 = vunpack.c.l.b16 %v578
        %v3067 = vunpack.c.h.b16 %v578
        %v3068 = vunpack.c.l.b16 %v579
        %v3069 = vunpack.c.h.b16 %v579
        %v3070 = vunpack.c.l.b16 %v580
        %v3071 = vunpack.c.h.b16 %v580
        %v3072 = vunpack.c.l.b16 %v581
        %v3073 = vunpack.c.h.b16 %v581
        %v3074 = vunpack.c.l.b16 %v582
        %v3075 = vunpack.c.h.b16 %v582
        %v3076 = vunpack.c.l.b16 %v583
        %v3077 = vunpack.c.h.b16 %v583
        %v3078 = vunpack.c.l.b16 %v584
        %v3079 = vunpack.c.h.b16 %v584
        %v3080 = vunpack.c.l.b16 %v585
        %v3081 = vunpack.c.h.b16 %v585
        %v3082 = vunpack.c.l.b16 %v586
        %v3083 = vunpack.c.h.b16 %v586
        %v3084 = vunpack.c.l.b16 %v587
        %v3085 = vunpack.c.h.b16 %v587
        %v3086 = vunpack.c.l.b16 %v588
        %v3087 = vunpack.c.h.b16 %v588
        %v3088 = vunpack.c.l.b16 %v589
        %v3089 = vunpack.c.h.b16 %v589
        %v3090 = vunpack.c.l.b16 %v590
        %v3091 = vunpack.c.h.b16 %v590
        %v3092 = vunpack.c.l.b16 %v591
        %v3093 = vunpack.c.h.b16 %v591
        %v3094 = vunpack.c.l.b16 %v592
        %v3095 = vunpack.c.h.b16 %v592
        %v3096 = vunpack.c.l.b16 %v593
        %v3097 = vunpack.c.h.b16 %v593
        %v3098 = vunpack.c.l.b16 %v594
        %v3099 = vunpack.c.h.b16 %v594
        %v3100 = vunpack.c.l.b16 %v595
        %v3101 = vunpack.c.h.b16 %v595
        %v3102 = vunpack.c.l.b16 %v596
        %v3103 = vunpack.c.h.b16 %v596
        %v3104 = vunpack.c.l.b16 %v597
        %v3105 = vunpack.c.h.b16 %v597
        %v3106 = vunpack.c.l.b16 %v598
        %v3107 = vunpack.c.h.b16 %v598
        %v3108 = vunpack.c.l.b16 %v599
        %v3109 = vunpack.c.h.b16 %v599
        %v3110 = vunpack.c.l.b16 %v600
        %v3111 = vunpack.c.h.b16 %v600
        %v3112 = vunpack.c.l.b16 %v601
        %v3113 = vunpack.c.h.b16 %v601
        %v3114 = vunpack.c.l.b16 %v602
        %v3115 = vunpack.c.h.b16 %v602
        %v3116 = vunpack.c.l.b16 %v603
        %v3117 = vunpack.c.h.b16 %v603
        %v3118 = vunpack.c.l.b16 %v604
        %v3119 = vunpack.c.h.b16 %v604
        %v3120 = vunpack.c.l.b16 %v605
        %v3121 = vunpack.c.h.b16 %v605
        %v3122 = vunpack.c.l.b16 %v606
        %v3123 = vunpack.c.h.b16 %v606
        %v3124 = vunpack.c.l.b16 %v607
        %v3125 = vunpack.c.h.b16 %v607
        %v3126 = vunpack.c.l.b16 %v608
        %v3127 = vunpack.c.h.b16 %v608
        %v3128 = vunpack.c.l.b16 %v609
        %v3129 = vunpack.c.h.b16 %v609
        %v3130 = vunpack.c.l.b16 %v610
        %v3131 = vunpack.c.h.b16 %v610
        %v3132 = vunpack.c.l.b16 %v611
        %v3133 = vunpack.c.h.b16 %v611
        %v3134 = vunpack.c.l.b16 %v612
        %v3135 = vunpack.c.h.b16 %v612
        %v3136 = vunpack.c.l.b16 %v613
        %v3137 = vunpack.c.h.b16 %v613
        %v3138 = vunpack.c.l.b16 %v614
        %v3139 = vunpack.c.h.b16 %v614
        %v3140 = vunpack.c.l.b16 %v615
        %v3141 = vunpack.c.h.b16 %v615
        %v3142 = vunpack.c.l.b16 %v616
        %v3143 = vunpack.c.h.b16 %v616
        %v3144 = vunpack.c.l.b16 %v617
        %v3145 = vunpack.c.h.b16 %v617
        %v3146 = vunpack.c.l.b16 %v618
        %v3147 = vunpack.c.h.b16 %v618
        %v3148 = vunpack.c.l.b16 %v619
        %v3149 = vunpack.c.h.b16 %v619
        %v3150 = vunpack.c.l.b16 %v620
        %v3151 = vunpack.c.h.b16 %v620
        %v3152 = vunpack.c.l.b16 %v621
        %v3153 = vunpack.c.h.b16 %v621
        %v3154 = vunpack.c.l.b16 %v622
        %v3155 = vunpack.c.h.b16 %v622
        %v3156 = vunpack.c.l.b16 %v623
        %v3157 = vunpack.c.h.b16 %v623
        %v3158 = vunpack.c.l.b16 %v624
        %v3159 = vunpack.c.h.b16 %v624
        %v3160 = vunpack.c.l.b16 %v625
        %v3161 = vunpack.c.h.b16 %v625
        %v3162 = vunpack.c.l.b16 %v626
        %v3163 = vunpack.c.h.b16 %v626
        %v3164 = vunpack.c.l.b16 %v627
        %v3165 = vunpack.c.h.b16 %v627
        %v3166 = vunpack.c.l.b16 %v628
        %v3167 = vunpack.c.h.b16 %v628
        %v3168 = vunpack.c.l.b16 %v629
        %v3169 = vunpack.c.h.b16 %v629
        %v3170 = vunpack.c.l.b16 %v630
        %v3171 = vunpack.c.h.b16 %v630
        %v3172 = vunpack.c.l.b16 %v631
        %v3173 = vunpack.c.h.b16 %v631
        %v3174 = vunpack.c.l.b16 %v632
        %v3175 = vunpack.c.h.b16 %v632
        %v3176 = vunpack.c.l.b16 %v633
        %v3177 = vunpack.c.h.b16 %v633
        %v3178 = vunpack.c.l.b16 %v634
        %v3179 = vunpack.c.h.b16 %v634
        %v3180 = vunpack.c.l.b16 %v635
        %v3181 = vunpack.c.h.b16 %v635
        %v3182 = vunpack.c.l.b16 %v636
        %v3183 = vunpack.c.h.b16 %v636
        %v3184 = vunpack.c.l.b16 %v637
        %v3185 = vunpack.c.h.b16 %v637
        %v3186 = vunpack.c.l.b16 %v638
        %v3187 = vunpack.c.h.b16 %v638
        %v3188 = vunpack.c.l.b16 %v639
        %v3189 = vunpack.c.h.b16 %v639
        %v3190 = vunpack.c.l.b16 %v640
        %v3191 = vunpack.c.h.b16 %v640
        %v3192 = vunpack.c.l.b16 %v641
        %v3193 = vunpack.c.h.b16 %v641
        %v3194 = vunpack.c.l.b16 %v642
        %v3195 = vunpack.c.h.b16 %v642
        %v3196 = vunpack.c.l.b16 %v643
        %v3197 = vunpack.c.h.b16 %v643
        %v3198 = vunpack.c.l.b16 %v644
        %v3199 = vunpack.c.h.b16 %v644
        %v3200 = vunpack.c.l.b16 %v645
        %v3201 = vunpack.c.h.b16 %v645
        %v3202 = vunpack.c.l.b16 %v646
        %v3203 = vunpack.c.h.b16 %v646
        %v3204 = vunpack.c.l.b16 %v647
        %v3205 = vunpack.c.h.b16 %v647
        %v3206 = vunpack.c.l.b16 %v648
        %v3207 = vunpack.c.h.b16 %v648
        %v3208 = vunpack.c.l.b16 %v649
        %v3209 = vunpack.c.h.b16 %v649
        %v3210 = vunpack.c.l.b16 %v650
        %v3211 = vunpack.c.h.b16 %v650
        %v3212 = vunpack.c.l.b16 %v651
        %v3213 = vunpack.c.h.b16 %v651
        %v3214 = vunpack.c.l.b16 %v652
        %v3215 = vunpack.c.h.b16 %v652
        %v3216 = vunpack.c.l.b16 %v653
        %v3217 = vunpack.c.h.b16 %v653
        %v3218 = vunpack.c.l.b16 %v654
        %v3219 = vunpack.c.h.b16 %v654
        %v3220 = vunpack.c.l.b16 %v655
        %v3221 = vunpack.c.h.b16 %v655
        %v3222 = vunpack.c.l.b16 %v656
        %v3223 = vunpack.c.h.b16 %v656
        %v3224 = vunpack.c.l.b16 %v657
        %v3225 = vunpack.c.h.b16 %v657
        %v3226 = vunpack.c.l.b16 %v658
        %v3227 = vunpack.c.h.b16 %v658
        %v3228 = vunpack.c.l.b16 %v659
        %v3229 = vunpack.c.h.b16 %v659
        %v3230 = vunpack.c.l.b16 %v660
        %v3231 = vunpack.c.h.b16 %v660
        %v3232 = vunpack.c.l.b16 %v661
        %v3233 = vunpack.c.h.b16 %v661
        %v3234 = vunpack.c.l.b16 %v662
        %v3235 = vunpack.c.h.b16 %v662
        %v3236 = vunpack.c.l.b16 %v663
        %v3237 = vunpack.c.h.b16 %v663
        %v3238 = vunpack.c.l.b16 %v664
        %v3239 = vunpack.c.h.b16 %v664
        %v3240 = vunpack.c.l.b16 %v665
        %v3241 = vunpack.c.h.b16 %v665
        %v3242 = vunpack.c.l.b16 %v666
        %v3243 = vunpack.c.h.b16 %v666
        %v3244 = vunpack.c.l.b16 %v667
        %v3245 = vunpack.c.h.b16 %v667
        %v3246 = vunpack.c.l.b16 %v668
        %v3247 = vunpack.c.h.b16 %v668
        %v3248 = vunpack.c.l.b16 %v669
        %v3249 = vunpack.c.h.b16 %v669
        %v3250 = vunpack.c.l.b16 %v670
        %v3251 = vunpack.c.h.b16 %v670
        %v3252 = vunpack.c.l.b16 %v671
        %v3253 = vunpack.c.h.b16 %v671
        %v3254 = vunpack.c.l.b16 %v672
        %v3255 = vunpack.c.h.b16 %v672
        %v3256 = vunpack.c.l.b16 %v673
        %v3257 = vunpack.c.h.b16 %v673
        %v3258 = vunpack.c.l.b16 %v674
        %v3259 = vunpack.c.h.b16 %v674
        %v3260 = vunpack.c.l.b16 %v675
        %v3261 = vunpack.c.h.b16 %v675
        %v3262 = vunpack.c.l.b16 %v676
        %v3263 = vunpack.c.h.b16 %v676
        %v3264 = vunpack.c.l.b16 %v677
        %v3265 = vunpack.c.h.b16 %v677
        %v3266 = vunpack.c.l.b16 %v678
        %v3267 = vunpack.c.h.b16 %v678
        %v3268 = vunpack.c.l.b16 %v679
        %v3269 = vunpack.c.h.b16 %v679
        %v3270 = vunpack.c.l.b16 %v680
        %v3271 = vunpack.c.h.b16 %v680
        %v3272 = vunpack.c.l.b16 %v681
        %v3273 = vunpack.c.h.b16 %v681
        %v3274 = vunpack.c.l.b16 %v682
        %v3275 = vunpack.c.h.b16 %v682
        %v3276 = vunpack.c.l.b16 %v683
        %v3277 = vunpack.c.h.b16 %v683
        %v3278 = vunpack.c.l.b16 %v684
        %v3279 = vunpack.c.h.b16 %v684
        %v3280 = vunpack.c.l.b16 %v685
        %v3281 = vunpack.c.h.b16 %v685
        %v3282 = vunpack.c.l.b16 %v686
        %v3283 = vunpack.c.h.b16 %v686
        %v3284 = vunpack.c.l.b16 %v687
        %v3285 = vunpack.c.h.b16 %v687
        %v3286 = vunpack.c.l.b16 %v688
        %v3287 = vunpack.c.h.b16 %v688
        %v3288 = vunpack.c.l.b16 %v689
        %v3289 = vunpack.c.h.b16 %v689
        %v3290 = vunpack.c.l.b16 %v690
        %v3291 = vunpack.c.h.b16 %v690
        %v3292 = vunpack.c.l.b16 %v691
        %v3293 = vunpack.c.h.b16 %v691
        %v3294 = vunpack.c.l.b16 %v692
        %v3295 = vunpack.c.h.b16 %v692
        %v3296 = vunpack.c.l.b16 %v693
        %v3297 = vunpack.c.h.b16 %v693
        %v3298 = vunpack.c.l.b16 %v694
        %v3299 = vunpack.c.h.b16 %v694
        %v3300 = vunpack.c.l.b16 %v695
        %v3301 = vunpack.c.h.b16 %v695
        %v3302 = vunpack.c.l.b16 %v696
        %v3303 = vunpack.c.h.b16 %v696
        %v3304 = vunpack.c.l.b16 %v697
        %v3305 = vunpack.c.h.b16 %v697
        %v3306 = vunpack.c.l.b16 %v698
        %v3307 = vunpack.c.h.b16 %v698
        %v3308 = vunpack.c.l.b16 %v699
        %v3309 = vunpack.c.h.b16 %v699
        %v3310 = vunpack.c.l.b16 %v700
        %v3311 = vunpack.c.h.b16 %v700
        %v3312 = vunpack.c.l.b16 %v701
        %v3313 = vunpack.c.h.b16 %v701
        %v3314 = vunpack.c.l.b16 %v702
        %v3315 = vunpack.c.h.b16 %v702
        %v3316 = vunpack.c.l.b16 %v703
        %v3317 = vunpack.c.h.b16 %v703
        %v3318 = vunpack.c.l.b16 %v704
        %v3319 = vunpack.c.h.b16 %v704
        %v3320 = vunpack.c.l.b16 %v705
        %v3321 = vunpack.c.h.b16 %v705
        %v3322 = vunpack.c.l.b16 %v706
        %v3323 = vunpack.c.h.b16 %v706
        %v3324 = vunpack.c.l.b16 %v707
        %v3325 = vunpack.c.h.b16 %v707
        %v3326 = vunpack.c.l.b16 %v708
        %v3327 = vunpack.c.h.b16 %v708
        %v3328 = vunpack.c.l.b16 %v709
        %v3329 = vunpack.c.h.b16 %v709
        %v3330 = vunpack.c.l.b16 %v710
        %v3331 = vunpack.c.h.b16 %v710
        %v3332 = vunpack.c.l.b16 %v711
        %v3333 = vunpack.c.h.b16 %v711
        %v3334 = vunpack.c.l.b16 %v712
        %v3335 = vunpack.c.h.b16 %v712
        %v3336 = vunpack.c.l.b16 %v713
        %v3337 = vunpack.c.h.b16 %v713
        %v3338 = vunpack.c.l.b16 %v714
        %v3339 = vunpack.c.h.b16 %v714
        %v3340 = vunpack.c.l.b16 %v715
        %v3341 = vunpack.c.h.b16 %v715
        %v3342 = vunpack.c.l.b16 %v716
        %v3343 = vunpack.c.h.b16 %v716
        %v3344 = vunpack.c.l.b16 %v717
        %v3345 = vunpack.c.h.b16 %v717
        %v3346 = vunpack.c.l.b16 %v718
        %v3347 = vunpack.c.h.b16 %v718
        %v3348 = vunpack.c.l.b16 %v719
        %v3349 = vunpack.c.h.b16 %v719
        %v3350 = vunpack.c.l.b16 %v720
        %v3351 = vunpack.c.h.b16 %v720
        %v3352 = vunpack.c.l.b16 %v721
        %v3353 = vunpack.c.h.b16 %v721
        %v3354 = vunpack.c.l.b16 %v722
        %v3355 = vunpack.c.h.b16 %v722
        %v3356 = vunpack.c.l.b16 %v723
        %v3357 = vunpack.c.h.b16 %v723
        %v3358 = vunpack.c.l.b16 %v724
        %v3359 = vunpack.c.h.b16 %v724
        %v3360 = vunpack.c.l.b16 %v725
        %v3361 = vunpack.c.h.b16 %v725
        %v3362 = vunpack.c.l.b16 %v726
        %v3363 = vunpack.c.h.b16 %v726
        %v3364 = vunpack.c.l.b16 %v727
        %v3365 = vunpack.c.h.b16 %v727
        %v3366 = vunpack.c.l.b16 %v728
        %v3367 = vunpack.c.h.b16 %v728
        %v3368 = vunpack.c.l.b16 %v729
        %v3369 = vunpack.c.h.b16 %v729
        %v3370 = vunpack.c.l.b16 %v730
        %v3371 = vunpack.c.h.b16 %v730
        %v3372 = vunpack.c.l.b16 %v731
        %v3373 = vunpack.c.h.b16 %v731
        %v3374 = vunpack.c.l.b16 %v732
        %v3375 = vunpack.c.h.b16 %v732
        %v3376 = vunpack.c.l.b16 %v733
        %v3377 = vunpack.c.h.b16 %v733
        %v3378 = vunpack.c.l.b16 %v734
        %v3379 = vunpack.c.h.b16 %v734
        %v3380 = vunpack.c.l.b16 %v735
        %v3381 = vunpack.c.h.b16 %v735
        %v3382 = vunpack.c.l.b16 %v736
        %v3383 = vunpack.c.h.b16 %v736
        %v3384 = vunpack.c.l.b16 %v737
        %v3385 = vunpack.c.h.b16 %v737
        %v3386 = vunpack.c.l.b16 %v738
        %v3387 = vunpack.c.h.b16 %v738
        %v3388 = vunpack.c.l.b16 %v739
        %v3389 = vunpack.c.h.b16 %v739
        %v3390 = vunpack.c.l.b16 %v740
        %v3391 = vunpack.c.h.b16 %v740
        %v3392 = vunpack.c.l.b16 %v741
        %v3393 = vunpack.c.h.b16 %v741
        %v3394 = vunpack.c.l.b16 %v742
        %v3395 = vunpack.c.h.b16 %v742
        %v3396 = vunpack.c.l.b16 %v743
        %v3397 = vunpack.c.h.b16 %v743
        %v3398 = vunpack.c.l.b16 %v744
        %v3399 = vunpack.c.h.b16 %v744
        %v3400 = vunpack.c.l.b16 %v745
        %v3401 = vunpack.c.h.b16 %v745
        %v3402 = vunpack.c.l.b16 %v746
        %v3403 = vunpack.c.h.b16 %v746
        %v3404 = vunpack.c.l.b16 %v747
        %v3405 = vunpack.c.h.b16 %v747
        %v3406 = vunpack.c.l.b16 %v748
        %v3407 = vunpack.c.h.b16 %v748
        %v3408 = vunpack.c.l.b16 %v749
        %v3409 = vunpack.c.h.b16 %v749
        %v3410 = vunpack.c.l.b16 %v750
        %v3411 = vunpack.c.h.b16 %v750
        %v3412 = vunpack.c.l.b16 %v751
        %v3413 = vunpack.c.h.b16 %v751
        %v3414 = vunpack.c.l.b16 %v752
        %v3415 = vunpack.c.h.b16 %v752
        %v3416 = vunpack.c.l.b16 %v753
        %v3417 = vunpack.c.h.b16 %v753
        %v3418 = vunpack.c.l.b16 %v754
        %v3419 = vunpack.c.h.b16 %v754
        %v3420 = vunpack.c.l.b16 %v755
        %v3421 = vunpack.c.h.b16 %v755
        %v3422 = vunpack.c.l.b16 %v756
        %v3423 = vunpack.c.h.b16 %v756
        %v3424 = vunpack.c.l.b16 %v757
        %v3425 = vunpack.c.h.b16 %v757
        %v3426 = vunpack.c.l.b16 %v758
        %v3427 = vunpack.c.h.b16 %v758
        %v3428 = vunpack.c.l.b16 %v759
        %v3429 = vunpack.c.h.b16 %v759
        %v3430 = vunpack.c.l.b16 %v760
        %v3431 = vunpack.c.h.b16 %v760
        %v3432 = vunpack.c.l.b16 %v761
        %v3433 = vunpack.c.h.b16 %v761
        %v3434 = vunpack.c.l.b16 %v762
        %v3435 = vunpack.c.h.b16 %v762
        %v3436 = vunpack.c.l.b16 %v763
        %v3437 = vunpack.c.h.b16 %v763
        %v3438 = vunpack.c.l.b16 %v764
        %v3439 = vunpack.c.h.b16 %v764
        %v3440 = vunpack.c.l.b16 %v765
        %v3441 = vunpack.c.h.b16 %v765
        %v3442 = vunpack.c.l.b16 %v766
        %v3443 = vunpack.c.h.b16 %v766
        %v3444 = vunpack.c.l.b16 %v767
        %v3445 = vunpack.c.h.b16 %v767
        %v3446 = vunpack.c.l.b16 %v768
        %v3447 = vunpack.c.h.b16 %v768
        %v3448 = vunpack.c.l.b16 %v769
        %v3449 = vunpack.c.h.b16 %v769
        %v3450 = vunpack.c.l.b16 %v770
        %v3451 = vunpack.c.h.b16 %v770
        %v3452 = vunpack.c.l.b16 %v771
        %v3453 = vunpack.c.h.b16 %v771
        %v3454 = vunpack.c.l.b16 %v772
        %v3455 = vunpack.c.h.b16 %v772
        %v3456 = vunpack.c.l.b16 %v773
        %v3457 = vunpack.c.h.b16 %v773
        %v3458 = vunpack.c.l.b16 %v774
        %v3459 = vunpack.c.h.b16 %v774
        %v3460 = vunpack.c.l.b16 %v775
        %v3461 = vunpack.c.h.b16 %v775
        %v3462 = vunpack.c.l.b16 %v776
        %v3463 = vunpack.c.h.b16 %v776
        %v3464 = vunpack.c.l.b16 %v777
        %v3465 = vunpack.c.h.b16 %v777
        %v3466 = vunpack.c.l.b16 %v778
        %v3467 = vunpack.c.h.b16 %v778
        %v3468 = vunpack.c.l.b16 %v779
        %v3469 = vunpack.c.h.b16 %v779
        %v3470 = vunpack.c.l.b16 %v780
        %v3471 = vunpack.c.h.b16 %v780
        %v3472 = vunpack.c.l.b16 %v781
        %v3473 = vunpack.c.h.b16 %v781
        %v3474 = vunpack.c.l.b16 %v782
        %v3475 = vunpack.c.h.b16 %v782
        %v3476 = vunpack.c.l.b16 %v783
        %v3477 = vunpack.c.h.b16 %v783
        %v3478 = vunpack.c.l.b16 %v784
        %v3479 = vunpack.c.h.b16 %v784
        %v3480 = vunpack.c.l.b16 %v785
        %v3481 = vunpack.c.h.b16 %v785
        %v3482 = vunpack.c.l.b16 %v786
        %v3483 = vunpack.c.h.b16 %v786
        %v3484 = vunpack.c.l.b16 %v787
        %v3485 = vunpack.c.h.b16 %v787
        %v3486 = vunpack.c.l.b16 %v788
        %v3487 = vunpack.c.h.b16 %v788
        %v3488 = vunpack.c.l.b16 %v789
        %v3489 = vunpack.c.h.b16 %v789
        %v3490 = vunpack.c.l.b16 %v790
        %v3491 = vunpack.c.h.b16 %v790
        %v3492 = vunpack.c.l.b16 %v791
        %v3493 = vunpack.c.h.b16 %v791
        %v3494 = vunpack.c.l.b16 %v792
        %v3495 = vunpack.c.h.b16 %v792
        %v3496 = vunpack.c.l.b16 %v793
        %v3497 = vunpack.c.h.b16 %v793
        %v3498 = vunpack.c.l.b16 %v794
        %v3499 = vunpack.c.h.b16 %v794
        %v3500 = vunpack.c.l.b16 %v795
        %v3501 = vunpack.c.h.b16 %v795
        %v3502 = vunpack.c.l.b16 %v796
        %v3503 = vunpack.c.h.b16 %v796
        %v3504 = vunpack.c.l.b16 %v797
        %v3505 = vunpack.c.h.b16 %v797
        %v3506 = vunpack.c.l.b16 %v798
        %v3507 = vunpack.c.h.b16 %v798
        %v3508 = vunpack.c.l.b16 %v799
        %v3509 = vunpack.c.h.b16 %v799
        %v3510 = vunpack.c.l.b16 %v800
        %v3511 = vunpack.c.h.b16 %v800
        %v3512 = vunpack.c.l.b16 %v801
        %v3513 = vunpack.c.h.b16 %v801
        %v3514 = vunpack.c.l.b16 %v802
        %v3515 = vunpack.c.h.b16 %v802
        %v3516 = vunpack.c.l.b16 %v803
        %v3517 = vunpack.c.h.b16 %v803
        %v3518 = vunpack.c.l.b16 %v804
        %v3519 = vunpack.c.h.b16 %v804
        %v3520 = vunpack.c.l.b16 %v805
        %v3521 = vunpack.c.h.b16 %v805
        %v3522 = vunpack.c.l.b16 %v806
        %v3523 = vunpack.c.h.b16 %v806
        %v3524 = vunpack.c.l.b16 %v807
        %v3525 = vunpack.c.h.b16 %v807
        %v3526 = vunpack.c.l.b16 %v808
        %v3527 = vunpack.c.h.b16 %v808
        %v3528 = vunpack.c.l.b16 %v809
        %v3529 = vunpack.c.h.b16 %v809
        %v3530 = vunpack.c.l.b16 %v810
        %v3531 = vunpack.c.h.b16 %v810
        %v3532 = vunpack.c.l.b16 %v811
        %v3533 = vunpack.c.h.b16 %v811
        %v3534 = vunpack.c.l.b16 %v812
        %v3535 = vunpack.c.h.b16 %v812
        %v3536 = vunpack.c.l.b16 %v813
        %v3537 = vunpack.c.h.b16 %v813
        %v3538 = vunpack.c.l.b16 %v814
        %v3539 = vunpack.c.h.b16 %v814
        %v3540 = vunpack.c.l.b16 %v815
        %v3541 = vunpack.c.h.b16 %v815
        %v3542 = vunpack.c.l.b16 %v816
        %v3543 = vunpack.c.h.b16 %v816
        %v3544 = vunpack.c.l.b16 %v817
        %v3545 = vunpack.c.h.b16 %v817
        %v3546 = vunpack.c.l.b16 %v818
        %v3547 = vunpack.c.h.b16 %v818
        %v3548 = vunpack.c.l.b16 %v819
        %v3549 = vunpack.c.h.b16 %v819
        %v3550 = vunpack.c.l.b16 %v820
        %v3551 = vunpack.c.h.b16 %v820
        %v3552 = vunpack.c.l.b16 %v821
        %v3553 = vunpack.c.h.b16 %v821
        %v3554 = vunpack.c.l.b16 %v822
        %v3555 = vunpack.c.h.b16 %v822
        %v3556 = vunpack.c.l.b16 %v823
        %v3557 = vunpack.c.h.b16 %v823
        %v3558 = vunpack.c.l.b16 %v824
        %v3559 = vunpack.c.h.b16 %v824
        %v3560 = vunpack.c.l.b16 %v825
        %v3561 = vunpack.c.h.b16 %v825
        %v3562 = vunpack.c.l.b16 %v826
        %v3563 = vunpack.c.h.b16 %v826
        %v3564 = vunpack.c.l.b16 %v827
        %v3565 = vunpack.c.h.b16 %v827
        %v3566 = vunpack.c.l.b16 %v828
        %v3567 = vunpack.c.h.b16 %v828
        %v3568 = vunpack.c.l.b16 %v829
        %v3569 = vunpack.c.h.b16 %v829
        %v3570 = vunpack.c.l.b16 %v830
        %v3571 = vunpack.c.h.b16 %v830
        %v3572 = vunpack.c.l.b16 %v831
        %v3573 = vunpack.c.h.b16 %v831
        %v3574 = vunpack.c.l.b16 %v832
        %v3575 = vunpack.c.h.b16 %v832
        %v3576 = vunpack.c.l.b16 %v833
        %v3577 = vunpack.c.h.b16 %v833
        %v3578 = vunpack.c.l.b16 %v834
        %v3579 = vunpack.c.h.b16 %v834
        %v3580 = vunpack.c.l.b16 %v835
        %v3581 = vunpack.c.h.b16 %v835
        %v3582 = vunpack.c.l.b16 %v836
        %v3583 = vunpack.c.h.b16 %v836
        %v3584 = vunpack.c.l.b16 %v837
        %v3585 = vunpack.c.h.b16 %v837
        %v3586 = vunpack.c.l.b16 %v838
        %v3587 = vunpack.c.h.b16 %v838
        %v3588 = vunpack.c.l.b16 %v839
        %v3589 = vunpack.c.h.b16 %v839
        %v3590 = vunpack.c.l.b16 %v840
        %v3591 = vunpack.c.h.b16 %v840
        %v3592 = vunpack.c.l.b16 %v841
        %v3593 = vunpack.c.h.b16 %v841
        %v3594 = vunpack.c.l.b16 %v842
        %v3595 = vunpack.c.h.b16 %v842
        %v3596 = vunpack.c.l.b16 %v843
        %v3597 = vunpack.c.h.b16 %v843
        %v3598 = vunpack.c.l.b16 %v844
        %v3599 = vunpack.c.h.b16 %v844
        %v3600 = vunpack.c.l.b16 %v845
        %v3601 = vunpack.c.h.b16 %v845
        %v3602 = vunpack.c.l.b16 %v846
        %v3603 = vunpack.c.h.b16 %v846
        %v3604 = vunpack.c.l.b16 %v847
        %v3605 = vunpack.c.h.b16 %v847
        %v3606 = vunpack.c.l.b16 %v848
        %v3607 = vunpack.c.h.b16 %v848
        %v3608 = vunpack.c.l.b16 %v849
        %v3609 = vunpack.c.h.b16 %v849
        %v3610 = vunpack.c.l.b16 %v850
        %v3611 = vunpack.c.h.b16 %v850
        %v3612 = vunpack.c.l.b16 %v851
        %v3613 = vunpack.c.h.b16 %v851
        %v3614 = vunpack.c.l.b16 %v852
        %v3615 = vunpack.c.h.b16 %v852
        %v3616 = vunpack.c.l.b16 %v853
        %v3617 = vunpack.c.h.b16 %v853
        %v3618 = vunpack.c.l.b16 %v854
        %v3619 = vunpack.c.h.b16 %v854
        %v3620 = vunpack.c.l.b16 %v855
        %v3621 = vunpack.c.h.b16 %v855
        %v3622 = vunpack.c.l.b16 %v856
        %v3623 = vunpack.c.h.b16 %v856
        %v3624 = vunpack.c.l.b16 %v857
        %v3625 = vunpack.c.h.b16 %v857
        %v3626 = vunpack.c.l.b16 %v858
        %v3627 = vunpack.c.h.b16 %v858
        %v3628 = vunpack.c.l.b16 %v859
        %v3629 = vunpack.c.h.b16 %v859
        %v3630 = vunpack.c.l.b16 %v860
        %v3631 = vunpack.c.h.b16 %v860
        %v3632 = vunpack.c.l.b16 %v861
        %v3633 = vunpack.c.h.b16 %v861
        %v3634 = vunpack.c.l.b16 %v862
        %v3635 = vunpack.c.h.b16 %v862
        %v3636 = vunpack.c.l.b16 %v863
        %v3637 = vunpack.c.h.b16 %v863
        %v3638 = vunpack.c.l.b16 %v864
        %v3639 = vunpack.c.h.b16 %v864
        %v3640 = vunpack.c.l.b16 %v865
        %v3641 = vunpack.c.h.b16 %v865
        %v3642 = vunpack.c.l.b16 %v866
        %v3643 = vunpack.c.h.b16 %v866
        %v3644 = vunpack.c.l.b16 %v867
        %v3645 = vunpack.c.h.b16 %v867
        %v3646 = vunpack.c.l.b16 %v868
        %v3647 = vunpack.c.h.b16 %v868
        %v3648 = vunpack.c.l.b16 %v869
        %v3649 = vunpack.c.h.b16 %v869
        %v3650 = vunpack.c.l.b16 %v870
        %v3651 = vunpack.c.h.b16 %v870
        %v3652 = vunpack.c.l.b16 %v871
        %v3653 = vunpack.c.h.b16 %v871
        %v3654 = vunpack.c.l.b16 %v872
        %v3655 = vunpack.c.h.b16 %v872
        %v3656 = vunpack.c.l.b16 %v873
        %v3657 = vunpack.c.h.b16 %v873
        %v3658 = vunpack.c.l.b16 %v874
        %v3659 = vunpack.c.h.b16 %v874
        %v3660 = vunpack.c.l.b16 %v875
        %v3661 = vunpack.c.h.b16 %v875
        %v3662 = vunpack.c.l.b16 %v876
        %v3663 = vunpack.c.h.b16 %v876
        %v3664 = vunpack.c.l.b16 %v877
        %v3665 = vunpack.c.h.b16 %v877
        %v3666 = vunpack.c.l.b16 %v878
        %v3667 = vunpack.c.h.b16 %v878
        %v3668 = vunpack.c.l.b16 %v879
        %v3669 = vunpack.c.h.b16 %v879
        %v3670 = vunpack.c.l.b16 %v880
        %v3671 = vunpack.c.h.b16 %v880
        %v3672 = vunpack.c.l.b16 %v881
        %v3673 = vunpack.c.h.b16 %v881
        %v3674 = vunpack.c.l.b16 %v882
        %v3675 = vunpack.c.h.b16 %v882
        %v3676 = vunpack.c.l.b16 %v883
        %v3677 = vunpack.c.h.b16 %v883
        %v3678 = vunpack.c.l.b16 %v884
        %v3679 = vunpack.c.h.b16 %v884
        %v3680 = vunpack.c.l.b16 %v885
        %v3681 = vunpack.c.h.b16 %v885
        %v3682 = vunpack.c.l.b16 %v886
        %v3683 = vunpack.c.h.b16 %v886
        %v3684 = vunpack.c.l.b16 %v887
        %v3685 = vunpack.c.h.b16 %v887
        %v3686 = vunpack.c.l.b16 %v888
        %v3687 = vunpack.c.h.b16 %v888
        %v3688 = vunpack.c.l.b16 %v889
        %v3689 = vunpack.c.h.b16 %v889
        %v3690 = vunpack.c.l.b16 %v890
        %v3691 = vunpack.c.h.b16 %v890
        %v3692 = vunpack.c.l.b16 %v891
        %v3693 = vunpack.c.h.b16 %v891
        %v3694 = vunpack.c.l.b16 %v892
        %v3695 = vunpack.c.h.b16 %v892
        %v3696 = vunpack.c.l.b16 %v893
        %v3697 = vunpack.c.h.b16 %v893
        %v3698 = vunpack.c.l.b16 %v894
        %v3699 = vunpack.c.h.b16 %v894
        %v3700 = vunpack.c.l.b16 %v895
        %v3701 = vunpack.c.h.b16 %v895
        %v3702 = vunpack.c.l.b16 %v896
        %v3703 = vunpack.c.h.b16 %v896
        %v3704 = vunpack.c.l.b16 %v897
        %v3705 = vunpack.c.h.b16 %v897
        %v3706 = vunpack.c.l.b16 %v898
        %v3707 = vunpack.c.h.b16 %v898
        %v3708 = vunpack.c.l.b16 %v899
        %v3709 = vunpack.c.h.b16 %v899
        %v3710 = vunpack.c.l.b16 %v900
        %v3711 = vunpack.c.h.b16 %v900
        %v3712 = vunpack.c.l.b16 %v901
        %v3713 = vunpack.c.h.b16 %v901
        %v3714 = vunpack.c.l.b16 %v902
        %v3715 = vunpack.c.h.b16 %v902
        %v3716 = vunpack.c.l.b16 %v903
        %v3717 = vunpack.c.h.b16 %v903
        %v3718 = vunpack.c.l.b16 %v904
        %v3719 = vunpack.c.h.b16 %v904
        %v3720 = vunpack.c.l.b16 %v905
        %v3721 = vunpack.c.h.b16 %v905
        %v3722 = vunpack.c.l.b16 %v906
        %v3723 = vunpack.c.h.b16 %v906
        %v3724 = vunpack.c.l.b16 %v907
        %v3725 = vunpack.c.h.b16 %v907
        %v3726 = vunpack.c.l.b16 %v908
        %v3727 = vunpack.c.h.b16 %v908
        %v3728 = vunpack.c.l.b16 %v909
        %v3729 = vunpack.c.h.b16 %v909
        %v3730 = vunpack.c.l.b16 %v910
        %v3731 = vunpack.c.h.b16 %v910
        %v3732 = vunpack.c.l.b16 %v911
        %v3733 = vunpack.c.h.b16 %v911
        %v3734 = vunpack.c.l.b16 %v912
        %v3735 = vunpack.c.h.b16 %v912
        %v3736 = vunpack.c.l.b16 %v913
        %v3737 = vunpack.c.h.b16 %v913
        %v3738 = vunpack.c.l.b16 %v914
        %v3739 = vunpack.c.h.b16 %v914
        %v3740 = vunpack.c.l.b16 %v915
        %v3741 = vunpack.c.h.b16 %v915
        %v3742 = vunpack.c.l.b16 %v916
        %v3743 = vunpack.c.h.b16 %v916
        %v3744 = vunpack.c.l.b16 %v917
        %v3745 = vunpack.c.h.b16 %v917
        %v3746 = vunpack.c.l.b16 %v918
        %v3747 = vunpack.c.h.b16 %v918
        %v3748 = vunpack.c.l.b16 %v919
        %v3749 = vunpack.c.h.b16 %v919
        %v3750 = vunpack.c.l.b16 %v920
        %v3751 = vunpack.c.h.b16 %v920
        %v3752 = vunpack.c.l.b16 %v921
        %v3753 = vunpack.c.h.b16 %v921
        %v3754 = vunpack.c.l.b16 %v922
        %v3755 = vunpack.c.h.b16 %v922
        %v3756 = vunpack.c.l.b16 %v923
        %v3757 = vunpack.c.h.b16 %v923
        %v3758 = vunpack.c.l.b16 %v924
        %v3759 = vunpack.c.h.b16 %v924
        %v3760 = vunpack.c.l.b16 %v925
        %v3761 = vunpack.c.h.b16 %v925
        %v3762 = vunpack.c.l.b16 %v926
        %v3763 = vunpack.c.h.b16 %v926
        %v3764 = vunpack.c.l.b16 %v927
        %v3765 = vunpack.c.h.b16 %v927
        %v3766 = vunpack.c.l.b16 %v928
        %v3767 = vunpack.c.h.b16 %v928
        %v3768 = vunpack.c.l.b16 %v929
        %v3769 = vunpack.c.h.b16 %v929
        %v3770 = vunpack.c.l.b16 %v930
        %v3771 = vunpack.c.h.b16 %v930
        %v3772 = vunpack.c.l.b16 %v931
        %v3773 = vunpack.c.h.b16 %v931
        %v3774 = vunpack.c.l.b16 %v932
        %v3775 = vunpack.c.h.b16 %v932
        %v3776 = vunpack.c.l.b16 %v933
        %v3777 = vunpack.c.h.b16 %v933
        %v3778 = vunpack.c.l.b16 %v934
        %v3779 = vunpack.c.h.b16 %v934
        %v3780 = vunpack.c.l.b16 %v935
        %v3781 = vunpack.c.h.b16 %v935
        %v3782 = vunpack.c.l.b16 %v936
        %v3783 = vunpack.c.h.b16 %v936
        %v3784 = vunpack.c.l.b16 %v937
        %v3785 = vunpack.c.h.b16 %v937
        %v3786 = vunpack.c.l.b16 %v938
        %v3787 = vunpack.c.h.b16 %v938
        %v3788 = vunpack.c.l.b16 %v939
        %v3789 = vunpack.c.h.b16 %v939
        %v3790 = vunpack.c.l.b16 %v940
        %v3791 = vunpack.c.h.b16 %v940
        %v3792 = vunpack.c.l.b16 %v941
        %v3793 = vunpack.c.h.b16 %v941
        %v3794 = vunpack.c.l.b16 %v942
        %v3795 = vunpack.c.h.b16 %v942
        %v3796 = vunpack.c.l.b16 %v943
        %v3797 = vunpack.c.h.b16 %v943
        %v3798 = vunpack.c.l.b16 %v944
        %v3799 = vunpack.c.h.b16 %v944
        %v3800 = vunpack.c.l.b16 %v945
        %v3801 = vunpack.c.h.b16 %v945
        %v3802 = vunpack.c.l.b16 %v946
        %v3803 = vunpack.c.h.b16 %v946
        %v3804 = vunpack.c.l.b16 %v947
        %v3805 = vunpack.c.h.b16 %v947
        %v3806 = vunpack.c.l.b16 %v948
        %v3807 = vunpack.c.h.b16 %v948
        %v3808 = vunpack.c.l.b16 %v949
        %v3809 = vunpack.c.h.b16 %v949
        %v3810 = vunpack.c.l.b16 %v950
        %v3811 = vunpack.c.h.b16 %v950
        %v3812 = vunpack.c.l.b16 %v951
        %v3813 = vunpack.c.h.b16 %v951
        %v3814 = vunpack.c.l.b16 %v952
        %v3815 = vunpack.c.h.b16 %v952
        %v3816 = vunpack.c.l.b16 %v953
        %v3817 = vunpack.c.h.b16 %v953
        %v3818 = vunpack.c.l.b16 %v954
        %v3819 = vunpack.c.h.b16 %v954
        %v3820 = vunpack.c.l.b16 %v955
        %v3821 = vunpack.c.h.b16 %v955
        %v3822 = vunpack.c.l.b16 %v956
        %v3823 = vunpack.c.h.b16 %v956
        %v3824 = vunpack.c.l.b16 %v957
        %v3825 = vunpack.c.h.b16 %v957
        %v3826 = vunpack.c.l.b16 %v958
        %v3827 = vunpack.c.h.b16 %v958
        %v3828 = vunpack.c.l.b16 %v959
        %v3829 = vunpack.c.h.b16 %v959
        %v3830 = vunpack.c.l.b16 %v960
        %v3831 = vunpack.c.h.b16 %v960
        %v3832 = vunpack.c.l.b16 %v961
        %v3833 = vunpack.c.h.b16 %v961
        %v3834 = vunpack.c.l.b16 %v962
        %v3835 = vunpack.c.h.b16 %v962
        %v3836 = vunpack.c.l.b16 %v963
        %v3837 = vunpack.c.h.b16 %v963
        %v3838 = vunpack.c.l.b16 %v964
        %v3839 = vunpack.c.h.b16 %v964
        %v3840 = vunpack.c.l.b16 %v965
        %v3841 = vunpack.c.h.b16 %v965
        %v3842 = vunpack.c.l.b16 %v966
        %v3843 = vunpack.c.h.b16 %v966
        %v3844 = vunpack.c.l.b16 %v967
        %v3845 = vunpack.c.h.b16 %v967
        %v3846 = vunpack.c.l.b16 %v968
        %v3847 = vunpack.c.h.b16 %v968
        %v3848 = vunpack.c.l.b16 %v969
        %v3849 = vunpack.c.h.b16 %v969
        %v3850 = vunpack.c.l.b16 %v970
        %v3851 = vunpack.c.h.b16 %v970
        %v3852 = vunpack.c.l.b16 %v971
        %v3853 = vunpack.c.h.b16 %v971
        %v3854 = vunpack.c.l.b16 %v972
        %v3855 = vunpack.c.h.b16 %v972
        %v3856 = vunpack.c.l.b16 %v973
        %v3857 = vunpack.c.h.b16 %v973
        %v3858 = vunpack.c.l.b16 %v974
        %v3859 = vunpack.c.h.b16 %v974
        %v3860 = vunpack.c.l.b16 %v975
        %v3861 = vunpack.c.h.b16 %v975
        %v3862 = vunpack.c.l.b16 %v976
        %v3863 = vunpack.c.h.b16 %v976
        %v3864 = vunpack.c.l.b16 %v977
        %v3865 = vunpack.c.h.b16 %v977
        %v3866 = vunpack.c.l.b16 %v978
        %v3867 = vunpack.c.h.b16 %v978
        %v3868 = vunpack.c.l.b16 %v979
        %v3869 = vunpack.c.h.b16 %v979
        %v3870 = vunpack.c.l.b16 %v980
        %v3871 = vunpack.c.h.b16 %v980
        %v3872 = vunpack.c.l.b16 %v981
        %v3873 = vunpack.c.h.b16 %v981
        %v3874 = vunpack.c.l.b16 %v982
        %v3875 = vunpack.c.h.b16 %v982
        %v3876 = vunpack.c.l.b16 %v983
        %v3877 = vunpack.c.h.b16 %v983
        %v3878 = vunpack.c.l.b16 %v984
        %v3879 = vunpack.c.h.b16 %v984
        %v3880 = vunpack.c.l.b16 %v985
        %v3881 = vunpack.c.h.b16 %v985
        %v3882 = vunpack.c.l.b16 %v986
        %v3883 = vunpack.c.h.b16 %v986
        %v3884 = vunpack.c.l.b16 %v987
        %v3885 = vunpack.c.h.b16 %v987
        %v3886 = vunpack.c.l.b16 %v988
        %v3887 = vunpack.c.h.b16 %v988
        %v3888 = vunpack.c.l.b16 %v989
        %v3889 = vunpack.c.h.b16 %v989
        %v3890 = vunpack.c.l.b16 %v990
        %v3891 = vunpack.c.h.b16 %v990
        %v3892 = vunpack.c.l.b16 %v991
        %v3893 = vunpack.c.h.b16 %v991
        %v3894 = vunpack.c.l.b16 %v992
        %v3895 = vunpack.c.h.b16 %v992
        %v3896 = vunpack.c.l.b16 %v993
        %v3897 = vunpack.c.h.b16 %v993
        %v3898 = vunpack.c.l.b16 %v994
        %v3899 = vunpack.c.h.b16 %v994
        %v3900 = vunpack.c.l.b16 %v995
        %v3901 = vunpack.c.h.b16 %v995
        %v3902 = vunpack.c.l.b16 %v996
        %v3903 = vunpack.c.h.b16 %v996
        %v3904 = vunpack.c.l.b16 %v997
        %v3905 = vunpack.c.h.b16 %v997
        %v3906 = vunpack.c.l.b16 %v998
        %v3907 = vunpack.c.h.b16 %v998
        %v3908 = vunpack.c.l.b16 %v999
        %v3909 = vunpack.c.h.b16 %v999
        %v3910 = vunpack.c.l.b16 %v1000
        %v3911 = vunpack.c.h.b16 %v1000
        %v3912 = vunpack.c.l.b16 %v1001
        %v3913 = vunpack.c.h.b16 %v1001
        %v3914 = vunpack.c.l.b16 %v1002
        %v3915 = vunpack.c.h.b16 %v1002
        %v3916 = vunpack.c.l.b16 %v1003
        %v3917 = vunpack.c.h.b16 %v1003
        %v3918 = vunpack.c.l.b16 %v1004
        %v3919 = vunpack.c.h.b16 %v1004
        %v3920 = vunpack.c.l.b16 %v1005
        %v3921 = vunpack.c.h.b16 %v1005
        %v3922 = vunpack.c.l.b16 %v1006
        %v3923 = vunpack.c.h.b16 %v1006
        %v3924 = vunpack.c.l.b16 %v1007
        %v3925 = vunpack.c.h.b16 %v1007
        %v3926 = vunpack.c.l.b16 %v1008
        %v3927 = vunpack.c.h.b16 %v1008
        %v3928 = vunpack.c.l.b16 %v1009
        %v3929 = vunpack.c.h.b16 %v1009
        %v3930 = vunpack.c.l.b16 %v1010
        %v3931 = vunpack.c.h.b16 %v1010
        %v3932 = vunpack.c.l.b16 %v1011
        %v3933 = vunpack.c.h.b16 %v1011
        %v3934 = vunpack.c.l.b16 %v1012
        %v3935 = vunpack.c.h.b16 %v1012
        %v3936 = vunpack.c.l.b16 %v1013
        %v3937 = vunpack.c.h.b16 %v1013
        %v3938 = vunpack.c.l.b16 %v1014
        %v3939 = vunpack.c.h.b16 %v1014
        %v3940 = vunpack.c.l.b16 %v1015
        %v3941 = vunpack.c.h.b16 %v1015
        %v3942 = vunpack.c.l.b16 %v1016
        %v3943 = vunpack.c.h.b16 %v1016
        %v3944 = vunpack.c.l.b16 %v1017
        %v3945 = vunpack.c.h.b16 %v1017
        %v3946 = vunpack.c.l.b16 %v1018
        %v3947 = vunpack.c.h.b16 %v1018
        %v3948 = vunpack.c.l.b16 %v1019
        %v3949 = vunpack.c.h.b16 %v1019
        %v3950 = vunpack.c.l.b16 %v1020
        %v3951 = vunpack.c.h.b16 %v1020
        %v3952 = vunpack.c.l.b16 %v1021
        %v3953 = vunpack.c.h.b16 %v1021
        %v3954 = vunpack.c.l.b16 %v1022
        %v3955 = vunpack.c.h.b16 %v1022
        %v3956 = vunpack.c.l.b16 %v1023
        %v3957 = vunpack.c.h.b16 %v1023
        %v3958 = vunpack.c.l.b16 %v1024
        %v3959 = vunpack.c.h.b16 %v1024
        %v3960 = vunpack.c.l.b16 %v1025
        %v3961 = vunpack.c.h.b16 %v1025
        %v3962 = vunpack.c.l.b16 %v1026
        %v3963 = vunpack.c.h.b16 %v1026
        %v3964 = vunpack.c.l.b16 %v1027
        %v3965 = vunpack.c.h.b16 %v1027
        %v3966 = vunpack.c.l.b16 %v1028
        %v3967 = vunpack.c.h.b16 %v1028
        %v3968 = vunpack.c.l.b16 %v1029
        %v3969 = vunpack.c.h.b16 %v1029
        %v3970 = vunpack.c.l.b16 %v1030
        %v3971 = vunpack.c.h.b16 %v1030
        %v3972 = vunpack.c.l.b16 %v1031
        %v3973 = vunpack.c.h.b16 %v1031
        %v3974 = vunpack.c.l.b16 %v1032
        %v3975 = vunpack.c.h.b16 %v1032
        %v3976 = vunpack.c.l.b16 %v1033
        %v3977 = vunpack.c.h.b16 %v1033
        %v3978 = vunpack.c.l.b16 %v1034
        %v3979 = vunpack.c.h.b16 %v1034
        %v3980 = vunpack.c.l.b16 %v1035
        %v3981 = vunpack.c.h.b16 %v1035
        %v3982 = vunpack.c.l.b16 %v1036
        %v3983 = vunpack.c.h.b16 %v1036
        %v3984 = vunpack.c.l.b16 %v1037
        %v3985 = vunpack.c.h.b16 %v1037
        %v3986 = vunpack.c.l.b16 %v1038
        %v3987 = vunpack.c.h.b16 %v1038
        %v3988 = vunpack.c.l.b16 %v1039
        %v3989 = vunpack.c.h.b16 %v1039
        %v3990 = vunpack.c.l.b16 %v1040
        %v3991 = vunpack.c.h.b16 %v1040
        %v3992 = vunpack.c.l.b16 %v1041
        %v3993 = vunpack.c.h.b16 %v1041
        %v3994 = vunpack.c.l.b16 %v1042
        %v3995 = vunpack.c.h.b16 %v1042
        %v3996 = vunpack.c.l.b16 %v1043
        %v3997 = vunpack.c.h.b16 %v1043
        %v3998 = vunpack.c.l.b16 %v1044
        %v3999 = vunpack.c.h.b16 %v1044
        %v4000 = vunpack.c.l.b16 %v1045
        %v4001 = vunpack.c.h.b16 %v1045
        %v4002 = vunpack.c.l.b16 %v1046
        %v4003 = vunpack.c.h.b16 %v1046
        %v4004 = vunpack.c.l.b16 %v1047
        %v4005 = vunpack.c.h.b16 %v1047
        %v4006 = vunpack.c.l.b16 %v1048
        %v4007 = vunpack.c.h.b16 %v1048
        %v4008 = vunpack.c.l.b16 %v1049
        %v4009 = vunpack.c.h.b16 %v1049
        %v4010 = vunpack.c.l.b16 %v1050
        %v4011 = vunpack.c.h.b16 %v1050
        %v4012 = vunpack.c.l.b16 %v1051
        %v4013 = vunpack.c.h.b16 %v1051
        %v4014 = vunpack.c.l.b16 %v1052
        %v4015 = vunpack.c.h.b16 %v1052
        %v4016 = vunpack.c.l.b16 %v1053
        %v4017 = vunpack.c.h.b16 %v1053
        %v4018 = vunpack.c.l.b16 %v1054
        %v4019 = vunpack.c.h.b16 %v1054
        %v4020 = vunpack.c.l.b16 %v1055
        %v4021 = vunpack.c.h.b16 %v1055
        %v4022 = vunpack.c.l.b16 %v1056
        %v4023 = vunpack.c.h.b16 %v1056
        %v4024 = vunpack.c.l.b16 %v1057
        %v4025 = vunpack.c.h.b16 %v1057
        %v4026 = vunpack.c.l.b16 %v1058
        %v4027 = vunpack.c.h.b16 %v1058
        %v4028 = vunpack.c.l.b16 %v1059
        %v4029 = vunpack.c.h.b16 %v1059
        %v4030 = vunpack.c.l.b16 %v1060
        %v4031 = vunpack.c.h.b16 %v1060
        %v4032 = vunpack.c.l.b16 %v1061
        %v4033 = vunpack.c.h.b16 %v1061
        %v4034 = vunpack.c.l.b16 %v1062
        %v4035 = vunpack.c.h.b16 %v1062
        %v4036 = vunpack.c.l.b16 %v1063
        %v4037 = vunpack.c.h.b16 %v1063
        %v4038 = vunpack.c.l.b16 %v1064
        %v4039 = vunpack.c.h.b16 %v1064
        %v4040 = vunpack.c.l.b16 %v1065
        %v4041 = vunpack.c.h.b16 %v1065
        %v4042 = vunpack.c.l.b16 %v1066
        %v4043 = vunpack.c.h.b16 %v1066
        %v4044 = vunpack.c.l.b16 %v1067
        %v4045 = vunpack.c.h.b16 %v1067
        %v4046 = vunpack.c.l.b16 %v1068
        %v4047 = vunpack.c.h.b16 %v1068
        %v4048 = vunpack.c.l.b16 %v1069
        %v4049 = vunpack.c.h.b16 %v1069
        %v4050 = vunpack.c.l.b16 %v1070
        %v4051 = vunpack.c.h.b16 %v1070
        %v4052 = vunpack.c.l.b16 %v1071
        %v4053 = vunpack.c.h.b16 %v1071
        %v4054 = vunpack.c.l.b16 %v1072
        %v4055 = vunpack.c.h.b16 %v1072
        %v4056 = vunpack.c.l.b16 %v1073
        %v4057 = vunpack.c.h.b16 %v1073
        %v4058 = vunpack.c.l.b16 %v1074
        %v4059 = vunpack.c.h.b16 %v1074
        %v4060 = vunpack.c.l.b16 %v1075
        %v4061 = vunpack.c.h.b16 %v1075
        %v4062 = vunpack.c.l.b16 %v1076
        %v4063 = vunpack.c.h.b16 %v1076
        %v4064 = vunpack.c.l.b16 %v1077
        %v4065 = vunpack.c.h.b16 %v1077
        %v4066 = vunpack.c.l.b16 %v1078
        %v4067 = vunpack.c.h.b16 %v1078
        %v4068 = vunpack.c.l.b16 %v1079
        %v4069 = vunpack.c.h.b16 %v1079
        %v4070 = vunpack.c.l.b16 %v1080
        %v4071 = vunpack.c.h.b16 %v1080
        %v4072 = vunpack.c.l.b16 %v1081
        %v4073 = vunpack.c.h.b16 %v1081
        %v4074 = vunpack.c.l.b16 %v1082
        %v4075 = vunpack.c.h.b16 %v1082
        %v4076 = vunpack.c.l.b16 %v1083
        %v4077 = vunpack.c.h.b16 %v1083
        %v4078 = vunpack.c.l.b16 %v1084
        %v4079 = vunpack.c.h.b16 %v1084
        %v4080 = vunpack.c.l.b16 %v1085
        %v4081 = vunpack.c.h.b16 %v1085
        %v4082 = vunpack.c.l.b16 %v1086
        %v4083 = vunpack.c.h.b16 %v1086
        %v4084 = vunpack.c.l.b16 %v1087
        %v4085 = vunpack.c.h.b16 %v1087
        %v4086 = vunpack.c.l.b16 %v1088
        %v4087 = vunpack.c.h.b16 %v1088
        %v4088 = vunpack.c.l.b16 %v1089
        %v4089 = vunpack.c.h.b16 %v1089
        %v4090 = vunpack.c.l.b16 %v1090
        %v4091 = vunpack.c.h.b16 %v1090
        %v4092 = vunpack.c.l.b16 %v1091
        %v4093 = vunpack.c.h.b16 %v1091
        %v4094 = vunpack.c.l.b16 %v1092
        %v4095 = vunpack.c.h.b16 %v1092
        %v4096 = vunpack.c.l.b16 %v1093
        %v4097 = vunpack.c.h.b16 %v1093
        %v4098 = vunpack.c.l.b16 %v1094
        %v4099 = vunpack.c.h.b16 %v1094
        %v4100 = vunpack.c.l.b16 %v1095
        %v4101 = vunpack.c.h.b16 %v1095
        %v4102 = vunpack.c.l.b16 %v1096
        %v4103 = vunpack.c.h.b16 %v1096
        %v4104 = vunpack.c.l.b16 %v1097
        %v4105 = vunpack.c.h.b16 %v1097
        %v4106 = vunpack.c.l.b16 %v1098
        %v4107 = vunpack.c.h.b16 %v1098
        %v4108 = vunpack.c.l.b16 %v1099
        %v4109 = vunpack.c.h.b16 %v1099
        %v4110 = vunpack.c.l.b16 %v1100
        %v4111 = vunpack.c.h.b16 %v1100
        %v4112 = vunpack.c.l.b16 %v1101
        %v4113 = vunpack.c.h.b16 %v1101
        %v4114 = vunpack.c.l.b16 %v1102
        %v4115 = vunpack.c.h.b16 %v1102
        %v4116 = vunpack.c.l.b16 %v1103
        %v4117 = vunpack.c.h.b16 %v1103
        %v4118 = vunpack.c.l.b16 %v1104
        %v4119 = vunpack.c.h.b16 %v1104
        %v4120 = vunpack.c.l.b16 %v1105
        %v4121 = vunpack.c.h.b16 %v1105
        %v4122 = vunpack.c.l.b16 %v1106
        %v4123 = vunpack.c.h.b16 %v1106
        %v4124 = vunpack.c.l.b16 %v1107
        %v4125 = vunpack.c.h.b16 %v1107
        %v4126 = vunpack.c.l.b16 %v1108
        %v4127 = vunpack.c.h.b16 %v1108
        %v4128 = vunpack.c.l.b16 %v1109
        %v4129 = vunpack.c.h.b16 %v1109
        %v4130 = vunpack.c.l.b16 %v1110
        %v4131 = vunpack.c.h.b16 %v1110
        %v4132 = vunpack.c.l.b16 %v1111
        %v4133 = vunpack.c.h.b16 %v1111
        %v4134 = vunpack.c.l.b16 %v1112
        %v4135 = vunpack.c.h.b16 %v1112
        %v4136 = vunpack.c.l.b16 %v1113
        %v4137 = vunpack.c.h.b16 %v1113
        %v4138 = vunpack.c.l.b16 %v1114
        %v4139 = vunpack.c.h.b16 %v1114
        %v4140 = vunpack.c.l.b16 %v1115
        %v4141 = vunpack.c.h.b16 %v1115
        %v4142 = vunpack.c.l.b16 %v1116
        %v4143 = vunpack.c.h.b16 %v1116
        %v4144 = vunpack.c.l.b16 %v1117
        %v4145 = vunpack.c.h.b16 %v1117
        %v4146 = vunpack.c.l.b16 %v1118
        %v4147 = vunpack.c.h.b16 %v1118
        %v4148 = vunpack.c.l.b16 %v1119
        %v4149 = vunpack.c.h.b16 %v1119
        %v4150 = vunpack.c.l.b16 %v1120
        %v4151 = vunpack.c.h.b16 %v1120
        %v4152 = vunpack.c.l.b16 %v1121
        %v4153 = vunpack.c.h.b16 %v1121
        %v4154 = vunpack.c.l.b16 %v1122
        %v4155 = vunpack.c.h.b16 %v1122
        %v4156 = vunpack.c.l.b16 %v1123
        %v4157 = vunpack.c.h.b16 %v1123
        %v4158 = vunpack.c.l.b16 %v1124
        %v4159 = vunpack.c.h.b16 %v1124
        %v4160 = vunpack.c.l.b16 %v1125
        %v4161 = vunpack.c.h.b16 %v1125
        %v4162 = vunpack.c.l.b16 %v1126
        %v4163 = vunpack.c.h.b16 %v1126
        %v4164 = vunpack.c.l.b16 %v1127
        %v4165 = vunpack.c.h.b16 %v1127
        %v4166 = vunpack.c.l.b16 %v1128
        %v4167 = vunpack.c.h.b16 %v1128
        %v4168 = vunpack.c.l.b16 %v1129
        %v4169 = vunpack.c.h.b16 %v1129
        %v4170 = vunpack.c.l.b16 %v1130
        %v4171 = vunpack.c.h.b16 %v1130
        %v4172 = vunpack.c.l.b16 %v1131
        %v4173 = vunpack.c.h.b16 %v1131
        %v4174 = vunpack.c.l.b16 %v1132
        %v4175 = vunpack.c.h.b16 %v1132
        %v4176 = vunpack.c.l.b16 %v1133
        %v4177 = vunpack.c.h.b16 %v1133
        %v4178 = vunpack.c.l.b16 %v1134
        %v4179 = vunpack.c.h.b16 %v1134
        %v4180 = vunpack.c.l.b16 %v1135
        %v4181 = vunpack.c.h.b16 %v1135
        %v4182 = vunpack.c.l.b16 %v1136
        %v4183 = vunpack.c.h.b16 %v1136
        %v4184 = vunpack.c.l.b16 %v1137
        %v4185 = vunpack.c.h.b16 %v1137
        %v4186 = vunpack.c.l.b16 %v1138
        %v4187 = vunpack.c.h.b16 %v1138
        %v4188 = vunpack.c.l.b16 %v1139
        %v4189 = vunpack.c.h.b16 %v1139
        %v4190 = vunpack.c.l.b16 %v1140
        %v4191 = vunpack.c.h.b16 %v1140
        %v4192 = vunpack.c.l.b16 %v1141
        %v4193 = vunpack.c.h.b16 %v1141
        %v4194 = vunpack.c.l.b16 %v1142
        %v4195 = vunpack.c.h.b16 %v1142
        %v4196 = vunpack.c.l.b16 %v1143
        %v4197 = vunpack.c.h.b16 %v1143
        %v4198 = vunpack.c.l.b16 %v1144
        %v4199 = vunpack.c.h.b16 %v1144
        %v4200 = vunpack.c.l.b16 %v1145
        %v4201 = vunpack.c.h.b16 %v1145
        %v4202 = vunpack.c.l.b16 %v1146
        %v4203 = vunpack.c.h.b16 %v1146
        %v4204 = vunpack.c.l.b16 %v1147
        %v4205 = vunpack.c.h.b16 %v1147
        %v4206 = vunpack.c.l.b16 %v1148
        %v4207 = vunpack.c.h.b16 %v1148
        %v4208 = vunpack.c.l.b16 %v1149
        %v4209 = vunpack.c.h.b16 %v1149
        %v4210 = vunpack.c.l.b16 %v1150
        %v4211 = vunpack.c.h.b16 %v1150
        %v4212 = vunpack.c.l.b16 %v1151
        %v4213 = vunpack.c.h.b16 %v1151
        %v4214 = vunpack.c.l.b16 %v1152
        %v4215 = vunpack.c.h.b16 %v1152
        %v4216 = vunpack.c.l.b16 %v1153
        %v4217 = vunpack.c.h.b16 %v1153
        %v4218 = vunpack.c.l.b16 %v1154
        %v4219 = vunpack.c.h.b16 %v1154
        %v4220 = vunpack.c.l.b16 %v1155
        %v4221 = vunpack.c.h.b16 %v1155
        %v4222 = vunpack.c.l.b16 %v1156
        %v4223 = vunpack.c.h.b16 %v1156
        %v4224 = vunpack.c.l.b16 %v1157
        %v4225 = vunpack.c.h.b16 %v1157
        %v4226 = vunpack.c.l.b16 %v1158
        %v4227 = vunpack.c.h.b16 %v1158
        %v4228 = vunpack.c.l.b16 %v1159
        %v4229 = vunpack.c.h.b16 %v1159
        %v4230 = vunpack.c.l.b16 %v1160
        %v4231 = vunpack.c.h.b16 %v1160
        %v4232 = vunpack.c.l.b16 %v1161
        %v4233 = vunpack.c.h.b16 %v1161
        %v4234 = vunpack.c.l.b16 %v1162
        %v4235 = vunpack.c.h.b16 %v1162
        %v4236 = vunpack.c.l.b16 %v1163
        %v4237 = vunpack.c.h.b16 %v1163
        %v4238 = vunpack.c.l.b16 %v1164
        %v4239 = vunpack.c.h.b16 %v1164
        %v4240 = vunpack.c.l.b16 %v1165
        %v4241 = vunpack.c.h.b16 %v1165
        %v4242 = vunpack.c.l.b16 %v1166
        %v4243 = vunpack.c.h.b16 %v1166
        %v4244 = vunpack.c.l.b16 %v1167
        %v4245 = vunpack.c.h.b16 %v1167
        %v4246 = vunpack.c.l.b16 %v1168
        %v4247 = vunpack.c.h.b16 %v1168
        %v4248 = vunpack.c.l.b16 %v1169
        %v4249 = vunpack.c.h.b16 %v1169
        %v4250 = vunpack.c.l.b16 %v1170
        %v4251 = vunpack.c.h.b16 %v1170
        %v4252 = vunpack.c.l.b16 %v1171
        %v4253 = vunpack.c.h.b16 %v1171
        %v4254 = vunpack.c.l.b16 %v1172
        %v4255 = vunpack.c.h.b16 %v1172
        %v4256 = vunpack.c.l.b16 %v1173
        %v4257 = vunpack.c.h.b16 %v1173
        %v4258 = vunpack.c.l.b16 %v1174
        %v4259 = vunpack.c.h.b16 %v1174
        %v4260 = vunpack.c.l.b16 %v1175
        %v4261 = vunpack.c.h.b16 %v1175
        %v4262 = vunpack.c.l.b16 %v1176
        %v4263 = vunpack.c.h.b16 %v1176
        %v4264 = vunpack.c.l.b16 %v1177
        %v4265 = vunpack.c.h.b16 %v1177
        %v4266 = vunpack.c.l.b16 %v1178
        %v4267 = vunpack.c.h.b16 %v1178
        %v4268 = vunpack.c.l.b16 %v1179
        %v4269 = vunpack.c.h.b16 %v1179
        %v4270 = vunpack.c.l.b16 %v1180
        %v4271 = vunpack.c.h.b16 %v1180
        %v4272 = vunpack.c.l.b16 %v1181
        %v4273 = vunpack.c.h.b16 %v1181
        %v4274 = vunpack.c.l.b16 %v1182
        %v4275 = vunpack.c.h.b16 %v1182
        %v4276 = vunpack.c.l.b16 %v1183
        %v4277 = vunpack.c.h.b16 %v1183
        %v4278 = vunpack.c.l.b16 %v1184
        %v4279 = vunpack.c.h.b16 %v1184
        %v4280 = vunpack.c.l.b16 %v1185
        %v4281 = vunpack.c.h.b16 %v1185
        %v4282 = vunpack.c.l.b16 %v1186
        %v4283 = vunpack.c.h.b16 %v1186
        %v4284 = vunpack.c.l.b16 %v1187
        %v4285 = vunpack.c.h.b16 %v1187
        %v4286 = vunpack.c.l.b16 %v1188
        %v4287 = vunpack.c.h.b16 %v1188
        %v4288 = vunpack.c.l.b16 %v1189
        %v4289 = vunpack.c.h.b16 %v1189
        %v4290 = vunpack.c.l.b16 %v1190
        %v4291 = vunpack.c.h.b16 %v1190
        %v4292 = vunpack.c.l.b16 %v1191
        %v4293 = vunpack.c.h.b16 %v1191
        %v4294 = vunpack.c.l.b16 %v1192
        %v4295 = vunpack.c.h.b16 %v1192
        %v4296 = vunpack.c.l.b16 %v1193
        %v4297 = vunpack.c.h.b16 %v1193
        %v4298 = vunpack.c.l.b16 %v1194
        %v4299 = vunpack.c.h.b16 %v1194
        %v4300 = vunpack.c.l.b16 %v1195
        %v4301 = vunpack.c.h.b16 %v1195
        %v4302 = vunpack.c.l.b16 %v1196
        %v4303 = vunpack.c.h.b16 %v1196
        %v4304 = vunpack.c.l.b16 %v1197
        %v4305 = vunpack.c.h.b16 %v1197
        %v4306 = vunpack.c.l.b16 %v1198
        %v4307 = vunpack.c.h.b16 %v1198
        %v4308 = vunpack.c.l.b16 %v1199
        %v4309 = vunpack.c.h.b16 %v1199
        %v4310 = vunpack.c.l.b16 %v1200
        %v4311 = vunpack.c.h.b16 %v1200
        %v4312 = vunpack.c.l.b16 %v1201
        %v4313 = vunpack.c.h.b16 %v1201
        %v4314 = vunpack.c.l.b16 %v1202
        %v4315 = vunpack.c.h.b16 %v1202
        %v4316 = vunpack.c.l.b16 %v1203
        %v4317 = vunpack.c.h.b16 %v1203
        %v4318 = vunpack.c.l.b16 %v1204
        %v4319 = vunpack.c.h.b16 %v1204
        %v4320 = vunpack.c.l.b16 %v1205
        %v4321 = vunpack.c.h.b16 %v1205
        %v4322 = vunpack.c.l.b16 %v1206
        %v4323 = vunpack.c.h.b16 %v1206
        %v4324 = vunpack.c.l.b16 %v1207
        %v4325 = vunpack.c.h.b16 %v1207
        %v4326 = vunpack.c.l.b16 %v1208
        %v4327 = vunpack.c.h.b16 %v1208
        %v4328 = vunpack.c.l.b16 %v1209
        %v4329 = vunpack.c.h.b16 %v1209
        %v4330 = vunpack.c.l.b16 %v1210
        %v4331 = vunpack.c.h.b16 %v1210
        %v4332 = vunpack.c.l.b16 %v1211
        %v4333 = vunpack.c.h.b16 %v1211
        %v4334 = vunpack.c.l.b16 %v1212
        %v4335 = vunpack.c.h.b16 %v1212
        %v4336 = vunpack.c.l.b16 %v1213
        %v4337 = vunpack.c.h.b16 %v1213
        %v4338 = vunpack.c.l.b16 %v1214
        %v4339 = vunpack.c.h.b16 %v1214
        %v4340 = vunpack.c.l.b16 %v1215
        %v4341 = vunpack.c.h.b16 %v1215
        %v4342 = vunpack.c.l.b16 %v1216
        %v4343 = vunpack.c.h.b16 %v1216
        %v4344 = vunpack.c.l.b16 %v1217
        %v4345 = vunpack.c.h.b16 %v1217
        %v4346 = vunpack.c.l.b16 %v1218
        %v4347 = vunpack.c.h.b16 %v1218
        %v4348 = vunpack.c.l.b16 %v1219
        %v4349 = vunpack.c.h.b16 %v1219
        %v4350 = vunpack.c.l.b16 %v1220
        %v4351 = vunpack.c.h.b16 %v1220
        %v4352 = vunpack.c.l.b16 %v1221
        %v4353 = vunpack.c.h.b16 %v1221
        %v4354 = vunpack.c.l.b16 %v1222
        %v4355 = vunpack.c.h.b16 %v1222
        %v4356 = vunpack.c.l.b16 %v1223
        %v4357 = vunpack.c.h.b16 %v1223
        %v4358 = vunpack.c.l.b16 %v1224
        %v4359 = vunpack.c.h.b16 %v1224
        %v4360 = vunpack.c.l.b16 %v1225
        %v4361 = vunpack.c.h.b16 %v1225
        %v4362 = vunpack.c.l.b16 %v1226
        %v4363 = vunpack.c.h.b16 %v1226
        %v4364 = vunpack.c.l.b16 %v1227
        %v4365 = vunpack.c.h.b16 %v1227
        %v4366 = vunpack.c.l.b16 %v1228
        %v4367 = vunpack.c.h.b16 %v1228
        %v4368 = vunpack.c.l.b16 %v1229
        %v4369 = vunpack.c.h.b16 %v1229
        %v4370 = vunpack.c.l.b16 %v1230
        %v4371 = vunpack.c.h.b16 %v1230
        %v4372 = vunpack.c.l.b16 %v1231
        %v4373 = vunpack.c.h.b16 %v1231
        %v4374 = vunpack.c.l.b16 %v1232
        %v4375 = vunpack.c.h.b16 %v1232
        %v4376 = vunpack.c.l.b16 %v1233
        %v4377 = vunpack.c.h.b16 %v1233
        %v4378 = vunpack.c.l.b16 %v1234
        %v4379 = vunpack.c.h.b16 %v1234
        %v4380 = vunpack.c.l.b16 %v1235
        %v4381 = vunpack.c.h.b16 %v1235
        %v4382 = vunpack.c.l.b16 %v1236
        %v4383 = vunpack.c.h.b16 %v1236
        %v4384 = vunpack.c.l.b16 %v1237
        %v4385 = vunpack.c.h.b16 %v1237
        %v4386 = vunpack.c.l.b16 %v1238
        %v4387 = vunpack.c.h.b16 %v1238
        %v4388 = vunpack.c.l.b16 %v1239
        %v4389 = vunpack.c.h.b16 %v1239
        %v4390 = vunpack.c.l.b16 %v1240
        %v4391 = vunpack.c.h.b16 %v1240
        %v4392 = vunpack.c.l.b16 %v1241
        %v4393 = vunpack.c.h.b16 %v1241
        %v4394 = vunpack.c.l.b16 %v1242
        %v4395 = vunpack.c.h.b16 %v1242
        %v4396 = vunpack.c.l.b16 %v1243
        %v4397 = vunpack.c.h.b16 %v1243
        %v4398 = vunpack.c.l.b16 %v1244
        %v4399 = vunpack.c.h.b16 %v1244
        %v4400 = vunpack.c.l.b16 %v1245
        %v4401 = vunpack.c.h.b16 %v1245
        %v4402 = vunpack.c.l.b16 %v1246
        %v4403 = vunpack.c.h.b16 %v1246
        %v4404 = vunpack.c.l.b16 %v1247
        %v4405 = vunpack.c.h.b16 %v1247
        %v4406 = vunpack.c.l.b16 %v1248
        %v4407 = vunpack.c.h.b16 %v1248
        %v4408 = vunpack.c.l.b16 %v1249
        %v4409 = vunpack.c.h.b16 %v1249
        %v4410 = vunpack.c.l.b16 %v1250
        %v4411 = vunpack.c.h.b16 %v1250
        %v4412 = vunpack.c.l.b16 %v1251
        %v4413 = vunpack.c.h.b16 %v1251
        %v4414 = vunpack.c.l.b16 %v1252
        %v4415 = vunpack.c.h.b16 %v1252
        %v4416 = vunpack.c.l.b16 %v1253
        %v4417 = vunpack.c.h.b16 %v1253
        %v4418 = vunpack.c.l.b16 %v1254
        %v4419 = vunpack.c.h.b16 %v1254
        %v4420 = vunpack.c.l.b16 %v1255
        %v4421 = vunpack.c.h.b16 %v1255
        %v4422 = vunpack.c.l.b16 %v1256
        %v4423 = vunpack.c.h.b16 %v1256
        %v4424 = vunpack.c.l.b16 %v1257
        %v4425 = vunpack.c.h.b16 %v1257
        %v4426 = vunpack.c.l.b16 %v1258
        %v4427 = vunpack.c.h.b16 %v1258
        %v4428 = vunpack.c.l.b16 %v1259
        %v4429 = vunpack.c.h.b16 %v1259
        %v4430 = vunpack.c.l.b16 %v1260
        %v4431 = vunpack.c.h.b16 %v1260
        %v4432 = vunpack.c.l.b16 %v1261
        %v4433 = vunpack.c.h.b16 %v1261
        %v4434 = vunpack.c.l.b16 %v1262
        %v4435 = vunpack.c.h.b16 %v1262
        %v4436 = vunpack.c.l.b16 %v1263
        %v4437 = vunpack.c.h.b16 %v1263
        %v4438 = vunpack.c.l.b16 %v1264
        %v4439 = vunpack.c.h.b16 %v1264
        %v4440 = vunpack.c.l.b16 %v1265
        %v4441 = vunpack.c.h.b16 %v1265
        %v4442 = vunpack.c.l.b16 %v1266
        %v4443 = vunpack.c.h.b16 %v1266
        %v4444 = vunpack.c.l.b16 %v1267
        %v4445 = vunpack.c.h.b16 %v1267
        %v4446 = vunpack.c.l.b16 %v1268
        %v4447 = vunpack.c.h.b16 %v1268
        %v4448 = vunpack.c.l.b16 %v1269
        %v4449 = vunpack.c.h.b16 %v1269
        %v4450 = vunpack.c.l.b16 %v1270
        %v4451 = vunpack.c.h.b16 %v1270
        %v4452 = vunpack.c.l.b16 %v1271
        %v4453 = vunpack.c.h.b16 %v1271
        %v4454 = vunpack.c.l.b16 %v1272
        %v4455 = vunpack.c.h.b16 %v1272
        %v4456 = vunpack.c.l.b16 %v1273
        %v4457 = vunpack.c.h.b16 %v1273
        %v4458 = vunpack.c.l.b16 %v1274
        %v4459 = vunpack.c.h.b16 %v1274
        %v4460 = vunpack.c.l.b16 %v1275
        %v4461 = vunpack.c.h.b16 %v1275
        %v4462 = vunpack.c.l.b16 %v1276
        %v4463 = vunpack.c.h.b16 %v1276
        %v4464 = vunpack.c.l.b16 %v1277
        %v4465 = vunpack.c.h.b16 %v1277
        %v4466 = vunpack.c.l.b16 %v1278
        %v4467 = vunpack.c.h.b16 %v1278
        %v4468 = vunpack.c.l.b16 %v1279
        %v4469 = vunpack.c.h.b16 %v1279
        %v4470 = vunpack.c.l.b16 %v1280
        %v4471 = vunpack.c.h.b16 %v1280
        %v4472 = vunpack.c.l.b16 %v1281
        %v4473 = vunpack.c.h.b16 %v1281
        %v4474 = vunpack.c.l.b16 %v1282
        %v4475 = vunpack.c.h.b16 %v1282
        %v4476 = vunpack.c.l.b16 %v1283
        %v4477 = vunpack.c.h.b16 %v1283
        %v4478 = vunpack.c.l.b16 %v1284
        %v4479 = vunpack.c.h.b16 %v1284
        %v4480 = vunpack.c.l.b16 %v1285
        %v4481 = vunpack.c.h.b16 %v1285
        %v4482 = vunpack.c.l.b16 %v1286
        %v4483 = vunpack.c.h.b16 %v1286
        %v4484 = vunpack.c.l.b16 %v1287
        %v4485 = vunpack.c.h.b16 %v1287
        %v4486 = vunpack.c.l.b16 %v1288
        %v4487 = vunpack.c.h.b16 %v1288
        %v4488 = vunpack.c.l.b16 %v1289
        %v4489 = vunpack.c.h.b16 %v1289
        %v4490 = vunpack.c.l.b16 %v1290
        %v4491 = vunpack.c.h.b16 %v1290
        %v4492 = vunpack.c.l.b16 %v1291
        %v4493 = vunpack.c.h.b16 %v1291
        %v4494 = vunpack.c.l.b16 %v1292
        %v4495 = vunpack.c.h.b16 %v1292
        %v4496 = vunpack.c.l.b16 %v1293
        %v4497 = vunpack.c.h.b16 %v1293
        %v4498 = vunpack.c.l.b16 %v1294
        %v4499 = vunpack.c.h.b16 %v1294
        %v4500 = vunpack.c.l.b16 %v1295
        %v4501 = vunpack.c.h.b16 %v1295
        %v4502 = vunpack.c.l.b16 %v1296
        %v4503 = vunpack.c.h.b16 %v1296
        %v4504 = vunpack.c.l.b16 %v1297
        %v4505 = vunpack.c.h.b16 %v1297
        %v4506 = vunpack.c.l.b16 %v1298
        %v4507 = vunpack.c.h.b16 %v1298
        %v4508 = vunpack.c.l.b16 %v1299
        %v4509 = vunpack.c.h.b16 %v1299
        %v4510 = vunpack.c.l.b16 %v1300
        %v4511 = vunpack.c.h.b16 %v1300
        %v4512 = vunpack.c.l.b16 %v1301
        %v4513 = vunpack.c.h.b16 %v1301
        %v4514 = vunpack.c.l.b16 %v1302
        %v4515 = vunpack.c.h.b16 %v1302
        %v4516 = vunpack.c.l.b16 %v1303
        %v4517 = vunpack.c.h.b16 %v1303
        %v4518 = vunpack.c.l.b16 %v1304
        %v4519 = vunpack.c.h.b16 %v1304
        %v4520 = vunpack.c.l.b16 %v1305
        %v4521 = vunpack.c.h.b16 %v1305
        %v4522 = vunpack.c.l.b16 %v1306
        %v4523 = vunpack.c.h.b16 %v1306
        %v4524 = vunpack.c.l.b16 %v1307
        %v4525 = vunpack.c.h.b16 %v1307
        %v4526 = vunpack.c.l.b16 %v1308
        %v4527 = vunpack.c.h.b16 %v1308
        %v4528 = vunpack.c.l.b16 %v1309
        %v4529 = vunpack.c.h.b16 %v1309
        %v4530 = vunpack.c.l.b16 %v1310
        %v4531 = vunpack.c.h.b16 %v1310
        %v4532 = vunpack.c.l.b16 %v1311
        %v4533 = vunpack.c.h.b16 %v1311
        %v4534 = vunpack.c.l.b16 %v1312
        %v4535 = vunpack.c.h.b16 %v1312
        %v4536 = vunpack.c.l.b16 %v1313
        %v4537 = vunpack.c.h.b16 %v1313
        %v4538 = vunpack.c.l.b16 %v1314
        %v4539 = vunpack.c.h.b16 %v1314
        %v4540 = vunpack.c.l.b16 %v1315
        %v4541 = vunpack.c.h.b16 %v1315
        %v4542 = vunpack.c.l.b16 %v1316
        %v4543 = vunpack.c.h.b16 %v1316
        %v4544 = vunpack.c.l.b16 %v1317
        %v4545 = vunpack.c.h.b16 %v1317
        %v4546 = vunpack.c.l.b16 %v1318
        %v4547 = vunpack.c.h.b16 %v1318
        %v4548 = vunpack.c.l.b16 %v1319
        %v4549 = vunpack.c.h.b16 %v1319
        %v4550 = vunpack.c.l.b16 %v1320
        %v4551 = vunpack.c.h.b16 %v1320
        %v4552 = vunpack.c.l.b16 %v1321
        %v4553 = vunpack.c.h.b16 %v1321
        %v4554 = vpack.c.b16 %v2510, %v2506
        %v4555 = vpack.c.b16 %v2511, %v2507
        %v4556 = vpack.c.b16 %v2512, %v2508
        %v4557 = vpack.c.b16 %v2513, %v2509
        %v4558 = vpack.c.b16 %v2518, %v2514
        %v4559 = vpack.c.b16 %v2519, %v2515
        %v4560 = vpack.c.b16 %v2520, %v2516
        %v4561 = vpack.c.b16 %v2521, %v2517
        %v4562 = vpack.c.b16 %v2526, %v2522
        %v4563 = vpack.c.b16 %v2527, %v2523
        %v4564 = vpack.c.b16 %v2528, %v2524
        %v4565 = vpack.c.b16 %v2529, %v2525
        %v4566 = vpack.c.b16 %v2534, %v2530
        %v4567 = vpack.c.b16 %v2535, %v2531
        %v4568 = vpack.c.b16 %v2536, %v2532
        %v4569 = vpack.c.b16 %v2537, %v2533
        %v4570 = vpack.c.b16 %v2542, %v2538
        %v4571 = vpack.c.b16 %v2543, %v2539
        %v4572 = vpack.c.b16 %v2544, %v2540
        %v4573 = vpack.c.b16 %v2545, %v2541
        %v4574 = vpack.c.b16 %v2550, %v2546
        %v4575 = vpack.c.b16 %v2551, %v2547
        %v4576 = vpack.c.b16 %v2552, %v2548
        %v4577 = vpack.c.b16 %v2553, %v2549
        %v4578 = vpack.c.b16 %v2558, %v2554
        %v4579 = vpack.c.b16 %v2559, %v2555
        %v4580 = vpack.c.b16 %v2560, %v2556
        %v4581 = vpack.c.b16 %v2561, %v2557
        %v4582 = vpack.c.b16 %v2566, %v2562
        %v4583 = vpack.c.b16 %v2567, %v2563
        %v4584 = vpack.c.b16 %v2568, %v2564
        %v4585 = vpack.c.b16 %v2569, %v2565
        %v4586 = vpack.c.b16 %v2574, %v2570
        %v4587 = vpack.c.b16 %v2575, %v2571
        %v4588 = vpack.c.b16 %v2576, %v2572
        %v4589 = vpack.c.b16 %v2577, %v2573
        %v4590 = vpack.c.b16 %v2582, %v2578
        %v4591 = vpack.c.b16 %v2583, %v2579
        %v4592 = vpack.c.b16 %v2584, %v2580
        %v4593 = vpack.c.b16 %v2585, %v2581
        %v4594 = vpack.c.b16 %v2590, %v2586
        %v4595 = vpack.c.b16 %v2591, %v2587
        %v4596 = vpack.c.b16 %v2592, %v2588
        %v4597 = vpack.c.b16 %v2593, %v2589
        %v4598 = vpack.c.b16 %v2598, %v2594
        %v4599 = vpack.c.b16 %v2599, %v2595
        %v4600 = vpack.c.b16 %v2600, %v2596
        %v4601 = vpack.c.b16 %v2601, %v2597
        %v4602 = vpack.c.b16 %v2606, %v2602
        %v4603 = vpack.c.b16 %v2607, %v2603
        %v4604 = vpack.c.b16 %v2608, %v2604
        %v4605 = vpack.c.b16 %v2609, %v2605
        %v4606 = vpack.c.b16 %v2614, %v2610
        %v4607 = vpack.c.b16 %v2615, %v2611
        %v4608 = vpack.c.b16 %v2616, %v2612
        %v4609 = vpack.c.b16 %v2617, %v2613
        %v4610 = vpack.c.b16 %v2622, %v2618
        %v4611 = vpack.c.b16 %v2623, %v2619
        %v4612 = vpack.c.b16 %v2624, %v2620
        %v4613 = vpack.c.b16 %v2625, %v2621
        %v4614 = vpack.c.b16 %v2630, %v2626
        %v4615 = vpack.c.b16 %v2631, %v2627
        %v4616 = vpack.c.b16 %v2632, %v2628
        %v4617 = vpack.c.b16 %v2633, %v2629
        %v4618 = vpack.c.b16 %v2638, %v2634
        %v4619 = vpack.c.b16 %v2639, %v2635
        %v4620 = vpack.c.b16 %v2640, %v2636
        %v4621 = vpack.c.b16 %v2641, %v2637
        %v4622 = vpack.c.b16 %v2646, %v2642
        %v4623 = vpack.c.b16 %v2647, %v2643
        %v4624 = vpack.c.b16 %v2648, %v2644
        %v4625 = vpack.c.b16 %v2649, %v2645
        %v4626 = vpack.c.b16 %v2654, %v2650
        %v4627 = vpack.c.b16 %v2655, %v2651
        %v4628 = vpack.c.b16 %v2656, %v2652
        %v4629 = vpack.c.b16 %v2657, %v2653
        %v4630 = vpack.c.b16 %v2662, %v2658
        %v4631 = vpack.c.b16 %v2663, %v2659
        %v4632 = vpack.c.b16 %v2664, %v2660
        %v4633 = vpack.c.b16 %v2665, %v2661
        %v4634 = vpack.c.b16 %v2670, %v2666
        %v4635 = vpack.c.b16 %v2671, %v2667
        %v4636 = vpack.c.b16 %v2672, %v2668
        %v4637 = vpack.c.b16 %v2673, %v2669
        %v4638 = vpack.c.b16 %v2678, %v2674
        %v4639 = vpack.c.b16 %v2679, %v2675
        %v4640 = vpack.c.b16 %v2680, %v2676
        %v4641 = vpack.c.b16 %v2681, %v2677
        %v4642 = vpack.c.b16 %v2686, %v2682
        %v4643 = vpack.c.b16 %v2687, %v2683
        %v4644 = vpack.c.b16 %v2688, %v2684
        %v4645 = vpack.c.b16 %v2689, %v2685
        %v4646 = vpack.c.b16 %v2694, %v2690
        %v4647 = vpack.c.b16 %v2695, %v2691
        %v4648 = vpack.c.b16 %v2696, %v2692
        %v4649 = vpack.c.b16 %v2697, %v2693
        %v4650 = vpack.c.b16 %v2702, %v2698
        %v4651 = vpack.c.b16 %v2703, %v2699
        %v4652 = vpack.c.b16 %v2704, %v2700
        %v4653 = vpack.c.b16 %v2705, %v2701
        %v4654 = vpack.c.b16 %v2710, %v2706
        %v4655 = vpack.c.b16 %v2711, %v2707
        %v4656 = vpack.c.b16 %v2712, %v2708
        %v4657 = vpack.c.b16 %v2713, %v2709
        %v4658 = vpack.c.b16 %v2718, %v2714
        %v4659 = vpack.c.b16 %v2719, %v2715
        %v4660 = vpack.c.b16 %v2720, %v2716
        %v4661 = vpack.c.b16 %v2721, %v2717
        %v4662 = vpack.c.b16 %v2726, %v2722
        %v4663 = vpack.c.b16 %v2727, %v2723
        %v4664 = vpack.c.b16 %v2728, %v2724
        %v4665 = vpack.c.b16 %v2729, %v2725
        %v4666 = vpack.c.b16 %v2734, %v2730
        %v4667 = vpack.c.b16 %v2735, %v2731
        %v4668 = vpack.c.b16 %v2736, %v2732
        %v4669 = vpack.c.b16 %v2737, %v2733
        %v4670 = vpack.c.b16 %v2742, %v2738
        %v4671 = vpack.c.b16 %v2743, %v2739
        %v4672 = vpack.c.b16 %v2744, %v2740
        %v4673 = vpack.c.b16 %v2745, %v2741
        %v4674 = vpack.c.b16 %v2750, %v2746
        %v4675 = vpack.c.b16 %v2751, %v2747
        %v4676 = vpack.c.b16 %v2752, %v2748
        %v4677 = vpack.c.b16 %v2753, %v2749
        %v4678 = vpack.c.b16 %v2758, %v2754
        %v4679 = vpack.c.b16 %v2759, %v2755
        %v4680 = vpack.c.b16 %v2760, %v2756
        %v4681 = vpack.c.b16 %v2761, %v2757
        %v4682 = vpack.c.b16 %v2766, %v2762
        %v4683 = vpack.c.b16 %v2767, %v2763
        %v4684 = vpack.c.b16 %v2768, %v2764
        %v4685 = vpack.c.b16 %v2769, %v2765
        %v4686 = vpack.c.b16 %v2774, %v2770
        %v4687 = vpack.c.b16 %v2775, %v2771
        %v4688 = vpack.c.b16 %v2776, %v2772
        %v4689 = vpack.c.b16 %v2777, %v2773
        %v4690 = vpack.c.b16 %v2782, %v2778
        %v4691 = vpack.c.b16 %v2783, %v2779
        %v4692 = vpack.c.b16 %v2784, %v2780
        %v4693 = vpack.c.b16 %v2785, %v2781
        %v4694 = vpack.c.b16 %v2790, %v2786
        %v4695 = vpack.c.b16 %v2791, %v2787
        %v4696 = vpack.c.b16 %v2792, %v2788
        %v4697 = vpack.c.b16 %v2793, %v2789
        %v4698 = vpack.c.b16 %v2798, %v2794
        %v4699 = vpack.c.b16 %v2799, %v2795
        %v4700 = vpack.c.b16 %v2800, %v2796
        %v4701 = vpack.c.b16 %v2801, %v2797
        %v4702 = vpack.c.b16 %v2806, %v2802
        %v4703 = vpack.c.b16 %v2807, %v2803
        %v4704 = vpack.c.b16 %v2808, %v2804
        %v4705 = vpack.c.b16 %v2809, %v2805
        %v4706 = vpack.c.b16 %v2814, %v2810
        %v4707 = vpack.c.b16 %v2815, %v2811
        %v4708 = vpack.c.b16 %v2816, %v2812
        %v4709 = vpack.c.b16 %v2817, %v2813
        %v4710 = vpack.c.b16 %v2822, %v2818
        %v4711 = vpack.c.b16 %v2823, %v2819
        %v4712 = vpack.c.b16 %v2824, %v2820
        %v4713 = vpack.c.b16 %v2825, %v2821
        %v4714 = vpack.c.b16 %v2830, %v2826
        %v4715 = vpack.c.b16 %v2831, %v2827
        %v4716 = vpack.c.b16 %v2832, %v2828
        %v4717 = vpack.c.b16 %v2833, %v2829
        %v4718 = vpack.c.b16 %v2838, %v2834
        %v4719 = vpack.c.b16 %v2839, %v2835
        %v4720 = vpack.c.b16 %v2840, %v2836
        %v4721 = vpack.c.b16 %v2841, %v2837
        %v4722 = vpack.c.b16 %v2846, %v2842
        %v4723 = vpack.c.b16 %v2847, %v2843
        %v4724 = vpack.c.b16 %v2848, %v2844
        %v4725 = vpack.c.b16 %v2849, %v2845
        %v4726 = vpack.c.b16 %v2854, %v2850
        %v4727 = vpack.c.b16 %v2855, %v2851
        %v4728 = vpack.c.b16 %v2856, %v2852
        %v4729 = vpack.c.b16 %v2857, %v2853
        %v4730 = vpack.c.b16 %v2862, %v2858
        %v4731 = vpack.c.b16 %v2863, %v2859
        %v4732 = vpack.c.b16 %v2864, %v2860
        %v4733 = vpack.c.b16 %v2865, %v2861
        %v4734 = vpack.c.b16 %v2870, %v2866
        %v4735 = vpack.c.b16 %v2871, %v2867
        %v4736 = vpack.c.b16 %v2872, %v2868
        %v4737 = vpack.c.b16 %v2873, %v2869
        %v4738 = vpack.c.b16 %v2878, %v2874
        %v4739 = vpack.c.b16 %v2879, %v2875
        %v4740 = vpack.c.b16 %v2880, %v2876
        %v4741 = vpack.c.b16 %v2881, %v2877
        %v4742 = vpack.c.b16 %v2886, %v2882
        %v4743 = vpack.c.b16 %v2887, %v2883
        %v4744 = vpack.c.b16 %v2888, %v2884
        %v4745 = vpack.c.b16 %v2889, %v2885
        %v4746 = vpack.c.b16 %v2894, %v2890
        %v4747 = vpack.c.b16 %v2895, %v2891
        %v4748 = vpack.c.b16 %v2896, %v2892
        %v4749 = vpack.c.b16 %v2897, %v2893
        %v4750 = vpack.c.b16 %v2902, %v2898
        %v4751 = vpack.c.b16 %v2903, %v2899
        %v4752 = vpack.c.b16 %v2904, %v2900
        %v4753 = vpack.c.b16 %v2905, %v2901
        %v4754 = vpack.c.b16 %v2910, %v2906
        %v4755 = vpack.c.b16 %v2911, %v2907
        %v4756 = vpack.c.b16 %v2912, %v2908
        %v4757 = vpack.c.b16 %v2913, %v2909
        %v4758 = vpack.c.b16 %v2918, %v2914
        %v4759 = vpack.c.b16 %v2919, %v2915
        %v4760 = vpack.c.b16 %v2920, %v2916
        %v4761 = vpack.c.b16 %v2921, %v2917
        %v4762 = vpack.c.b16 %v2926, %v2922
        %v4763 = vpack.c.b16 %v2927, %v2923
        %v4764 = vpack.c.b16 %v2928, %v2924
        %v4765 = vpack.c.b16 %v2929, %v2925
        %v4766 = vpack.c.b16 %v2934, %v2930
        %v4767 = vpack.c.b16 %v2935, %v2931
        %v4768 = vpack.c.b16 %v2936, %v2932
        %v4769 = vpack.c.b16 %v2937, %v2933
        %v4770 = vpack.c.b16 %v2942, %v2938
        %v4771 = vpack.c.b16 %v2943, %v2939
        %v4772 = vpack.c.b16 %v2944, %v2940
        %v4773 = vpack.c.b16 %v2945, %v2941
        %v4774 = vpack.c.b16 %v2950, %v2946
        %v4775 = vpack.c.b16 %v2951, %v2947
        %v4776 = vpack.c.b16 %v2952, %v2948
        %v4777 = vpack.c.b16 %v2953, %v2949
        %v4778 = vpack.c.b16 %v2958, %v2954
        %v4779 = vpack.c.b16 %v2959, %v2955
        %v4780 = vpack.c.b16 %v2960, %v2956
        %v4781 = vpack.c.b16 %v2961, %v2957
        %v4782 = vpack.c.b16 %v2966, %v2962
        %v4783 = vpack.c.b16 %v2967, %v2963
        %v4784 = vpack.c.b16 %v2968, %v2964
        %v4785 = vpack.c.b16 %v2969, %v2965
        %v4786 = vpack.c.b16 %v2974, %v2970
        %v4787 = vpack.c.b16 %v2975, %v2971
        %v4788 = vpack.c.b16 %v2976, %v2972
        %v4789 = vpack.c.b16 %v2977, %v2973
        %v4790 = vpack.c.b16 %v2982, %v2978
        %v4791 = vpack.c.b16 %v2983, %v2979
        %v4792 = vpack.c.b16 %v2984, %v2980
        %v4793 = vpack.c.b16 %v2985, %v2981
        %v4794 = vpack.c.b16 %v2990, %v2986
        %v4795 = vpack.c.b16 %v2991, %v2987
        %v4796 = vpack.c.b16 %v2992, %v2988
        %v4797 = vpack.c.b16 %v2993, %v2989
        %v4798 = vpack.c.b16 %v2998, %v2994
        %v4799 = vpack.c.b16 %v2999, %v2995
        %v4800 = vpack.c.b16 %v3000, %v2996
        %v4801 = vpack.c.b16 %v3001, %v2997
        %v4802 = vpack.c.b16 %v3006, %v3002
        %v4803 = vpack.c.b16 %v3007, %v3003
        %v4804 = vpack.c.b16 %v3008, %v3004
        %v4805 = vpack.c.b16 %v3009, %v3005
        %v4806 = vpack.c.b16 %v3014, %v3010
        %v4807 = vpack.c.b16 %v3015, %v3011
        %v4808 = vpack.c.b16 %v3016, %v3012
        %v4809 = vpack.c.b16 %v3017, %v3013
        %v4810 = vpack.c.b16 %v3022, %v3018
        %v4811 = vpack.c.b16 %v3023, %v3019
        %v4812 = vpack.c.b16 %v3024, %v3020
        %v4813 = vpack.c.b16 %v3025, %v3021
        %v4814 = vpack.c.b16 %v3030, %v3026
        %v4815 = vpack.c.b16 %v3031, %v3027
        %v4816 = vpack.c.b16 %v3032, %v3028
        %v4817 = vpack.c.b16 %v3033, %v3029
        %v4818 = vpack.c.b16 %v3038, %v3034
        %v4819 = vpack.c.b16 %v3039, %v3035
        %v4820 = vpack.c.b16 %v3040, %v3036
        %v4821 = vpack.c.b16 %v3041, %v3037
        %v4822 = vpack.c.b16 %v3046, %v3042
        %v4823 = vpack.c.b16 %v3047, %v3043
        %v4824 = vpack.c.b16 %v3048, %v3044
        %v4825 = vpack.c.b16 %v3049, %v3045
        %v4826 = vpack.c.b16 %v3054, %v3050
        %v4827 = vpack.c.b16 %v3055, %v3051
        %v4828 = vpack.c.b16 %v3056, %v3052
        %v4829 = vpack.c.b16 %v3057, %v3053
        %v4830 = vpack.c.b16 %v3062, %v3058
        %v4831 = vpack.c.b16 %v3063, %v3059
        %v4832 = vpack.c.b16 %v3064, %v3060
        %v4833 = vpack.c.b16 %v3065, %v3061
        %v4834 = vpack.c.b16 %v3070, %v3066
        %v4835 = vpack.c.b16 %v3071, %v3067
        %v4836 = vpack.c.b16 %v3072, %v3068
        %v4837 = vpack.c.b16 %v3073, %v3069
        %v4838 = vpack.c.b16 %v3078, %v3074
        %v4839 = vpack.c.b16 %v3079, %v3075
        %v4840 = vpack.c.b16 %v3080, %v3076
        %v4841 = vpack.c.b16 %v3081, %v3077
        %v4842 = vpack.c.b16 %v3086, %v3082
        %v4843 = vpack.c.b16 %v3087, %v3083
        %v4844 = vpack.c.b16 %v3088, %v3084
        %v4845 = vpack.c.b16 %v3089, %v3085
        %v4846 = vpack.c.b16 %v3094, %v3090
        %v4847 = vpack.c.b16 %v3095, %v3091
        %v4848 = vpack.c.b16 %v3096, %v3092
        %v4849 = vpack.c.b16 %v3097, %v3093
        %v4850 = vpack.c.b16 %v3102, %v3098
        %v4851 = vpack.c.b16 %v3103, %v3099
        %v4852 = vpack.c.b16 %v3104, %v3100
        %v4853 = vpack.c.b16 %v3105, %v3101
        %v4854 = vpack.c.b16 %v3110, %v3106
        %v4855 = vpack.c.b16 %v3111, %v3107
        %v4856 = vpack.c.b16 %v3112, %v3108
        %v4857 = vpack.c.b16 %v3113, %v3109
        %v4858 = vpack.c.b16 %v3118, %v3114
        %v4859 = vpack.c.b16 %v3119, %v3115
        %v4860 = vpack.c.b16 %v3120, %v3116
        %v4861 = vpack.c.b16 %v3121, %v3117
        %v4862 = vpack.c.b16 %v3126, %v3122
        %v4863 = vpack.c.b16 %v3127, %v3123
        %v4864 = vpack.c.b16 %v3128, %v3124
        %v4865 = vpack.c.b16 %v3129, %v3125
        %v4866 = vpack.c.b16 %v3134, %v3130
        %v4867 = vpack.c.b16 %v3135, %v3131
        %v4868 = vpack.c.b16 %v3136, %v3132
        %v4869 = vpack.c.b16 %v3137, %v3133
        %v4870 = vpack.c.b16 %v3142, %v3138
        %v4871 = vpack.c.b16 %v3143, %v3139
        %v4872 = vpack.c.b16 %v3144, %v3140
        %v4873 = vpack.c.b16 %v3145, %v3141
        %v4874 = vpack.c.b16 %v3150, %v3146
        %v4875 = vpack.c.b16 %v3151, %v3147
        %v4876 = vpack.c.b16 %v3152, %v3148
        %v4877 = vpack.c.b16 %v3153, %v3149
        %v4878 = vpack.c.b16 %v3158, %v3154
        %v4879 = vpack.c.b16 %v3159, %v3155
        %v4880 = vpack.c.b16 %v3160, %v3156
        %v4881 = vpack.c.b16 %v3161, %v3157
        %v4882 = vpack.c.b16 %v3166, %v3162
        %v4883 = vpack.c.b16 %v3167, %v3163
        %v4884 = vpack.c.b16 %v3168, %v3164
        %v4885 = vpack.c.b16 %v3169, %v3165
        %v4886 = vpack.c.b16 %v3174, %v3170
        %v4887 = vpack.c.b16 %v3175, %v3171
        %v4888 = vpack.c.b16 %v3176, %v3172
        %v4889 = vpack.c.b16 %v3177, %v3173
        %v4890 = vpack.c.b16 %v3182, %v3178
        %v4891 = vpack.c.b16 %v3183, %v3179
        %v4892 = vpack.c.b16 %v3184, %v3180
        %v4893 = vpack.c.b16 %v3185, %v3181
        %v4894 = vpack.c.b16 %v3190, %v3186
        %v4895 = vpack.c.b16 %v3191, %v3187
        %v4896 = vpack.c.b16 %v3192, %v3188
        %v4897 = vpack.c.b16 %v3193, %v3189
        %v4898 = vpack.c.b16 %v3198, %v3194
        %v4899 = vpack.c.b16 %v3199, %v3195
        %v4900 = vpack.c.b16 %v3200, %v3196
        %v4901 = vpack.c.b16 %v3201, %v3197
        %v4902 = vpack.c.b16 %v3206, %v3202
        %v4903 = vpack.c.b16 %v3207, %v3203
        %v4904 = vpack.c.b16 %v3208, %v3204
        %v4905 = vpack.c.b16 %v3209, %v3205
        %v4906 = vpack.c.b16 %v3214, %v3210
        %v4907 = vpack.c.b16 %v3215, %v3211
        %v4908 = vpack.c.b16 %v3216, %v3212
        %v4909 = vpack.c.b16 %v3217, %v3213
        %v4910 = vpack.c.b16 %v3222, %v3218
        %v4911 = vpack.c.b16 %v3223, %v3219
        %v4912 = vpack.c.b16 %v3224, %v3220
        %v4913 = vpack.c.b16 %v3225, %v3221
        %v4914 = vpack.c.b16 %v3230, %v3226
        %v4915 = vpack.c.b16 %v3231, %v3227
        %v4916 = vpack.c.b16 %v3232, %v3228
        %v4917 = vpack.c.b16 %v3233, %v3229
        %v4918 = vpack.c.b16 %v3238, %v3234
        %v4919 = vpack.c.b16 %v3239, %v3235
        %v4920 = vpack.c.b16 %v3240, %v3236
        %v4921 = vpack.c.b16 %v3241, %v3237
        %v4922 = vpack.c.b16 %v3246, %v3242
        %v4923 = vpack.c.b16 %v3247, %v3243
        %v4924 = vpack.c.b16 %v3248, %v3244
        %v4925 = vpack.c.b16 %v3249, %v3245
        %v4926 = vpack.c.b16 %v3254, %v3250
        %v4927 = vpack.c.b16 %v3255, %v3251
        %v4928 = vpack.c.b16 %v3256, %v3252
        %v4929 = vpack.c.b16 %v3257, %v3253
        %v4930 = vpack.c.b16 %v3262, %v3258
        %v4931 = vpack.c.b16 %v3263, %v3259
        %v4932 = vpack.c.b16 %v3264, %v3260
        %v4933 = vpack.c.b16 %v3265, %v3261
        %v4934 = vpack.c.b16 %v3270, %v3266
        %v4935 = vpack.c.b16 %v3271, %v3267
        %v4936 = vpack.c.b16 %v3272, %v3268
        %v4937 = vpack.c.b16 %v3273, %v3269
        %v4938 = vpack.c.b16 %v3278, %v3274
        %v4939 = vpack.c.b16 %v3279, %v3275
        %v4940 = vpack.c.b16 %v3280, %v3276
        %v4941 = vpack.c.b16 %v3281, %v3277
        %v4942 = vpack.c.b16 %v3286, %v3282
        %v4943 = vpack.c.b16 %v3287, %v3283
        %v4944 = vpack.c.b16 %v3288, %v3284
        %v4945 = vpack.c.b16 %v3289, %v3285
        %v4946 = vpack.c.b16 %v3294, %v3290
        %v4947 = vpack.c.b16 %v3295, %v3291
        %v4948 = vpack.c.b16 %v3296, %v3292
        %v4949 = vpack.c.b16 %v3297, %v3293
        %v4950 = vpack.c.b16 %v3302, %v3298
        %v4951 = vpack.c.b16 %v3303, %v3299
        %v4952 = vpack.c.b16 %v3304, %v3300
        %v4953 = vpack.c.b16 %v3305, %v3301
        %v4954 = vpack.c.b16 %v3310, %v3306
        %v4955 = vpack.c.b16 %v3311, %v3307
        %v4956 = vpack.c.b16 %v3312, %v3308
        %v4957 = vpack.c.b16 %v3313, %v3309
        %v4958 = vpack.c.b16 %v3318, %v3314
        %v4959 = vpack.c.b16 %v3319, %v3315
        %v4960 = vpack.c.b16 %v3320, %v3316
        %v4961 = vpack.c.b16 %v3321, %v3317
        %v4962 = vpack.c.b16 %v3326, %v3322
        %v4963 = vpack.c.b16 %v3327, %v3323
        %v4964 = vpack.c.b16 %v3328, %v3324
        %v4965 = vpack.c.b16 %v3329, %v3325
        %v4966 = vpack.c.b16 %v3334, %v3330
        %v4967 = vpack.c.b16 %v3335, %v3331
        %v4968 = vpack.c.b16 %v3336, %v3332
        %v4969 = vpack.c.b16 %v3337, %v3333
        %v4970 = vpack.c.b16 %v3342, %v3338
        %v4971 = vpack.c.b16 %v3343, %v3339
        %v4972 = vpack.c.b16 %v3344, %v3340
        %v4973 = vpack.c.b16 %v3345, %v3341
        %v4974 = vpack.c.b16 %v3350, %v3346
        %v4975 = vpack.c.b16 %v3351, %v3347
        %v4976 = vpack.c.b16 %v3352, %v3348
        %v4977 = vpack.c.b16 %v3353, %v3349
        %v4978 = vpack.c.b16 %v3358, %v3354
        %v4979 = vpack.c.b16 %v3359, %v3355
        %v4980 = vpack.c.b16 %v3360, %v3356
        %v4981 = vpack.c.b16 %v3361, %v3357
        %v4982 = vpack.c.b16 %v3366, %v3362
        %v4983 = vpack.c.b16 %v3367, %v3363
        %v4984 = vpack.c.b16 %v3368, %v3364
        %v4985 = vpack.c.b16 %v3369, %v3365
        %v4986 = vpack.c.b16 %v3374, %v3370
        %v4987 = vpack.c.b16 %v3375, %v3371
        %v4988 = vpack.c.b16 %v3376, %v3372
        %v4989 = vpack.c.b16 %v3377, %v3373
        %v4990 = vpack.c.b16 %v3382, %v3378
        %v4991 = vpack.c.b16 %v3383, %v3379
        %v4992 = vpack.c.b16 %v3384, %v3380
        %v4993 = vpack.c.b16 %v3385, %v3381
        %v4994 = vpack.c.b16 %v3390, %v3386
        %v4995 = vpack.c.b16 %v3391, %v3387
        %v4996 = vpack.c.b16 %v3392, %v3388
        %v4997 = vpack.c.b16 %v3393, %v3389
        %v4998 = vpack.c.b16 %v3398, %v3394
        %v4999 = vpack.c.b16 %v3399, %v3395
        %v5000 = vpack.c.b16 %v3400, %v3396
        %v5001 = vpack.c.b16 %v3401, %v3397
        %v5002 = vpack.c.b16 %v3406, %v3402
        %v5003 = vpack.c.b16 %v3407, %v3403
        %v5004 = vpack.c.b16 %v3408, %v3404
        %v5005 = vpack.c.b16 %v3409, %v3405
        %v5006 = vpack.c.b16 %v3414, %v3410
        %v5007 = vpack.c.b16 %v3415, %v3411
        %v5008 = vpack.c.b16 %v3416, %v3412
        %v5009 = vpack.c.b16 %v3417, %v3413
        %v5010 = vpack.c.b16 %v3422, %v3418
        %v5011 = vpack.c.b16 %v3423, %v3419
        %v5012 = vpack.c.b16 %v3424, %v3420
        %v5013 = vpack.c.b16 %v3425, %v3421
        %v5014 = vpack.c.b16 %v3430, %v3426
        %v5015 = vpack.c.b16 %v3431, %v3427
        %v5016 = vpack.c.b16 %v3432, %v3428
        %v5017 = vpack.c.b16 %v3433, %v3429
        %v5018 = vpack.c.b16 %v3438, %v3434
        %v5019 = vpack.c.b16 %v3439, %v3435
        %v5020 = vpack.c.b16 %v3440, %v3436
        %v5021 = vpack.c.b16 %v3441, %v3437
        %v5022 = vpack.c.b16 %v3446, %v3442
        %v5023 = vpack.c.b16 %v3447, %v3443
        %v5024 = vpack.c.b16 %v3448, %v3444
        %v5025 = vpack.c.b16 %v3449, %v3445
        %v5026 = vpack.c.b16 %v3454, %v3450
        %v5027 = vpack.c.b16 %v3455, %v3451
        %v5028 = vpack.c.b16 %v3456, %v3452
        %v5029 = vpack.c.b16 %v3457, %v3453
        %v5030 = vpack.c.b16 %v3462, %v3458
        %v5031 = vpack.c.b16 %v3463, %v3459
        %v5032 = vpack.c.b16 %v3464, %v3460
        %v5033 = vpack.c.b16 %v3465, %v3461
        %v5034 = vpack.c.b16 %v3470, %v3466
        %v5035 = vpack.c.b16 %v3471, %v3467
        %v5036 = vpack.c.b16 %v3472, %v3468
        %v5037 = vpack.c.b16 %v3473, %v3469
        %v5038 = vpack.c.b16 %v3478, %v3474
        %v5039 = vpack.c.b16 %v3479, %v3475
        %v5040 = vpack.c.b16 %v3480, %v3476
        %v5041 = vpack.c.b16 %v3481, %v3477
        %v5042 = vpack.c.b16 %v3486, %v3482
        %v5043 = vpack.c.b16 %v3487, %v3483
        %v5044 = vpack.c.b16 %v3488, %v3484
        %v5045 = vpack.c.b16 %v3489, %v3485
        %v5046 = vpack.c.b16 %v3494, %v3490
        %v5047 = vpack.c.b16 %v3495, %v3491
        %v5048 = vpack.c.b16 %v3496, %v3492
        %v5049 = vpack.c.b16 %v3497, %v3493
        %v5050 = vpack.c.b16 %v3502, %v3498
        %v5051 = vpack.c.b16 %v3503, %v3499
        %v5052 = vpack.c.b16 %v3504, %v3500
        %v5053 = vpack.c.b16 %v3505, %v3501
        %v5054 = vpack.c.b16 %v3510, %v3506
        %v5055 = vpack.c.b16 %v3511, %v3507
        %v5056 = vpack.c.b16 %v3512, %v3508
        %v5057 = vpack.c.b16 %v3513, %v3509
        %v5058 = vpack.c.b16 %v3518, %v3514
        %v5059 = vpack.c.b16 %v3519, %v3515
        %v5060 = vpack.c.b16 %v3520, %v3516
        %v5061 = vpack.c.b16 %v3521, %v3517
        %v5062 = vpack.c.b16 %v3526, %v3522
        %v5063 = vpack.c.b16 %v3527, %v3523
        %v5064 = vpack.c.b16 %v3528, %v3524
        %v5065 = vpack.c.b16 %v3529, %v3525
        %v5066 = vpack.c.b16 %v3534, %v3530
        %v5067 = vpack.c.b16 %v3535, %v3531
        %v5068 = vpack.c.b16 %v3536, %v3532
        %v5069 = vpack.c.b16 %v3537, %v3533
        %v5070 = vpack.c.b16 %v3542, %v3538
        %v5071 = vpack.c.b16 %v3543, %v3539
        %v5072 = vpack.c.b16 %v3544, %v3540
        %v5073 = vpack.c.b16 %v3545, %v3541
        %v5074 = vpack.c.b16 %v3550, %v3546
        %v5075 = vpack.c.b16 %v3551, %v3547
        %v5076 = vpack.c.b16 %v3552, %v3548
        %v5077 = vpack.c.b16 %v3553, %v3549
        %v5078 = vpack.c.b16 %v3558, %v3554
        %v5079 = vpack.c.b16 %v3559, %v3555
        %v5080 = vpack.c.b16 %v3560, %v3556
        %v5081 = vpack.c.b16 %v3561, %v3557
        %v5082 = vpack.c.b16 %v3566, %v3562
        %v5083 = vpack.c.b16 %v3567, %v3563
        %v5084 = vpack.c.b16 %v3568, %v3564
        %v5085 = vpack.c.b16 %v3569, %v3565
        %v5086 = vpack.c.b16 %v3574, %v3570
        %v5087 = vpack.c.b16 %v3575, %v3571
        %v5088 = vpack.c.b16 %v3576, %v3572
        %v5089 = vpack.c.b16 %v3577, %v3573
        %v5090 = vpack.c.b16 %v3582, %v3578
        %v5091 = vpack.c.b16 %v3583, %v3579
        %v5092 = vpack.c.b16 %v3584, %v3580
        %v5093 = vpack.c.b16 %v3585, %v3581
        %v5094 = vpack.c.b16 %v3590, %v3586
        %v5095 = vpack.c.b16 %v3591, %v3587
        %v5096 = vpack.c.b16 %v3592, %v3588
        %v5097 = vpack.c.b16 %v3593, %v3589
        %v5098 = vpack.c.b16 %v3598, %v3594
        %v5099 = vpack.c.b16 %v3599, %v3595
        %v5100 = vpack.c.b16 %v3600, %v3596
        %v5101 = vpack.c.b16 %v3601, %v3597
        %v5102 = vpack.c.b16 %v3606, %v3602
        %v5103 = vpack.c.b16 %v3607, %v3603
        %v5104 = vpack.c.b16 %v3608, %v3604
        %v5105 = vpack.c.b16 %v3609, %v3605
        %v5106 = vpack.c.b16 %v3614, %v3610
        %v5107 = vpack.c.b16 %v3615, %v3611
        %v5108 = vpack.c.b16 %v3616, %v3612
        %v5109 = vpack.c.b16 %v3617, %v3613
        %v5110 = vpack.c.b16 %v3622, %v3618
        %v5111 = vpack.c.b16 %v3623, %v3619
        %v5112 = vpack.c.b16 %v3624, %v3620
        %v5113 = vpack.c.b16 %v3625, %v3621
        %v5114 = vpack.c.b16 %v3630, %v3626
        %v5115 = vpack.c.b16 %v3631, %v3627
        %v5116 = vpack.c.b16 %v3632, %v3628
        %v5117 = vpack.c.b16 %v3633, %v3629
        %v5118 = vpack.c.b16 %v3638, %v3634
        %v5119 = vpack.c.b16 %v3639, %v3635
        %v5120 = vpack.c.b16 %v3640, %v3636
        %v5121 = vpack.c.b16 %v3641, %v3637
        %v5122 = vpack.c.b16 %v3646, %v3642
        %v5123 = vpack.c.b16 %v3647, %v3643
        %v5124 = vpack.c.b16 %v3648, %v3644
        %v5125 = vpack.c.b16 %v3649, %v3645
        %v5126 = vpack.c.b16 %v3654, %v3650
        %v5127 = vpack.c.b16 %v3655, %v3651
        %v5128 = vpack.c.b16 %v3656, %v3652
        %v5129 = vpack.c.b16 %v3657, %v3653
        %v5130 = vpack.c.b16 %v3662, %v3658
        %v5131 = vpack.c.b16 %v3663, %v3659
        %v5132 = vpack.c.b16 %v3664, %v3660
        %v5133 = vpack.c.b16 %v3665, %v3661
        %v5134 = vpack.c.b16 %v3670, %v3666
        %v5135 = vpack.c.b16 %v3671, %v3667
        %v5136 = vpack.c.b16 %v3672, %v3668
        %v5137 = vpack.c.b16 %v3673, %v3669
        %v5138 = vpack.c.b16 %v3678, %v3674
        %v5139 = vpack.c.b16 %v3679, %v3675
        %v5140 = vpack.c.b16 %v3680, %v3676
        %v5141 = vpack.c.b16 %v3681, %v3677
        %v5142 = vpack.c.b16 %v3686, %v3682
        %v5143 = vpack.c.b16 %v3687, %v3683
        %v5144 = vpack.c.b16 %v3688, %v3684
        %v5145 = vpack.c.b16 %v3689, %v3685
        %v5146 = vpack.c.b16 %v3694, %v3690
        %v5147 = vpack.c.b16 %v3695, %v3691
        %v5148 = vpack.c.b16 %v3696, %v3692
        %v5149 = vpack.c.b16 %v3697, %v3693
        %v5150 = vpack.c.b16 %v3702, %v3698
        %v5151 = vpack.c.b16 %v3703, %v3699
        %v5152 = vpack.c.b16 %v3704, %v3700
        %v5153 = vpack.c.b16 %v3705, %v3701
        %v5154 = vpack.c.b16 %v3710, %v3706
        %v5155 = vpack.c.b16 %v3711, %v3707
        %v5156 = vpack.c.b16 %v3712, %v3708
        %v5157 = vpack.c.b16 %v3713, %v3709
        %v5158 = vpack.c.b16 %v3718, %v3714
        %v5159 = vpack.c.b16 %v3719, %v3715
        %v5160 = vpack.c.b16 %v3720, %v3716
        %v5161 = vpack.c.b16 %v3721, %v3717
        %v5162 = vpack.c.b16 %v3726, %v3722
        %v5163 = vpack.c.b16 %v3727, %v3723
        %v5164 = vpack.c.b16 %v3728, %v3724
        %v5165 = vpack.c.b16 %v3729, %v3725
        %v5166 = vpack.c.b16 %v3734, %v3730
        %v5167 = vpack.c.b16 %v3735, %v3731
        %v5168 = vpack.c.b16 %v3736, %v3732
        %v5169 = vpack.c.b16 %v3737, %v3733
        %v5170 = vpack.c.b16 %v3742, %v3738
        %v5171 = vpack.c.b16 %v3743, %v3739
        %v5172 = vpack.c.b16 %v3744, %v3740
        %v5173 = vpack.c.b16 %v3745, %v3741
        %v5174 = vpack.c.b16 %v3750, %v3746
        %v5175 = vpack.c.b16 %v3751, %v3747
        %v5176 = vpack.c.b16 %v3752, %v3748
        %v5177 = vpack.c.b16 %v3753, %v3749
        %v5178 = vpack.c.b16 %v3758, %v3754
        %v5179 = vpack.c.b16 %v3759, %v3755
        %v5180 = vpack.c.b16 %v3760, %v3756
        %v5181 = vpack.c.b16 %v3761, %v3757
        %v5182 = vpack.c.b16 %v3766, %v3762
        %v5183 = vpack.c.b16 %v3767, %v3763
        %v5184 = vpack.c.b16 %v3768, %v3764
        %v5185 = vpack.c.b16 %v3769, %v3765
        %v5186 = vpack.c.b16 %v3774, %v3770
        %v5187 = vpack.c.b16 %v3775, %v3771
        %v5188 = vpack.c.b16 %v3776, %v3772
        %v5189 = vpack.c.b16 %v3777, %v3773
        %v5190 = vpack.c.b16 %v3782, %v3778
        %v5191 = vpack.c.b16 %v3783, %v3779
        %v5192 = vpack.c.b16 %v3784, %v3780
        %v5193 = vpack.c.b16 %v3785, %v3781
        %v5194 = vpack.c.b16 %v3790, %v3786
        %v5195 = vpack.c.b16 %v3791, %v3787
        %v5196 = vpack.c.b16 %v3792, %v3788
        %v5197 = vpack.c.b16 %v3793, %v3789
        %v5198 = vpack.c.b16 %v3798, %v3794
        %v5199 = vpack.c.b16 %v3799, %v3795
        %v5200 = vpack.c.b16 %v3800, %v3796
        %v5201 = vpack.c.b16 %v3801, %v3797
        %v5202 = vpack.c.b16 %v3806, %v3802
        %v5203 = vpack.c.b16 %v3807, %v3803
        %v5204 = vpack.c.b16 %v3808, %v3804
        %v5205 = vpack.c.b16 %v3809, %v3805
        %v5206 = vpack.c.b16 %v3814, %v3810
        %v5207 = vpack.c.b16 %v3815, %v3811
        %v5208 = vpack.c.b16 %v3816, %v3812
        %v5209 = vpack.c.b16 %v3817, %v3813
        %v5210 = vpack.c.b16 %v3822, %v3818
        %v5211 = vpack.c.b16 %v3823, %v3819
        %v5212 = vpack.c.b16 %v3824, %v3820
        %v5213 = vpack.c.b16 %v3825, %v3821
        %v5214 = vpack.c.b16 %v3830, %v3826
        %v5215 = vpack.c.b16 %v3831, %v3827
        %v5216 = vpack.c.b16 %v3832, %v3828
        %v5217 = vpack.c.b16 %v3833, %v3829
        %v5218 = vpack.c.b16 %v3838, %v3834
        %v5219 = vpack.c.b16 %v3839, %v3835
        %v5220 = vpack.c.b16 %v3840, %v3836
        %v5221 = vpack.c.b16 %v3841, %v3837
        %v5222 = vpack.c.b16 %v3846, %v3842
        %v5223 = vpack.c.b16 %v3847, %v3843
        %v5224 = vpack.c.b16 %v3848, %v3844
        %v5225 = vpack.c.b16 %v3849, %v3845
        %v5226 = vpack.c.b16 %v3854, %v3850
        %v5227 = vpack.c.b16 %v3855, %v3851
        %v5228 = vpack.c.b16 %v3856, %v3852
        %v5229 = vpack.c.b16 %v3857, %v3853
        %v5230 = vpack.c.b16 %v3862, %v3858
        %v5231 = vpack.c.b16 %v3863, %v3859
        %v5232 = vpack.c.b16 %v3864, %v3860
        %v5233 = vpack.c.b16 %v3865, %v3861
        %v5234 = vpack.c.b16 %v3870, %v3866
        %v5235 = vpack.c.b16 %v3871, %v3867
        %v5236 = vpack.c.b16 %v3872, %v3868
        %v5237 = vpack.c.b16 %v3873, %v3869
        %v5238 = vpack.c.b16 %v3878, %v3874
        %v5239 = vpack.c.b16 %v3879, %v3875
        %v5240 = vpack.c.b16 %v3880, %v3876
        %v5241 = vpack.c.b16 %v3881, %v3877
        %v5242 = vpack.c.b16 %v3886, %v3882
        %v5243 = vpack.c.b16 %v3887, %v3883
        %v5244 = vpack.c.b16 %v3888, %v3884
        %v5245 = vpack.c.b16 %v3889, %v3885
        %v5246 = vpack.c.b16 %v3894, %v3890
        %v5247 = vpack.c.b16 %v3895, %v3891
        %v5248 = vpack.c.b16 %v3896, %v3892
        %v5249 = vpack.c.b16 %v3897, %v3893
        %v5250 = vpack.c.b16 %v3902, %v3898
        %v5251 = vpack.c.b16 %v3903, %v3899
        %v5252 = vpack.c.b16 %v3904, %v3900
        %v5253 = vpack.c.b16 %v3905, %v3901
        %v5254 = vpack.c.b16 %v3910, %v3906
        %v5255 = vpack.c.b16 %v3911, %v3907
        %v5256 = vpack.c.b16 %v3912, %v3908
        %v5257 = vpack.c.b16 %v3913, %v3909
        %v5258 = vpack.c.b16 %v3918, %v3914
        %v5259 = vpack.c.b16 %v3919, %v3915
        %v5260 = vpack.c.b16 %v3920, %v3916
        %v5261 = vpack.c.b16 %v3921, %v3917
        %v5262 = vpack.c.b16 %v3926, %v3922
        %v5263 = vpack.c.b16 %v3927, %v3923
        %v5264 = vpack.c.b16 %v3928, %v3924
        %v5265 = vpack.c.b16 %v3929, %v3925
        %v5266 = vpack.c.b16 %v3934, %v3930
        %v5267 = vpack.c.b16 %v3935, %v3931
        %v5268 = vpack.c.b16 %v3936, %v3932
        %v5269 = vpack.c.b16 %v3937, %v3933
        %v5270 = vpack.c.b16 %v3942, %v3938
        %v5271 = vpack.c.b16 %v3943, %v3939
        %v5272 = vpack.c.b16 %v3944, %v3940
        %v5273 = vpack.c.b16 %v3945, %v3941
        %v5274 = vpack.c.b16 %v3950, %v3946
        %v5275 = vpack.c.b16 %v3951, %v3947
        %v5276 = vpack.c.b16 %v3952, %v3948
        %v5277 = vpack.c.b16 %v3953, %v3949
        %v5278 = vpack.c.b16 %v3958, %v3954
        %v5279 = vpack.c.b16 %v3959, %v3955
        %v5280 = vpack.c.b16 %v3960, %v3956
        %v5281 = vpack.c.b16 %v3961, %v3957
        %v5282 = vpack.c.b16 %v3966, %v3962
        %v5283 = vpack.c.b16 %v3967, %v3963
        %v5284 = vpack.c.b16 %v3968, %v3964
        %v5285 = vpack.c.b16 %v3969, %v3965
        %v5286 = vpack.c.b16 %v3974, %v3970
        %v5287 = vpack.c.b16 %v3975, %v3971
        %v5288 = vpack.c.b16 %v3976, %v3972
        %v5289 = vpack.c.b16 %v3977, %v3973
        %v5290 = vpack.c.b16 %v3982, %v3978
        %v5291 = vpack.c.b16 %v3983, %v3979
        %v5292 = vpack.c.b16 %v3984, %v3980
        %v5293 = vpack.c.b16 %v3985, %v3981
        %v5294 = vpack.c.b16 %v3990, %v3986
        %v5295 = vpack.c.b16 %v3991, %v3987
        %v5296 = vpack.c.b16 %v3992, %v3988
        %v5297 = vpack.c.b16 %v3993, %v3989
        %v5298 = vpack.c.b16 %v3998, %v3994
        %v5299 = vpack.c.b16 %v3999, %v3995
        %v5300 = vpack.c.b16 %v4000, %v3996
        %v5301 = vpack.c.b16 %v4001, %v3997
        %v5302 = vpack.c.b16 %v4006, %v4002
        %v5303 = vpack.c.b16 %v4007, %v4003
        %v5304 = vpack.c.b16 %v4008, %v4004
        %v5305 = vpack.c.b16 %v4009, %v4005
        %v5306 = vpack.c.b16 %v4014, %v4010
        %v5307 = vpack.c.b16 %v4015, %v4011
        %v5308 = vpack.c.b16 %v4016, %v4012
        %v5309 = vpack.c.b16 %v4017, %v4013
        %v5310 = vpack.c.b16 %v4022, %v4018
        %v5311 = vpack.c.b16 %v4023, %v4019
        %v5312 = vpack.c.b16 %v4024, %v4020
        %v5313 = vpack.c.b16 %v4025, %v4021
        %v5314 = vpack.c.b16 %v4030, %v4026
        %v5315 = vpack.c.b16 %v4031, %v4027
        %v5316 = vpack.c.b16 %v4032, %v4028
        %v5317 = vpack.c.b16 %v4033, %v4029
        %v5318 = vpack.c.b16 %v4038, %v4034
        %v5319 = vpack.c.b16 %v4039, %v4035
        %v5320 = vpack.c.b16 %v4040, %v4036
        %v5321 = vpack.c.b16 %v4041, %v4037
        %v5322 = vpack.c.b16 %v4046, %v4042
        %v5323 = vpack.c.b16 %v4047, %v4043
        %v5324 = vpack.c.b16 %v4048, %v4044
        %v5325 = vpack.c.b16 %v4049, %v4045
        %v5326 = vpack.c.b16 %v4054, %v4050
        %v5327 = vpack.c.b16 %v4055, %v4051
        %v5328 = vpack.c.b16 %v4056, %v4052
        %v5329 = vpack.c.b16 %v4057, %v4053
        %v5330 = vpack.c.b16 %v4062, %v4058
        %v5331 = vpack.c.b16 %v4063, %v4059
        %v5332 = vpack.c.b16 %v4064, %v4060
        %v5333 = vpack.c.b16 %v4065, %v4061
        %v5334 = vpack.c.b16 %v4070, %v4066
        %v5335 = vpack.c.b16 %v4071, %v4067
        %v5336 = vpack.c.b16 %v4072, %v4068
        %v5337 = vpack.c.b16 %v4073, %v4069
        %v5338 = vpack.c.b16 %v4078, %v4074
        %v5339 = vpack.c.b16 %v4079, %v4075
        %v5340 = vpack.c.b16 %v4080, %v4076
        %v5341 = vpack.c.b16 %v4081, %v4077
        %v5342 = vpack.c.b16 %v4086, %v4082
        %v5343 = vpack.c.b16 %v4087, %v4083
        %v5344 = vpack.c.b16 %v4088, %v4084
        %v5345 = vpack.c.b16 %v4089, %v4085
        %v5346 = vpack.c.b16 %v4094, %v4090
        %v5347 = vpack.c.b16 %v4095, %v4091
        %v5348 = vpack.c.b16 %v4096, %v4092
        %v5349 = vpack.c.b16 %v4097, %v4093
        %v5350 = vpack.c.b16 %v4102, %v4098
        %v5351 = vpack.c.b16 %v4103, %v4099
        %v5352 = vpack.c.b16 %v4104, %v4100
        %v5353 = vpack.c.b16 %v4105, %v4101
        %v5354 = vpack.c.b16 %v4110, %v4106
        %v5355 = vpack.c.b16 %v4111, %v4107
        %v5356 = vpack.c.b16 %v4112, %v4108
        %v5357 = vpack.c.b16 %v4113, %v4109
        %v5358 = vpack.c.b16 %v4118, %v4114
        %v5359 = vpack.c.b16 %v4119, %v4115
        %v5360 = vpack.c.b16 %v4120, %v4116
        %v5361 = vpack.c.b16 %v4121, %v4117
        %v5362 = vpack.c.b16 %v4126, %v4122
        %v5363 = vpack.c.b16 %v4127, %v4123
        %v5364 = vpack.c.b16 %v4128, %v4124
        %v5365 = vpack.c.b16 %v4129, %v4125
        %v5366 = vpack.c.b16 %v4134, %v4130
        %v5367 = vpack.c.b16 %v4135, %v4131
        %v5368 = vpack.c.b16 %v4136, %v4132
        %v5369 = vpack.c.b16 %v4137, %v4133
        %v5370 = vpack.c.b16 %v4142, %v4138
        %v5371 = vpack.c.b16 %v4143, %v4139
        %v5372 = vpack.c.b16 %v4144, %v4140
        %v5373 = vpack.c.b16 %v4145, %v4141
        %v5374 = vpack.c.b16 %v4150, %v4146
        %v5375 = vpack.c.b16 %v4151, %v4147
        %v5376 = vpack.c.b16 %v4152, %v4148
        %v5377 = vpack.c.b16 %v4153, %v4149
        %v5378 = vpack.c.b16 %v4158, %v4154
        %v5379 = vpack.c.b16 %v4159, %v4155
        %v5380 = vpack.c.b16 %v4160, %v4156
        %v5381 = vpack.c.b16 %v4161, %v4157
        %v5382 = vpack.c.b16 %v4166, %v4162
        %v5383 = vpack.c.b16 %v4167, %v4163
        %v5384 = vpack.c.b16 %v4168, %v4164
        %v5385 = vpack.c.b16 %v4169, %v4165
        %v5386 = vpack.c.b16 %v4174, %v4170
        %v5387 = vpack.c.b16 %v4175, %v4171
        %v5388 = vpack.c.b16 %v4176, %v4172
        %v5389 = vpack.c.b16 %v4177, %v4173
        %v5390 = vpack.c.b16 %v4182, %v4178
        %v5391 = vpack.c.b16 %v4183, %v4179
        %v5392 = vpack.c.b16 %v4184, %v4180
        %v5393 = vpack.c.b16 %v4185, %v4181
        %v5394 = vpack.c.b16 %v4190, %v4186
        %v5395 = vpack.c.b16 %v4191, %v4187
        %v5396 = vpack.c.b16 %v4192, %v4188
        %v5397 = vpack.c.b16 %v4193, %v4189
        %v5398 = vpack.c.b16 %v4198, %v4194
        %v5399 = vpack.c.b16 %v4199, %v4195
        %v5400 = vpack.c.b16 %v4200, %v4196
        %v5401 = vpack.c.b16 %v4201, %v4197
        %v5402 = vpack.c.b16 %v4206, %v4202
        %v5403 = vpack.c.b16 %v4207, %v4203
        %v5404 = vpack.c.b16 %v4208, %v4204
        %v5405 = vpack.c.b16 %v4209, %v4205
        %v5406 = vpack.c.b16 %v4214, %v4210
        %v5407 = vpack.c.b16 %v4215, %v4211
        %v5408 = vpack.c.b16 %v4216, %v4212
        %v5409 = vpack.c.b16 %v4217, %v4213
        %v5410 = vpack.c.b16 %v4222, %v4218
        %v5411 = vpack.c.b16 %v4223, %v4219
        %v5412 = vpack.c.b16 %v4224, %v4220
        %v5413 = vpack.c.b16 %v4225, %v4221
        %v5414 = vpack.c.b16 %v4230, %v4226
        %v5415 = vpack.c.b16 %v4231, %v4227
        %v5416 = vpack.c.b16 %v4232, %v4228
        %v5417 = vpack.c.b16 %v4233, %v4229
        %v5418 = vpack.c.b16 %v4238, %v4234
        %v5419 = vpack.c.b16 %v4239, %v4235
        %v5420 = vpack.c.b16 %v4240, %v4236
        %v5421 = vpack.c.b16 %v4241, %v4237
        %v5422 = vpack.c.b16 %v4246, %v4242
        %v5423 = vpack.c.b16 %v4247, %v4243
        %v5424 = vpack.c.b16 %v4248, %v4244
        %v5425 = vpack.c.b16 %v4249, %v4245
        %v5426 = vpack.c.b16 %v4254, %v4250
        %v5427 = vpack.c.b16 %v4255, %v4251
        %v5428 = vpack.c.b16 %v4256, %v4252
        %v5429 = vpack.c.b16 %v4257, %v4253
        %v5430 = vpack.c.b16 %v4262, %v4258
        %v5431 = vpack.c.b16 %v4263, %v4259
        %v5432 = vpack.c.b16 %v4264, %v4260
        %v5433 = vpack.c.b16 %v4265, %v4261
        %v5434 = vpack.c.b16 %v4270, %v4266
        %v5435 = vpack.c.b16 %v4271, %v4267
        %v5436 = vpack.c.b16 %v4272, %v4268
        %v5437 = vpack.c.b16 %v4273, %v4269
        %v5438 = vpack.c.b16 %v4278, %v4274
        %v5439 = vpack.c.b16 %v4279, %v4275
        %v5440 = vpack.c.b16 %v4280, %v4276
        %v5441 = vpack.c.b16 %v4281, %v4277
        %v5442 = vpack.c.b16 %v4286, %v4282
        %v5443 = vpack.c.b16 %v4287, %v4283
        %v5444 = vpack.c.b16 %v4288, %v4284
        %v5445 = vpack.c.b16 %v4289, %v4285
        %v5446 = vpack.c.b16 %v4294, %v4290
        %v5447 = vpack.c.b16 %v4295, %v4291
        %v5448 = vpack.c.b16 %v4296, %v4292
        %v5449 = vpack.c.b16 %v4297, %v4293
        %v5450 = vpack.c.b16 %v4302, %v4298
        %v5451 = vpack.c.b16 %v4303, %v4299
        %v5452 = vpack.c.b16 %v4304, %v4300
        %v5453 = vpack.c.b16 %v4305, %v4301
        %v5454 = vpack.c.b16 %v4310, %v4306
        %v5455 = vpack.c.b16 %v4311, %v4307
        %v5456 = vpack.c.b16 %v4312, %v4308
        %v5457 = vpack.c.b16 %v4313, %v4309
        %v5458 = vpack.c.b16 %v4318, %v4314
        %v5459 = vpack.c.b16 %v4319, %v4315
        %v5460 = vpack.c.b16 %v4320, %v4316
        %v5461 = vpack.c.b16 %v4321, %v4317
        %v5462 = vpack.c.b16 %v4326, %v4322
        %v5463 = vpack.c.b16 %v4327, %v4323
        %v5464 = vpack.c.b16 %v4328, %v4324
        %v5465 = vpack.c.b16 %v4329, %v4325
        %v5466 = vpack.c.b16 %v4334, %v4330
        %v5467 = vpack.c.b16 %v4335, %v4331
        %v5468 = vpack.c.b16 %v4336, %v4332
        %v5469 = vpack.c.b16 %v4337, %v4333
        %v5470 = vpack.c.b16 %v4342, %v4338
        %v5471 = vpack.c.b16 %v4343, %v4339
        %v5472 = vpack.c.b16 %v4344, %v4340
        %v5473 = vpack.c.b16 %v4345, %v4341
        %v5474 = vpack.c.b16 %v4350, %v4346
        %v5475 = vpack.c.b16 %v4351, %v4347
        %v5476 = vpack.c.b16 %v4352, %v4348
        %v5477 = vpack.c.b16 %v4353, %v4349
        %v5478 = vpack.c.b16 %v4358, %v4354
        %v5479 = vpack.c.b16 %v4359, %v4355
        %v5480 = vpack.c.b16 %v4360, %v4356
        %v5481 = vpack.c.b16 %v4361, %v4357
        %v5482 = vpack.c.b16 %v4366, %v4362
        %v5483 = vpack.c.b16 %v4367, %v4363
        %v5484 = vpack.c.b16 %v4368, %v4364
        %v5485 = vpack.c.b16 %v4369, %v4365
        %v5486 = vpack.c.b16 %v4374, %v4370
        %v5487 = vpack.c.b16 %v4375, %v4371
        %v5488 = vpack.c.b16 %v4376, %v4372
        %v5489 = vpack.c.b16 %v4377, %v4373
        %v5490 = vpack.c.b16 %v4382, %v4378
        %v5491 = vpack.c.b16 %v4383, %v4379
        %v5492 = vpack.c.b16 %v4384, %v4380
        %v5493 = vpack.c.b16 %v4385, %v4381
        %v5494 = vpack.c.b16 %v4390, %v4386
        %v5495 = vpack.c.b16 %v4391, %v4387
        %v5496 = vpack.c.b16 %v4392, %v4388
        %v5497 = vpack.c.b16 %v4393, %v4389
        %v5498 = vpack.c.b16 %v4398, %v4394
        %v5499 = vpack.c.b16 %v4399, %v4395
        %v5500 = vpack.c.b16 %v4400, %v4396
        %v5501 = vpack.c.b16 %v4401, %v4397
        %v5502 = vpack.c.b16 %v4406, %v4402
        %v5503 = vpack.c.b16 %v4407, %v4403
        %v5504 = vpack.c.b16 %v4408, %v4404
        %v5505 = vpack.c.b16 %v4409, %v4405
        %v5506 = vpack.c.b16 %v4414, %v4410
        %v5507 = vpack.c.b16 %v4415, %v4411
        %v5508 = vpack.c.b16 %v4416, %v4412
        %v5509 = vpack.c.b16 %v4417, %v4413
        %v5510 = vpack.c.b16 %v4422, %v4418
        %v5511 = vpack.c.b16 %v4423, %v4419
        %v5512 = vpack.c.b16 %v4424, %v4420
        %v5513 = vpack.c.b16 %v4425, %v4421
        %v5514 = vpack.c.b16 %v4430, %v4426
        %v5515 = vpack.c.b16 %v4431, %v4427
        %v5516 = vpack.c.b16 %v4432, %v4428
        %v5517 = vpack.c.b16 %v4433, %v4429
        %v5518 = vpack.c.b16 %v4438, %v4434
        %v5519 = vpack.c.b16 %v4439, %v4435
        %v5520 = vpack.c.b16 %v4440, %v4436
        %v5521 = vpack.c.b16 %v4441, %v4437
        %v5522 = vpack.c.b16 %v4446, %v4442
        %v5523 = vpack.c.b16 %v4447, %v4443
        %v5524 = vpack.c.b16 %v4448, %v4444
        %v5525 = vpack.c.b16 %v4449, %v4445
        %v5526 = vpack.c.b16 %v4454, %v4450
        %v5527 = vpack.c.b16 %v4455, %v4451
        %v5528 = vpack.c.b16 %v4456, %v4452
        %v5529 = vpack.c.b16 %v4457, %v4453
        %v5530 = vpack.c.b16 %v4462, %v4458
        %v5531 = vpack.c.b16 %v4463, %v4459
        %v5532 = vpack.c.b16 %v4464, %v4460
        %v5533 = vpack.c.b16 %v4465, %v4461
        %v5534 = vpack.c.b16 %v4470, %v4466
        %v5535 = vpack.c.b16 %v4471, %v4467
        %v5536 = vpack.c.b16 %v4472, %v4468
        %v5537 = vpack.c.b16 %v4473, %v4469
        %v5538 = vpack.c.b16 %v4478, %v4474
        %v5539 = vpack.c.b16 %v4479, %v4475
        %v5540 = vpack.c.b16 %v4480, %v4476
        %v5541 = vpack.c.b16 %v4481, %v4477
        %v5542 = vpack.c.b16 %v4486, %v4482
        %v5543 = vpack.c.b16 %v4487, %v4483
        %v5544 = vpack.c.b16 %v4488, %v4484
        %v5545 = vpack.c.b16 %v4489, %v4485
        %v5546 = vpack.c.b16 %v4494, %v4490
        %v5547 = vpack.c.b16 %v4495, %v4491
        %v5548 = vpack.c.b16 %v4496, %v4492
        %v5549 = vpack.c.b16 %v4497, %v4493
        %v5550 = vpack.c.b16 %v4502, %v4498
        %v5551 = vpack.c.b16 %v4503, %v4499
        %v5552 = vpack.c.b16 %v4504, %v4500
        %v5553 = vpack.c.b16 %v4505, %v4501
        %v5554 = vpack.c.b16 %v4510, %v4506
        %v5555 = vpack.c.b16 %v4511, %v4507
        %v5556 = vpack.c.b16 %v4512, %v4508
        %v5557 = vpack.c.b16 %v4513, %v4509
        %v5558 = vpack.c.b16 %v4518, %v4514
        %v5559 = vpack.c.b16 %v4519, %v4515
        %v5560 = vpack.c.b16 %v4520, %v4516
        %v5561 = vpack.c.b16 %v4521, %v4517
        %v5562 = vpack.c.b16 %v4526, %v4522
        %v5563 = vpack.c.b16 %v4527, %v4523
        %v5564 = vpack.c.b16 %v4528, %v4524
        %v5565 = vpack.c.b16 %v4529, %v4525
        %v5566 = vpack.c.b16 %v4534, %v4530
        %v5567 = vpack.c.b16 %v4535, %v4531
        %v5568 = vpack.c.b16 %v4536, %v4532
        %v5569 = vpack.c.b16 %v4537, %v4533
        %v5570 = vpack.c.b16 %v4542, %v4538
        %v5571 = vpack.c.b16 %v4543, %v4539
        %v5572 = vpack.c.b16 %v4544, %v4540
        %v5573 = vpack.c.b16 %v4545, %v4541
        %v5574 = vpack.c.b16 %v4550, %v4546
        %v5575 = vpack.c.b16 %v4551, %v4547
        %v5576 = vpack.c.b16 %v4552, %v4548
        %v5577 = vpack.c.b16 %v4553, %v4549
        %6602 = vmatprep.subr.bf16.mxu0 %v4555
        %6603 = vmatpush1.bf16.msra.mxu0 %v4554
        %6604 = vmatprep.subr.bf16.mxu0 %v4559
        %6605 = vmatpush1.bf16.msra.mxu0 %v4558
        %6606 = vmatprep.subr.bf16.mxu0 %v4563
        %6607 = vmatpush1.bf16.msra.mxu0 %v4562
        %6608 = vmatprep.subr.bf16.mxu0 %v4567
        %6609 = vmatpush1.bf16.msra.mxu0 %v4566
        %6610 = vmatprep.subr.bf16.mxu0 %v4571
        %6611 = vmatpush1.bf16.msra.mxu0 %v4570
        %6612 = vmatprep.subr.bf16.mxu0 %v4575
        %6613 = vmatpush1.bf16.msra.mxu0 %v4574
        %6614 = vmatprep.subr.bf16.mxu0 %v4579
        %6615 = vmatpush1.bf16.msra.mxu0 %v4578
        %6616 = vmatprep.subr.bf16.mxu0 %v4583
        %6617 = vmatpush1.bf16.msra.mxu0 %v4582
        %6618 = vmatprep.subr.bf16.mxu0 %v4587
        %6619 = vmatpush1.bf16.msra.mxu0 %v4586
        %6620 = vmatprep.subr.bf16.mxu0 %v4591
        %6621 = vmatpush1.bf16.msra.mxu0 %v4590
        %6622 = vmatprep.subr.bf16.mxu0 %v4595
        %6623 = vmatpush1.bf16.msra.mxu0 %v4594
        %6624 = vmatprep.subr.bf16.mxu0 %v4599
        %6625 = vmatpush1.bf16.msra.mxu0 %v4598
        %6626 = vmatprep.subr.bf16.mxu0 %v4603
        %6627 = vmatpush1.bf16.msra.mxu0 %v4602
        %6628 = vmatprep.subr.bf16.mxu0 %v4607
        %6629 = vmatpush1.bf16.msra.mxu0 %v4606
        %6630 = vmatprep.subr.bf16.mxu0 %v4611
        %6631 = vmatpush1.bf16.msra.mxu0 %v4610
        %6632 = vmatprep.subr.bf16.mxu0 %v4615
        %6633 = vmatpush1.bf16.msra.mxu0 %v4614
        %6634 = vmatprep.mubr.bf16.mxu0 %v1419
        %6635 = vmatmul.mubr.bf16.gmra.mrb[0].mxu0 %v1418
        %v6636 = vpop.f32.mrb[0].mxu0
        %v6637 = vadd.f32 0.0, %v6636
        %v6638 = vpop.f32.mrb[0].mxu0
        %v6639 = vadd.f32 0.0, %v6638
        %v6640 = vpop.f32.mrb[0].mxu0
        %v6641 = vadd.f32 0.0, %v6640
        %v6642 = vpop.f32.mrb[0].mxu0
        %v6643 = vadd.f32 0.0, %v6642
        %6644 = vdwg.mxu0
        %6645 = vmatprep.subr.bf16.mxu0 %v4619
        %6646 = vmatpush1.bf16.msra.mxu0 %v4618
        %6647 = vmatprep.subr.bf16.mxu0 %v4623
        %6648 = vmatpush1.bf16.msra.mxu0 %v4622
        %6649 = vmatprep.subr.bf16.mxu0 %v4627
        %6650 = vmatpush1.bf16.msra.mxu0 %v4626
        %6651 = vmatprep.subr.bf16.mxu0 %v4631
        %6652 = vmatpush1.bf16.msra.mxu0 %v4630
        %6653 = vmatprep.subr.bf16.mxu0 %v4635
        %6654 = vmatpush1.bf16.msra.mxu0 %v4634
        %6655 = vmatprep.subr.bf16.mxu0 %v4639
        %6656 = vmatpush1.bf16.msra.mxu0 %v4638
        %6657 = vmatprep.subr.bf16.mxu0 %v4643
        %6658 = vmatpush1.bf16.msra.mxu0 %v4642
        %6659 = vmatprep.subr.bf16.mxu0 %v4647
        %6660 = vmatpush1.bf16.msra.mxu0 %v4646
        %6661 = vmatprep.subr.bf16.mxu0 %v4651
        %6662 = vmatpush1.bf16.msra.mxu0 %v4650
        %6663 = vmatprep.subr.bf16.mxu0 %v4655
        %6664 = vmatpush1.bf16.msra.mxu0 %v4654
        %6665 = vmatprep.subr.bf16.mxu0 %v4659
        %6666 = vmatpush1.bf16.msra.mxu0 %v4658
        %6667 = vmatprep.subr.bf16.mxu0 %v4663
        %6668 = vmatpush1.bf16.msra.mxu0 %v4662
        %6669 = vmatprep.subr.bf16.mxu0 %v4667
        %6670 = vmatpush1.bf16.msra.mxu0 %v4666
        %6671 = vmatprep.subr.bf16.mxu0 %v4671
        %6672 = vmatpush1.bf16.msra.mxu0 %v4670
        %6673 = vmatprep.subr.bf16.mxu0 %v4675
        %6674 = vmatpush1.bf16.msra.mxu0 %v4674
        %6675 = vmatprep.subr.bf16.mxu0 %v4679
        %6676 = vmatpush1.bf16.msra.mxu0 %v4678
        %6677 = vmatprep.mubr.bf16.mxu0 %v1421
        %6678 = vmatmul.mubr.bf16.gmra.mrb[0].mxu0 %v1420
        %v6679 = vpop.f32.mrb[0].mxu0
        %v6680 = vadd.f32 %v6637, %v6679
        %v6681 = vpop.f32.mrb[0].mxu0
        %v6682 = vadd.f32 %v6639, %v6681
        %v6683 = vpop.f32.mrb[0].mxu0
        %v6684 = vadd.f32 %v6641, %v6683
        %v6685 = vpop.f32.mrb[0].mxu0
        %v6686 = vadd.f32 %v6643, %v6685
        %6687 = vdwg.mxu0
        %6688 = vmatprep.subr.bf16.mxu0 %v4683
        %6689 = vmatpush1.bf16.msra.mxu0 %v4682
        %6690 = vmatprep.subr.bf16.mxu0 %v4687
        %6691 = vmatpush1.bf16.msra.mxu0 %v4686
        %6692 = vmatprep.subr.bf16.mxu0 %v4691
        %6693 = vmatpush1.bf16.msra.mxu0 %v4690
        %6694 = vmatprep.subr.bf16.mxu0 %v4695
        %6695 = vmatpush1.bf16.msra.mxu0 %v4694
        %6696 = vmatprep.subr.bf16.mxu0 %v4699
        %6697 = vmatpush1.bf16.msra.mxu0 %v4698
        %6698 = vmatprep.subr.bf16.mxu0 %v4703
        %6699 = vmatpush1.bf16.msra.mxu0 %v4702
        %6700 = vmatprep.subr.bf16.mxu0 %v4707
        %6701 = vmatpush1.bf16.msra.mxu0 %v4706
        %6702 = vmatprep.subr.bf16.mxu0 %v4711
        %6703 = vmatpush1.bf16.msra.mxu0 %v4710
        %6704 = vmatprep.subr.bf16.mxu0 %v4715
        %6705 = vmatpush1.bf16.msra.mxu0 %v4714
        %6706 = vmatprep.subr.bf16.mxu0 %v4719
        %6707 = vmatpush1.bf16.msra.mxu0 %v4718
        %6708 = vmatprep.subr.bf16.mxu0 %v4723
        %6709 = vmatpush1.bf16.msra.mxu0 %v4722
        %6710 = vmatprep.subr.bf16.mxu0 %v4727
        %6711 = vmatpush1.bf16.msra.mxu0 %v4726
        %6712 = vmatprep.subr.bf16.mxu0 %v4731
        %6713 = vmatpush1.bf16.msra.mxu0 %v4730
        %6714 = vmatprep.subr.bf16.mxu0 %v4735
        %6715 = vmatpush1.bf16.msra.mxu0 %v4734
        %6716 = vmatprep.subr.bf16.mxu0 %v4739
        %6717 = vmatpush1.bf16.msra.mxu0 %v4738
        %6718 = vmatprep.subr.bf16.mxu0 %v4743
        %6719 = vmatpush1.bf16.msra.mxu0 %v4742
        %6720 = vmatprep.mubr.bf16.mxu0 %v1423
        %6721 = vmatmul.mubr.bf16.gmra.mrb[0].mxu0 %v1422
        %v6722 = vpop.f32.mrb[0].mxu0
        %v6723 = vadd.f32 %v6680, %v6722
        %v6724 = vpop.f32.mrb[0].mxu0
        %v6725 = vadd.f32 %v6682, %v6724
        %v6726 = vpop.f32.mrb[0].mxu0
        %v6727 = vadd.f32 %v6684, %v6726
        %v6728 = vpop.f32.mrb[0].mxu0
        %v6729 = vadd.f32 %v6686, %v6728
        %6730 = vdwg.mxu0
        %6731 = vmatprep.subr.bf16.mxu0 %v4747
        %6732 = vmatpush1.bf16.msra.mxu0 %v4746
        %6733 = vmatprep.subr.bf16.mxu0 %v4751
        %6734 = vmatpush1.bf16.msra.mxu0 %v4750
        %6735 = vmatprep.subr.bf16.mxu0 %v4755
        %6736 = vmatpush1.bf16.msra.mxu0 %v4754
        %6737 = vmatprep.subr.bf16.mxu0 %v4759
        %6738 = vmatpush1.bf16.msra.mxu0 %v4758
        %6739 = vmatprep.subr.bf16.mxu0 %v4763
        %6740 = vmatpush1.bf16.msra.mxu0 %v4762
        %6741 = vmatprep.subr.bf16.mxu0 %v4767
        %6742 = vmatpush1.bf16.msra.mxu0 %v4766
        %6743 = vmatprep.subr.bf16.mxu0 %v4771
        %6744 = vmatpush1.bf16.msra.mxu0 %v4770
        %6745 = vmatprep.subr.bf16.mxu0 %v4775
        %6746 = vmatpush1.bf16.msra.mxu0 %v4774
        %6747 = vmatprep.subr.bf16.mxu0 %v4779
        %6748 = vmatpush1.bf16.msra.mxu0 %v4778
        %6749 = vmatprep.subr.bf16.mxu0 %v4783
        %6750 = vmatpush1.bf16.msra.mxu0 %v4782
        %6751 = vmatprep.subr.bf16.mxu0 %v4787
        %6752 = vmatpush1.bf16.msra.mxu0 %v4786
        %6753 = vmatprep.subr.bf16.mxu0 %v4791
        %6754 = vmatpush1.bf16.msra.mxu0 %v4790
        %6755 = vmatprep.subr.bf16.mxu0 %v4795
        %6756 = vmatpush1.bf16.msra.mxu0 %v4794
        %6757 = vmatprep.subr.bf16.mxu0 %v4799
        %6758 = vmatpush1.bf16.msra.mxu0 %v4798
        %6759 = vmatprep.subr.bf16.mxu0 %v4803
        %6760 = vmatpush1.bf16.msra.mxu0 %v4802
        %6761 = vmatprep.subr.bf16.mxu0 %v4807
        %6762 = vmatpush1.bf16.msra.mxu0 %v4806
        %6763 = vmatprep.mubr.bf16.mxu0 %v1425
        %6764 = vmatmul.mubr.bf16.gmra.mrb[0].mxu0 %v1424
        %v6765 = vpop.f32.mrb[0].mxu0
        %v6766 = vadd.f32 %v6723, %v6765
        %v6767 = vpop.f32.mrb[0].mxu0
        %v6768 = vadd.f32 %v6725, %v6767
        %v6769 = vpop.f32.mrb[0].mxu0
        %v6770 = vadd.f32 %v6727, %v6769
        %v6771 = vpop.f32.mrb[0].mxu0
        %v6772 = vadd.f32 %v6729, %v6771
        %6773 = vdwg.mxu0
        %6774 = vmatprep.subr.bf16.mxu0 %v4811
        %6775 = vmatpush1.bf16.msra.mxu0 %v4810
        %6776 = vmatprep.subr.bf16.mxu0 %v4815
        %6777 = vmatpush1.bf16.msra.mxu0 %v4814
        %6778 = vmatprep.subr.bf16.mxu0 %v4819
        %6779 = vmatpush1.bf16.msra.mxu0 %v4818
        %6780 = vmatprep.subr.bf16.mxu0 %v4823
        %6781 = vmatpush1.bf16.msra.mxu0 %v4822
        %6782 = vmatprep.subr.bf16.mxu0 %v4827
        %6783 = vmatpush1.bf16.msra.mxu0 %v4826
        %6784 = vmatprep.subr.bf16.mxu0 %v4831
        %6785 = vmatpush1.bf16.msra.mxu0 %v4830
        %6786 = vmatprep.subr.bf16.mxu0 %v4835
        %6787 = vmatpush1.bf16.msra.mxu0 %v4834
        %6788 = vmatprep.subr.bf16.mxu0 %v4839
        %6789 = vmatpush1.bf16.msra.mxu0 %v4838
        %6790 = vmatprep.subr.bf16.mxu0 %v4843
        %6791 = vmatpush1.bf16.msra.mxu0 %v4842
        %6792 = vmatprep.subr.bf16.mxu0 %v4847
        %6793 = vmatpush1.bf16.msra.mxu0 %v4846
        %6794 = vmatprep.subr.bf16.mxu0 %v4851
        %6795 = vmatpush1.bf16.msra.mxu0 %v4850
        %6796 = vmatprep.subr.bf16.mxu0 %v4855
        %6797 = vmatpush1.bf16.msra.mxu0 %v4854
        %6798 = vmatprep.subr.bf16.mxu0 %v4859
        %6799 = vmatpush1.bf16.msra.mxu0 %v4858
        %6800 = vmatprep.subr.bf16.mxu0 %v4863
        %6801 = vmatpush1.bf16.msra.mxu0 %v4862
        %6802 = vmatprep.subr.bf16.mxu0 %v4867
        %6803 = vmatpush1.bf16.msra.mxu0 %v4866
        %6804 = vmatprep.subr.bf16.mxu0 %v4871
        %6805 = vmatpush1.bf16.msra.mxu0 %v4870
        %6806 = vmatprep.mubr.bf16.mxu0 %v1427
        %6807 = vmatmul.mubr.bf16.gmra.mrb[0].mxu0 %v1426
        %v6808 = vpop.f32.mrb[0].mxu0
        %v6809 = vadd.f32 %v6766, %v6808
        %v6810 = vpop.f32.mrb[0].mxu0
        %v6811 = vadd.f32 %v6768, %v6810
        %v6812 = vpop.f32.mrb[0].mxu0
        %v6813 = vadd.f32 %v6770, %v6812
        %v6814 = vpop.f32.mrb[0].mxu0
        %v6815 = vadd.f32 %v6772, %v6814
        %6816 = vdwg.mxu0
        %6817 = vmatprep.subr.bf16.mxu0 %v4875
        %6818 = vmatpush1.bf16.msra.mxu0 %v4874
        %6819 = vmatprep.subr.bf16.mxu0 %v4879
        %6820 = vmatpush1.bf16.msra.mxu0 %v4878
        %6821 = vmatprep.subr.bf16.mxu0 %v4883
        %6822 = vmatpush1.bf16.msra.mxu0 %v4882
        %6823 = vmatprep.subr.bf16.mxu0 %v4887
        %6824 = vmatpush1.bf16.msra.mxu0 %v4886
        %6825 = vmatprep.subr.bf16.mxu0 %v4891
        %6826 = vmatpush1.bf16.msra.mxu0 %v4890
        %6827 = vmatprep.subr.bf16.mxu0 %v4895
        %6828 = vmatpush1.bf16.msra.mxu0 %v4894
        %6829 = vmatprep.subr.bf16.mxu0 %v4899
        %6830 = vmatpush1.bf16.msra.mxu0 %v4898
        %6831 = vmatprep.subr.bf16.mxu0 %v4903
        %6832 = vmatpush1.bf16.msra.mxu0 %v4902
        %6833 = vmatprep.subr.bf16.mxu0 %v4907
        %6834 = vmatpush1.bf16.msra.mxu0 %v4906
        %6835 = vmatprep.subr.bf16.mxu0 %v4911
        %6836 = vmatpush1.bf16.msra.mxu0 %v4910
        %6837 = vmatprep.subr.bf16.mxu0 %v4915
        %6838 = vmatpush1.bf16.msra.mxu0 %v4914
        %6839 = vmatprep.subr.bf16.mxu0 %v4919
        %6840 = vmatpush1.bf16.msra.mxu0 %v4918
        %6841 = vmatprep.subr.bf16.mxu0 %v4923
        %6842 = vmatpush1.bf16.msra.mxu0 %v4922
        %6843 = vmatprep.subr.bf16.mxu0 %v4927
        %6844 = vmatpush1.bf16.msra.mxu0 %v4926
        %6845 = vmatprep.subr.bf16.mxu0 %v4931
        %6846 = vmatpush1.bf16.msra.mxu0 %v4930
        %6847 = vmatprep.subr.bf16.mxu0 %v4935
        %6848 = vmatpush1.bf16.msra.mxu0 %v4934
        %6849 = vmatprep.mubr.bf16.mxu0 %v1429
        %6850 = vmatmul.mubr.bf16.gmra.mrb[0].mxu0 %v1428
        %v6851 = vpop.f32.mrb[0].mxu0
        %v6852 = vadd.f32 %v6809, %v6851
        %v6853 = vpop.f32.mrb[0].mxu0
        %v6854 = vadd.f32 %v6811, %v6853
        %v6855 = vpop.f32.mrb[0].mxu0
        %v6856 = vadd.f32 %v6813, %v6855
        %v6857 = vpop.f32.mrb[0].mxu0
        %v6858 = vadd.f32 %v6815, %v6857
        %6859 = vdwg.mxu0
        %6860 = vmatprep.subr.bf16.mxu0 %v4939
        %6861 = vmatpush1.bf16.msra.mxu0 %v4938
        %6862 = vmatprep.subr.bf16.mxu0 %v4943
        %6863 = vmatpush1.bf16.msra.mxu0 %v4942
        %6864 = vmatprep.subr.bf16.mxu0 %v4947
        %6865 = vmatpush1.bf16.msra.mxu0 %v4946
        %6866 = vmatprep.subr.bf16.mxu0 %v4951
        %6867 = vmatpush1.bf16.msra.mxu0 %v4950
        %6868 = vmatprep.subr.bf16.mxu0 %v4955
        %6869 = vmatpush1.bf16.msra.mxu0 %v4954
        %6870 = vmatprep.subr.bf16.mxu0 %v4959
        %6871 = vmatpush1.bf16.msra.mxu0 %v4958
        %6872 = vmatprep.subr.bf16.mxu0 %v4963
        %6873 = vmatpush1.bf16.msra.mxu0 %v4962
        %6874 = vmatprep.subr.bf16.mxu0 %v4967
        %6875 = vmatpush1.bf16.msra.mxu0 %v4966
        %6876 = vmatprep.subr.bf16.mxu0 %v4971
        %6877 = vmatpush1.bf16.msra.mxu0 %v4970
        %6878 = vmatprep.subr.bf16.mxu0 %v4975
        %6879 = vmatpush1.bf16.msra.mxu0 %v4974
        %6880 = vmatprep.subr.bf16.mxu0 %v4979
        %6881 = vmatpush1.bf16.msra.mxu0 %v4978
        %6882 = vmatprep.subr.bf16.mxu0 %v4983
        %6883 = vmatpush1.bf16.msra.mxu0 %v4982
        %6884 = vmatprep.subr.bf16.mxu0 %v4987
        %6885 = vmatpush1.bf16.msra.mxu0 %v4986
        %6886 = vmatprep.subr.bf16.mxu0 %v4991
        %6887 = vmatpush1.bf16.msra.mxu0 %v4990
        %6888 = vmatprep.subr.bf16.mxu0 %v4995
        %6889 = vmatpush1.bf16.msra.mxu0 %v4994
        %6890 = vmatprep.subr.bf16.mxu0 %v4999
        %6891 = vmatpush1.bf16.msra.mxu0 %v4998
        %6892 = vmatprep.mubr.bf16.mxu0 %v1431
        %6893 = vmatmul.mubr.bf16.gmra.mrb[0].mxu0 %v1430
        %v6894 = vpop.f32.mrb[0].mxu0
        %v6895 = vadd.f32 %v6852, %v6894
        %v6896 = vpop.f32.mrb[0].mxu0
        %v6897 = vadd.f32 %v6854, %v6896
        %v6898 = vpop.f32.mrb[0].mxu0
        %v6899 = vadd.f32 %v6856, %v6898
        %v6900 = vpop.f32.mrb[0].mxu0
        %v6901 = vadd.f32 %v6858, %v6900
        %6902 = vdwg.mxu0
        %6903 = vmatprep.subr.bf16.mxu0 %v5003
        %6904 = vmatpush1.bf16.msra.mxu0 %v5002
        %6905 = vmatprep.subr.bf16.mxu0 %v5007
        %6906 = vmatpush1.bf16.msra.mxu0 %v5006
        %6907 = vmatprep.subr.bf16.mxu0 %v5011
        %6908 = vmatpush1.bf16.msra.mxu0 %v5010
        %6909 = vmatprep.subr.bf16.mxu0 %v5015
        %6910 = vmatpush1.bf16.msra.mxu0 %v5014
        %6911 = vmatprep.subr.bf16.mxu0 %v5019
        %6912 = vmatpush1.bf16.msra.mxu0 %v5018
        %6913 = vmatprep.subr.bf16.mxu0 %v5023
        %6914 = vmatpush1.bf16.msra.mxu0 %v5022
        %6915 = vmatprep.subr.bf16.mxu0 %v5027
        %6916 = vmatpush1.bf16.msra.mxu0 %v5026
        %6917 = vmatprep.subr.bf16.mxu0 %v5031
        %6918 = vmatpush1.bf16.msra.mxu0 %v5030
        %6919 = vmatprep.subr.bf16.mxu0 %v5035
        %6920 = vmatpush1.bf16.msra.mxu0 %v5034
        %6921 = vmatprep.subr.bf16.mxu0 %v5039
        %6922 = vmatpush1.bf16.msra.mxu0 %v5038
        %6923 = vmatprep.subr.bf16.mxu0 %v5043
        %6924 = vmatpush1.bf16.msra.mxu0 %v5042
        %6925 = vmatprep.subr.bf16.mxu0 %v5047
        %6926 = vmatpush1.bf16.msra.mxu0 %v5046
        %6927 = vmatprep.subr.bf16.mxu0 %v5051
        %6928 = vmatpush1.bf16.msra.mxu0 %v5050
        %6929 = vmatprep.subr.bf16.mxu0 %v5055
        %6930 = vmatpush1.bf16.msra.mxu0 %v5054
        %6931 = vmatprep.subr.bf16.mxu0 %v5059
        %6932 = vmatpush1.bf16.msra.mxu0 %v5058
        %6933 = vmatprep.subr.bf16.mxu0 %v5063
        %6934 = vmatpush1.bf16.msra.mxu0 %v5062
        %6935 = vmatprep.mubr.bf16.mxu0 %v1433
        %6936 = vmatmul.mubr.bf16.gmra.mrb[0].mxu0 %v1432
        %v6937 = vpop.f32.mrb[0].mxu0
        %v6938 = vadd.f32 %v6895, %v6937
        %v6939 = vpop.f32.mrb[0].mxu0
        %v6940 = vadd.f32 %v6897, %v6939
        %v6941 = vpop.f32.mrb[0].mxu0
        %v6942 = vadd.f32 %v6899, %v6941
        %v6943 = vpop.f32.mrb[0].mxu0
        %v6944 = vadd.f32 %v6901, %v6943
        %6945 = vdwg.mxu0
        %6946 = vmatprep.subr.bf16.mxu0 %v5067
        %6947 = vmatpush1.bf16.msra.mxu0 %v5066
        %6948 = vmatprep.subr.bf16.mxu0 %v5071
        %6949 = vmatpush1.bf16.msra.mxu0 %v5070
        %6950 = vmatprep.subr.bf16.mxu0 %v5075
        %6951 = vmatpush1.bf16.msra.mxu0 %v5074
        %6952 = vmatprep.subr.bf16.mxu0 %v5079
        %6953 = vmatpush1.bf16.msra.mxu0 %v5078
        %6954 = vmatprep.subr.bf16.mxu0 %v5083
        %6955 = vmatpush1.bf16.msra.mxu0 %v5082
        %6956 = vmatprep.subr.bf16.mxu0 %v5087
        %6957 = vmatpush1.bf16.msra.mxu0 %v5086
        %6958 = vmatprep.subr.bf16.mxu0 %v5091
        %6959 = vmatpush1.bf16.msra.mxu0 %v5090
        %6960 = vmatprep.subr.bf16.mxu0 %v5095
        %6961 = vmatpush1.bf16.msra.mxu0 %v5094
        %6962 = vmatprep.subr.bf16.mxu0 %v5099
        %6963 = vmatpush1.bf16.msra.mxu0 %v5098
        %6964 = vmatprep.subr.bf16.mxu0 %v5103
        %6965 = vmatpush1.bf16.msra.mxu0 %v5102
        %6966 = vmatprep.subr.bf16.mxu0 %v5107
        %6967 = vmatpush1.bf16.msra.mxu0 %v5106
        %6968 = vmatprep.subr.bf16.mxu0 %v5111
        %6969 = vmatpush1.bf16.msra.mxu0 %v5110
        %6970 = vmatprep.subr.bf16.mxu0 %v5115
        %6971 = vmatpush1.bf16.msra.mxu0 %v5114
        %6972 = vmatprep.subr.bf16.mxu0 %v5119
        %6973 = vmatpush1.bf16.msra.mxu0 %v5118
        %6974 = vmatprep.subr.bf16.mxu0 %v5123
        %6975 = vmatpush1.bf16.msra.mxu0 %v5122
        %6976 = vmatprep.subr.bf16.mxu0 %v5127
        %6977 = vmatpush1.bf16.msra.mxu0 %v5126
        %6978 = vmatprep.mubr.bf16.mxu0 %v1435
        %6979 = vmatmul.mubr.bf16.gmra.mrb[0].mxu0 %v1434
        %v6980 = vpop.f32.mrb[0].mxu0
        %v6981 = vadd.f32 %v6938, %v6980
        %v6982 = vpop.f32.mrb[0].mxu0
        %v6983 = vadd.f32 %v6940, %v6982
        %v6984 = vpop.f32.mrb[0].mxu0
        %v6985 = vadd.f32 %v6942, %v6984
        %v6986 = vpop.f32.mrb[0].mxu0
        %v6987 = vadd.f32 %v6944, %v6986
        %6988 = vdwg.mxu0
        %6989 = vmatprep.subr.bf16.mxu0 %v5131
        %6990 = vmatpush1.bf16.msra.mxu0 %v5130
        %6991 = vmatprep.subr.bf16.mxu0 %v5135
        %6992 = vmatpush1.bf16.msra.mxu0 %v5134
        %6993 = vmatprep.subr.bf16.mxu0 %v5139
        %6994 = vmatpush1.bf16.msra.mxu0 %v5138
        %6995 = vmatprep.subr.bf16.mxu0 %v5143
        %6996 = vmatpush1.bf16.msra.mxu0 %v5142
        %6997 = vmatprep.subr.bf16.mxu0 %v5147
        %6998 = vmatpush1.bf16.msra.mxu0 %v5146
        %6999 = vmatprep.subr.bf16.mxu0 %v5151
        %7000 = vmatpush1.bf16.msra.mxu0 %v5150
        %7001 = vmatprep.subr.bf16.mxu0 %v5155
        %7002 = vmatpush1.bf16.msra.mxu0 %v5154
        %7003 = vmatprep.subr.bf16.mxu0 %v5159
        %7004 = vmatpush1.bf16.msra.mxu0 %v5158
        %7005 = vmatprep.subr.bf16.mxu0 %v5163
        %7006 = vmatpush1.bf16.msra.mxu0 %v5162
        %7007 = vmatprep.subr.bf16.mxu0 %v5167
        %7008 = vmatpush1.bf16.msra.mxu0 %v5166
        %7009 = vmatprep.subr.bf16.mxu0 %v5171
        %7010 = vmatpush1.bf16.msra.mxu0 %v5170
        %7011 = vmatprep.subr.bf16.mxu0 %v5175
        %7012 = vmatpush1.bf16.msra.mxu0 %v5174
        %7013 = vmatprep.subr.bf16.mxu0 %v5179
        %7014 = vmatpush1.bf16.msra.mxu0 %v5178
        %7015 = vmatprep.subr.bf16.mxu0 %v5183
        %7016 = vmatpush1.bf16.msra.mxu0 %v5182
        %7017 = vmatprep.subr.bf16.mxu0 %v5187
        %7018 = vmatpush1.bf16.msra.mxu0 %v5186
        %7019 = vmatprep.subr.bf16.mxu0 %v5191
        %7020 = vmatpush1.bf16.msra.mxu0 %v5190
        %7021 = vmatprep.mubr.bf16.mxu0 %v1437
        %7022 = vmatmul.mubr.bf16.gmra.mrb[0].mxu0 %v1436
        %v7023 = vpop.f32.mrb[0].mxu0
        %v7024 = vadd.f32 %v6981, %v7023
        %v7025 = vpop.f32.mrb[0].mxu0
        %v7026 = vadd.f32 %v6983, %v7025
        %v7027 = vpop.f32.mrb[0].mxu0
        %v7028 = vadd.f32 %v6985, %v7027
        %v7029 = vpop.f32.mrb[0].mxu0
        %v7030 = vadd.f32 %v6987, %v7029
        %7031 = vdwg.mxu0
        %7032 = vmatprep.subr.bf16.mxu0 %v5195
        %7033 = vmatpush1.bf16.msra.mxu0 %v5194
        %7034 = vmatprep.subr.bf16.mxu0 %v5199
        %7035 = vmatpush1.bf16.msra.mxu0 %v5198
        %7036 = vmatprep.subr.bf16.mxu0 %v5203
        %7037 = vmatpush1.bf16.msra.mxu0 %v5202
        %7038 = vmatprep.subr.bf16.mxu0 %v5207
        %7039 = vmatpush1.bf16.msra.mxu0 %v5206
        %7040 = vmatprep.subr.bf16.mxu0 %v5211
        %7041 = vmatpush1.bf16.msra.mxu0 %v5210
        %7042 = vmatprep.subr.bf16.mxu0 %v5215
        %7043 = vmatpush1.bf16.msra.mxu0 %v5214
        %7044 = vmatprep.subr.bf16.mxu0 %v5219
        %7045 = vmatpush1.bf16.msra.mxu0 %v5218
        %7046 = vmatprep.subr.bf16.mxu0 %v5223
        %7047 = vmatpush1.bf16.msra.mxu0 %v5222
        %7048 = vmatprep.subr.bf16.mxu0 %v5227
        %7049 = vmatpush1.bf16.msra.mxu0 %v5226
        %7050 = vmatprep.subr.bf16.mxu0 %v5231
        %7051 = vmatpush1.bf16.msra.mxu0 %v5230
        %7052 = vmatprep.subr.bf16.mxu0 %v5235
        %7053 = vmatpush1.bf16.msra.mxu0 %v5234
        %7054 = vmatprep.subr.bf16.mxu0 %v5239
        %7055 = vmatpush1.bf16.msra.mxu0 %v5238
        %7056 = vmatprep.subr.bf16.mxu0 %v5243
        %7057 = vmatpush1.bf16.msra.mxu0 %v5242
        %7058 = vmatprep.subr.bf16.mxu0 %v5247
        %7059 = vmatpush1.bf16.msra.mxu0 %v5246
        %7060 = vmatprep.subr.bf16.mxu0 %v5251
        %7061 = vmatpush1.bf16.msra.mxu0 %v5250
        %7062 = vmatprep.subr.bf16.mxu0 %v5255
        %7063 = vmatpush1.bf16.msra.mxu0 %v5254
        %7064 = vmatprep.mubr.bf16.mxu0 %v1439
        %7065 = vmatmul.mubr.bf16.gmra.mrb[0].mxu0 %v1438
        %v7066 = vpop.f32.mrb[0].mxu0
        %v7067 = vadd.f32 %v7024, %v7066
        %v7068 = vpop.f32.mrb[0].mxu0
        %v7069 = vadd.f32 %v7026, %v7068
        %v7070 = vpop.f32.mrb[0].mxu0
        %v7071 = vadd.f32 %v7028, %v7070
        %v7072 = vpop.f32.mrb[0].mxu0
        %v7073 = vadd.f32 %v7030, %v7072
        %7074 = vdwg.mxu0
        %7075 = vmatprep.subr.bf16.mxu0 %v5259
        %7076 = vmatpush1.bf16.msra.mxu0 %v5258
        %7077 = vmatprep.subr.bf16.mxu0 %v5263
        %7078 = vmatpush1.bf16.msra.mxu0 %v5262
        %7079 = vmatprep.subr.bf16.mxu0 %v5267
        %7080 = vmatpush1.bf16.msra.mxu0 %v5266
        %7081 = vmatprep.subr.bf16.mxu0 %v5271
        %7082 = vmatpush1.bf16.msra.mxu0 %v5270
        %7083 = vmatprep.subr.bf16.mxu0 %v5275
        %7084 = vmatpush1.bf16.msra.mxu0 %v5274
        %7085 = vmatprep.subr.bf16.mxu0 %v5279
        %7086 = vmatpush1.bf16.msra.mxu0 %v5278
        %7087 = vmatprep.subr.bf16.mxu0 %v5283
        %7088 = vmatpush1.bf16.msra.mxu0 %v5282
        %7089 = vmatprep.subr.bf16.mxu0 %v5287
        %7090 = vmatpush1.bf16.msra.mxu0 %v5286
        %7091 = vmatprep.subr.bf16.mxu0 %v5291
        %7092 = vmatpush1.bf16.msra.mxu0 %v5290
        %7093 = vmatprep.subr.bf16.mxu0 %v5295
        %7094 = vmatpush1.bf16.msra.mxu0 %v5294
        %7095 = vmatprep.subr.bf16.mxu0 %v5299
        %7096 = vmatpush1.bf16.msra.mxu0 %v5298
        %7097 = vmatprep.subr.bf16.mxu0 %v5303
        %7098 = vmatpush1.bf16.msra.mxu0 %v5302
        %7099 = vmatprep.subr.bf16.mxu0 %v5307
        %7100 = vmatpush1.bf16.msra.mxu0 %v5306
        %7101 = vmatprep.subr.bf16.mxu0 %v5311
        %7102 = vmatpush1.bf16.msra.mxu0 %v5310
        %7103 = vmatprep.subr.bf16.mxu0 %v5315
        %7104 = vmatpush1.bf16.msra.mxu0 %v5314
        %7105 = vmatprep.subr.bf16.mxu0 %v5319
        %7106 = vmatpush1.bf16.msra.mxu0 %v5318
        %7107 = vmatprep.mubr.bf16.mxu0 %v1441
        %7108 = vmatmul.mubr.bf16.gmra.mrb[0].mxu0 %v1440
        %v7109 = vpop.f32.mrb[0].mxu0
        %v7110 = vadd.f32 %v7067, %v7109
        %v7111 = vpop.f32.mrb[0].mxu0
        %v7112 = vadd.f32 %v7069, %v7111
        %v7113 = vpop.f32.mrb[0].mxu0
        %v7114 = vadd.f32 %v7071, %v7113
        %v7115 = vpop.f32.mrb[0].mxu0
        %v7116 = vadd.f32 %v7073, %v7115
        %7117 = vdwg.mxu0
        %7118 = vmatprep.subr.bf16.mxu0 %v5323
        %7119 = vmatpush1.bf16.msra.mxu0 %v5322
        %7120 = vmatprep.subr.bf16.mxu0 %v5327
        %7121 = vmatpush1.bf16.msra.mxu0 %v5326
        %7122 = vmatprep.subr.bf16.mxu0 %v5331
        %7123 = vmatpush1.bf16.msra.mxu0 %v5330
        %7124 = vmatprep.subr.bf16.mxu0 %v5335
        %7125 = vmatpush1.bf16.msra.mxu0 %v5334
        %7126 = vmatprep.subr.bf16.mxu0 %v5339
        %7127 = vmatpush1.bf16.msra.mxu0 %v5338
        %7128 = vmatprep.subr.bf16.mxu0 %v5343
        %7129 = vmatpush1.bf16.msra.mxu0 %v5342
        %7130 = vmatprep.subr.bf16.mxu0 %v5347
        %7131 = vmatpush1.bf16.msra.mxu0 %v5346
        %7132 = vmatprep.subr.bf16.mxu0 %v5351
        %7133 = vmatpush1.bf16.msra.mxu0 %v5350
        %7134 = vmatprep.subr.bf16.mxu0 %v5355
        %7135 = vmatpush1.bf16.msra.mxu0 %v5354
        %7136 = vmatprep.subr.bf16.mxu0 %v5359
        %7137 = vmatpush1.bf16.msra.mxu0 %v5358
        %7138 = vmatprep.subr.bf16.mxu0 %v5363
        %7139 = vmatpush1.bf16.msra.mxu0 %v5362
        %7140 = vmatprep.subr.bf16.mxu0 %v5367
        %7141 = vmatpush1.bf16.msra.mxu0 %v5366
        %7142 = vmatprep.subr.bf16.mxu0 %v5371
        %7143 = vmatpush1.bf16.msra.mxu0 %v5370
        %7144 = vmatprep.subr.bf16.mxu0 %v5375
        %7145 = vmatpush1.bf16.msra.mxu0 %v5374
        %7146 = vmatprep.subr.bf16.mxu0 %v5379
        %7147 = vmatpush1.bf16.msra.mxu0 %v5378
        %7148 = vmatprep.subr.bf16.mxu0 %v5383
        %7149 = vmatpush1.bf16.msra.mxu0 %v5382
        %7150 = vmatprep.mubr.bf16.mxu0 %v1443
        %7151 = vmatmul.mubr.bf16.gmra.mrb[0].mxu0 %v1442
        %v7152 = vpop.f32.mrb[0].mxu0
        %v7153 = vadd.f32 %v7110, %v7152
        %v7154 = vpop.f32.mrb[0].mxu0
        %v7155 = vadd.f32 %v7112, %v7154
        %v7156 = vpop.f32.mrb[0].mxu0
        %v7157 = vadd.f32 %v7114, %v7156
        %v7158 = vpop.f32.mrb[0].mxu0
        %v7159 = vadd.f32 %v7116, %v7158
        %7160 = vdwg.mxu0
        %7161 = vmatprep.subr.bf16.mxu0 %v5387
        %7162 = vmatpush1.bf16.msra.mxu0 %v5386
        %7163 = vmatprep.subr.bf16.mxu0 %v5391
        %7164 = vmatpush1.bf16.msra.mxu0 %v5390
        %7165 = vmatprep.subr.bf16.mxu0 %v5395
        %7166 = vmatpush1.bf16.msra.mxu0 %v5394
        %7167 = vmatprep.subr.bf16.mxu0 %v5399
        %7168 = vmatpush1.bf16.msra.mxu0 %v5398
        %7169 = vmatprep.subr.bf16.mxu0 %v5403
        %7170 = vmatpush1.bf16.msra.mxu0 %v5402
        %7171 = vmatprep.subr.bf16.mxu0 %v5407
        %7172 = vmatpush1.bf16.msra.mxu0 %v5406
        %7173 = vmatprep.subr.bf16.mxu0 %v5411
        %7174 = vmatpush1.bf16.msra.mxu0 %v5410
        %7175 = vmatprep.subr.bf16.mxu0 %v5415
        %7176 = vmatpush1.bf16.msra.mxu0 %v5414
        %7177 = vmatprep.subr.bf16.mxu0 %v5419
        %7178 = vmatpush1.bf16.msra.mxu0 %v5418
        %7179 = vmatprep.subr.bf16.mxu0 %v5423
        %7180 = vmatpush1.bf16.msra.mxu0 %v5422
        %7181 = vmatprep.subr.bf16.mxu0 %v5427
        %7182 = vmatpush1.bf16.msra.mxu0 %v5426
        %7183 = vmatprep.subr.bf16.mxu0 %v5431
        %7184 = vmatpush1.bf16.msra.mxu0 %v5430
        %7185 = vmatprep.subr.bf16.mxu0 %v5435
        %7186 = vmatpush1.bf16.msra.mxu0 %v5434
        %7187 = vmatprep.subr.bf16.mxu0 %v5439
        %7188 = vmatpush1.bf16.msra.mxu0 %v5438
        %7189 = vmatprep.subr.bf16.mxu0 %v5443
        %7190 = vmatpush1.bf16.msra.mxu0 %v5442
        %7191 = vmatprep.subr.bf16.mxu0 %v5447
        %7192 = vmatpush1.bf16.msra.mxu0 %v5446
        %7193 = vmatprep.mubr.bf16.mxu0 %v1445
        %7194 = vmatmul.mubr.bf16.gmra.mrb[0].mxu0 %v1444
        %v7195 = vpop.f32.mrb[0].mxu0
        %v7196 = vadd.f32 %v7153, %v7195
        %v7197 = vpop.f32.mrb[0].mxu0
        %v7198 = vadd.f32 %v7155, %v7197
        %v7199 = vpop.f32.mrb[0].mxu0
        %v7200 = vadd.f32 %v7157, %v7199
        %v7201 = vpop.f32.mrb[0].mxu0
        %v7202 = vadd.f32 %v7159, %v7201
        %7203 = vdwg.mxu0
        %7204 = vmatprep.subr.bf16.mxu0 %v5451
        %7205 = vmatpush1.bf16.msra.mxu0 %v5450
        %7206 = vmatprep.subr.bf16.mxu0 %v5455
        %7207 = vmatpush1.bf16.msra.mxu0 %v5454
        %7208 = vmatprep.subr.bf16.mxu0 %v5459
        %7209 = vmatpush1.bf16.msra.mxu0 %v5458
        %7210 = vmatprep.subr.bf16.mxu0 %v5463
        %7211 = vmatpush1.bf16.msra.mxu0 %v5462
        %7212 = vmatprep.subr.bf16.mxu0 %v5467
        %7213 = vmatpush1.bf16.msra.mxu0 %v5466
        %7214 = vmatprep.subr.bf16.mxu0 %v5471
        %7215 = vmatpush1.bf16.msra.mxu0 %v5470
        %7216 = vmatprep.subr.bf16.mxu0 %v5475
        %7217 = vmatpush1.bf16.msra.mxu0 %v5474
        %7218 = vmatprep.subr.bf16.mxu0 %v5479
        %7219 = vmatpush1.bf16.msra.mxu0 %v5478
        %7220 = vmatprep.subr.bf16.mxu0 %v5483
        %7221 = vmatpush1.bf16.msra.mxu0 %v5482
        %7222 = vmatprep.subr.bf16.mxu0 %v5487
        %7223 = vmatpush1.bf16.msra.mxu0 %v5486
        %7224 = vmatprep.subr.bf16.mxu0 %v5491
        %7225 = vmatpush1.bf16.msra.mxu0 %v5490
        %7226 = vmatprep.subr.bf16.mxu0 %v5495
        %7227 = vmatpush1.bf16.msra.mxu0 %v5494
        %7228 = vmatprep.subr.bf16.mxu0 %v5499
        %7229 = vmatpush1.bf16.msra.mxu0 %v5498
        %7230 = vmatprep.subr.bf16.mxu0 %v5503
        %7231 = vmatpush1.bf16.msra.mxu0 %v5502
        %7232 = vmatprep.subr.bf16.mxu0 %v5507
        %7233 = vmatpush1.bf16.msra.mxu0 %v5506
        %7234 = vmatprep.subr.bf16.mxu0 %v5511
        %7235 = vmatpush1.bf16.msra.mxu0 %v5510
        %7236 = vmatprep.mubr.bf16.mxu0 %v1447
        %7237 = vmatmul.mubr.bf16.gmra.mrb[0].mxu0 %v1446
        %v7238 = vpop.f32.mrb[0].mxu0
        %v7239 = vadd.f32 %v7196, %v7238
        %v7240 = vpop.f32.mrb[0].mxu0
        %v7241 = vadd.f32 %v7198, %v7240
        %v7242 = vpop.f32.mrb[0].mxu0
        %v7243 = vadd.f32 %v7200, %v7242
        %v7244 = vpop.f32.mrb[0].mxu0
        %v7245 = vadd.f32 %v7202, %v7244
        %7246 = vdwg.mxu0
        %7247 = vmatprep.subr.bf16.mxu0 %v5515
        %7248 = vmatpush1.bf16.msra.mxu0 %v5514
        %7249 = vmatprep.subr.bf16.mxu0 %v5519
        %7250 = vmatpush1.bf16.msra.mxu0 %v5518
        %7251 = vmatprep.subr.bf16.mxu0 %v5523
        %7252 = vmatpush1.bf16.msra.mxu0 %v5522
        %7253 = vmatprep.subr.bf16.mxu0 %v5527
        %7254 = vmatpush1.bf16.msra.mxu0 %v5526
        %7255 = vmatprep.subr.bf16.mxu0 %v5531
        %7256 = vmatpush1.bf16.msra.mxu0 %v5530
        %7257 = vmatprep.subr.bf16.mxu0 %v5535
        %7258 = vmatpush1.bf16.msra.mxu0 %v5534
        %7259 = vmatprep.subr.bf16.mxu0 %v5539
        %7260 = vmatpush1.bf16.msra.mxu0 %v5538
        %7261 = vmatprep.subr.bf16.mxu0 %v5543
        %7262 = vmatpush1.bf16.msra.mxu0 %v5542
        %7263 = vmatprep.subr.bf16.mxu0 %v5547
        %7264 = vmatpush1.bf16.msra.mxu0 %v5546
        %7265 = vmatprep.subr.bf16.mxu0 %v5551
        %7266 = vmatpush1.bf16.msra.mxu0 %v5550
        %7267 = vmatprep.subr.bf16.mxu0 %v5555
        %7268 = vmatpush1.bf16.msra.mxu0 %v5554
        %7269 = vmatprep.subr.bf16.mxu0 %v5559
        %7270 = vmatpush1.bf16.msra.mxu0 %v5558
        %7271 = vmatprep.subr.bf16.mxu0 %v5563
        %7272 = vmatpush1.bf16.msra.mxu0 %v5562
        %7273 = vmatprep.subr.bf16.mxu0 %v5567
        %7274 = vmatpush1.bf16.msra.mxu0 %v5566
        %7275 = vmatprep.subr.bf16.mxu0 %v5571
        %7276 = vmatpush1.bf16.msra.mxu0 %v5570
        %7277 = vmatprep.subr.bf16.mxu0 %v5575
        %7278 = vmatpush1.bf16.msra.mxu0 %v5574
        %7279 = vmatprep.mubr.bf16.mxu0 %v1449
        %7280 = vmatmul.mubr.bf16.gmra.mrb[0].mxu0 %v1448
        %v7281 = vpop.f32.mrb[0].mxu0
        %v7282 = vadd.f32 %v7239, %v7281
        %v7283 = vpop.f32.mrb[0].mxu0
        %v7284 = vadd.f32 %v7241, %v7283
        %v7285 = vpop.f32.mrb[0].mxu0
        %v7286 = vadd.f32 %v7243, %v7285
        %v7287 = vpop.f32.mrb[0].mxu0
        %v7288 = vadd.f32 %v7245, %v7287
        %7289 = vdwg.mxu0
        %7290 = vmatprep.subr.bf16.mxu0 %v4557
        %7291 = vmatpush1.bf16.msra.mxu0 %v4556
        %7292 = vmatprep.subr.bf16.mxu0 %v4561
        %7293 = vmatpush1.bf16.msra.mxu0 %v4560
        %7294 = vmatprep.subr.bf16.mxu0 %v4565
        %7295 = vmatpush1.bf16.msra.mxu0 %v4564
        %7296 = vmatprep.subr.bf16.mxu0 %v4569
        %7297 = vmatpush1.bf16.msra.mxu0 %v4568
        %7298 = vmatprep.subr.bf16.mxu0 %v4573
        %7299 = vmatpush1.bf16.msra.mxu0 %v4572
        %7300 = vmatprep.subr.bf16.mxu0 %v4577
        %7301 = vmatpush1.bf16.msra.mxu0 %v4576
        %7302 = vmatprep.subr.bf16.mxu0 %v4581
        %7303 = vmatpush1.bf16.msra.mxu0 %v4580
        %7304 = vmatprep.subr.bf16.mxu0 %v4585
        %7305 = vmatpush1.bf16.msra.mxu0 %v4584
        %7306 = vmatprep.subr.bf16.mxu0 %v4589
        %7307 = vmatpush1.bf16.msra.mxu0 %v4588
        %7308 = vmatprep.subr.bf16.mxu0 %v4593
        %7309 = vmatpush1.bf16.msra.mxu0 %v4592
        %7310 = vmatprep.subr.bf16.mxu0 %v4597
        %7311 = vmatpush1.bf16.msra.mxu0 %v4596
        %7312 = vmatprep.subr.bf16.mxu0 %v4601
        %7313 = vmatpush1.bf16.msra.mxu0 %v4600
        %7314 = vmatprep.subr.bf16.mxu0 %v4605
        %7315 = vmatpush1.bf16.msra.mxu0 %v4604
        %7316 = vmatprep.subr.bf16.mxu0 %v4609
        %7317 = vmatpush1.bf16.msra.mxu0 %v4608
        %7318 = vmatprep.subr.bf16.mxu0 %v4613
        %7319 = vmatpush1.bf16.msra.mxu0 %v4612
        %7320 = vmatprep.subr.bf16.mxu0 %v4617
        %7321 = vmatpush1.bf16.msra.mxu0 %v4616
        %7322 = vmatprep.mubr.bf16.mxu0 %v1419
        %7323 = vmatmul.mubr.bf16.gmra.mrb[0].mxu0 %v1418
        %v7324 = vpop.f32.mrb[0].mxu0
        %v7325 = vadd.f32 0.0, %v7324
        %v7326 = vpop.f32.mrb[0].mxu0
        %v7327 = vadd.f32 0.0, %v7326
        %v7328 = vpop.f32.mrb[0].mxu0
        %v7329 = vadd.f32 0.0, %v7328
        %v7330 = vpop.f32.mrb[0].mxu0
        %v7331 = vadd.f32 0.0, %v7330
        %7332 = vdwg.mxu0
        %7333 = vmatprep.subr.bf16.mxu0 %v4621
        %7334 = vmatpush1.bf16.msra.mxu0 %v4620
        %7335 = vmatprep.subr.bf16.mxu0 %v4625
        %7336 = vmatpush1.bf16.msra.mxu0 %v4624
        %7337 = vmatprep.subr.bf16.mxu0 %v4629
        %7338 = vmatpush1.bf16.msra.mxu0 %v4628
        %7339 = vmatprep.subr.bf16.mxu0 %v4633
        %7340 = vmatpush1.bf16.msra.mxu0 %v4632
        %7341 = vmatprep.subr.bf16.mxu0 %v4637
        %7342 = vmatpush1.bf16.msra.mxu0 %v4636
        %7343 = vmatprep.subr.bf16.mxu0 %v4641
        %7344 = vmatpush1.bf16.msra.mxu0 %v4640
        %7345 = vmatprep.subr.bf16.mxu0 %v4645
        %7346 = vmatpush1.bf16.msra.mxu0 %v4644
        %7347 = vmatprep.subr.bf16.mxu0 %v4649
        %7348 = vmatpush1.bf16.msra.mxu0 %v4648
        %7349 = vmatprep.subr.bf16.mxu0 %v4653
        %7350 = vmatpush1.bf16.msra.mxu0 %v4652
        %7351 = vmatprep.subr.bf16.mxu0 %v4657
        %7352 = vmatpush1.bf16.msra.mxu0 %v4656
        %7353 = vmatprep.subr.bf16.mxu0 %v4661
        %7354 = vmatpush1.bf16.msra.mxu0 %v4660
        %7355 = vmatprep.subr.bf16.mxu0 %v4665
        %7356 = vmatpush1.bf16.msra.mxu0 %v4664
        %7357 = vmatprep.subr.bf16.mxu0 %v4669
        %7358 = vmatpush1.bf16.msra.mxu0 %v4668
        %7359 = vmatprep.subr.bf16.mxu0 %v4673
        %7360 = vmatpush1.bf16.msra.mxu0 %v4672
        %7361 = vmatprep.subr.bf16.mxu0 %v4677
        %7362 = vmatpush1.bf16.msra.mxu0 %v4676
        %7363 = vmatprep.subr.bf16.mxu0 %v4681
        %7364 = vmatpush1.bf16.msra.mxu0 %v4680
        %7365 = vmatprep.mubr.bf16.mxu0 %v1421
        %7366 = vmatmul.mubr.bf16.gmra.mrb[0].mxu0 %v1420
        %v7367 = vpop.f32.mrb[0].mxu0
        %v7368 = vadd.f32 %v7325, %v7367
        %v7369 = vpop.f32.mrb[0].mxu0
        %v7370 = vadd.f32 %v7327, %v7369
        %v7371 = vpop.f32.mrb[0].mxu0
        %v7372 = vadd.f32 %v7329, %v7371
        %v7373 = vpop.f32.mrb[0].mxu0
        %v7374 = vadd.f32 %v7331, %v7373
        %7375 = vdwg.mxu0
        %7376 = vmatprep.subr.bf16.mxu0 %v4685
        %7377 = vmatpush1.bf16.msra.mxu0 %v4684
        %7378 = vmatprep.subr.bf16.mxu0 %v4689
        %7379 = vmatpush1.bf16.msra.mxu0 %v4688
        %7380 = vmatprep.subr.bf16.mxu0 %v4693
        %7381 = vmatpush1.bf16.msra.mxu0 %v4692
        %7382 = vmatprep.subr.bf16.mxu0 %v4697
        %7383 = vmatpush1.bf16.msra.mxu0 %v4696
        %7384 = vmatprep.subr.bf16.mxu0 %v4701
        %7385 = vmatpush1.bf16.msra.mxu0 %v4700
        %7386 = vmatprep.subr.bf16.mxu0 %v4705
        %7387 = vmatpush1.bf16.msra.mxu0 %v4704
        %7388 = vmatprep.subr.bf16.mxu0 %v4709
        %7389 = vmatpush1.bf16.msra.mxu0 %v4708
        %7390 = vmatprep.subr.bf16.mxu0 %v4713
        %7391 = vmatpush1.bf16.msra.mxu0 %v4712
        %7392 = vmatprep.subr.bf16.mxu0 %v4717
        %7393 = vmatpush1.bf16.msra.mxu0 %v4716
        %7394 = vmatprep.subr.bf16.mxu0 %v4721
        %7395 = vmatpush1.bf16.msra.mxu0 %v4720
        %7396 = vmatprep.subr.bf16.mxu0 %v4725
        %7397 = vmatpush1.bf16.msra.mxu0 %v4724
        %7398 = vmatprep.subr.bf16.mxu0 %v4729
        %7399 = vmatpush1.bf16.msra.mxu0 %v4728
        %7400 = vmatprep.subr.bf16.mxu0 %v4733
        %7401 = vmatpush1.bf16.msra.mxu0 %v4732
        %7402 = vmatprep.subr.bf16.mxu0 %v4737
        %7403 = vmatpush1.bf16.msra.mxu0 %v4736
        %7404 = vmatprep.subr.bf16.mxu0 %v4741
        %7405 = vmatpush1.bf16.msra.mxu0 %v4740
        %7406 = vmatprep.subr.bf16.mxu0 %v4745
        %7407 = vmatpush1.bf16.msra.mxu0 %v4744
        %7408 = vmatprep.mubr.bf16.mxu0 %v1423
        %7409 = vmatmul.mubr.bf16.gmra.mrb[0].mxu0 %v1422
        %v7410 = vpop.f32.mrb[0].mxu0
        %v7411 = vadd.f32 %v7368, %v7410
        %v7412 = vpop.f32.mrb[0].mxu0
        %v7413 = vadd.f32 %v7370, %v7412
        %v7414 = vpop.f32.mrb[0].mxu0
        %v7415 = vadd.f32 %v7372, %v7414
        %v7416 = vpop.f32.mrb[0].mxu0
        %v7417 = vadd.f32 %v7374, %v7416
        %7418 = vdwg.mxu0
        %7419 = vmatprep.subr.bf16.mxu0 %v4749
        %7420 = vmatpush1.bf16.msra.mxu0 %v4748
        %7421 = vmatprep.subr.bf16.mxu0 %v4753
        %7422 = vmatpush1.bf16.msra.mxu0 %v4752
        %7423 = vmatprep.subr.bf16.mxu0 %v4757
        %7424 = vmatpush1.bf16.msra.mxu0 %v4756
        %7425 = vmatprep.subr.bf16.mxu0 %v4761
        %7426 = vmatpush1.bf16.msra.mxu0 %v4760
        %7427 = vmatprep.subr.bf16.mxu0 %v4765
        %7428 = vmatpush1.bf16.msra.mxu0 %v4764
        %7429 = vmatprep.subr.bf16.mxu0 %v4769
        %7430 = vmatpush1.bf16.msra.mxu0 %v4768
        %7431 = vmatprep.subr.bf16.mxu0 %v4773
        %7432 = vmatpush1.bf16.msra.mxu0 %v4772
        %7433 = vmatprep.subr.bf16.mxu0 %v4777
        %7434 = vmatpush1.bf16.msra.mxu0 %v4776
        %7435 = vmatprep.subr.bf16.mxu0 %v4781
        %7436 = vmatpush1.bf16.msra.mxu0 %v4780
        %7437 = vmatprep.subr.bf16.mxu0 %v4785
        %7438 = vmatpush1.bf16.msra.mxu0 %v4784
        %7439 = vmatprep.subr.bf16.mxu0 %v4789
        %7440 = vmatpush1.bf16.msra.mxu0 %v4788
        %7441 = vmatprep.subr.bf16.mxu0 %v4793
        %7442 = vmatpush1.bf16.msra.mxu0 %v4792
        %7443 = vmatprep.subr.bf16.mxu0 %v4797
        %7444 = vmatpush1.bf16.msra.mxu0 %v4796
        %7445 = vmatprep.subr.bf16.mxu0 %v4801
        %7446 = vmatpush1.bf16.msra.mxu0 %v4800
        %7447 = vmatprep.subr.bf16.mxu0 %v4805
        %7448 = vmatpush1.bf16.msra.mxu0 %v4804
        %7449 = vmatprep.subr.bf16.mxu0 %v4809
        %7450 = vmatpush1.bf16.msra.mxu0 %v4808
        %7451 = vmatprep.mubr.bf16.mxu0 %v1425
        %7452 = vmatmul.mubr.bf16.gmra.mrb[0].mxu0 %v1424
        %v7453 = vpop.f32.mrb[0].mxu0
        %v7454 = vadd.f32 %v7411, %v7453
        %v7455 = vpop.f32.mrb[0].mxu0
        %v7456 = vadd.f32 %v7413, %v7455
        %v7457 = vpop.f32.mrb[0].mxu0
        %v7458 = vadd.f32 %v7415, %v7457
        %v7459 = vpop.f32.mrb[0].mxu0
        %v7460 = vadd.f32 %v7417, %v7459
        %7461 = vdwg.mxu0
        %7462 = vmatprep.subr.bf16.mxu0 %v4813
        %7463 = vmatpush1.bf16.msra.mxu0 %v4812
        %7464 = vmatprep.subr.bf16.mxu0 %v4817
        %7465 = vmatpush1.bf16.msra.mxu0 %v4816
        %7466 = vmatprep.subr.bf16.mxu0 %v4821
        %7467 = vmatpush1.bf16.msra.mxu0 %v4820
        %7468 = vmatprep.subr.bf16.mxu0 %v4825
        %7469 = vmatpush1.bf16.msra.mxu0 %v4824
        %7470 = vmatprep.subr.bf16.mxu0 %v4829
        %7471 = vmatpush1.bf16.msra.mxu0 %v4828
        %7472 = vmatprep.subr.bf16.mxu0 %v4833
        %7473 = vmatpush1.bf16.msra.mxu0 %v4832
        %7474 = vmatprep.subr.bf16.mxu0 %v4837
        %7475 = vmatpush1.bf16.msra.mxu0 %v4836
        %7476 = vmatprep.subr.bf16.mxu0 %v4841
        %7477 = vmatpush1.bf16.msra.mxu0 %v4840
        %7478 = vmatprep.subr.bf16.mxu0 %v4845
        %7479 = vmatpush1.bf16.msra.mxu0 %v4844
        %7480 = vmatprep.subr.bf16.mxu0 %v4849
        %7481 = vmatpush1.bf16.msra.mxu0 %v4848
        %7482 = vmatprep.subr.bf16.mxu0 %v4853
        %7483 = vmatpush1.bf16.msra.mxu0 %v4852
        %7484 = vmatprep.subr.bf16.mxu0 %v4857
        %7485 = vmatpush1.bf16.msra.mxu0 %v4856
        %7486 = vmatprep.subr.bf16.mxu0 %v4861
        %7487 = vmatpush1.bf16.msra.mxu0 %v4860
        %7488 = vmatprep.subr.bf16.mxu0 %v4865
        %7489 = vmatpush1.bf16.msra.mxu0 %v4864
        %7490 = vmatprep.subr.bf16.mxu0 %v4869
        %7491 = vmatpush1.bf16.msra.mxu0 %v4868
        %7492 = vmatprep.subr.bf16.mxu0 %v4873
        %7493 = vmatpush1.bf16.msra.mxu0 %v4872
        %7494 = vmatprep.mubr.bf16.mxu0 %v1427
        %7495 = vmatmul.mubr.bf16.gmra.mrb[0].mxu0 %v1426
        %v7496 = vpop.f32.mrb[0].mxu0
        %v7497 = vadd.f32 %v7454, %v7496
        %v7498 = vpop.f32.mrb[0].mxu0
        %v7499 = vadd.f32 %v7456, %v7498
        %v7500 = vpop.f32.mrb[0].mxu0
        %v7501 = vadd.f32 %v7458, %v7500
        %v7502 = vpop.f32.mrb[0].mxu0
        %v7503 = vadd.f32 %v7460, %v7502
        %7504 = vdwg.mxu0
        %7505 = vmatprep.subr.bf16.mxu0 %v4877
        %7506 = vmatpush1.bf16.msra.mxu0 %v4876
        %7507 = vmatprep.subr.bf16.mxu0 %v4881
        %7508 = vmatpush1.bf16.msra.mxu0 %v4880
        %7509 = vmatprep.subr.bf16.mxu0 %v4885
        %7510 = vmatpush1.bf16.msra.mxu0 %v4884
        %7511 = vmatprep.subr.bf16.mxu0 %v4889
        %7512 = vmatpush1.bf16.msra.mxu0 %v4888
        %7513 = vmatprep.subr.bf16.mxu0 %v4893
        %7514 = vmatpush1.bf16.msra.mxu0 %v4892
        %7515 = vmatprep.subr.bf16.mxu0 %v4897
        %7516 = vmatpush1.bf16.msra.mxu0 %v4896
        %7517 = vmatprep.subr.bf16.mxu0 %v4901
        %7518 = vmatpush1.bf16.msra.mxu0 %v4900
        %7519 = vmatprep.subr.bf16.mxu0 %v4905
        %7520 = vmatpush1.bf16.msra.mxu0 %v4904
        %7521 = vmatprep.subr.bf16.mxu0 %v4909
        %7522 = vmatpush1.bf16.msra.mxu0 %v4908
        %7523 = vmatprep.subr.bf16.mxu0 %v4913
        %7524 = vmatpush1.bf16.msra.mxu0 %v4912
        %7525 = vmatprep.subr.bf16.mxu0 %v4917
        %7526 = vmatpush1.bf16.msra.mxu0 %v4916
        %7527 = vmatprep.subr.bf16.mxu0 %v4921
        %7528 = vmatpush1.bf16.msra.mxu0 %v4920
        %7529 = vmatprep.subr.bf16.mxu0 %v4925
        %7530 = vmatpush1.bf16.msra.mxu0 %v4924
        %7531 = vmatprep.subr.bf16.mxu0 %v4929
        %7532 = vmatpush1.bf16.msra.mxu0 %v4928
        %7533 = vmatprep.subr.bf16.mxu0 %v4933
        %7534 = vmatpush1.bf16.msra.mxu0 %v4932
        %7535 = vmatprep.subr.bf16.mxu0 %v4937
        %7536 = vmatpush1.bf16.msra.mxu0 %v4936
        %7537 = vmatprep.mubr.bf16.mxu0 %v1429
        %7538 = vmatmul.mubr.bf16.gmra.mrb[0].mxu0 %v1428
        %v7539 = vpop.f32.mrb[0].mxu0
        %v7540 = vadd.f32 %v7497, %v7539
        %v7541 = vpop.f32.mrb[0].mxu0
        %v7542 = vadd.f32 %v7499, %v7541
        %v7543 = vpop.f32.mrb[0].mxu0
        %v7544 = vadd.f32 %v7501, %v7543
        %v7545 = vpop.f32.mrb[0].mxu0
        %v7546 = vadd.f32 %v7503, %v7545
        %7547 = vdwg.mxu0
        %7548 = vmatprep.subr.bf16.mxu0 %v4941
        %7549 = vmatpush1.bf16.msra.mxu0 %v4940
        %7550 = vmatprep.subr.bf16.mxu0 %v4945
        %7551 = vmatpush1.bf16.msra.mxu0 %v4944
        %7552 = vmatprep.subr.bf16.mxu0 %v4949
        %7553 = vmatpush1.bf16.msra.mxu0 %v4948
        %7554 = vmatprep.subr.bf16.mxu0 %v4953
        %7555 = vmatpush1.bf16.msra.mxu0 %v4952
        %7556 = vmatprep.subr.bf16.mxu0 %v4957
        %7557 = vmatpush1.bf16.msra.mxu0 %v4956
        %7558 = vmatprep.subr.bf16.mxu0 %v4961
        %7559 = vmatpush1.bf16.msra.mxu0 %v4960
        %7560 = vmatprep.subr.bf16.mxu0 %v4965
        %7561 = vmatpush1.bf16.msra.mxu0 %v4964
        %7562 = vmatprep.subr.bf16.mxu0 %v4969
        %7563 = vmatpush1.bf16.msra.mxu0 %v4968
        %7564 = vmatprep.subr.bf16.mxu0 %v4973
        %7565 = vmatpush1.bf16.msra.mxu0 %v4972
        %7566 = vmatprep.subr.bf16.mxu0 %v4977
        %7567 = vmatpush1.bf16.msra.mxu0 %v4976
        %7568 = vmatprep.subr.bf16.mxu0 %v4981
        %7569 = vmatpush1.bf16.msra.mxu0 %v4980
        %7570 = vmatprep.subr.bf16.mxu0 %v4985
        %7571 = vmatpush1.bf16.msra.mxu0 %v4984
        %7572 = vmatprep.subr.bf16.mxu0 %v4989
        %7573 = vmatpush1.bf16.msra.mxu0 %v4988
        %7574 = vmatprep.subr.bf16.mxu0 %v4993
        %7575 = vmatpush1.bf16.msra.mxu0 %v4992
        %7576 = vmatprep.subr.bf16.mxu0 %v4997
        %7577 = vmatpush1.bf16.msra.mxu0 %v4996
        %7578 = vmatprep.subr.bf16.mxu0 %v5001
        %7579 = vmatpush1.bf16.msra.mxu0 %v5000
        %7580 = vmatprep.mubr.bf16.mxu0 %v1431
        %7581 = vmatmul.mubr.bf16.gmra.mrb[0].mxu0 %v1430
        %v7582 = vpop.f32.mrb[0].mxu0
        %v7583 = vadd.f32 %v7540, %v7582
        %v7584 = vpop.f32.mrb[0].mxu0
        %v7585 = vadd.f32 %v7542, %v7584
        %v7586 = vpop.f32.mrb[0].mxu0
        %v7587 = vadd.f32 %v7544, %v7586
        %v7588 = vpop.f32.mrb[0].mxu0
        %v7589 = vadd.f32 %v7546, %v7588
        %7590 = vdwg.mxu0
        %7591 = vmatprep.subr.bf16.mxu0 %v5005
        %7592 = vmatpush1.bf16.msra.mxu0 %v5004
        %7593 = vmatprep.subr.bf16.mxu0 %v5009
        %7594 = vmatpush1.bf16.msra.mxu0 %v5008
        %7595 = vmatprep.subr.bf16.mxu0 %v5013
        %7596 = vmatpush1.bf16.msra.mxu0 %v5012
        %7597 = vmatprep.subr.bf16.mxu0 %v5017
        %7598 = vmatpush1.bf16.msra.mxu0 %v5016
        %7599 = vmatprep.subr.bf16.mxu0 %v5021
        %7600 = vmatpush1.bf16.msra.mxu0 %v5020
        %7601 = vmatprep.subr.bf16.mxu0 %v5025
        %7602 = vmatpush1.bf16.msra.mxu0 %v5024
        %7603 = vmatprep.subr.bf16.mxu0 %v5029
        %7604 = vmatpush1.bf16.msra.mxu0 %v5028
        %7605 = vmatprep.subr.bf16.mxu0 %v5033
        %7606 = vmatpush1.bf16.msra.mxu0 %v5032
        %7607 = vmatprep.subr.bf16.mxu0 %v5037
        %7608 = vmatpush1.bf16.msra.mxu0 %v5036
        %7609 = vmatprep.subr.bf16.mxu0 %v5041
        %7610 = vmatpush1.bf16.msra.mxu0 %v5040
        %7611 = vmatprep.subr.bf16.mxu0 %v5045
        %7612 = vmatpush1.bf16.msra.mxu0 %v5044
        %7613 = vmatprep.subr.bf16.mxu0 %v5049
        %7614 = vmatpush1.bf16.msra.mxu0 %v5048
        %7615 = vmatprep.subr.bf16.mxu0 %v5053
        %7616 = vmatpush1.bf16.msra.mxu0 %v5052
        %7617 = vmatprep.subr.bf16.mxu0 %v5057
        %7618 = vmatpush1.bf16.msra.mxu0 %v5056
        %7619 = vmatprep.subr.bf16.mxu0 %v5061
        %7620 = vmatpush1.bf16.msra.mxu0 %v5060
        %7621 = vmatprep.subr.bf16.mxu0 %v5065
        %7622 = vmatpush1.bf16.msra.mxu0 %v5064
        %7623 = vmatprep.mubr.bf16.mxu0 %v1433
        %7624 = vmatmul.mubr.bf16.gmra.mrb[0].mxu0 %v1432
        %v7625 = vpop.f32.mrb[0].mxu0
        %v7626 = vadd.f32 %v7583, %v7625
        %v7627 = vpop.f32.mrb[0].mxu0
        %v7628 = vadd.f32 %v7585, %v7627
        %v7629 = vpop.f32.mrb[0].mxu0
        %v7630 = vadd.f32 %v7587, %v7629
        %v7631 = vpop.f32.mrb[0].mxu0
        %v7632 = vadd.f32 %v7589, %v7631
        %7633 = vdwg.mxu0
        %7634 = vmatprep.subr.bf16.mxu0 %v5069
        %7635 = vmatpush1.bf16.msra.mxu0 %v5068
        %7636 = vmatprep.subr.bf16.mxu0 %v5073
        %7637 = vmatpush1.bf16.msra.mxu0 %v5072
        %7638 = vmatprep.subr.bf16.mxu0 %v5077
        %7639 = vmatpush1.bf16.msra.mxu0 %v5076
        %7640 = vmatprep.subr.bf16.mxu0 %v5081
        %7641 = vmatpush1.bf16.msra.mxu0 %v5080
        %7642 = vmatprep.subr.bf16.mxu0 %v5085
        %7643 = vmatpush1.bf16.msra.mxu0 %v5084
        %7644 = vmatprep.subr.bf16.mxu0 %v5089
        %7645 = vmatpush1.bf16.msra.mxu0 %v5088
        %7646 = vmatprep.subr.bf16.mxu0 %v5093
        %7647 = vmatpush1.bf16.msra.mxu0 %v5092
        %7648 = vmatprep.subr.bf16.mxu0 %v5097
        %7649 = vmatpush1.bf16.msra.mxu0 %v5096
        %7650 = vmatprep.subr.bf16.mxu0 %v5101
        %7651 = vmatpush1.bf16.msra.mxu0 %v5100
        %7652 = vmatprep.subr.bf16.mxu0 %v5105
        %7653 = vmatpush1.bf16.msra.mxu0 %v5104
        %7654 = vmatprep.subr.bf16.mxu0 %v5109
        %7655 = vmatpush1.bf16.msra.mxu0 %v5108
        %7656 = vmatprep.subr.bf16.mxu0 %v5113
        %7657 = vmatpush1.bf16.msra.mxu0 %v5112
        %7658 = vmatprep.subr.bf16.mxu0 %v5117
        %7659 = vmatpush1.bf16.msra.mxu0 %v5116
        %7660 = vmatprep.subr.bf16.mxu0 %v5121
        %7661 = vmatpush1.bf16.msra.mxu0 %v5120
        %7662 = vmatprep.subr.bf16.mxu0 %v5125
        %7663 = vmatpush1.bf16.msra.mxu0 %v5124
        %7664 = vmatprep.subr.bf16.mxu0 %v5129
        %7665 = vmatpush1.bf16.msra.mxu0 %v5128
        %7666 = vmatprep.mubr.bf16.mxu0 %v1435
        %7667 = vmatmul.mubr.bf16.gmra.mrb[0].mxu0 %v1434
        %v7668 = vpop.f32.mrb[0].mxu0
        %v7669 = vadd.f32 %v7626, %v7668
        %v7670 = vpop.f32.mrb[0].mxu0
        %v7671 = vadd.f32 %v7628, %v7670
        %v7672 = vpop.f32.mrb[0].mxu0
        %v7673 = vadd.f32 %v7630, %v7672
        %v7674 = vpop.f32.mrb[0].mxu0
        %v7675 = vadd.f32 %v7632, %v7674
        %7676 = vdwg.mxu0
        %7677 = vmatprep.subr.bf16.mxu0 %v5133
        %7678 = vmatpush1.bf16.msra.mxu0 %v5132
        %7679 = vmatprep.subr.bf16.mxu0 %v5137
        %7680 = vmatpush1.bf16.msra.mxu0 %v5136
        %7681 = vmatprep.subr.bf16.mxu0 %v5141
        %7682 = vmatpush1.bf16.msra.mxu0 %v5140
        %7683 = vmatprep.subr.bf16.mxu0 %v5145
        %7684 = vmatpush1.bf16.msra.mxu0 %v5144
        %7685 = vmatprep.subr.bf16.mxu0 %v5149
        %7686 = vmatpush1.bf16.msra.mxu0 %v5148
        %7687 = vmatprep.subr.bf16.mxu0 %v5153
        %7688 = vmatpush1.bf16.msra.mxu0 %v5152
        %7689 = vmatprep.subr.bf16.mxu0 %v5157
        %7690 = vmatpush1.bf16.msra.mxu0 %v5156
        %7691 = vmatprep.subr.bf16.mxu0 %v5161
        %7692 = vmatpush1.bf16.msra.mxu0 %v5160
        %7693 = vmatprep.subr.bf16.mxu0 %v5165
        %7694 = vmatpush1.bf16.msra.mxu0 %v5164
        %7695 = vmatprep.subr.bf16.mxu0 %v5169
        %7696 = vmatpush1.bf16.msra.mxu0 %v5168
        %7697 = vmatprep.subr.bf16.mxu0 %v5173
        %7698 = vmatpush1.bf16.msra.mxu0 %v5172
        %7699 = vmatprep.subr.bf16.mxu0 %v5177
        %7700 = vmatpush1.bf16.msra.mxu0 %v5176
        %7701 = vmatprep.subr.bf16.mxu0 %v5181
        %7702 = vmatpush1.bf16.msra.mxu0 %v5180
        %7703 = vmatprep.subr.bf16.mxu0 %v5185
        %7704 = vmatpush1.bf16.msra.mxu0 %v5184
        %7705 = vmatprep.subr.bf16.mxu0 %v5189
        %7706 = vmatpush1.bf16.msra.mxu0 %v5188
        %7707 = vmatprep.subr.bf16.mxu0 %v5193
        %7708 = vmatpush1.bf16.msra.mxu0 %v5192
        %7709 = vmatprep.mubr.bf16.mxu0 %v1437
        %7710 = vmatmul.mubr.bf16.gmra.mrb[0].mxu0 %v1436
        %v7711 = vpop.f32.mrb[0].mxu0
        %v7712 = vadd.f32 %v7669, %v7711
        %v7713 = vpop.f32.mrb[0].mxu0
        %v7714 = vadd.f32 %v7671, %v7713
        %v7715 = vpop.f32.mrb[0].mxu0
        %v7716 = vadd.f32 %v7673, %v7715
        %v7717 = vpop.f32.mrb[0].mxu0
        %v7718 = vadd.f32 %v7675, %v7717
        %7719 = vdwg.mxu0
        %7720 = vmatprep.subr.bf16.mxu0 %v5197
        %7721 = vmatpush1.bf16.msra.mxu0 %v5196
        %7722 = vmatprep.subr.bf16.mxu0 %v5201
        %7723 = vmatpush1.bf16.msra.mxu0 %v5200
        %7724 = vmatprep.subr.bf16.mxu0 %v5205
        %7725 = vmatpush1.bf16.msra.mxu0 %v5204
        %7726 = vmatprep.subr.bf16.mxu0 %v5209
        %7727 = vmatpush1.bf16.msra.mxu0 %v5208
        %7728 = vmatprep.subr.bf16.mxu0 %v5213
        %7729 = vmatpush1.bf16.msra.mxu0 %v5212
        %7730 = vmatprep.subr.bf16.mxu0 %v5217
        %7731 = vmatpush1.bf16.msra.mxu0 %v5216
        %7732 = vmatprep.subr.bf16.mxu0 %v5221
        %7733 = vmatpush1.bf16.msra.mxu0 %v5220
        %7734 = vmatprep.subr.bf16.mxu0 %v5225
        %7735 = vmatpush1.bf16.msra.mxu0 %v5224
        %7736 = vmatprep.subr.bf16.mxu0 %v5229
        %7737 = vmatpush1.bf16.msra.mxu0 %v5228
        %7738 = vmatprep.subr.bf16.mxu0 %v5233
        %7739 = vmatpush1.bf16.msra.mxu0 %v5232
        %7740 = vmatprep.subr.bf16.mxu0 %v5237
        %7741 = vmatpush1.bf16.msra.mxu0 %v5236
        %7742 = vmatprep.subr.bf16.mxu0 %v5241
        %7743 = vmatpush1.bf16.msra.mxu0 %v5240
        %7744 = vmatprep.subr.bf16.mxu0 %v5245
        %7745 = vmatpush1.bf16.msra.mxu0 %v5244
        %7746 = vmatprep.subr.bf16.mxu0 %v5249
        %7747 = vmatpush1.bf16.msra.mxu0 %v5248
        %7748 = vmatprep.subr.bf16.mxu0 %v5253
        %7749 = vmatpush1.bf16.msra.mxu0 %v5252
        %7750 = vmatprep.subr.bf16.mxu0 %v5257
        %7751 = vmatpush1.bf16.msra.mxu0 %v5256
        %7752 = vmatprep.mubr.bf16.mxu0 %v1439
        %7753 = vmatmul.mubr.bf16.gmra.mrb[0].mxu0 %v1438
        %v7754 = vpop.f32.mrb[0].mxu0
        %v7755 = vadd.f32 %v7712, %v7754
        %v7756 = vpop.f32.mrb[0].mxu0
        %v7757 = vadd.f32 %v7714, %v7756
        %v7758 = vpop.f32.mrb[0].mxu0
        %v7759 = vadd.f32 %v7716, %v7758
        %v7760 = vpop.f32.mrb[0].mxu0
        %v7761 = vadd.f32 %v7718, %v7760
        %7762 = vdwg.mxu0
        %7763 = vmatprep.subr.bf16.mxu0 %v5261
        %7764 = vmatpush1.bf16.msra.mxu0 %v5260
        %7765 = vmatprep.subr.bf16.mxu0 %v5265
        %7766 = vmatpush1.bf16.msra.mxu0 %v5264
        %7767 = vmatprep.subr.bf16.mxu0 %v5269
        %7768 = vmatpush1.bf16.msra.mxu0 %v5268
        %7769 = vmatprep.subr.bf16.mxu0 %v5273
        %7770 = vmatpush1.bf16.msra.mxu0 %v5272
        %7771 = vmatprep.subr.bf16.mxu0 %v5277
        %7772 = vmatpush1.bf16.msra.mxu0 %v5276
        %7773 = vmatprep.subr.bf16.mxu0 %v5281
        %7774 = vmatpush1.bf16.msra.mxu0 %v5280
        %7775 = vmatprep.subr.bf16.mxu0 %v5285
        %7776 = vmatpush1.bf16.msra.mxu0 %v5284
        %7777 = vmatprep.subr.bf16.mxu0 %v5289
        %7778 = vmatpush1.bf16.msra.mxu0 %v5288
        %7779 = vmatprep.subr.bf16.mxu0 %v5293
        %7780 = vmatpush1.bf16.msra.mxu0 %v5292
        %7781 = vmatprep.subr.bf16.mxu0 %v5297
        %7782 = vmatpush1.bf16.msra.mxu0 %v5296
        %7783 = vmatprep.subr.bf16.mxu0 %v5301
        %7784 = vmatpush1.bf16.msra.mxu0 %v5300
        %7785 = vmatprep.subr.bf16.mxu0 %v5305
        %7786 = vmatpush1.bf16.msra.mxu0 %v5304
        %7787 = vmatprep.subr.bf16.mxu0 %v5309
        %7788 = vmatpush1.bf16.msra.mxu0 %v5308
        %7789 = vmatprep.subr.bf16.mxu0 %v5313
        %7790 = vmatpush1.bf16.msra.mxu0 %v5312
        %7791 = vmatprep.subr.bf16.mxu0 %v5317
        %7792 = vmatpush1.bf16.msra.mxu0 %v5316
        %7793 = vmatprep.subr.bf16.mxu0 %v5321
        %7794 = vmatpush1.bf16.msra.mxu0 %v5320
        %7795 = vmatprep.mubr.bf16.mxu0 %v1441
        %7796 = vmatmul.mubr.bf16.gmra.mrb[0].mxu0 %v1440
        %v7797 = vpop.f32.mrb[0].mxu0
        %v7798 = vadd.f32 %v7755, %v7797
        %v7799 = vpop.f32.mrb[0].mxu0
        %v7800 = vadd.f32 %v7757, %v7799
        %v7801 = vpop.f32.mrb[0].mxu0
        %v7802 = vadd.f32 %v7759, %v7801
        %v7803 = vpop.f32.mrb[0].mxu0
        %v7804 = vadd.f32 %v7761, %v7803
        %7805 = vdwg.mxu0
        %7806 = vmatprep.subr.bf16.mxu0 %v5325
        %7807 = vmatpush1.bf16.msra.mxu0 %v5324
        %7808 = vmatprep.subr.bf16.mxu0 %v5329
        %7809 = vmatpush1.bf16.msra.mxu0 %v5328
        %7810 = vmatprep.subr.bf16.mxu0 %v5333
        %7811 = vmatpush1.bf16.msra.mxu0 %v5332
        %7812 = vmatprep.subr.bf16.mxu0 %v5337
        %7813 = vmatpush1.bf16.msra.mxu0 %v5336
        %7814 = vmatprep.subr.bf16.mxu0 %v5341
        %7815 = vmatpush1.bf16.msra.mxu0 %v5340
        %7816 = vmatprep.subr.bf16.mxu0 %v5345
        %7817 = vmatpush1.bf16.msra.mxu0 %v5344
        %7818 = vmatprep.subr.bf16.mxu0 %v5349
        %7819 = vmatpush1.bf16.msra.mxu0 %v5348
        %7820 = vmatprep.subr.bf16.mxu0 %v5353
        %7821 = vmatpush1.bf16.msra.mxu0 %v5352
        %7822 = vmatprep.subr.bf16.mxu0 %v5357
        %7823 = vmatpush1.bf16.msra.mxu0 %v5356
        %7824 = vmatprep.subr.bf16.mxu0 %v5361
        %7825 = vmatpush1.bf16.msra.mxu0 %v5360
        %7826 = vmatprep.subr.bf16.mxu0 %v5365
        %7827 = vmatpush1.bf16.msra.mxu0 %v5364
        %7828 = vmatprep.subr.bf16.mxu0 %v5369
        %7829 = vmatpush1.bf16.msra.mxu0 %v5368
        %7830 = vmatprep.subr.bf16.mxu0 %v5373
        %7831 = vmatpush1.bf16.msra.mxu0 %v5372
        %7832 = vmatprep.subr.bf16.mxu0 %v5377
        %7833 = vmatpush1.bf16.msra.mxu0 %v5376
        %7834 = vmatprep.subr.bf16.mxu0 %v5381
        %7835 = vmatpush1.bf16.msra.mxu0 %v5380
        %7836 = vmatprep.subr.bf16.mxu0 %v5385
        %7837 = vmatpush1.bf16.msra.mxu0 %v5384
        %7838 = vmatprep.mubr.bf16.mxu0 %v1443
        %7839 = vmatmul.mubr.bf16.gmra.mrb[0].mxu0 %v1442
        %v7840 = vpop.f32.mrb[0].mxu0
        %v7841 = vadd.f32 %v7798, %v7840
        %v7842 = vpop.f32.mrb[0].mxu0
        %v7843 = vadd.f32 %v7800, %v7842
        %v7844 = vpop.f32.mrb[0].mxu0
        %v7845 = vadd.f32 %v7802, %v7844
        %v7846 = vpop.f32.mrb[0].mxu0
        %v7847 = vadd.f32 %v7804, %v7846
        %7848 = vdwg.mxu0
        %7849 = vmatprep.subr.bf16.mxu0 %v5389
        %7850 = vmatpush1.bf16.msra.mxu0 %v5388
        %7851 = vmatprep.subr.bf16.mxu0 %v5393
        %7852 = vmatpush1.bf16.msra.mxu0 %v5392
        %7853 = vmatprep.subr.bf16.mxu0 %v5397
        %7854 = vmatpush1.bf16.msra.mxu0 %v5396
        %7855 = vmatprep.subr.bf16.mxu0 %v5401
        %7856 = vmatpush1.bf16.msra.mxu0 %v5400
        %7857 = vmatprep.subr.bf16.mxu0 %v5405
        %7858 = vmatpush1.bf16.msra.mxu0 %v5404
        %7859 = vmatprep.subr.bf16.mxu0 %v5409
        %7860 = vmatpush1.bf16.msra.mxu0 %v5408
        %7861 = vmatprep.subr.bf16.mxu0 %v5413
        %7862 = vmatpush1.bf16.msra.mxu0 %v5412
        %7863 = vmatprep.subr.bf16.mxu0 %v5417
        %7864 = vmatpush1.bf16.msra.mxu0 %v5416
        %7865 = vmatprep.subr.bf16.mxu0 %v5421
        %7866 = vmatpush1.bf16.msra.mxu0 %v5420
        %7867 = vmatprep.subr.bf16.mxu0 %v5425
        %7868 = vmatpush1.bf16.msra.mxu0 %v5424
        %7869 = vmatprep.subr.bf16.mxu0 %v5429
        %7870 = vmatpush1.bf16.msra.mxu0 %v5428
        %7871 = vmatprep.subr.bf16.mxu0 %v5433
        %7872 = vmatpush1.bf16.msra.mxu0 %v5432
        %7873 = vmatprep.subr.bf16.mxu0 %v5437
        %7874 = vmatpush1.bf16.msra.mxu0 %v5436
        %7875 = vmatprep.subr.bf16.mxu0 %v5441
        %7876 = vmatpush1.bf16.msra.mxu0 %v5440
        %7877 = vmatprep.subr.bf16.mxu0 %v5445
        %7878 = vmatpush1.bf16.msra.mxu0 %v5444
        %7879 = vmatprep.subr.bf16.mxu0 %v5449
        %7880 = vmatpush1.bf16.msra.mxu0 %v5448
        %7881 = vmatprep.mubr.bf16.mxu0 %v1445
        %7882 = vmatmul.mubr.bf16.gmra.mrb[0].mxu0 %v1444
        %v7883 = vpop.f32.mrb[0].mxu0
        %v7884 = vadd.f32 %v7841, %v7883
        %v7885 = vpop.f32.mrb[0].mxu0
        %v7886 = vadd.f32 %v7843, %v7885
        %v7887 = vpop.f32.mrb[0].mxu0
        %v7888 = vadd.f32 %v7845, %v7887
        %v7889 = vpop.f32.mrb[0].mxu0
        %v7890 = vadd.f32 %v7847, %v7889
        %7891 = vdwg.mxu0
        %7892 = vmatprep.subr.bf16.mxu0 %v5453
        %7893 = vmatpush1.bf16.msra.mxu0 %v5452
        %7894 = vmatprep.subr.bf16.mxu0 %v5457
        %7895 = vmatpush1.bf16.msra.mxu0 %v5456
        %7896 = vmatprep.subr.bf16.mxu0 %v5461
        %7897 = vmatpush1.bf16.msra.mxu0 %v5460
        %7898 = vmatprep.subr.bf16.mxu0 %v5465
        %7899 = vmatpush1.bf16.msra.mxu0 %v5464
        %7900 = vmatprep.subr.bf16.mxu0 %v5469
        %7901 = vmatpush1.bf16.msra.mxu0 %v5468
        %7902 = vmatprep.subr.bf16.mxu0 %v5473
        %7903 = vmatpush1.bf16.msra.mxu0 %v5472
        %7904 = vmatprep.subr.bf16.mxu0 %v5477
        %7905 = vmatpush1.bf16.msra.mxu0 %v5476
        %7906 = vmatprep.subr.bf16.mxu0 %v5481
        %7907 = vmatpush1.bf16.msra.mxu0 %v5480
        %7908 = vmatprep.subr.bf16.mxu0 %v5485
        %7909 = vmatpush1.bf16.msra.mxu0 %v5484
        %7910 = vmatprep.subr.bf16.mxu0 %v5489
        %7911 = vmatpush1.bf16.msra.mxu0 %v5488
        %7912 = vmatprep.subr.bf16.mxu0 %v5493
        %7913 = vmatpush1.bf16.msra.mxu0 %v5492
        %7914 = vmatprep.subr.bf16.mxu0 %v5497
        %7915 = vmatpush1.bf16.msra.mxu0 %v5496
        %7916 = vmatprep.subr.bf16.mxu0 %v5501
        %7917 = vmatpush1.bf16.msra.mxu0 %v5500
        %7918 = vmatprep.subr.bf16.mxu0 %v5505
        %7919 = vmatpush1.bf16.msra.mxu0 %v5504
        %7920 = vmatprep.subr.bf16.mxu0 %v5509
        %7921 = vmatpush1.bf16.msra.mxu0 %v5508
        %7922 = vmatprep.subr.bf16.mxu0 %v5513
        %7923 = vmatpush1.bf16.msra.mxu0 %v5512
        %7924 = vmatprep.mubr.bf16.mxu0 %v1447
        %7925 = vmatmul.mubr.bf16.gmra.mrb[0].mxu0 %v1446
        %v7926 = vpop.f32.mrb[0].mxu0
        %v7927 = vadd.f32 %v7884, %v7926
        %v7928 = vpop.f32.mrb[0].mxu0
        %v7929 = vadd.f32 %v7886, %v7928
        %v7930 = vpop.f32.mrb[0].mxu0
        %v7931 = vadd.f32 %v7888, %v7930
        %v7932 = vpop.f32.mrb[0].mxu0
        %v7933 = vadd.f32 %v7890, %v7932
        %7934 = vdwg.mxu0
        %7935 = vmatprep.subr.bf16.mxu0 %v5517
        %7936 = vmatpush1.bf16.msra.mxu0 %v5516
        %7937 = vmatprep.subr.bf16.mxu0 %v5521
        %7938 = vmatpush1.bf16.msra.mxu0 %v5520
        %7939 = vmatprep.subr.bf16.mxu0 %v5525
        %7940 = vmatpush1.bf16.msra.mxu0 %v5524
        %7941 = vmatprep.subr.bf16.mxu0 %v5529
        %7942 = vmatpush1.bf16.msra.mxu0 %v5528
        %7943 = vmatprep.subr.bf16.mxu0 %v5533
        %7944 = vmatpush1.bf16.msra.mxu0 %v5532
        %7945 = vmatprep.subr.bf16.mxu0 %v5537
        %7946 = vmatpush1.bf16.msra.mxu0 %v5536
        %7947 = vmatprep.subr.bf16.mxu0 %v5541
        %7948 = vmatpush1.bf16.msra.mxu0 %v5540
        %7949 = vmatprep.subr.bf16.mxu0 %v5545
        %7950 = vmatpush1.bf16.msra.mxu0 %v5544
        %7951 = vmatprep.subr.bf16.mxu0 %v5549
        %7952 = vmatpush1.bf16.msra.mxu0 %v5548
        %7953 = vmatprep.subr.bf16.mxu0 %v5553
        %7954 = vmatpush1.bf16.msra.mxu0 %v5552
        %7955 = vmatprep.subr.bf16.mxu0 %v5557
        %7956 = vmatpush1.bf16.msra.mxu0 %v5556
        %7957 = vmatprep.subr.bf16.mxu0 %v5561
        %7958 = vmatpush1.bf16.msra.mxu0 %v5560
        %7959 = vmatprep.subr.bf16.mxu0 %v5565
        %7960 = vmatpush1.bf16.msra.mxu0 %v5564
        %7961 = vmatprep.subr.bf16.mxu0 %v5569
        %7962 = vmatpush1.bf16.msra.mxu0 %v5568
        %7963 = vmatprep.subr.bf16.mxu0 %v5573
        %7964 = vmatpush1.bf16.msra.mxu0 %v5572
        %7965 = vmatprep.subr.bf16.mxu0 %v5577
        %7966 = vmatpush1.bf16.msra.mxu0 %v5576
        %7967 = vmatprep.mubr.bf16.mxu0 %v1449
        %7968 = vmatmul.mubr.bf16.gmra.mrb[0].mxu0 %v1448
        %v7969 = vpop.f32.mrb[0].mxu0
        %v7970 = vadd.f32 %v7927, %v7969
        %v7971 = vpop.f32.mrb[0].mxu0
        %v7972 = vadd.f32 %v7929, %v7971
        %v7973 = vpop.f32.mrb[0].mxu0
        %v7974 = vadd.f32 %v7931, %v7973
        %v7975 = vpop.f32.mrb[0].mxu0
        %v7976 = vadd.f32 %v7933, %v7975
        %7977 = vdwg.mxu0
        %v7978 = vadd.f32 %v290, %v7282
        %v7979 = vadd.f32 %v291, %v7284
        %v7980 = vadd.f32 %v292, %v7970
        %v7981 = vadd.f32 %v293, %v7972
        %v7982 = vadd.f32 %v294, %v7286
        %v7983 = vadd.f32 %v295, %v7288
        %v7984 = vadd.f32 %v296, %v7974
        %v7985 = vadd.f32 %v297, %v7976
        %7986 = vst [vmem:[#allocation2] sm:$0xff] %v7978
        %7987 = vst [vmem:[#allocation2 + $0x8] sm:$0xff] %v7979
        %7988 = vst [vmem:[#allocation2 + $0x10] sm:$0xff] %v7980
        %7989 = vst [vmem:[#allocation2 + $0x18] sm:$0xff] %v7981
        %7990 = vst [vmem:[#allocation2 + $0x20] sm:$0xff] %v7982
        %7991 = vst [vmem:[#allocation2 + $0x28] sm:$0xff] %v7983
        %7992 = vst [vmem:[#allocation2 + $0x30] sm:$0xff] %v7984
        %7993 = vst [vmem:[#allocation2 + $0x38] sm:$0xff] %v7985
        // Predicated region
        $region45: #{mesh_to_image_forward.4} parent=31 // pred_check
          %p7994 = pneg %p241
        $region46: #{mesh_to_image_forward.4} parent=31 // pred_check_branch
          %7996 = sbr.rel (%p7994) target = $region48
        $region47: #{mesh_to_image_forward.4} parent=31 // pred_region
          %v7997 = vld [vmem:[#allocation2] sm:$0xff]
          %v7998 = vld [vmem:[#allocation2 + $0x8] sm:$0xff]
          %v7999 = vld [vmem:[#allocation2 + $0x10] sm:$0xff]
          %v8000 = vld [vmem:[#allocation2 + $0x18] sm:$0xff]
          %v8001 = vld [vmem:[#allocation2 + $0x20] sm:$0xff]
          %v8002 = vld [vmem:[#allocation2 + $0x28] sm:$0xff]
          %v8003 = vld [vmem:[#allocation2 + $0x30] sm:$0xff]
          %v8004 = vld [vmem:[#allocation2 + $0x38] sm:$0xff]
          %v8005 = vld [vmem:[%s212] sm:$0xf]
          %v8007 = vlaneseq
          %v8008 = vshrl.u32 %v8007, 7
          %v8009 = vsub.s32 0, %v8008
          %v8010 = vrot.slane %v8005, %v8009
          %v8011 = vlaneseq
          %v8012 = vshrl.u32 %v8011, 7
          %v8013 = vsub.s32 1, %v8012
          %v8014 = vrot.slane %v8005, %v8013
          %v8015 = vlaneseq
          %v8016 = vshrl.u32 %v8015, 7
          %v8017 = vsub.s32 2, %v8016
          %v8018 = vrot.slane %v8005, %v8017
          %v8019 = vlaneseq
          %v8020 = vshrl.u32 %v8019, 7
          %v8021 = vsub.s32 3, %v8020
          %v8022 = vrot.slane %v8005, %v8021
          %v8027 = vadd.f32 %v7997, %v8010
          %v8028 = vadd.f32 %v7998, %v8014
          %v8029 = vadd.f32 %v7999, %v8018
          %v8030 = vadd.f32 %v8000, %v8022
          %v8031 = vadd.f32 %v8001, %v8010
          %v8032 = vadd.f32 %v8002, %v8014
          %v8033 = vadd.f32 %v8003, %v8018
          %v8034 = vadd.f32 %v8004, %v8022
          %v8035 = vmax.f32 %v8027, 0.0
          %v8036 = vmax.f32 %v8028, 0.0
          %v8037 = vmax.f32 %v8029, 0.0
          %v8038 = vmax.f32 %v8030, 0.0
          %v8039 = vmax.f32 %v8031, 0.0
          %v8040 = vmax.f32 %v8032, 0.0
          %v8041 = vmax.f32 %v8033, 0.0
          %v8042 = vmax.f32 %v8034, 0.0
          %v8043 = vpack.c.bf16 %v8039, %v8035
          %v8044 = vpack.c.bf16 %v8040, %v8036
          %v8045 = vpack.c.bf16 %v8041, %v8037
          %v8046 = vpack.c.bf16 %v8042, %v8038
          %v8051 = vunpack.c.l.b16 %v8043
          %v8052 = vunpack.c.l.b16 %v8044
          %v8053 = vunpack.c.l.b16 %v8045
          %v8054 = vunpack.c.l.b16 %v8046
          %v8055 = vunpack.c.h.b16 %v8043
          %v8056 = vunpack.c.h.b16 %v8044
          %v8057 = vunpack.c.h.b16 %v8045
          %v8058 = vunpack.c.h.b16 %v8046
          %v8059 = vpack.c.b16 %v8052, %v8051
          %v8060 = vpack.c.b16 %v8054, %v8053
          %v8061 = vpack.c.b16 %v8056, %v8055
          %v8062 = vpack.c.b16 %v8058, %v8057
          %8067 = vst [vmem:[%s238] sm:$0xff] %v8059
          %8068 = vst [vmem:[%s238 + $0x8] sm:$0xff] %v8060
          %8069 = vst [vmem:[%s238 + $0x10] sm:$0xff] %v8061
          %8070 = vst [vmem:[%s238 + $0x18] sm:$0xff] %v8062
        $region48: #{mesh_to_image_forward.4} parent=31 // pred_fallthru
          _
        %s8071 = sand.u32 %s115, 1
        %s8072 = sand.u32 %s115, 1
        %s8073 = smul.addr %s8072, 32
        %s8074 = scalar_lea.vmem [#allocation7], %s8073
        // Predicated region
        $region49: #{mesh_to_image_forward.4} parent=31 // pred_check
          %p8075 = pneg %p125
        $region50: #{mesh_to_image_forward.4} parent=31 // pred_check_branch
          %8077 = sbr.rel (%p8075) target = $region52
        $region51: #{mesh_to_image_forward.4} parent=31 // pred_region
          %s8078 = smul.u32 4, %s24
          %s8079 = smul.addr %s8078, 4
          %s8080 = scalar_lea.vmem %s3, %s8079
          // Predicated region
          $region53: #{mesh_to_image_forward.4} parent=51 // pred_check
            _
          $region54: #{mesh_to_image_forward.4} parent=51 // pred_check_branch
            %8082 = sbr.rel (0) target = $region56
          $region55: #{mesh_to_image_forward.4} parent=51 // pred_region
            // Predicated region
            $region57: #{mesh_to_image_forward.4} parent=55 // pred_check
              _
            $region58: #{mesh_to_image_forward.4} parent=55 // pred_check_branch
              %8084 = sbr.rel (0) target = $region60
            $region59: #{mesh_to_image_forward.4} parent=55 // pred_region
              loop: start=0, step=1, limit=1
              $region61: #{mesh_to_image_forward.4} parent=59 // loop_pre_header
                _
              $region62: #{mesh_to_image_forward.4} parent=59 // loop_header
                %s8086 = sphi 0, %s8090
                %p8087 = scmp.ge.s32.totalorder %s8086, 1
                %s8091 = sphi %s8074, %s8074
                %s8092 = sphi %s8080, %s8080
              $region63: #{mesh_to_image_forward.4} parent=59 // loop_header_branch
                %8089 = sbr.rel (%p8087) target = $region67
              $region64: #{mesh_to_image_forward.4} parent=59 // loop_body
                %v8093 = vld [vmem:[%s8091] sm:$0xff]
                %8094 = vst [vmem:[%s8092] sm:$0xff] %v8093
                %v8095 = vld [vmem:[%s8091 + $0x8] sm:$0xff]
                %8096 = vst [vmem:[%s8092 + $0x8] sm:$0xff] %v8095
                %v8097 = vld [vmem:[%s8091 + $0x10] sm:$0xff]
                %8098 = vst [vmem:[%s8092 + $0x20] sm:$0xff] %v8097
                %v8099 = vld [vmem:[%s8091 + $0x18] sm:$0xff]
                %8100 = vst [vmem:[%s8092 + $0x28] sm:$0xff] %v8099
              $region65: #{mesh_to_image_forward.4} parent=59 // loop_footer
                %s8090 = sadd.s32 1, %s8086
              $region66: #{mesh_to_image_forward.4} parent=59 // loop_footer_branch
                %8085 = sbr.rel target = $region62
              $region67: #{mesh_to_image_forward.4} parent=59 // loop_exit
                _
            $region60: #{mesh_to_image_forward.4} parent=55 // pred_fallthru
              _
            // Predicated region
            $region68: #{mesh_to_image_forward.4} parent=55 // pred_check
              _
            $region69: #{mesh_to_image_forward.4} parent=55 // pred_check_branch
              %8102 = sbr.rel target = $region71
            $region70: #{mesh_to_image_forward.4} parent=55 // pred_region
              _
            $region71: #{mesh_to_image_forward.4} parent=55 // pred_fallthru
              _
          $region56: #{mesh_to_image_forward.4} parent=51 // pred_fallthru
            _
          %8103 = vnop
        $region52: #{mesh_to_image_forward.4} parent=31 // pred_fallthru
          _
      $region32: #{mesh_to_image_forward.4} parent=5 // pred_fallthru
        _
      %p8104 = scmp.le.s32.totalorder 2, %s15
      // Predicated region
      $region72: #{mesh_to_image_forward.4} parent=5 // pred_check
        %p8105 = pneg %p8104
      $region73: #{mesh_to_image_forward.4} parent=5 // pred_check_branch
        %8107 = sbr.rel (%p8105) target = $region75
      $region74: #{mesh_to_image_forward.4} parent=5 // pred_region
        %s8108 = ssub.s32 %s15, 2
        // Predicated region
        $region76: #{mesh_to_image_forward.4} parent=74 // pred_check
          %p8109 = pneg %p131
        $region77: #{mesh_to_image_forward.4} parent=74 // pred_check_branch
          %8111 = sbr.rel (%p8109) target = $region79
        $region78: #{mesh_to_image_forward.4} parent=74 // pred_region
          %s8112 = sand.u32 %s116, 1
          %s8113 = sand.u32 %s116, 1
          %s8114 = smul.addr %s8113, 32
          %s8115 = scalar_lea.vmem [#allocation7], %s8114
        $region79: #{mesh_to_image_forward.4} parent=74 // pred_fallthru
          _
      $region75: #{mesh_to_image_forward.4} parent=5 // pred_fallthru
        _
    $region6: #{mesh_to_image_forward.4} parent=1 // loop_footer
      %s19 = sadd.s32 1, %s15
    $region7: #{mesh_to_image_forward.4} parent=1 // loop_footer_branch
      %14 = sbr.rel target = $region3
    $region8: #{mesh_to_image_forward.4} parent=1 // loop_exit
      _
    %8116 = vsyncpa [#allocation4], 1
    %s8117 = scalar_lea.sflag [#allocation4], 1
    %8118 = vsyncpa %s8117, 1
    %8119 = vsyncpa [#allocation6], 1
    %s8120 = scalar_lea.sflag [#allocation6], 1
    %8121 = vsyncpa %s8120, 1

</llo_original>
